<compile_context>
chip_gen: v7x
topology: tpu7x:2x2x1
jax: 0.10.0
libtpu: 0.0.40
codegen_flags: <defaults>
</compile_context>

<pallas_src>
import functools

import jax
import jax.numpy as jnp
from jax import lax
from jax.experimental import pallas as pl
from jax.experimental.pallas import tpu as pltpu


def _resblock_mod_kernel(x1_ref, x2_ref, w_ref, b_ref, y_ref, scr_ref,
                         *, H, W, C, lead):
    Wp = W + 2
    M = H * Wp                       # rows of the flattened "output" layout
    top = lead + Wp + 1              # first interior row of padded scratch (16-aligned)
    bot = top + M                    # one past last interior row

    # Keep the scratch's zero border intact.  The interior [top, bot) is fully
    # rewritten (pad columns included) before every read, so only the borders
    # need zeroing -- and doing it every step keeps megacore batch-splitting safe.
    scr_ref[0:top, :] = jnp.zeros((top, C), scr_ref.dtype)
    scr_ref[bot:, :] = jnp.zeros((scr_ref.shape[0] - bot, C), scr_ref.dtype)

    # Column x = m % Wp of the flat layout is a real pixel iff x < W.
    col = lax.broadcasted_iota(jnp.int32, (M, 1), 0) % Wp
    valid = col < W

    tap_offs = tuple(ky * Wp + kx for ky in range(3) for kx in range(3))

    def conv(flat_bf16, base, idx):
        # im2col: 9 contiguous row slices lane-concatenated -> (M, 9*C) bf16,
        # then a single MXU matmul with f32 accumulation.
        patches = jnp.concatenate(
            [flat_bf16[base + off:base + off + M, :] for off in tap_offs],
            axis=1)
        acc = jnp.dot(patches, w_ref[idx], preferred_element_type=jnp.float32)
        return acc + b_ref[idx]                       # (M, C) f32

    def branch(x_bf16, idx_a, idx_b):
        f_1 = conv(x_bf16, 0, idx_a)
        # ReLU + zero dead columns (they are exactly the pad columns of the
        # padded scratch image), then one row-contiguous aligned store.
        inter = jnp.where(valid, jnp.maximum(f_1, 0.0), 0.0)
        scr_ref[top:bot, :] = inter.astype(scr_ref.dtype)
        return conv(scr_ref[...], lead, idx_b)

    x1 = x1_ref[0]                                    # (Lin, C) f32, zero-padded flat
    x2 = x2_ref[0]
    # relu(pad(x)) == pad(relu(x)); cast once to bf16 for the MXU operands.
    x1r = jnp.maximum(x1, 0.0).astype(jnp.bfloat16)
    x2r = jnp.maximum(x2, 0.0).astype(jnp.bfloat16)
    identity = x2[Wp + 1:Wp + 1 + M, :]               # x2 interior in flat layout (f32)

    f1_2 = branch(x1r, 0, 1)                          # conv1 -> conv2
    f2_2 = branch(x2r, 2, 3)                          # conv3 -> conv4

    y_ref[0] = (f1_2 * f2_2 + identity).astype(y_ref.dtype)


def residual_block_mod(x1_nchw, x2_nchw, params):
    """Forward pass of ResidualBlock_Mod. Inputs/outputs are NCHW float32."""
    w1, b1, w2, b2, w3, b3, w4, b4 = params
    N, C, H, W = x1_nchw.shape
    Wp = W + 2
    M = H * Wp
    Lin = (H + 4) * Wp                       # 1 top + 3 bottom zero-pad rows, flattened
    lead = (-(Wp + 1)) % 16                  # 16-aligns the scratch interior store (bf16 tile)
    s_rows = ((lead + 2 * Wp + 2 + M + 15) // 16) * 16   # covers every tap read

    def to_flat(x):                          # NCHW -> zero-padded flat NHWC (N, Lin, C)
        x = jnp.transpose(x, (0, 2, 3, 1))
        x = jnp.pad(x, ((0, 0), (1, 3), (1, 1), (0, 0)))
        return x.reshape(N, Lin, C)

    x1p = to_flat(x1_nchw)
    x2p = to_flat(x2_nchw)

    # PyTorch (Cout, Cin, 3, 3) -> im2col weight (9*Cin, Cout), stacked for 4 convs.
    def to_im2col(w):
        return jnp.transpose(w, (2, 3, 1, 0)).reshape(9 * C, C)

    w_stack = jnp.stack([to_im2col(w) for w in (w1, w2, w3, w4)]).astype(jnp.bfloat16)
    b_stack = jnp.stack([b1, b2, b3, b4]).astype(jnp.float32).reshape(4, 1, C)

    kernel = functools.partial(_resblock_mod_kernel, H=H, W=W, C=C, lead=lead)

    y_flat = pl.pallas_call(
        kernel,
        out_shape=jax.ShapeDtypeStruct((N, M, C), jnp.float32),
        grid_spec=pltpu.PrefetchScalarGridSpec(
            num_scalar_prefetch=0,
            grid=(N,),
            in_specs=[
                pl.BlockSpec((1, Lin, C), lambda n: (n, 0, 0)),
                pl.BlockSpec((1, Lin, C), lambda n: (n, 0, 0)),
                pl.BlockSpec((4, 9 * C, C), lambda n: (0, 0, 0)),
                pl.BlockSpec((4, 1, C), lambda n: (0, 0, 0)),
            ],
            out_specs=pl.BlockSpec((1, M, C), lambda n: (n, 0, 0)),
            scratch_shapes=[pltpu.VMEM((s_rows, C), jnp.bfloat16)],
        ),
        compiler_params=pltpu.CompilerParams(
            dimension_semantics=("parallel",),
        ),
    )(x1p, x2p, w_stack, b_stack)

    # Drop the two dead pad columns per row, back to NCHW.
    y_nhwc = y_flat.reshape(N, H, Wp, C)[:, :, :W, :]
    return jnp.transpose(y_nhwc, (0, 3, 1, 2))


def reference_forward(x1, x2, params):
    """Pure-JAX reference matching the PyTorch module (NCHW, f32)."""
    w1, b1, w2, b2, w3, b3, w4, b4 = params

    def conv(x, w, b):
        y = lax.conv_general_dilated(
            x, w, window_strides=(1, 1), padding=((1, 1), (1, 1)),
            dimension_numbers=("NCHW", "OIHW", "NCHW"))
        return y + b[None, :, None, None]

    relu = lambda v: jnp.maximum(v, 0.0)
    f1_2 = conv(relu(conv(relu(x1), w1, b1)), w2, b2)
    f2_2 = conv(relu(conv(relu(x2), w3, b3)), w4, b4)
    return f1_2 * f2_2 + x2


if __name__ == "__main__":
    N, C, H, W = 2, 64, 16, 16  # nf=64 (module default)

    key = jax.random.PRNGKey(0)
    keys = jax.random.split(key, 10)

    x1 = jax.random.normal(keys[0], (N, C, H, W), dtype=jnp.float32)
    x2 = jax.random.normal(keys[1], (N, C, H, W), dtype=jnp.float32)

    # Deterministic synthetic parameters (Conv2d(nf, nf, 3, 1, 1, bias=True) x4).
    def make_conv_params(kw, kb):
        w = 0.05 * jax.random.normal(kw, (C, C, 3, 3), dtype=jnp.float32)
        b = 0.01 * jax.random.normal(kb, (C,), dtype=jnp.float32)
        return w, b

    w1, b1 = make_conv_params(keys[2], keys[3])
    w2, b2 = make_conv_params(keys[4], keys[5])
    w3, b3 = make_conv_params(keys[6], keys[7])
    w4, b4 = make_conv_params(keys[8], keys[9])
    params = (w1, b1, w2, b2, w3, b3, w4, b4)

    y = jax.block_until_ready(residual_block_mod(x1, x2, params))
    y_ref = jax.block_until_ready(reference_forward(x1, x2, params))

    assert y.shape == (N, C, H, W)
    # bf16 MXU operands with f32 accumulation -> slightly looser tolerance than pure f32.
    assert jnp.allclose(y, y_ref, rtol=2e-2, atol=2e-2), (
        float(jnp.max(jnp.abs(y - y_ref))))

    print("KERNEL_OK")
</pallas_src>

<mosaic_0001>
module attributes {stable_mosaic.version = 11 : i64} {
  func.func @_resblock_mod_kernel(%arg0: i32, %arg1: memref<1x360x64xf32, #tpu.memory_space<vmem>>, %arg2: memref<1x360x64xf32, #tpu.memory_space<vmem>>, %arg3: memref<4x576x64xbf16, #tpu.memory_space<vmem>>, %arg4: memref<4x1x64xf32, #tpu.memory_space<vmem>>, %arg5: memref<1x288x64xf32, #tpu.memory_space<vmem>>, %arg6: memref<352x64xbf16, #tpu.memory_space<vmem>>) attributes {dimension_semantics = [#tpu.dimension_semantics<parallel>], iteration_bounds = array<i64: 2>, scalar_prefetch = 0 : i64, scratch_operands = 1 : i64, tpu.core_type = #tpu.core_type<tc>, window_params = [{transform_indices = @transform_0, window_bounds = array<i64: 1, 360, 64>}, {transform_indices = @transform_1, window_bounds = array<i64: 1, 360, 64>}, {pipeline_mode = #tpu.pipeline_mode<synchronous>, transform_indices = @transform_2, window_bounds = array<i64: 4, 576, 64>}, {pipeline_mode = #tpu.pipeline_mode<synchronous>, transform_indices = @transform_3, window_bounds = array<i64: 4, 1, 64>}, {transform_indices = @transform_4, window_bounds = array<i64: 1, 288, 64>}]} {
    %cst = arith.constant 0.000000e+00 : bf16
    %0 = vector.broadcast %cst : bf16 to vector<32x64xbf16>
    %c0 = arith.constant 0 : index
    %c0_0 = arith.constant 0 : index
    %1 = vector.load %arg6[%c0, %c0_0] : memref<352x64xbf16, #tpu.memory_space<vmem>>, vector<32x64xbf16>
    tpu.vector_store %arg6[%c0, %c0_0], %0 {strides = array<i32>} : memref<352x64xbf16, #tpu.memory_space<vmem>>, vector<32x64xbf16>,
    %cst_1 = arith.constant 0.000000e+00 : bf16
    %2 = vector.broadcast %cst_1 : bf16 to vector<32x64xbf16>
    %c320 = arith.constant 320 : index
    %c0_2 = arith.constant 0 : index
    %3 = vector.load %arg6[%c320, %c0_2] : memref<352x64xbf16, #tpu.memory_space<vmem>>, vector<32x64xbf16>
    tpu.vector_store %arg6[%c320, %c0_2], %2 {strides = array<i32>} : memref<352x64xbf16, #tpu.memory_space<vmem>>, vector<32x64xbf16>,
    %4 = tpu.iota {dimensions = array<i32: 0>} : vector<288x1xi32>
    %c18_i32 = arith.constant 18 : i32
    %c0_i32 = arith.constant 0 : i32
    %5 = arith.cmpi eq, %c18_i32, %c0_i32 : i32
    %c1_i32 = arith.constant 1 : i32
    %6 = arith.select %5, %c1_i32, %c18_i32 : i32
    %7 = vector.broadcast %6 : i32 to vector<288x1xi32>
    %8 = arith.remsi %4, %7 : vector<288x1xi32>
    %c0_i32_3 = arith.constant 0 : i32
    %9 = vector.broadcast %c0_i32_3 : i32 to vector<288x1xi32>
    %10 = arith.cmpi ne, %8, %9 : vector<288x1xi32>
    %c0_i32_4 = arith.constant 0 : i32
    %11 = vector.broadcast %c0_i32_4 : i32 to vector<288x1xi32>
    %12 = arith.cmpi slt, %8, %11 : vector<288x1xi32>
    %c0_i32_5 = arith.constant 0 : i32
    %13 = arith.cmpi slt, %6, %c0_i32_5 : i32
    %14 = vector.broadcast %13 : i1 to vector<288x1xi1>
    %15 = vector.broadcast %14 : vector<288x1xi1> to vector<288x1xi1>
    %16 = arith.xori %12, %15 : vector<288x1xi1>
    %17 = arith.andi %16, %10 : vector<288x1xi1>
    %18 = vector.broadcast %6 : i32 to vector<288x1xi32>
    %19 = arith.addi %8, %18 : vector<288x1xi32>
    %20 = arith.select %17, %19, %8 : vector<288x1xi1>, vector<288x1xi32>
    %c16_i32 = arith.constant 16 : i32
    %21 = vector.broadcast %c16_i32 : i32 to vector<288x1xi32>
    %22 = arith.cmpi slt, %20, %21 : vector<288x1xi32>
    %c0_6 = arith.constant 0 : index
    %c0_7 = arith.constant 0 : index
    %c0_8 = arith.constant 0 : index
    %23 = vector.load %arg1[%c0_6, %c0_7, %c0_8] : memref<1x360x64xf32, #tpu.memory_space<vmem>>, vector<1x360x64xf32>
    %24 = vector.shape_cast %23 : vector<1x360x64xf32> to vector<360x64xf32>
    %c0_9 = arith.constant 0 : index
    %c0_10 = arith.constant 0 : index
    %c0_11 = arith.constant 0 : index
    %25 = vector.load %arg2[%c0_9, %c0_10, %c0_11] : memref<1x360x64xf32, #tpu.memory_space<vmem>>, vector<1x360x64xf32>
    %26 = vector.shape_cast %25 : vector<1x360x64xf32> to vector<360x64xf32>
    %cst_12 = arith.constant 0.000000e+00 : f32
    %27 = vector.broadcast %cst_12 : f32 to vector<360x64xf32>
    %28 = arith.maximumf %24, %27 : vector<360x64xf32>
    %29 = arith.truncf %28 : vector<360x64xf32> to vector<360x64xbf16>
    %cst_13 = arith.constant 0.000000e+00 : f32
    %30 = vector.broadcast %cst_13 : f32 to vector<360x64xf32>
    %31 = arith.maximumf %26, %30 : vector<360x64xf32>
    %32 = arith.truncf %31 : vector<360x64xf32> to vector<360x64xbf16>
    %33 = vector.extract_strided_slice %26 {offsets = [19, 0], sizes = [288, 64], strides = [1, 1]} : vector<360x64xf32> to vector<288x64xf32>
    %34 = vector.extract_strided_slice %29 {offsets = [0, 0], sizes = [288, 64], strides = [1, 1]} : vector<360x64xbf16> to vector<288x64xbf16>
    %35 = vector.extract_strided_slice %29 {offsets = [1, 0], sizes = [288, 64], strides = [1, 1]} : vector<360x64xbf16> to vector<288x64xbf16>
    %36 = vector.extract_strided_slice %29 {offsets = [2, 0], sizes = [288, 64], strides = [1, 1]} : vector<360x64xbf16> to vector<288x64xbf16>
    %37 = vector.extract_strided_slice %29 {offsets = [18, 0], sizes = [288, 64], strides = [1, 1]} : vector<360x64xbf16> to vector<288x64xbf16>
    %38 = vector.extract_strided_slice %29 {offsets = [19, 0], sizes = [288, 64], strides = [1, 1]} : vector<360x64xbf16> to vector<288x64xbf16>
    %39 = vector.extract_strided_slice %29 {offsets = [20, 0], sizes = [288, 64], strides = [1, 1]} : vector<360x64xbf16> to vector<288x64xbf16>
    %40 = vector.extract_strided_slice %29 {offsets = [36, 0], sizes = [288, 64], strides = [1, 1]} : vector<360x64xbf16> to vector<288x64xbf16>
    %41 = vector.extract_strided_slice %29 {offsets = [37, 0], sizes = [288, 64], strides = [1, 1]} : vector<360x64xbf16> to vector<288x64xbf16>
    %42 = vector.extract_strided_slice %29 {offsets = [38, 0], sizes = [288, 64], strides = [1, 1]} : vector<360x64xbf16> to vector<288x64xbf16>
    %43 = tpu.concatenate %34, %35, %36, %37, %38, %39, %40, %41, %42 in 1 : vector<288x64xbf16>, vector<288x64xbf16>, vector<288x64xbf16>, vector<288x64xbf16>, vector<288x64xbf16>, vector<288x64xbf16>, vector<288x64xbf16>, vector<288x64xbf16>, vector<288x64xbf16> -> vector<288x576xbf16>
    %c0_14 = arith.constant 0 : index
    %c0_15 = arith.constant 0 : index
    %c0_16 = arith.constant 0 : index
    %44 = vector.load %arg3[%c0_14, %c0_15, %c0_16] : memref<4x576x64xbf16, #tpu.memory_space<vmem>>, vector<1x576x64xbf16>
    %45 = vector.shape_cast %44 : vector<1x576x64xbf16> to vector<576x64xbf16>
    %cst_17 = arith.constant dense<0.000000e+00> : vector<288x64xf32>
    %46 = tpu.matmul %43, %45, %cst_17 {dimension_numbers = #tpu.dot_dimension_numbers<[1], [0], [0], [1], [0, 0, 1, 1], [], []>} : vector<288x576xbf16>, vector<576x64xbf16>, vector<288x64xf32> -> vector<288x64xf32>
    %c0_18 = arith.constant 0 : index
    %c0_19 = arith.constant 0 : index
    %c0_20 = arith.constant 0 : index
    %47 = vector.load %arg4[%c0_18, %c0_19, %c0_20] : memref<4x1x64xf32, #tpu.memory_space<vmem>>, vector<1x1x64xf32>
    %48 = vector.shape_cast %47 : vector<1x1x64xf32> to vector<1x64xf32>
    %49 = vector.broadcast %48 : vector<1x64xf32> to vector<288x64xf32>
    %50 = arith.addf %46, %49 : vector<288x64xf32>
    %cst_21 = arith.constant 0.000000e+00 : f32
    %51 = vector.broadcast %cst_21 : f32 to vector<288x64xf32>
    %52 = arith.maximumf %50, %51 : vector<288x64xf32>
    %cst_22 = arith.constant 0.000000e+00 : f32
    %53 = vector.shape_cast %22 : vector<288x1xi1> to vector<288x1xi1>
    %54 = vector.broadcast %53 : vector<288x1xi1> to vector<288x64xi1>
    %55 = vector.broadcast %cst_22 : f32 to vector<288x64xf32>
    %56 = arith.select %54, %52, %55 : vector<288x64xi1>, vector<288x64xf32>
    %57 = arith.truncf %56 : vector<288x64xf32> to vector<288x64xbf16>
    %c32 = arith.constant 32 : index
    %c0_23 = arith.constant 0 : index
    %58 = vector.load %arg6[%c32, %c0_23] : memref<352x64xbf16, #tpu.memory_space<vmem>>, vector<288x64xbf16>
    tpu.vector_store %arg6[%c32, %c0_23], %57 {strides = array<i32>} : memref<352x64xbf16, #tpu.memory_space<vmem>>, vector<288x64xbf16>,
    %c0_24 = arith.constant 0 : index
    %c0_25 = arith.constant 0 : index
    %59 = vector.load %arg6[%c0_24, %c0_25] : memref<352x64xbf16, #tpu.memory_space<vmem>>, vector<352x64xbf16>
    %60 = vector.extract_strided_slice %59 {offsets = [13, 0], sizes = [288, 64], strides = [1, 1]} : vector<352x64xbf16> to vector<288x64xbf16>
    %61 = vector.extract_strided_slice %59 {offsets = [14, 0], sizes = [288, 64], strides = [1, 1]} : vector<352x64xbf16> to vector<288x64xbf16>
    %62 = vector.extract_strided_slice %59 {offsets = [15, 0], sizes = [288, 64], strides = [1, 1]} : vector<352x64xbf16> to vector<288x64xbf16>
    %63 = vector.extract_strided_slice %59 {offsets = [31, 0], sizes = [288, 64], strides = [1, 1]} : vector<352x64xbf16> to vector<288x64xbf16>
    %64 = vector.extract_strided_slice %59 {offsets = [32, 0], sizes = [288, 64], strides = [1, 1]} : vector<352x64xbf16> to vector<288x64xbf16>
    %65 = vector.extract_strided_slice %59 {offsets = [33, 0], sizes = [288, 64], strides = [1, 1]} : vector<352x64xbf16> to vector<288x64xbf16>
    %66 = vector.extract_strided_slice %59 {offsets = [49, 0], sizes = [288, 64], strides = [1, 1]} : vector<352x64xbf16> to vector<288x64xbf16>
    %67 = vector.extract_strided_slice %59 {offsets = [50, 0], sizes = [288, 64], strides = [1, 1]} : vector<352x64xbf16> to vector<288x64xbf16>
    %68 = vector.extract_strided_slice %59 {offsets = [51, 0], sizes = [288, 64], strides = [1, 1]} : vector<352x64xbf16> to vector<288x64xbf16>
    %69 = tpu.concatenate %60, %61, %62, %63, %64, %65, %66, %67, %68 in 1 : vector<288x64xbf16>, vector<288x64xbf16>, vector<288x64xbf16>, vector<288x64xbf16>, vector<288x64xbf16>, vector<288x64xbf16>, vector<288x64xbf16>, vector<288x64xbf16>, vector<288x64xbf16> -> vector<288x576xbf16>
    %c1 = arith.constant 1 : index
    %c0_26 = arith.constant 0 : index
    %c0_27 = arith.constant 0 : index
    %70 = vector.load %arg3[%c1, %c0_26, %c0_27] : memref<4x576x64xbf16, #tpu.memory_space<vmem>>, vector<1x576x64xbf16>
    %71 = vector.shape_cast %70 : vector<1x576x64xbf16> to vector<576x64xbf16>
    %cst_28 = arith.constant dense<0.000000e+00> : vector<288x64xf32>
    %72 = tpu.matmul %69, %71, %cst_28 {dimension_numbers = #tpu.dot_dimension_numbers<[1], [0], [0], [1], [0, 0, 1, 1], [], []>} : vector<288x576xbf16>, vector<576x64xbf16>, vector<288x64xf32> -> vector<288x64xf32>
    %c1_29 = arith.constant 1 : index
    %c0_30 = arith.constant 0 : index
    %c0_31 = arith.constant 0 : index
    %73 = vector.load %arg4[%c1_29, %c0_30, %c0_31] : memref<4x1x64xf32, #tpu.memory_space<vmem>>, vector<1x1x64xf32>
    %74 = vector.shape_cast %73 : vector<1x1x64xf32> to vector<1x64xf32>
    %75 = vector.broadcast %74 : vector<1x64xf32> to vector<288x64xf32>
    %76 = arith.addf %72, %75 : vector<288x64xf32>
    %77 = vector.extract_strided_slice %32 {offsets = [0, 0], sizes = [288, 64], strides = [1, 1]} : vector<360x64xbf16> to vector<288x64xbf16>
    %78 = vector.extract_strided_slice %32 {offsets = [1, 0], sizes = [288, 64], strides = [1, 1]} : vector<360x64xbf16> to vector<288x64xbf16>
    %79 = vector.extract_strided_slice %32 {offsets = [2, 0], sizes = [288, 64], strides = [1, 1]} : vector<360x64xbf16> to vector<288x64xbf16>
    %80 = vector.extract_strided_slice %32 {offsets = [18, 0], sizes = [288, 64], strides = [1, 1]} : vector<360x64xbf16> to vector<288x64xbf16>
    %81 = vector.extract_strided_slice %32 {offsets = [19, 0], sizes = [288, 64], strides = [1, 1]} : vector<360x64xbf16> to vector<288x64xbf16>
    %82 = vector.extract_strided_slice %32 {offsets = [20, 0], sizes = [288, 64], strides = [1, 1]} : vector<360x64xbf16> to vector<288x64xbf16>
    %83 = vector.extract_strided_slice %32 {offsets = [36, 0], sizes = [288, 64], strides = [1, 1]} : vector<360x64xbf16> to vector<288x64xbf16>
    %84 = vector.extract_strided_slice %32 {offsets = [37, 0], sizes = [288, 64], strides = [1, 1]} : vector<360x64xbf16> to vector<288x64xbf16>
    %85 = vector.extract_strided_slice %32 {offsets = [38, 0], sizes = [288, 64], strides = [1, 1]} : vector<360x64xbf16> to vector<288x64xbf16>
    %86 = tpu.concatenate %77, %78, %79, %80, %81, %82, %83, %84, %85 in 1 : vector<288x64xbf16>, vector<288x64xbf16>, vector<288x64xbf16>, vector<288x64xbf16>, vector<288x64xbf16>, vector<288x64xbf16>, vector<288x64xbf16>, vector<288x64xbf16>, vector<288x64xbf16> -> vector<288x576xbf16>
    %c2 = arith.constant 2 : index
    %c0_32 = arith.constant 0 : index
    %c0_33 = arith.constant 0 : index
    %87 = vector.load %arg3[%c2, %c0_32, %c0_33] : memref<4x576x64xbf16, #tpu.memory_space<vmem>>, vector<1x576x64xbf16>
    %88 = vector.shape_cast %87 : vector<1x576x64xbf16> to vector<576x64xbf16>
    %cst_34 = arith.constant dense<0.000000e+00> : vector<288x64xf32>
    %89 = tpu.matmul %86, %88, %cst_34 {dimension_numbers = #tpu.dot_dimension_numbers<[1], [0], [0], [1], [0, 0, 1, 1], [], []>} : vector<288x576xbf16>, vector<576x64xbf16>, vector<288x64xf32> -> vector<288x64xf32>
    %c2_35 = arith.constant 2 : index
    %c0_36 = arith.constant 0 : index
    %c0_37 = arith.constant 0 : index
    %90 = vector.load %arg4[%c2_35, %c0_36, %c0_37] : memref<4x1x64xf32, #tpu.memory_space<vmem>>, vector<1x1x64xf32>
    %91 = vector.shape_cast %90 : vector<1x1x64xf32> to vector<1x64xf32>
    %92 = vector.broadcast %91 : vector<1x64xf32> to vector<288x64xf32>
    %93 = arith.addf %89, %92 : vector<288x64xf32>
    %cst_38 = arith.constant 0.000000e+00 : f32
    %94 = vector.broadcast %cst_38 : f32 to vector<288x64xf32>
    %95 = arith.maximumf %93, %94 : vector<288x64xf32>
    %cst_39 = arith.constant 0.000000e+00 : f32
    %96 = vector.shape_cast %22 : vector<288x1xi1> to vector<288x1xi1>
    %97 = vector.broadcast %96 : vector<288x1xi1> to vector<288x64xi1>
    %98 = vector.broadcast %cst_39 : f32 to vector<288x64xf32>
    %99 = arith.select %97, %95, %98 : vector<288x64xi1>, vector<288x64xf32>
    %100 = arith.truncf %99 : vector<288x64xf32> to vector<288x64xbf16>
    %c32_40 = arith.constant 32 : index
    %c0_41 = arith.constant 0 : index
    %101 = vector.load %arg6[%c32_40, %c0_41] : memref<352x64xbf16, #tpu.memory_space<vmem>>, vector<288x64xbf16>
    tpu.vector_store %arg6[%c32_40, %c0_41], %100 {strides = array<i32>} : memref<352x64xbf16, #tpu.memory_space<vmem>>, vector<288x64xbf16>,
    %c0_42 = arith.constant 0 : index
    %c0_43 = arith.constant 0 : index
    %102 = vector.load %arg6[%c0_42, %c0_43] : memref<352x64xbf16, #tpu.memory_space<vmem>>, vector<352x64xbf16>
    %103 = vector.extract_strided_slice %102 {offsets = [13, 0], sizes = [288, 64], strides = [1, 1]} : vector<352x64xbf16> to vector<288x64xbf16>
    %104 = vector.extract_strided_slice %102 {offsets = [14, 0], sizes = [288, 64], strides = [1, 1]} : vector<352x64xbf16> to vector<288x64xbf16>
    %105 = vector.extract_strided_slice %102 {offsets = [15, 0], sizes = [288, 64], strides = [1, 1]} : vector<352x64xbf16> to vector<288x64xbf16>
    %106 = vector.extract_strided_slice %102 {offsets = [31, 0], sizes = [288, 64], strides = [1, 1]} : vector<352x64xbf16> to vector<288x64xbf16>
    %107 = vector.extract_strided_slice %102 {offsets = [32, 0], sizes = [288, 64], strides = [1, 1]} : vector<352x64xbf16> to vector<288x64xbf16>
    %108 = vector.extract_strided_slice %102 {offsets = [33, 0], sizes = [288, 64], strides = [1, 1]} : vector<352x64xbf16> to vector<288x64xbf16>
    %109 = vector.extract_strided_slice %102 {offsets = [49, 0], sizes = [288, 64], strides = [1, 1]} : vector<352x64xbf16> to vector<288x64xbf16>
    %110 = vector.extract_strided_slice %102 {offsets = [50, 0], sizes = [288, 64], strides = [1, 1]} : vector<352x64xbf16> to vector<288x64xbf16>
    %111 = vector.extract_strided_slice %102 {offsets = [51, 0], sizes = [288, 64], strides = [1, 1]} : vector<352x64xbf16> to vector<288x64xbf16>
    %112 = tpu.concatenate %103, %104, %105, %106, %107, %108, %109, %110, %111 in 1 : vector<288x64xbf16>, vector<288x64xbf16>, vector<288x64xbf16>, vector<288x64xbf16>, vector<288x64xbf16>, vector<288x64xbf16>, vector<288x64xbf16>, vector<288x64xbf16>, vector<288x64xbf16> -> vector<288x576xbf16>
    %c3 = arith.constant 3 : index
    %c0_44 = arith.constant 0 : index
    %c0_45 = arith.constant 0 : index
    %113 = vector.load %arg3[%c3, %c0_44, %c0_45] : memref<4x576x64xbf16, #tpu.memory_space<vmem>>, vector<1x576x64xbf16>
    %114 = vector.shape_cast %113 : vector<1x576x64xbf16> to vector<576x64xbf16>
    %cst_46 = arith.constant dense<0.000000e+00> : vector<288x64xf32>
    %115 = tpu.matmul %112, %114, %cst_46 {dimension_numbers = #tpu.dot_dimension_numbers<[1], [0], [0], [1], [0, 0, 1, 1], [], []>} : vector<288x576xbf16>, vector<576x64xbf16>, vector<288x64xf32> -> vector<288x64xf32>
    %c3_47 = arith.constant 3 : index
    %c0_48 = arith.constant 0 : index
    %c0_49 = arith.constant 0 : index
    %116 = vector.load %arg4[%c3_47, %c0_48, %c0_49] : memref<4x1x64xf32, #tpu.memory_space<vmem>>, vector<1x1x64xf32>
    %117 = vector.shape_cast %116 : vector<1x1x64xf32> to vector<1x64xf32>
    %118 = vector.broadcast %117 : vector<1x64xf32> to vector<288x64xf32>
    %119 = arith.addf %115, %118 : vector<288x64xf32>
    %120 = arith.mulf %76, %119 : vector<288x64xf32>
    %121 = arith.addf %120, %33 : vector<288x64xf32>
    %c0_50 = arith.constant 0 : index
    %c0_51 = arith.constant 0 : index
    %c0_52 = arith.constant 0 : index
    %122 = vector.load %arg5[%c0_50, %c0_51, %c0_52] : memref<1x288x64xf32, #tpu.memory_space<vmem>>, vector<1x288x64xf32>
    %123 = vector.shape_cast %122 : vector<1x288x64xf32> to vector<288x64xf32>
    %124 = vector.shape_cast %121 : vector<288x64xf32> to vector<1x288x64xf32>
    tpu.vector_store %arg5[%c0_50, %c0_51, %c0_52], %124 {strides = array<i32>} : memref<1x288x64xf32, #tpu.memory_space<vmem>>, vector<1x288x64xf32>,
    return
  }
  func.func @transform_0(%arg0: i32) -> (i32, i32, i32) {
    %c0_i32 = arith.constant 0 : i32
    %c0_i32_0 = arith.constant 0 : i32
    %c0_i32_1 = arith.constant 0 : i32
    return %arg0, %c0_i32, %c0_i32_0 : i32, i32, i32
  }
  func.func @transform_1(%arg0: i32) -> (i32, i32, i32) {
    %c0_i32 = arith.constant 0 : i32
    %c0_i32_0 = arith.constant 0 : i32
    %c0_i32_1 = arith.constant 0 : i32
    return %arg0, %c0_i32, %c0_i32_0 : i32, i32, i32
  }
  func.func @transform_2(%arg0: i32) -> (i32, i32, i32) {
    %c0_i32 = arith.constant 0 : i32
    %c0_i32_0 = arith.constant 0 : i32
    %c0_i32_1 = arith.constant 0 : i32
    %c0_i32_2 = arith.constant 0 : i32
    return %c0_i32, %c0_i32_0, %c0_i32_1 : i32, i32, i32
  }
  func.func @transform_3(%arg0: i32) -> (i32, i32, i32) {
    %c0_i32 = arith.constant 0 : i32
    %c0_i32_0 = arith.constant 0 : i32
    %c0_i32_1 = arith.constant 0 : i32
    %c0_i32_2 = arith.constant 0 : i32
    return %c0_i32, %c0_i32_0, %c0_i32_1 : i32, i32, i32
  }
  func.func @transform_4(%arg0: i32) -> (i32, i32, i32) {
    %c0_i32 = arith.constant 0 : i32
    %c0_i32_0 = arith.constant 0 : i32
    %c0_i32_1 = arith.constant 0 : i32
    return %arg0, %c0_i32, %c0_i32_0 : i32, i32, i32
  }
}

</mosaic_0001>

<llo_original>
// kernel: tpu_custom_call.1
$region0: #{tpu_custom_call.1}
  #allocation0 [shape = 'u32[]', space=smem, size = 0x4, offset = 0x4, fixed_abs, tag = 'smem constant byte address 0x4 - core index']
  #allocation1 [shape = 'u32[144,128]{1,0:T(1,128)}', space=vmem, size = 0x12000, scoped, tag = 'internal scratch']
  #allocation2 [shape = 'bf16[352,64]{1,0:T(16,128)(2,1)}', space=vmem, size = 0x16000, scoped, tag = 'scratch operand']
  %s0 = inlined_call_operand.vmem [shape: f32[2,360,64], index: 0, kind: input, shape index: {}]
  %s1 = inlined_call_operand.vmem [shape: f32[2,360,64], index: 1, kind: input, shape index: {}]
  %s2 = inlined_call_operand.vmem [shape: bf16[4,576,64], index: 2, kind: input, shape index: {}]
  %s3 = inlined_call_operand.vmem [shape: f32[4,1,64], index: 3, kind: input, shape index: {}]
  %s4 = inlined_call_operand.vmem [shape: f32[2,288,64], index: 4, kind: output, shape index: {}]
  %s5 = sld [smem:[#allocation0]]
  $region49: #{tpu_custom_call.1} parent=0
    _
  %s7 = ssub.s32 1, %s5
  %s8 = scalar_select 0, %s7, %s5
  loop: start=0, step=1, limit=4
  $region2: #{tpu_custom_call.1} parent=0 // loop_pre_header
    _
  $region3: #{tpu_custom_call.1} parent=0 // loop_header
    %s10 = sphi 0, %s14
    %p11 = scmp.ge.s32.totalorder %s10, 4
    %s20 = sphi 0, %s22
    %s23 = sphi 0, %s20
    %s24 = sphi 0, %s23
    %s40 = sphi 0, %s24
    %s46 = sphi 0, %s48
    %s49 = sphi 0, %s46
    %s50 = sphi 0, %s49
    %s66 = sphi 0, %s50
    %s70 = sphi 0, %s70
    %s72 = sphi 0, %s70
    %s73 = sphi 0, %s72
    %s87 = sphi 0, %s73
    %s91 = sphi 0, %s91
    %s93 = sphi 0, %s91
    %s94 = sphi 0, %s93
    %s108 = sphi 0, %s94
    %s114 = sphi 0, %s116
    %s117 = sphi 0, %s114
    %s118 = sphi 0, %s117
    %s134 = sphi 0, %s118
  $region4: #{tpu_custom_call.1} parent=0 // loop_header_branch
    %13 = sbr.rel (%p11) target = $region8
  $region5: #{tpu_custom_call.1} parent=0 // loop_body
    %s15 = ssub.s32 %s10, 1
    %s16 = ssub.s32 %s10, 2
    %s17 = sadd.s32 %s10, 1
    %s18 = ssub.s32 %s10, %s17
    %p19 = scmp.eq.s32.totalorder %s18, 0
    %s21 = sadd.s32 %s20, 1
    %s22 = scalar_select %p19, %s20, %s21
    %p25 = pneg %p19
    %p26 = scmp.eq.s32.totalorder %s10, 1
    %p27 = por %p25, %p26
    %p28 = scmp.ne.s32.totalorder %s20, %s23
    %p29 = scmp.eq.s32.totalorder %s10, 0
    %p30 = por %p28, %p29
    %p31 = scmp.ne.s32.totalorder %s20, %s23
    %p32 = scmp.eq.s32.totalorder %s15, 1
    %p33 = por %p31, %p32
    %p34 = scmp.ne.s32.totalorder %s23, %s24
    %p35 = scmp.eq.s32.totalorder %s15, 0
    %p36 = por %p34, %p35
    %p37 = scmp.ne.s32.totalorder %s23, %s24
    %p38 = scmp.eq.s32.totalorder %s16, 1
    %p39 = por %p37, %p38
    %p41 = scmp.ne.s32.totalorder %s24, %s40
    %p42 = scmp.eq.s32.totalorder %s16, 0
    %p43 = por %p41, %p42
    %s44 = ssub.s32 %s10, %s17
    %p45 = scmp.eq.s32.totalorder %s44, 0
    %s47 = sadd.s32 %s46, 1
    %s48 = scalar_select %p45, %s46, %s47
    %p51 = pneg %p45
    %p52 = scmp.eq.s32.totalorder %s10, 1
    %p53 = por %p51, %p52
    %p54 = scmp.ne.s32.totalorder %s46, %s49
    %p55 = scmp.eq.s32.totalorder %s10, 0
    %p56 = por %p54, %p55
    %p57 = scmp.ne.s32.totalorder %s46, %s49
    %p58 = scmp.eq.s32.totalorder %s15, 1
    %p59 = por %p57, %p58
    %p60 = scmp.ne.s32.totalorder %s49, %s50
    %p61 = scmp.eq.s32.totalorder %s15, 0
    %p62 = por %p60, %p61
    %p63 = scmp.ne.s32.totalorder %s49, %s50
    %p64 = scmp.eq.s32.totalorder %s16, 1
    %p65 = por %p63, %p64
    %p67 = scmp.ne.s32.totalorder %s50, %s66
    %p68 = scmp.eq.s32.totalorder %s16, 0
    %p69 = por %p67, %p68
    %s71 = sadd.s32 %s70, 1
    %p74 = scmp.eq.s32.totalorder %s10, 1
    %p75 = scmp.ne.s32.totalorder %s70, %s72
    %p76 = scmp.eq.s32.totalorder %s10, 0
    %p77 = por %p75, %p76
    %p78 = scmp.ne.s32.totalorder %s70, %s72
    %p79 = scmp.eq.s32.totalorder %s15, 1
    %p80 = por %p78, %p79
    %p81 = scmp.ne.s32.totalorder %s72, %s73
    %p82 = scmp.eq.s32.totalorder %s15, 0
    %p83 = por %p81, %p82
    %p84 = scmp.ne.s32.totalorder %s72, %s73
    %p85 = scmp.eq.s32.totalorder %s16, 1
    %p86 = por %p84, %p85
    %p88 = scmp.ne.s32.totalorder %s73, %s87
    %p89 = scmp.eq.s32.totalorder %s16, 0
    %p90 = por %p88, %p89
    %s92 = sadd.s32 %s91, 1
    %p95 = scmp.eq.s32.totalorder %s10, 1
    %p96 = scmp.ne.s32.totalorder %s91, %s93
    %p97 = scmp.eq.s32.totalorder %s10, 0
    %p98 = por %p96, %p97
    %p99 = scmp.ne.s32.totalorder %s91, %s93
    %p100 = scmp.eq.s32.totalorder %s15, 1
    %p101 = por %p99, %p100
    %p102 = scmp.ne.s32.totalorder %s93, %s94
    %p103 = scmp.eq.s32.totalorder %s15, 0
    %p104 = por %p102, %p103
    %p105 = scmp.ne.s32.totalorder %s93, %s94
    %p106 = scmp.eq.s32.totalorder %s16, 1
    %p107 = por %p105, %p106
    %p109 = scmp.ne.s32.totalorder %s94, %s108
    %p110 = scmp.eq.s32.totalorder %s16, 0
    %p111 = por %p109, %p110
    %s112 = ssub.s32 %s10, %s17
    %p113 = scmp.eq.s32.totalorder %s112, 0
    %s115 = sadd.s32 %s114, 1
    %s116 = scalar_select %p113, %s114, %s115
    %p119 = pneg %p113
    %p120 = scmp.eq.s32.totalorder %s10, 1
    %p121 = por %p119, %p120
    %p122 = scmp.ne.s32.totalorder %s114, %s117
    %p123 = scmp.eq.s32.totalorder %s10, 0
    %p124 = por %p122, %p123
    %p125 = scmp.ne.s32.totalorder %s114, %s117
    %p126 = scmp.eq.s32.totalorder %s15, 1
    %p127 = por %p125, %p126
    %p128 = scmp.ne.s32.totalorder %s117, %s118
    %p129 = scmp.eq.s32.totalorder %s15, 0
    %p130 = por %p128, %p129
    %p131 = scmp.ne.s32.totalorder %s117, %s118
    %p132 = scmp.eq.s32.totalorder %s16, 1
    %p133 = por %p131, %p132
    %p135 = scmp.ne.s32.totalorder %s118, %s134
    %p136 = scmp.eq.s32.totalorder %s16, 0
    %p137 = por %p135, %p136
    %p138 = scmp.le.s32.totalorder 1, %s10
    %p139 = scmp.lt.s32.totalorder %s10, 3
    %p140 = pnand %p138, %p139
    %p141 = pneg %p140
    // Predicated region
    $region9: #{tpu_custom_call.1} parent=5 // pred_check
      _
    $region10: #{tpu_custom_call.1} parent=5 // pred_check_branch
      %143 = sbr.rel (%p140) target = $region12
    $region11: #{tpu_custom_call.1} parent=5 // pred_region
      %s144 = ssub.s32 %s10, 1
      // Predicated region
      $region13: #{tpu_custom_call.1} parent=11 // pred_check
        %p145 = pneg %p83
      $region14: #{tpu_custom_call.1} parent=11 // pred_check_branch
        %147 = sbr.rel (%p145) target = $region16
      $region15: #{tpu_custom_call.1} parent=11 // pred_region
        _
      $region16: #{tpu_custom_call.1} parent=11 // pred_fallthru
        _
      // Predicated region
      $region17: #{tpu_custom_call.1} parent=11 // pred_check
        %p148 = pneg %p104
      $region18: #{tpu_custom_call.1} parent=11 // pred_check_branch
        %150 = sbr.rel (%p148) target = $region20
      $region19: #{tpu_custom_call.1} parent=11 // pred_region
        _
      $region20: #{tpu_custom_call.1} parent=11 // pred_fallthru
        _
    $region12: #{tpu_custom_call.1} parent=5 // pred_fallthru
      _
    %p151 = scmp.lt.s32.totalorder %s10, 2
    // Predicated region
    $region21: #{tpu_custom_call.1} parent=5 // pred_check
      %p152 = pneg %p151
    $region22: #{tpu_custom_call.1} parent=5 // pred_check_branch
      %154 = sbr.rel (%p152) target = $region24
    $region23: #{tpu_custom_call.1} parent=5 // pred_region
      // Predicated region
      $region25: #{tpu_custom_call.1} parent=23 // pred_check
        %p155 = pneg %p30
      $region26: #{tpu_custom_call.1} parent=23 // pred_check_branch
        %157 = sbr.rel (%p155) target = $region28
      $region27: #{tpu_custom_call.1} parent=23 // pred_region
        %p158 = scmp.lt.s32.totalorder %s10, 1
        %s159 = scalar_select %p158, %s10, 1
        %s160 = smul.addr %s159, 45
        %s161 = smul.addr %s160, 8
        %s162 = scalar_lea.vmem %s0, %s161
      $region28: #{tpu_custom_call.1} parent=23 // pred_fallthru
        _
      // Predicated region
      $region29: #{tpu_custom_call.1} parent=23 // pred_check
        %p163 = pneg %p56
      $region30: #{tpu_custom_call.1} parent=23 // pred_check_branch
        %165 = sbr.rel (%p163) target = $region32
      $region31: #{tpu_custom_call.1} parent=23 // pred_region
        %p166 = scmp.lt.s32.totalorder %s10, 1
        %s167 = scalar_select %p166, %s10, 1
        %s168 = smul.addr %s167, 45
        %s169 = smul.addr %s168, 8
        %s170 = scalar_lea.vmem %s1, %s169
      $region32: #{tpu_custom_call.1} parent=23 // pred_fallthru
        _
    $region24: #{tpu_custom_call.1} parent=5 // pred_fallthru
      _
    %p171 = scmp.le.s32.totalorder 1, %s10
    %p172 = scmp.lt.s32.totalorder %s10, 3
    %p173 = pnand %p171, %p172
    %p174 = pneg %p173
    // Predicated region
    $region33: #{tpu_custom_call.1} parent=5 // pred_check
      _
    $region34: #{tpu_custom_call.1} parent=5 // pred_check_branch
      %176 = sbr.rel (%p173) target = $region36
    $region35: #{tpu_custom_call.1} parent=5 // pred_region
      %s177 = ssub.s32 %s10, 1
      %p178 = scmp.lt.s32.totalorder %s15, 1
      %s179 = scalar_select %p178, %s15, 1
      %s180 = smul.addr %s179, 45
      %s181 = smul.addr %s180, 8
      %s182 = scalar_lea.vmem %s0, %s181
      %p183 = pneg %p36
      %p184 = pneg %p33
      %p185 = scmp.lt.s32.totalorder %s15, 1
      %s186 = scalar_select %p185, %s15, 1
      %s187 = smul.addr %s186, 45
      %s188 = smul.addr %s187, 8
      %s189 = scalar_lea.vmem %s1, %s188
      %p190 = pneg %p62
      %p191 = pneg %p59
      %p192 = pneg %p83
      %p193 = pneg %p80
      %p194 = pneg %p104
      %p195 = pneg %p101
      %p196 = pneg %p130
      %p197 = pneg %p127
      %p198 = scmp.lt.s32.totalorder %s15, 1
      %s199 = scalar_select %p198, %s15, 1
      %s200 = smul.addr %s199, 36
      %s201 = smul.addr %s200, 8
      %s202 = scalar_lea.vmem %s4, %s201
      %p203 = scmp.lt.s32.totalorder %s15, 1
      %s204 = scalar_select %p203, %s15, 1
      %s205 = smul.addr %s204, 45
      %s206 = smul.addr %s205, 8
      %s207 = scalar_lea.vmem %s0, %s206
      %p208 = scmp.lt.s32.totalorder %s15, 1
      %s209 = scalar_select %p208, %s15, 1
      %s210 = smul.addr %s209, 45
      %s211 = smul.addr %s210, 8
      %s212 = scalar_lea.vmem %s1, %s211
      %p213 = scmp.lt.s32.totalorder %s15, 1
      %s214 = scalar_select %p213, %s15, 1
      %s215 = smul.addr %s214, 36
      %s216 = smul.addr %s215, 8
      %s217 = scalar_lea.vmem %s4, %s216
      %vm219 = vcmask 523264
      %220 = vst.msk [vmem:[#allocation2] sm:$0xff] %vm219, 0
      %221 = vst.msk [vmem:[#allocation2 + $0x8] sm:$0xff] %vm219, 0
      %222 = vst.msk [vmem:[#allocation2 + $0xa0] sm:$0xff] %vm219, 0
      %223 = vst.msk [vmem:[#allocation2 + $0xa8] sm:$0xff] %vm219, 0
      %v224 = vlaneseq
      %v225 = vshrl.u32 %v224, 7
      %v226 = vadd.s32 %v225, 8
      %v227 = vadd.s32 %v225, 16
      %v228 = vadd.s32 %v225, 24
      %v229 = vadd.s32 %v225, 32
      %v230 = vadd.s32 %v225, 40
      %v231 = vadd.s32 %v225, 48
      %v232 = vadd.s32 %v225, 56
      %v233 = vadd.s32 %v225, 64
      %v234 = vadd.s32 %v225, 72
      %v235 = vadd.s32 %v225, 80
      %v236 = vadd.s32 %v225, 88
      %v237 = vadd.s32 %v225, 96
      %v238 = vadd.s32 %v225, 104
      %v239 = vadd.s32 %v225, 112
      %v240 = vadd.s32 %v225, 120
      %v241 = vadd.s32 %v225, 128
      %v242 = vadd.s32 %v225, 136
      %v243 = vadd.s32 %v225, 144
      %v244 = vadd.s32 %v225, 152
      %v245 = vadd.s32 %v225, 160
      %v246 = vadd.s32 %v225, 168
      %v247 = vadd.s32 %v225, 176
      %v248 = vadd.s32 %v225, 184
      %v249 = vadd.s32 %v225, 192
      %v250 = vadd.s32 %v225, 200
      %v251 = vadd.s32 %v225, 208
      %v252 = vadd.s32 %v225, 216
      %v253 = vadd.s32 %v225, 224
      %v254 = vadd.s32 %v225, 232
      %v255 = vadd.s32 %v225, 240
      %v256 = vadd.s32 %v225, 248
      %v257 = vadd.s32 %v225, 256
      %v258 = vadd.s32 %v225, 264
      %v259 = vadd.s32 %v225, 272
      %v260 = vadd.s32 %v225, 280
      %vm261 = vcmp.lt.s32.totalorder %v225, 0
      %v262 = vsub.s32 0, %v225
      %v263 = vsel %vm261, %v262, %v225
      %v264 = vmul.u32.u64.compose %v263, 3817748708
      %v265 = vextract.low.u32 %v264
      %v266 = vextract.high.u32 %v264
      %v267 = vshrl.u32 %v266, 4
      %v268 = vmul.u32 %v267, 18
      %v269 = vsub.s32 %v263, %v268
      %v270 = vsub.s32 0, %v269
      %v271 = vsel %vm261, %v270, %v269
      %vm272 = vcmp.lt.s32.totalorder %v226, 0
      %v273 = vsub.s32 0, %v226
      %v274 = vsel %vm272, %v273, %v226
      %v275 = vmul.u32.u64.compose %v274, 3817748708
      %v276 = vextract.low.u32 %v275
      %v277 = vextract.high.u32 %v275
      %v278 = vshrl.u32 %v277, 4
      %v279 = vmul.u32 %v278, 18
      %v280 = vsub.s32 %v274, %v279
      %v281 = vsub.s32 0, %v280
      %v282 = vsel %vm272, %v281, %v280
      %vm283 = vcmp.lt.s32.totalorder %v227, 0
      %v284 = vsub.s32 0, %v227
      %v285 = vsel %vm283, %v284, %v227
      %v286 = vmul.u32.u64.compose %v285, 3817748708
      %v287 = vextract.low.u32 %v286
      %v288 = vextract.high.u32 %v286
      %v289 = vshrl.u32 %v288, 4
      %v290 = vmul.u32 %v289, 18
      %v291 = vsub.s32 %v285, %v290
      %v292 = vsub.s32 0, %v291
      %v293 = vsel %vm283, %v292, %v291
      %vm294 = vcmp.lt.s32.totalorder %v228, 0
      %v295 = vsub.s32 0, %v228
      %v296 = vsel %vm294, %v295, %v228
      %v297 = vmul.u32.u64.compose %v296, 3817748708
      %v298 = vextract.low.u32 %v297
      %v299 = vextract.high.u32 %v297
      %v300 = vshrl.u32 %v299, 4
      %v301 = vmul.u32 %v300, 18
      %v302 = vsub.s32 %v296, %v301
      %v303 = vsub.s32 0, %v302
      %v304 = vsel %vm294, %v303, %v302
      %vm305 = vcmp.lt.s32.totalorder %v229, 0
      %v306 = vsub.s32 0, %v229
      %v307 = vsel %vm305, %v306, %v229
      %v308 = vmul.u32.u64.compose %v307, 3817748708
      %v309 = vextract.low.u32 %v308
      %v310 = vextract.high.u32 %v308
      %v311 = vshrl.u32 %v310, 4
      %v312 = vmul.u32 %v311, 18
      %v313 = vsub.s32 %v307, %v312
      %v314 = vsub.s32 0, %v313
      %v315 = vsel %vm305, %v314, %v313
      %vm316 = vcmp.lt.s32.totalorder %v230, 0
      %v317 = vsub.s32 0, %v230
      %v318 = vsel %vm316, %v317, %v230
      %v319 = vmul.u32.u64.compose %v318, 3817748708
      %v320 = vextract.low.u32 %v319
      %v321 = vextract.high.u32 %v319
      %v322 = vshrl.u32 %v321, 4
      %v323 = vmul.u32 %v322, 18
      %v324 = vsub.s32 %v318, %v323
      %v325 = vsub.s32 0, %v324
      %v326 = vsel %vm316, %v325, %v324
      %vm327 = vcmp.lt.s32.totalorder %v231, 0
      %v328 = vsub.s32 0, %v231
      %v329 = vsel %vm327, %v328, %v231
      %v330 = vmul.u32.u64.compose %v329, 3817748708
      %v331 = vextract.low.u32 %v330
      %v332 = vextract.high.u32 %v330
      %v333 = vshrl.u32 %v332, 4
      %v334 = vmul.u32 %v333, 18
      %v335 = vsub.s32 %v329, %v334
      %v336 = vsub.s32 0, %v335
      %v337 = vsel %vm327, %v336, %v335
      %vm338 = vcmp.lt.s32.totalorder %v232, 0
      %v339 = vsub.s32 0, %v232
      %v340 = vsel %vm338, %v339, %v232
      %v341 = vmul.u32.u64.compose %v340, 3817748708
      %v342 = vextract.low.u32 %v341
      %v343 = vextract.high.u32 %v341
      %v344 = vshrl.u32 %v343, 4
      %v345 = vmul.u32 %v344, 18
      %v346 = vsub.s32 %v340, %v345
      %v347 = vsub.s32 0, %v346
      %v348 = vsel %vm338, %v347, %v346
      %vm349 = vcmp.lt.s32.totalorder %v233, 0
      %v350 = vsub.s32 0, %v233
      %v351 = vsel %vm349, %v350, %v233
      %v352 = vmul.u32.u64.compose %v351, 3817748708
      %v353 = vextract.low.u32 %v352
      %v354 = vextract.high.u32 %v352
      %v355 = vshrl.u32 %v354, 4
      %v356 = vmul.u32 %v355, 18
      %v357 = vsub.s32 %v351, %v356
      %v358 = vsub.s32 0, %v357
      %v359 = vsel %vm349, %v358, %v357
      %vm360 = vcmp.lt.s32.totalorder %v234, 0
      %v361 = vsub.s32 0, %v234
      %v362 = vsel %vm360, %v361, %v234
      %v363 = vmul.u32.u64.compose %v362, 3817748708
      %v364 = vextract.low.u32 %v363
      %v365 = vextract.high.u32 %v363
      %v366 = vshrl.u32 %v365, 4
      %v367 = vmul.u32 %v366, 18
      %v368 = vsub.s32 %v362, %v367
      %v369 = vsub.s32 0, %v368
      %v370 = vsel %vm360, %v369, %v368
      %vm371 = vcmp.lt.s32.totalorder %v235, 0
      %v372 = vsub.s32 0, %v235
      %v373 = vsel %vm371, %v372, %v235
      %v374 = vmul.u32.u64.compose %v373, 3817748708
      %v375 = vextract.low.u32 %v374
      %v376 = vextract.high.u32 %v374
      %v377 = vshrl.u32 %v376, 4
      %v378 = vmul.u32 %v377, 18
      %v379 = vsub.s32 %v373, %v378
      %v380 = vsub.s32 0, %v379
      %v381 = vsel %vm371, %v380, %v379
      %vm382 = vcmp.lt.s32.totalorder %v236, 0
      %v383 = vsub.s32 0, %v236
      %v384 = vsel %vm382, %v383, %v236
      %v385 = vmul.u32.u64.compose %v384, 3817748708
      %v386 = vextract.low.u32 %v385
      %v387 = vextract.high.u32 %v385
      %v388 = vshrl.u32 %v387, 4
      %v389 = vmul.u32 %v388, 18
      %v390 = vsub.s32 %v384, %v389
      %v391 = vsub.s32 0, %v390
      %v392 = vsel %vm382, %v391, %v390
      %vm393 = vcmp.lt.s32.totalorder %v237, 0
      %v394 = vsub.s32 0, %v237
      %v395 = vsel %vm393, %v394, %v237
      %v396 = vmul.u32.u64.compose %v395, 3817748708
      %v397 = vextract.low.u32 %v396
      %v398 = vextract.high.u32 %v396
      %v399 = vshrl.u32 %v398, 4
      %v400 = vmul.u32 %v399, 18
      %v401 = vsub.s32 %v395, %v400
      %v402 = vsub.s32 0, %v401
      %v403 = vsel %vm393, %v402, %v401
      %vm404 = vcmp.lt.s32.totalorder %v238, 0
      %v405 = vsub.s32 0, %v238
      %v406 = vsel %vm404, %v405, %v238
      %v407 = vmul.u32.u64.compose %v406, 3817748708
      %v408 = vextract.low.u32 %v407
      %v409 = vextract.high.u32 %v407
      %v410 = vshrl.u32 %v409, 4
      %v411 = vmul.u32 %v410, 18
      %v412 = vsub.s32 %v406, %v411
      %v413 = vsub.s32 0, %v412
      %v414 = vsel %vm404, %v413, %v412
      %vm415 = vcmp.lt.s32.totalorder %v239, 0
      %v416 = vsub.s32 0, %v239
      %v417 = vsel %vm415, %v416, %v239
      %v418 = vmul.u32.u64.compose %v417, 3817748708
      %v419 = vextract.low.u32 %v418
      %v420 = vextract.high.u32 %v418
      %v421 = vshrl.u32 %v420, 4
      %v422 = vmul.u32 %v421, 18
      %v423 = vsub.s32 %v417, %v422
      %v424 = vsub.s32 0, %v423
      %v425 = vsel %vm415, %v424, %v423
      %vm426 = vcmp.lt.s32.totalorder %v240, 0
      %v427 = vsub.s32 0, %v240
      %v428 = vsel %vm426, %v427, %v240
      %v429 = vmul.u32.u64.compose %v428, 3817748708
      %v430 = vextract.low.u32 %v429
      %v431 = vextract.high.u32 %v429
      %v432 = vshrl.u32 %v431, 4
      %v433 = vmul.u32 %v432, 18
      %v434 = vsub.s32 %v428, %v433
      %v435 = vsub.s32 0, %v434
      %v436 = vsel %vm426, %v435, %v434
      %vm437 = vcmp.lt.s32.totalorder %v241, 0
      %v438 = vsub.s32 0, %v241
      %v439 = vsel %vm437, %v438, %v241
      %v440 = vmul.u32.u64.compose %v439, 3817748708
      %v441 = vextract.low.u32 %v440
      %v442 = vextract.high.u32 %v440
      %v443 = vshrl.u32 %v442, 4
      %v444 = vmul.u32 %v443, 18
      %v445 = vsub.s32 %v439, %v444
      %v446 = vsub.s32 0, %v445
      %v447 = vsel %vm437, %v446, %v445
      %vm448 = vcmp.lt.s32.totalorder %v242, 0
      %v449 = vsub.s32 0, %v242
      %v450 = vsel %vm448, %v449, %v242
      %v451 = vmul.u32.u64.compose %v450, 3817748708
      %v452 = vextract.low.u32 %v451
      %v453 = vextract.high.u32 %v451
      %v454 = vshrl.u32 %v453, 4
      %v455 = vmul.u32 %v454, 18
      %v456 = vsub.s32 %v450, %v455
      %v457 = vsub.s32 0, %v456
      %v458 = vsel %vm448, %v457, %v456
      %vm459 = vcmp.lt.s32.totalorder %v243, 0
      %v460 = vsub.s32 0, %v243
      %v461 = vsel %vm459, %v460, %v243
      %v462 = vmul.u32.u64.compose %v461, 3817748708
      %v463 = vextract.low.u32 %v462
      %v464 = vextract.high.u32 %v462
      %v465 = vshrl.u32 %v464, 4
      %v466 = vmul.u32 %v465, 18
      %v467 = vsub.s32 %v461, %v466
      %v468 = vsub.s32 0, %v467
      %v469 = vsel %vm459, %v468, %v467
      %vm470 = vcmp.lt.s32.totalorder %v244, 0
      %v471 = vsub.s32 0, %v244
      %v472 = vsel %vm470, %v471, %v244
      %v473 = vmul.u32.u64.compose %v472, 3817748708
      %v474 = vextract.low.u32 %v473
      %v475 = vextract.high.u32 %v473
      %v476 = vshrl.u32 %v475, 4
      %v477 = vmul.u32 %v476, 18
      %v478 = vsub.s32 %v472, %v477
      %v479 = vsub.s32 0, %v478
      %v480 = vsel %vm470, %v479, %v478
      %vm481 = vcmp.lt.s32.totalorder %v245, 0
      %v482 = vsub.s32 0, %v245
      %v483 = vsel %vm481, %v482, %v245
      %v484 = vmul.u32.u64.compose %v483, 3817748708
      %v485 = vextract.low.u32 %v484
      %v486 = vextract.high.u32 %v484
      %v487 = vshrl.u32 %v486, 4
      %v488 = vmul.u32 %v487, 18
      %v489 = vsub.s32 %v483, %v488
      %v490 = vsub.s32 0, %v489
      %v491 = vsel %vm481, %v490, %v489
      %vm492 = vcmp.lt.s32.totalorder %v246, 0
      %v493 = vsub.s32 0, %v246
      %v494 = vsel %vm492, %v493, %v246
      %v495 = vmul.u32.u64.compose %v494, 3817748708
      %v496 = vextract.low.u32 %v495
      %v497 = vextract.high.u32 %v495
      %v498 = vshrl.u32 %v497, 4
      %v499 = vmul.u32 %v498, 18
      %v500 = vsub.s32 %v494, %v499
      %v501 = vsub.s32 0, %v500
      %v502 = vsel %vm492, %v501, %v500
      %vm503 = vcmp.lt.s32.totalorder %v247, 0
      %v504 = vsub.s32 0, %v247
      %v505 = vsel %vm503, %v504, %v247
      %v506 = vmul.u32.u64.compose %v505, 3817748708
      %v507 = vextract.low.u32 %v506
      %v508 = vextract.high.u32 %v506
      %v509 = vshrl.u32 %v508, 4
      %v510 = vmul.u32 %v509, 18
      %v511 = vsub.s32 %v505, %v510
      %v512 = vsub.s32 0, %v511
      %v513 = vsel %vm503, %v512, %v511
      %vm514 = vcmp.lt.s32.totalorder %v248, 0
      %v515 = vsub.s32 0, %v248
      %v516 = vsel %vm514, %v515, %v248
      %v517 = vmul.u32.u64.compose %v516, 3817748708
      %v518 = vextract.low.u32 %v517
      %v519 = vextract.high.u32 %v517
      %v520 = vshrl.u32 %v519, 4
      %v521 = vmul.u32 %v520, 18
      %v522 = vsub.s32 %v516, %v521
      %v523 = vsub.s32 0, %v522
      %v524 = vsel %vm514, %v523, %v522
      %vm525 = vcmp.lt.s32.totalorder %v249, 0
      %v526 = vsub.s32 0, %v249
      %v527 = vsel %vm525, %v526, %v249
      %v528 = vmul.u32.u64.compose %v527, 3817748708
      %v529 = vextract.low.u32 %v528
      %v530 = vextract.high.u32 %v528
      %v531 = vshrl.u32 %v530, 4
      %v532 = vmul.u32 %v531, 18
      %v533 = vsub.s32 %v527, %v532
      %v534 = vsub.s32 0, %v533
      %v535 = vsel %vm525, %v534, %v533
      %vm536 = vcmp.lt.s32.totalorder %v250, 0
      %v537 = vsub.s32 0, %v250
      %v538 = vsel %vm536, %v537, %v250
      %v539 = vmul.u32.u64.compose %v538, 3817748708
      %v540 = vextract.low.u32 %v539
      %v541 = vextract.high.u32 %v539
      %v542 = vshrl.u32 %v541, 4
      %v543 = vmul.u32 %v542, 18
      %v544 = vsub.s32 %v538, %v543
      %v545 = vsub.s32 0, %v544
      %v546 = vsel %vm536, %v545, %v544
      %vm547 = vcmp.lt.s32.totalorder %v251, 0
      %v548 = vsub.s32 0, %v251
      %v549 = vsel %vm547, %v548, %v251
      %v550 = vmul.u32.u64.compose %v549, 3817748708
      %v551 = vextract.low.u32 %v550
      %v552 = vextract.high.u32 %v550
      %v553 = vshrl.u32 %v552, 4
      %v554 = vmul.u32 %v553, 18
      %v555 = vsub.s32 %v549, %v554
      %v556 = vsub.s32 0, %v555
      %v557 = vsel %vm547, %v556, %v555
      %vm558 = vcmp.lt.s32.totalorder %v252, 0
      %v559 = vsub.s32 0, %v252
      %v560 = vsel %vm558, %v559, %v252
      %v561 = vmul.u32.u64.compose %v560, 3817748708
      %v562 = vextract.low.u32 %v561
      %v563 = vextract.high.u32 %v561
      %v564 = vshrl.u32 %v563, 4
      %v565 = vmul.u32 %v564, 18
      %v566 = vsub.s32 %v560, %v565
      %v567 = vsub.s32 0, %v566
      %v568 = vsel %vm558, %v567, %v566
      %vm569 = vcmp.lt.s32.totalorder %v253, 0
      %v570 = vsub.s32 0, %v253
      %v571 = vsel %vm569, %v570, %v253
      %v572 = vmul.u32.u64.compose %v571, 3817748708
      %v573 = vextract.low.u32 %v572
      %v574 = vextract.high.u32 %v572
      %v575 = vshrl.u32 %v574, 4
      %v576 = vmul.u32 %v575, 18
      %v577 = vsub.s32 %v571, %v576
      %v578 = vsub.s32 0, %v577
      %v579 = vsel %vm569, %v578, %v577
      %vm580 = vcmp.lt.s32.totalorder %v254, 0
      %v581 = vsub.s32 0, %v254
      %v582 = vsel %vm580, %v581, %v254
      %v583 = vmul.u32.u64.compose %v582, 3817748708
      %v584 = vextract.low.u32 %v583
      %v585 = vextract.high.u32 %v583
      %v586 = vshrl.u32 %v585, 4
      %v587 = vmul.u32 %v586, 18
      %v588 = vsub.s32 %v582, %v587
      %v589 = vsub.s32 0, %v588
      %v590 = vsel %vm580, %v589, %v588
      %vm591 = vcmp.lt.s32.totalorder %v255, 0
      %v592 = vsub.s32 0, %v255
      %v593 = vsel %vm591, %v592, %v255
      %v594 = vmul.u32.u64.compose %v593, 3817748708
      %v595 = vextract.low.u32 %v594
      %v596 = vextract.high.u32 %v594
      %v597 = vshrl.u32 %v596, 4
      %v598 = vmul.u32 %v597, 18
      %v599 = vsub.s32 %v593, %v598
      %v600 = vsub.s32 0, %v599
      %v601 = vsel %vm591, %v600, %v599
      %vm602 = vcmp.lt.s32.totalorder %v256, 0
      %v603 = vsub.s32 0, %v256
      %v604 = vsel %vm602, %v603, %v256
      %v605 = vmul.u32.u64.compose %v604, 3817748708
      %v606 = vextract.low.u32 %v605
      %v607 = vextract.high.u32 %v605
      %v608 = vshrl.u32 %v607, 4
      %v609 = vmul.u32 %v608, 18
      %v610 = vsub.s32 %v604, %v609
      %v611 = vsub.s32 0, %v610
      %v612 = vsel %vm602, %v611, %v610
      %vm613 = vcmp.lt.s32.totalorder %v257, 0
      %v614 = vsub.s32 0, %v257
      %v615 = vsel %vm613, %v614, %v257
      %v616 = vmul.u32.u64.compose %v615, 3817748708
      %v617 = vextract.low.u32 %v616
      %v618 = vextract.high.u32 %v616
      %v619 = vshrl.u32 %v618, 4
      %v620 = vmul.u32 %v619, 18
      %v621 = vsub.s32 %v615, %v620
      %v622 = vsub.s32 0, %v621
      %v623 = vsel %vm613, %v622, %v621
      %vm624 = vcmp.lt.s32.totalorder %v258, 0
      %v625 = vsub.s32 0, %v258
      %v626 = vsel %vm624, %v625, %v258
      %v627 = vmul.u32.u64.compose %v626, 3817748708
      %v628 = vextract.low.u32 %v627
      %v629 = vextract.high.u32 %v627
      %v630 = vshrl.u32 %v629, 4
      %v631 = vmul.u32 %v630, 18
      %v632 = vsub.s32 %v626, %v631
      %v633 = vsub.s32 0, %v632
      %v634 = vsel %vm624, %v633, %v632
      %vm635 = vcmp.lt.s32.totalorder %v259, 0
      %v636 = vsub.s32 0, %v259
      %v637 = vsel %vm635, %v636, %v259
      %v638 = vmul.u32.u64.compose %v637, 3817748708
      %v639 = vextract.low.u32 %v638
      %v640 = vextract.high.u32 %v638
      %v641 = vshrl.u32 %v640, 4
      %v642 = vmul.u32 %v641, 18
      %v643 = vsub.s32 %v637, %v642
      %v644 = vsub.s32 0, %v643
      %v645 = vsel %vm635, %v644, %v643
      %vm646 = vcmp.lt.s32.totalorder %v260, 0
      %v647 = vsub.s32 0, %v260
      %v648 = vsel %vm646, %v647, %v260
      %v649 = vmul.u32.u64.compose %v648, 3817748708
      %v650 = vextract.low.u32 %v649
      %v651 = vextract.high.u32 %v649
      %v652 = vshrl.u32 %v651, 4
      %v653 = vmul.u32 %v652, 18
      %v654 = vsub.s32 %v648, %v653
      %v655 = vsub.s32 0, %v654
      %v656 = vsel %vm646, %v655, %v654
      %vm657 = vcmp.ne.s32.totalorder %v271, 0
      %vm658 = vcmp.ne.s32.totalorder %v282, 0
      %vm659 = vcmp.ne.s32.totalorder %v293, 0
      %vm660 = vcmp.ne.s32.totalorder %v304, 0
      %vm661 = vcmp.ne.s32.totalorder %v315, 0
      %vm662 = vcmp.ne.s32.totalorder %v326, 0
      %vm663 = vcmp.ne.s32.totalorder %v337, 0
      %vm664 = vcmp.ne.s32.totalorder %v348, 0
      %vm665 = vcmp.ne.s32.totalorder %v359, 0
      %vm666 = vcmp.ne.s32.totalorder %v370, 0
      %vm667 = vcmp.ne.s32.totalorder %v381, 0
      %vm668 = vcmp.ne.s32.totalorder %v392, 0
      %vm669 = vcmp.ne.s32.totalorder %v403, 0
      %vm670 = vcmp.ne.s32.totalorder %v414, 0
      %vm671 = vcmp.ne.s32.totalorder %v425, 0
      %vm672 = vcmp.ne.s32.totalorder %v436, 0
      %vm673 = vcmp.ne.s32.totalorder %v447, 0
      %vm674 = vcmp.ne.s32.totalorder %v458, 0
      %vm675 = vcmp.ne.s32.totalorder %v469, 0
      %vm676 = vcmp.ne.s32.totalorder %v480, 0
      %vm677 = vcmp.ne.s32.totalorder %v491, 0
      %vm678 = vcmp.ne.s32.totalorder %v502, 0
      %vm679 = vcmp.ne.s32.totalorder %v513, 0
      %vm680 = vcmp.ne.s32.totalorder %v524, 0
      %vm681 = vcmp.ne.s32.totalorder %v535, 0
      %vm682 = vcmp.ne.s32.totalorder %v546, 0
      %vm683 = vcmp.ne.s32.totalorder %v557, 0
      %vm684 = vcmp.ne.s32.totalorder %v568, 0
      %vm685 = vcmp.ne.s32.totalorder %v579, 0
      %vm686 = vcmp.ne.s32.totalorder %v590, 0
      %vm687 = vcmp.ne.s32.totalorder %v601, 0
      %vm688 = vcmp.ne.s32.totalorder %v612, 0
      %vm689 = vcmp.ne.s32.totalorder %v623, 0
      %vm690 = vcmp.ne.s32.totalorder %v634, 0
      %vm691 = vcmp.ne.s32.totalorder %v645, 0
      %vm692 = vcmp.ne.s32.totalorder %v656, 0
      %vm693 = vcmp.lt.s32.totalorder %v271, 0
      %vm694 = vcmp.lt.s32.totalorder %v282, 0
      %vm695 = vcmp.lt.s32.totalorder %v293, 0
      %vm696 = vcmp.lt.s32.totalorder %v304, 0
      %vm697 = vcmp.lt.s32.totalorder %v315, 0
      %vm698 = vcmp.lt.s32.totalorder %v326, 0
      %vm699 = vcmp.lt.s32.totalorder %v337, 0
      %vm700 = vcmp.lt.s32.totalorder %v348, 0
      %vm701 = vcmp.lt.s32.totalorder %v359, 0
      %vm702 = vcmp.lt.s32.totalorder %v370, 0
      %vm703 = vcmp.lt.s32.totalorder %v381, 0
      %vm704 = vcmp.lt.s32.totalorder %v392, 0
      %vm705 = vcmp.lt.s32.totalorder %v403, 0
      %vm706 = vcmp.lt.s32.totalorder %v414, 0
      %vm707 = vcmp.lt.s32.totalorder %v425, 0
      %vm708 = vcmp.lt.s32.totalorder %v436, 0
      %vm709 = vcmp.lt.s32.totalorder %v447, 0
      %vm710 = vcmp.lt.s32.totalorder %v458, 0
      %vm711 = vcmp.lt.s32.totalorder %v469, 0
      %vm712 = vcmp.lt.s32.totalorder %v480, 0
      %vm713 = vcmp.lt.s32.totalorder %v491, 0
      %vm714 = vcmp.lt.s32.totalorder %v502, 0
      %vm715 = vcmp.lt.s32.totalorder %v513, 0
      %vm716 = vcmp.lt.s32.totalorder %v524, 0
      %vm717 = vcmp.lt.s32.totalorder %v535, 0
      %vm718 = vcmp.lt.s32.totalorder %v546, 0
      %vm719 = vcmp.lt.s32.totalorder %v557, 0
      %vm720 = vcmp.lt.s32.totalorder %v568, 0
      %vm721 = vcmp.lt.s32.totalorder %v579, 0
      %vm722 = vcmp.lt.s32.totalorder %v590, 0
      %vm723 = vcmp.lt.s32.totalorder %v601, 0
      %vm724 = vcmp.lt.s32.totalorder %v612, 0
      %vm725 = vcmp.lt.s32.totalorder %v623, 0
      %vm726 = vcmp.lt.s32.totalorder %v634, 0
      %vm727 = vcmp.lt.s32.totalorder %v645, 0
      %vm728 = vcmp.lt.s32.totalorder %v656, 0
      %vm729 = vmand %vm693, %vm657
      %vm730 = vmand %vm694, %vm658
      %vm731 = vmand %vm695, %vm659
      %vm732 = vmand %vm696, %vm660
      %vm733 = vmand %vm697, %vm661
      %vm734 = vmand %vm698, %vm662
      %vm735 = vmand %vm699, %vm663
      %vm736 = vmand %vm700, %vm664
      %vm737 = vmand %vm701, %vm665
      %vm738 = vmand %vm702, %vm666
      %vm739 = vmand %vm703, %vm667
      %vm740 = vmand %vm704, %vm668
      %vm741 = vmand %vm705, %vm669
      %vm742 = vmand %vm706, %vm670
      %vm743 = vmand %vm707, %vm671
      %vm744 = vmand %vm708, %vm672
      %vm745 = vmand %vm709, %vm673
      %vm746 = vmand %vm710, %vm674
      %vm747 = vmand %vm711, %vm675
      %vm748 = vmand %vm712, %vm676
      %vm749 = vmand %vm713, %vm677
      %vm750 = vmand %vm714, %vm678
      %vm751 = vmand %vm715, %vm679
      %vm752 = vmand %vm716, %vm680
      %vm753 = vmand %vm717, %vm681
      %vm754 = vmand %vm718, %vm682
      %vm755 = vmand %vm719, %vm683
      %vm756 = vmand %vm720, %vm684
      %vm757 = vmand %vm721, %vm685
      %vm758 = vmand %vm722, %vm686
      %vm759 = vmand %vm723, %vm687
      %vm760 = vmand %vm724, %vm688
      %vm761 = vmand %vm725, %vm689
      %vm762 = vmand %vm726, %vm690
      %vm763 = vmand %vm727, %vm691
      %vm764 = vmand %vm728, %vm692
      %v765 = vadd.s32 %v271, 18
      %v766 = vadd.s32 %v282, 18
      %v767 = vadd.s32 %v293, 18
      %v768 = vadd.s32 %v304, 18
      %v769 = vadd.s32 %v315, 18
      %v770 = vadd.s32 %v326, 18
      %v771 = vadd.s32 %v337, 18
      %v772 = vadd.s32 %v348, 18
      %v773 = vadd.s32 %v359, 18
      %v774 = vadd.s32 %v370, 18
      %v775 = vadd.s32 %v381, 18
      %v776 = vadd.s32 %v392, 18
      %v777 = vadd.s32 %v403, 18
      %v778 = vadd.s32 %v414, 18
      %v779 = vadd.s32 %v425, 18
      %v780 = vadd.s32 %v436, 18
      %v781 = vadd.s32 %v447, 18
      %v782 = vadd.s32 %v458, 18
      %v783 = vadd.s32 %v469, 18
      %v784 = vadd.s32 %v480, 18
      %v785 = vadd.s32 %v491, 18
      %v786 = vadd.s32 %v502, 18
      %v787 = vadd.s32 %v513, 18
      %v788 = vadd.s32 %v524, 18
      %v789 = vadd.s32 %v535, 18
      %v790 = vadd.s32 %v546, 18
      %v791 = vadd.s32 %v557, 18
      %v792 = vadd.s32 %v568, 18
      %v793 = vadd.s32 %v579, 18
      %v794 = vadd.s32 %v590, 18
      %v795 = vadd.s32 %v601, 18
      %v796 = vadd.s32 %v612, 18
      %v797 = vadd.s32 %v623, 18
      %v798 = vadd.s32 %v634, 18
      %v799 = vadd.s32 %v645, 18
      %v800 = vadd.s32 %v656, 18
      %v801 = vsel %vm729, %v765, %v271
      %v802 = vsel %vm730, %v766, %v282
      %v803 = vsel %vm731, %v767, %v293
      %v804 = vsel %vm732, %v768, %v304
      %v805 = vsel %vm733, %v769, %v315
      %v806 = vsel %vm734, %v770, %v326
      %v807 = vsel %vm735, %v771, %v337
      %v808 = vsel %vm736, %v772, %v348
      %v809 = vsel %vm737, %v773, %v359
      %v810 = vsel %vm738, %v774, %v370
      %v811 = vsel %vm739, %v775, %v381
      %v812 = vsel %vm740, %v776, %v392
      %v813 = vsel %vm741, %v777, %v403
      %v814 = vsel %vm742, %v778, %v414
      %v815 = vsel %vm743, %v779, %v425
      %v816 = vsel %vm744, %v780, %v436
      %v817 = vsel %vm745, %v781, %v447
      %v818 = vsel %vm746, %v782, %v458
      %v819 = vsel %vm747, %v783, %v469
      %v820 = vsel %vm748, %v784, %v480
      %v821 = vsel %vm749, %v785, %v491
      %v822 = vsel %vm750, %v786, %v502
      %v823 = vsel %vm751, %v787, %v513
      %v824 = vsel %vm752, %v788, %v524
      %v825 = vsel %vm753, %v789, %v535
      %v826 = vsel %vm754, %v790, %v546
      %v827 = vsel %vm755, %v791, %v557
      %v828 = vsel %vm756, %v792, %v568
      %v829 = vsel %vm757, %v793, %v579
      %v830 = vsel %vm758, %v794, %v590
      %v831 = vsel %vm759, %v795, %v601
      %v832 = vsel %vm760, %v796, %v612
      %v833 = vsel %vm761, %v797, %v623
      %v834 = vsel %vm762, %v798, %v634
      %v835 = vsel %vm763, %v799, %v645
      %v836 = vsel %vm764, %v800, %v656
      %vm837 = vcmp.lt.s32.totalorder %v801, 16
      %vm838 = vcmp.lt.s32.totalorder %v802, 16
      %vm839 = vcmp.lt.s32.totalorder %v803, 16
      %vm840 = vcmp.lt.s32.totalorder %v804, 16
      %vm841 = vcmp.lt.s32.totalorder %v805, 16
      %vm842 = vcmp.lt.s32.totalorder %v806, 16
      %vm843 = vcmp.lt.s32.totalorder %v807, 16
      %vm844 = vcmp.lt.s32.totalorder %v808, 16
      %vm845 = vcmp.lt.s32.totalorder %v809, 16
      %vm846 = vcmp.lt.s32.totalorder %v810, 16
      %vm847 = vcmp.lt.s32.totalorder %v811, 16
      %vm848 = vcmp.lt.s32.totalorder %v812, 16
      %vm849 = vcmp.lt.s32.totalorder %v813, 16
      %vm850 = vcmp.lt.s32.totalorder %v814, 16
      %vm851 = vcmp.lt.s32.totalorder %v815, 16
      %vm852 = vcmp.lt.s32.totalorder %v816, 16
      %vm853 = vcmp.lt.s32.totalorder %v817, 16
      %vm854 = vcmp.lt.s32.totalorder %v818, 16
      %vm855 = vcmp.lt.s32.totalorder %v819, 16
      %vm856 = vcmp.lt.s32.totalorder %v820, 16
      %vm857 = vcmp.lt.s32.totalorder %v821, 16
      %vm858 = vcmp.lt.s32.totalorder %v822, 16
      %vm859 = vcmp.lt.s32.totalorder %v823, 16
      %vm860 = vcmp.lt.s32.totalorder %v824, 16
      %vm861 = vcmp.lt.s32.totalorder %v825, 16
      %vm862 = vcmp.lt.s32.totalorder %v826, 16
      %vm863 = vcmp.lt.s32.totalorder %v827, 16
      %vm864 = vcmp.lt.s32.totalorder %v828, 16
      %vm865 = vcmp.lt.s32.totalorder %v829, 16
      %vm866 = vcmp.lt.s32.totalorder %v830, 16
      %vm867 = vcmp.lt.s32.totalorder %v831, 16
      %vm868 = vcmp.lt.s32.totalorder %v832, 16
      %vm869 = vcmp.lt.s32.totalorder %v833, 16
      %vm870 = vcmp.lt.s32.totalorder %v834, 16
      %vm871 = vcmp.lt.s32.totalorder %v835, 16
      %vm872 = vcmp.lt.s32.totalorder %v836, 16
      %v873 = vld [vmem:[%s207] sm:$0xff]
      %v874 = vld [vmem:[%s207 + $0x8] sm:$0xff]
      %v875 = vld [vmem:[%s207 + $0x10] sm:$0xff]
      %v876 = vld [vmem:[%s207 + $0x18] sm:$0xff]
      %v877 = vld [vmem:[%s207 + $0x20] sm:$0xff]
      %v878 = vld [vmem:[%s207 + $0x28] sm:$0xff]
      %v879 = vld [vmem:[%s207 + $0x30] sm:$0xff]
      %v880 = vld [vmem:[%s207 + $0x38] sm:$0xff]
      %v881 = vld [vmem:[%s207 + $0x40] sm:$0xff]
      %v882 = vld [vmem:[%s207 + $0x48] sm:$0xff]
      %v883 = vld [vmem:[%s207 + $0x50] sm:$0xff]
      %v884 = vld [vmem:[%s207 + $0x58] sm:$0xff]
      %v885 = vld [vmem:[%s207 + $0x60] sm:$0xff]
      %v886 = vld [vmem:[%s207 + $0x68] sm:$0xff]
      %v887 = vld [vmem:[%s207 + $0x70] sm:$0xff]
      %v888 = vld [vmem:[%s207 + $0x78] sm:$0xff]
      %v889 = vld [vmem:[%s207 + $0x80] sm:$0xff]
      %v890 = vld [vmem:[%s207 + $0x88] sm:$0xff]
      %v891 = vld [vmem:[%s207 + $0x90] sm:$0xff]
      %v892 = vld [vmem:[%s207 + $0x98] sm:$0xff]
      %v893 = vld [vmem:[%s207 + $0xa0] sm:$0xff]
      %v894 = vld [vmem:[%s207 + $0xa8] sm:$0xff]
      %v895 = vld [vmem:[%s207 + $0xb0] sm:$0xff]
      %v896 = vld [vmem:[%s207 + $0xb8] sm:$0xff]
      %v897 = vld [vmem:[%s207 + $0xc0] sm:$0xff]
      %v898 = vld [vmem:[%s207 + $0xc8] sm:$0xff]
      %v899 = vld [vmem:[%s207 + $0xd0] sm:$0xff]
      %v900 = vld [vmem:[%s207 + $0xd8] sm:$0xff]
      %v901 = vld [vmem:[%s207 + $0xe0] sm:$0xff]
      %v902 = vld [vmem:[%s207 + $0xe8] sm:$0xff]
      %v903 = vld [vmem:[%s207 + $0xf0] sm:$0xff]
      %v904 = vld [vmem:[%s207 + $0xf8] sm:$0xff]
      %v905 = vld [vmem:[%s207 + $0x100] sm:$0xff]
      %v906 = vld [vmem:[%s207 + $0x108] sm:$0xff]
      %v907 = vld [vmem:[%s207 + $0x110] sm:$0xff]
      %v908 = vld [vmem:[%s207 + $0x118] sm:$0xff]
      %v909 = vld [vmem:[%s207 + $0x120] sm:$0xff]
      %v910 = vld [vmem:[%s207 + $0x128] sm:$0xff]
      %v911 = vld [vmem:[%s207 + $0x130] sm:$0xff]
      %v912 = vld [vmem:[%s207 + $0x138] sm:$0xff]
      %v913 = vld [vmem:[%s207 + $0x140] sm:$0xff]
      %v914 = vld [vmem:[%s207 + $0x148] sm:$0xff]
      %v915 = vld [vmem:[%s212] sm:$0xff]
      %v916 = vld [vmem:[%s212 + $0x8] sm:$0xff]
      %v917 = vld [vmem:[%s212 + $0x10] sm:$0xff]
      %v918 = vld [vmem:[%s212 + $0x18] sm:$0xff]
      %v919 = vld [vmem:[%s212 + $0x20] sm:$0xff]
      %v920 = vld [vmem:[%s212 + $0x28] sm:$0xff]
      %v921 = vld [vmem:[%s212 + $0x30] sm:$0xff]
      %v922 = vld [vmem:[%s212 + $0x38] sm:$0xff]
      %v923 = vld [vmem:[%s212 + $0x40] sm:$0xff]
      %v924 = vld [vmem:[%s212 + $0x48] sm:$0xff]
      %v925 = vld [vmem:[%s212 + $0x50] sm:$0xff]
      %v926 = vld [vmem:[%s212 + $0x58] sm:$0xff]
      %v927 = vld [vmem:[%s212 + $0x60] sm:$0xff]
      %v928 = vld [vmem:[%s212 + $0x68] sm:$0xff]
      %v929 = vld [vmem:[%s212 + $0x70] sm:$0xff]
      %v930 = vld [vmem:[%s212 + $0x78] sm:$0xff]
      %v931 = vld [vmem:[%s212 + $0x80] sm:$0xff]
      %v932 = vld [vmem:[%s212 + $0x88] sm:$0xff]
      %v933 = vld [vmem:[%s212 + $0x90] sm:$0xff]
      %v934 = vld [vmem:[%s212 + $0x98] sm:$0xff]
      %v935 = vld [vmem:[%s212 + $0xa0] sm:$0xff]
      %v936 = vld [vmem:[%s212 + $0xa8] sm:$0xff]
      %v937 = vld [vmem:[%s212 + $0xb0] sm:$0xff]
      %v938 = vld [vmem:[%s212 + $0xb8] sm:$0xff]
      %v939 = vld [vmem:[%s212 + $0xc0] sm:$0xff]
      %v940 = vld [vmem:[%s212 + $0xc8] sm:$0xff]
      %v941 = vld [vmem:[%s212 + $0xd0] sm:$0xff]
      %v942 = vld [vmem:[%s212 + $0xd8] sm:$0xff]
      %v943 = vld [vmem:[%s212 + $0xe0] sm:$0xff]
      %v944 = vld [vmem:[%s212 + $0xe8] sm:$0xff]
      %v945 = vld [vmem:[%s212 + $0xf0] sm:$0xff]
      %v946 = vld [vmem:[%s212 + $0xf8] sm:$0xff]
      %v947 = vld [vmem:[%s212 + $0x100] sm:$0xff]
      %v948 = vld [vmem:[%s212 + $0x108] sm:$0xff]
      %v949 = vld [vmem:[%s212 + $0x110] sm:$0xff]
      %v950 = vld [vmem:[%s212 + $0x118] sm:$0xff]
      %v951 = vld [vmem:[%s212 + $0x120] sm:$0xff]
      %v952 = vld [vmem:[%s212 + $0x128] sm:$0xff]
      %v953 = vld [vmem:[%s212 + $0x130] sm:$0xff]
      %v954 = vld [vmem:[%s212 + $0x138] sm:$0xff]
      %v955 = vld [vmem:[%s212 + $0x140] sm:$0xff]
      %v956 = vld [vmem:[%s212 + $0x148] sm:$0xff]
      %v957 = vmax.f32 %v873, 0.0
      %v958 = vmax.f32 %v874, 0.0
      %v959 = vmax.f32 %v875, 0.0
      %v960 = vmax.f32 %v876, 0.0
      %v961 = vmax.f32 %v877, 0.0
      %v962 = vmax.f32 %v878, 0.0
      %v963 = vmax.f32 %v879, 0.0
      %v964 = vmax.f32 %v880, 0.0
      %v965 = vmax.f32 %v881, 0.0
      %v966 = vmax.f32 %v882, 0.0
      %v967 = vmax.f32 %v883, 0.0
      %v968 = vmax.f32 %v884, 0.0
      %v969 = vmax.f32 %v885, 0.0
      %v970 = vmax.f32 %v886, 0.0
      %v971 = vmax.f32 %v887, 0.0
      %v972 = vmax.f32 %v888, 0.0
      %v973 = vmax.f32 %v889, 0.0
      %v974 = vmax.f32 %v890, 0.0
      %v975 = vmax.f32 %v891, 0.0
      %v976 = vmax.f32 %v892, 0.0
      %v977 = vmax.f32 %v893, 0.0
      %v978 = vmax.f32 %v894, 0.0
      %v979 = vmax.f32 %v895, 0.0
      %v980 = vmax.f32 %v896, 0.0
      %v981 = vmax.f32 %v897, 0.0
      %v982 = vmax.f32 %v898, 0.0
      %v983 = vmax.f32 %v899, 0.0
      %v984 = vmax.f32 %v900, 0.0
      %v985 = vmax.f32 %v901, 0.0
      %v986 = vmax.f32 %v902, 0.0
      %v987 = vmax.f32 %v903, 0.0
      %v988 = vmax.f32 %v904, 0.0
      %v989 = vmax.f32 %v905, 0.0
      %v990 = vmax.f32 %v906, 0.0
      %v991 = vmax.f32 %v907, 0.0
      %v992 = vmax.f32 %v908, 0.0
      %v993 = vmax.f32 %v909, 0.0
      %v994 = vmax.f32 %v910, 0.0
      %v995 = vmax.f32 %v911, 0.0
      %v996 = vmax.f32 %v912, 0.0
      %v997 = vmax.f32 %v913, 0.0
      %v998 = vmax.f32 %v914, 0.0
      %v999 = vpack.c.bf16 %v958, %v957
      %v1000 = vpack.c.bf16 %v960, %v959
      %v1001 = vpack.c.bf16 %v962, %v961
      %v1002 = vpack.c.bf16 %v964, %v963
      %v1003 = vpack.c.bf16 %v966, %v965
      %v1004 = vpack.c.bf16 %v968, %v967
      %v1005 = vpack.c.bf16 %v970, %v969
      %v1006 = vpack.c.bf16 %v972, %v971
      %v1007 = vpack.c.bf16 %v974, %v973
      %v1008 = vpack.c.bf16 %v976, %v975
      %v1009 = vpack.c.bf16 %v978, %v977
      %v1010 = vpack.c.bf16 %v980, %v979
      %v1011 = vpack.c.bf16 %v982, %v981
      %v1012 = vpack.c.bf16 %v984, %v983
      %v1013 = vpack.c.bf16 %v986, %v985
      %v1014 = vpack.c.bf16 %v988, %v987
      %v1015 = vpack.c.bf16 %v990, %v989
      %v1016 = vpack.c.bf16 %v992, %v991
      %v1017 = vpack.c.bf16 %v994, %v993
      %v1018 = vpack.c.bf16 %v996, %v995
      %v1019 = vpack.c.bf16 %v998, %v997
      %v1020 = vmax.f32 %v915, 0.0
      %v1021 = vmax.f32 %v916, 0.0
      %v1022 = vmax.f32 %v917, 0.0
      %v1023 = vmax.f32 %v918, 0.0
      %v1024 = vmax.f32 %v919, 0.0
      %v1025 = vmax.f32 %v920, 0.0
      %v1026 = vmax.f32 %v921, 0.0
      %v1027 = vmax.f32 %v922, 0.0
      %v1028 = vmax.f32 %v923, 0.0
      %v1029 = vmax.f32 %v924, 0.0
      %v1030 = vmax.f32 %v925, 0.0
      %v1031 = vmax.f32 %v926, 0.0
      %v1032 = vmax.f32 %v927, 0.0
      %v1033 = vmax.f32 %v928, 0.0
      %v1034 = vmax.f32 %v929, 0.0
      %v1035 = vmax.f32 %v930, 0.0
      %v1036 = vmax.f32 %v931, 0.0
      %v1037 = vmax.f32 %v932, 0.0
      %v1038 = vmax.f32 %v933, 0.0
      %v1039 = vmax.f32 %v934, 0.0
      %v1040 = vmax.f32 %v935, 0.0
      %v1041 = vmax.f32 %v936, 0.0
      %v1042 = vmax.f32 %v937, 0.0
      %v1043 = vmax.f32 %v938, 0.0
      %v1044 = vmax.f32 %v939, 0.0
      %v1045 = vmax.f32 %v940, 0.0
      %v1046 = vmax.f32 %v941, 0.0
      %v1047 = vmax.f32 %v942, 0.0
      %v1048 = vmax.f32 %v943, 0.0
      %v1049 = vmax.f32 %v944, 0.0
      %v1050 = vmax.f32 %v945, 0.0
      %v1051 = vmax.f32 %v946, 0.0
      %v1052 = vmax.f32 %v947, 0.0
      %v1053 = vmax.f32 %v948, 0.0
      %v1054 = vmax.f32 %v949, 0.0
      %v1055 = vmax.f32 %v950, 0.0
      %v1056 = vmax.f32 %v951, 0.0
      %v1057 = vmax.f32 %v952, 0.0
      %v1058 = vmax.f32 %v953, 0.0
      %v1059 = vmax.f32 %v954, 0.0
      %v1060 = vmax.f32 %v955, 0.0
      %v1061 = vmax.f32 %v956, 0.0
      %v1062 = vpack.c.bf16 %v1021, %v1020
      %v1063 = vpack.c.bf16 %v1023, %v1022
      %v1064 = vpack.c.bf16 %v1025, %v1024
      %v1065 = vpack.c.bf16 %v1027, %v1026
      %v1066 = vpack.c.bf16 %v1029, %v1028
      %v1067 = vpack.c.bf16 %v1031, %v1030
      %v1068 = vpack.c.bf16 %v1033, %v1032
      %v1069 = vpack.c.bf16 %v1035, %v1034
      %v1070 = vpack.c.bf16 %v1037, %v1036
      %v1071 = vpack.c.bf16 %v1039, %v1038
      %v1072 = vpack.c.bf16 %v1041, %v1040
      %v1073 = vpack.c.bf16 %v1043, %v1042
      %v1074 = vpack.c.bf16 %v1045, %v1044
      %v1075 = vpack.c.bf16 %v1047, %v1046
      %v1076 = vpack.c.bf16 %v1049, %v1048
      %v1077 = vpack.c.bf16 %v1051, %v1050
      %v1078 = vpack.c.bf16 %v1053, %v1052
      %v1079 = vpack.c.bf16 %v1055, %v1054
      %v1080 = vpack.c.bf16 %v1057, %v1056
      %v1081 = vpack.c.bf16 %v1059, %v1058
      %v1082 = vpack.c.bf16 %v1061, %v1060
      %vm1083 = vsmask.f32 7424
      %v1085 = vshrl.u32 %v999, 16
      %v1087 = vshll.u32 %v999, 16
      %v1089 = vrot.slane %v1087, 1
      %v1090 = vor.u32 %v1085, %v1089
      %v1092 = vshll.u32 %v1000, 16
      %v1094 = vrot.slane %v1092, 1
      %v1095 = vsel %vm1083, %v1090, %v1094
      %v1096 = vshrl.u32 %v1000, 16
      %v1098 = vor.u32 %v1096, %v1094
      %v1100 = vshll.u32 %v1001, 16
      %v1102 = vrot.slane %v1100, 1
      %v1103 = vsel %vm1083, %v1098, %v1102
      %v1104 = vshrl.u32 %v1001, 16
      %v1106 = vor.u32 %v1104, %v1102
      %v1108 = vshll.u32 %v1002, 16
      %v1110 = vrot.slane %v1108, 1
      %v1111 = vsel %vm1083, %v1106, %v1110
      %v1112 = vshrl.u32 %v1002, 16
      %v1114 = vor.u32 %v1112, %v1110
      %v1116 = vshll.u32 %v1003, 16
      %v1118 = vrot.slane %v1116, 1
      %v1119 = vsel %vm1083, %v1114, %v1118
      %v1120 = vshrl.u32 %v1003, 16
      %v1122 = vor.u32 %v1120, %v1118
      %v1124 = vshll.u32 %v1004, 16
      %v1126 = vrot.slane %v1124, 1
      %v1127 = vsel %vm1083, %v1122, %v1126
      %v1128 = vshrl.u32 %v1004, 16
      %v1130 = vor.u32 %v1128, %v1126
      %v1132 = vshll.u32 %v1005, 16
      %v1134 = vrot.slane %v1132, 1
      %v1135 = vsel %vm1083, %v1130, %v1134
      %v1136 = vshrl.u32 %v1005, 16
      %v1138 = vor.u32 %v1136, %v1134
      %v1140 = vshll.u32 %v1006, 16
      %v1142 = vrot.slane %v1140, 1
      %v1143 = vsel %vm1083, %v1138, %v1142
      %v1144 = vshrl.u32 %v1006, 16
      %v1146 = vor.u32 %v1144, %v1142
      %v1148 = vshll.u32 %v1007, 16
      %v1150 = vrot.slane %v1148, 1
      %v1151 = vsel %vm1083, %v1146, %v1150
      %v1152 = vshrl.u32 %v1007, 16
      %v1154 = vor.u32 %v1152, %v1150
      %v1156 = vshll.u32 %v1008, 16
      %v1158 = vrot.slane %v1156, 1
      %v1159 = vsel %vm1083, %v1154, %v1158
      %v1160 = vshrl.u32 %v1008, 16
      %v1162 = vor.u32 %v1160, %v1158
      %v1164 = vshll.u32 %v1009, 16
      %v1166 = vrot.slane %v1164, 1
      %v1167 = vsel %vm1083, %v1162, %v1166
      %v1168 = vshrl.u32 %v1009, 16
      %v1170 = vor.u32 %v1168, %v1166
      %v1172 = vshll.u32 %v1010, 16
      %v1174 = vrot.slane %v1172, 1
      %v1175 = vsel %vm1083, %v1170, %v1174
      %v1176 = vshrl.u32 %v1010, 16
      %v1178 = vor.u32 %v1176, %v1174
      %v1180 = vshll.u32 %v1011, 16
      %v1182 = vrot.slane %v1180, 1
      %v1183 = vsel %vm1083, %v1178, %v1182
      %v1184 = vshrl.u32 %v1011, 16
      %v1186 = vor.u32 %v1184, %v1182
      %v1188 = vshll.u32 %v1012, 16
      %v1190 = vrot.slane %v1188, 1
      %v1191 = vsel %vm1083, %v1186, %v1190
      %v1192 = vshrl.u32 %v1012, 16
      %v1194 = vor.u32 %v1192, %v1190
      %v1196 = vshll.u32 %v1013, 16
      %v1198 = vrot.slane %v1196, 1
      %v1199 = vsel %vm1083, %v1194, %v1198
      %v1200 = vshrl.u32 %v1013, 16
      %v1202 = vor.u32 %v1200, %v1198
      %v1204 = vshll.u32 %v1014, 16
      %v1206 = vrot.slane %v1204, 1
      %v1207 = vsel %vm1083, %v1202, %v1206
      %v1208 = vshrl.u32 %v1014, 16
      %v1210 = vor.u32 %v1208, %v1206
      %v1212 = vshll.u32 %v1015, 16
      %v1214 = vrot.slane %v1212, 1
      %v1215 = vsel %vm1083, %v1210, %v1214
      %v1216 = vshrl.u32 %v1015, 16
      %v1218 = vor.u32 %v1216, %v1214
      %v1220 = vshll.u32 %v1016, 16
      %v1222 = vrot.slane %v1220, 1
      %v1223 = vsel %vm1083, %v1218, %v1222
      %v1224 = vshrl.u32 %v1016, 16
      %v1226 = vor.u32 %v1224, %v1222
      %v1228 = vshll.u32 %v1017, 16
      %v1230 = vrot.slane %v1228, 1
      %v1231 = vsel %vm1083, %v1226, %v1230
      %1232 = vrot.lane.b32.xlu0 %v1095, 64
      %v1233 = vpop.permute.xlu0 %1232
      %1234 = vrot.lane.b32.xlu0 %v1103, 64
      %v1235 = vpop.permute.xlu0 %1234
      %1236 = vrot.lane.b32.xlu0 %v1111, 64
      %v1237 = vpop.permute.xlu0 %1236
      %1238 = vrot.lane.b32.xlu0 %v1119, 64
      %v1239 = vpop.permute.xlu0 %1238
      %1240 = vrot.lane.b32.xlu0 %v1127, 64
      %v1241 = vpop.permute.xlu0 %1240
      %1242 = vrot.lane.b32.xlu0 %v1135, 64
      %v1243 = vpop.permute.xlu0 %1242
      %1244 = vrot.lane.b32.xlu0 %v1143, 64
      %v1245 = vpop.permute.xlu0 %1244
      %1246 = vrot.lane.b32.xlu0 %v1151, 64
      %v1247 = vpop.permute.xlu0 %1246
      %1248 = vrot.lane.b32.xlu0 %v1159, 64
      %v1249 = vpop.permute.xlu0 %1248
      %1250 = vrot.lane.b32.xlu0 %v1167, 64
      %v1251 = vpop.permute.xlu0 %1250
      %1252 = vrot.lane.b32.xlu0 %v1175, 64
      %v1253 = vpop.permute.xlu0 %1252
      %1254 = vrot.lane.b32.xlu0 %v1183, 64
      %v1255 = vpop.permute.xlu0 %1254
      %1256 = vrot.lane.b32.xlu0 %v1191, 64
      %v1257 = vpop.permute.xlu0 %1256
      %1258 = vrot.lane.b32.xlu0 %v1199, 64
      %v1259 = vpop.permute.xlu0 %1258
      %1260 = vrot.lane.b32.xlu0 %v1207, 64
      %v1261 = vpop.permute.xlu0 %1260
      %1262 = vrot.lane.b32.xlu0 %v1215, 64
      %v1263 = vpop.permute.xlu0 %1262
      %1264 = vrot.lane.b32.xlu0 %v1223, 64
      %v1265 = vpop.permute.xlu0 %1264
      %1266 = vrot.lane.b32.xlu0 %v1231, 64
      %v1267 = vpop.permute.xlu0 %1266
      %vm1287 = vcmask 1046528
      %v1288 = vrot.slane %v999, 1
      %v1289 = vrot.slane %v1000, 1
      %v1290 = vsel %vm1287, %v1288, %v1289
      %v1291 = vrot.slane %v1001, 1
      %v1292 = vsel %vm1287, %v1289, %v1291
      %v1293 = vrot.slane %v1002, 1
      %v1294 = vsel %vm1287, %v1291, %v1293
      %v1295 = vrot.slane %v1003, 1
      %v1296 = vsel %vm1287, %v1293, %v1295
      %v1297 = vrot.slane %v1004, 1
      %v1298 = vsel %vm1287, %v1295, %v1297
      %v1299 = vrot.slane %v1005, 1
      %v1300 = vsel %vm1287, %v1297, %v1299
      %v1301 = vrot.slane %v1006, 1
      %v1302 = vsel %vm1287, %v1299, %v1301
      %v1303 = vrot.slane %v1007, 1
      %v1304 = vsel %vm1287, %v1301, %v1303
      %v1305 = vrot.slane %v1008, 1
      %v1306 = vsel %vm1287, %v1303, %v1305
      %v1307 = vrot.slane %v1009, 1
      %v1308 = vsel %vm1287, %v1305, %v1307
      %v1309 = vrot.slane %v1010, 1
      %v1310 = vsel %vm1287, %v1307, %v1309
      %v1311 = vrot.slane %v1011, 1
      %v1312 = vsel %vm1287, %v1309, %v1311
      %v1313 = vrot.slane %v1012, 1
      %v1314 = vsel %vm1287, %v1311, %v1313
      %v1315 = vrot.slane %v1013, 1
      %v1316 = vsel %vm1287, %v1313, %v1315
      %v1317 = vrot.slane %v1014, 1
      %v1318 = vsel %vm1287, %v1315, %v1317
      %v1319 = vrot.slane %v1015, 1
      %v1320 = vsel %vm1287, %v1317, %v1319
      %v1321 = vrot.slane %v1016, 1
      %v1322 = vsel %vm1287, %v1319, %v1321
      %v1323 = vrot.slane %v1017, 1
      %v1324 = vsel %vm1287, %v1321, %v1323
      %v1326 = vrot.slane %v1018, 1
      %v1327 = vsel %vm1287, %v1323, %v1326
      %1328 = vrot.lane.b32.xlu0 %v1292, 64
      %v1329 = vpop.permute.xlu0 %1328
      %1330 = vrot.lane.b32.xlu0 %v1294, 64
      %v1331 = vpop.permute.xlu0 %1330
      %1332 = vrot.lane.b32.xlu0 %v1296, 64
      %v1333 = vpop.permute.xlu0 %1332
      %1334 = vrot.lane.b32.xlu0 %v1298, 64
      %v1335 = vpop.permute.xlu0 %1334
      %1336 = vrot.lane.b32.xlu0 %v1300, 64
      %v1337 = vpop.permute.xlu0 %1336
      %1338 = vrot.lane.b32.xlu0 %v1302, 64
      %v1339 = vpop.permute.xlu0 %1338
      %1340 = vrot.lane.b32.xlu0 %v1304, 64
      %v1341 = vpop.permute.xlu0 %1340
      %1342 = vrot.lane.b32.xlu0 %v1306, 64
      %v1343 = vpop.permute.xlu0 %1342
      %1344 = vrot.lane.b32.xlu0 %v1308, 64
      %v1345 = vpop.permute.xlu0 %1344
      %1346 = vrot.lane.b32.xlu0 %v1310, 64
      %v1347 = vpop.permute.xlu0 %1346
      %1348 = vrot.lane.b32.xlu0 %v1312, 64
      %v1349 = vpop.permute.xlu0 %1348
      %1350 = vrot.lane.b32.xlu0 %v1314, 64
      %v1351 = vpop.permute.xlu0 %1350
      %1352 = vrot.lane.b32.xlu0 %v1316, 64
      %v1353 = vpop.permute.xlu0 %1352
      %1354 = vrot.lane.b32.xlu0 %v1318, 64
      %v1355 = vpop.permute.xlu0 %1354
      %1356 = vrot.lane.b32.xlu0 %v1320, 64
      %v1357 = vpop.permute.xlu0 %1356
      %1358 = vrot.lane.b32.xlu0 %v1322, 64
      %v1359 = vpop.permute.xlu0 %1358
      %1360 = vrot.lane.b32.xlu0 %v1324, 64
      %v1361 = vpop.permute.xlu0 %1360
      %1362 = vrot.lane.b32.xlu0 %v1327, 64
      %v1363 = vpop.permute.xlu0 %1362
      %vm1364 = vsmask.f32 6400
      %v1365 = vrot.slane %v1096, 1
      %v1366 = vrot.slane %v1092, 2
      %v1367 = vor.u32 %v1365, %v1366
      %v1368 = vrot.slane %v1104, 1
      %v1369 = vrot.slane %v1100, 2
      %v1370 = vor.u32 %v1368, %v1369
      %v1371 = vsel %vm1364, %v1367, %v1370
      %v1372 = vrot.slane %v1112, 1
      %v1373 = vrot.slane %v1108, 2
      %v1374 = vor.u32 %v1372, %v1373
      %v1375 = vsel %vm1364, %v1370, %v1374
      %v1376 = vrot.slane %v1120, 1
      %v1377 = vrot.slane %v1116, 2
      %v1378 = vor.u32 %v1376, %v1377
      %v1379 = vsel %vm1364, %v1374, %v1378
      %v1380 = vrot.slane %v1128, 1
      %v1381 = vrot.slane %v1124, 2
      %v1382 = vor.u32 %v1380, %v1381
      %v1383 = vsel %vm1364, %v1378, %v1382
      %v1384 = vrot.slane %v1136, 1
      %v1385 = vrot.slane %v1132, 2
      %v1386 = vor.u32 %v1384, %v1385
      %v1387 = vsel %vm1364, %v1382, %v1386
      %v1388 = vrot.slane %v1144, 1
      %v1389 = vrot.slane %v1140, 2
      %v1390 = vor.u32 %v1388, %v1389
      %v1391 = vsel %vm1364, %v1386, %v1390
      %v1392 = vrot.slane %v1152, 1
      %v1393 = vrot.slane %v1148, 2
      %v1394 = vor.u32 %v1392, %v1393
      %v1395 = vsel %vm1364, %v1390, %v1394
      %v1396 = vrot.slane %v1160, 1
      %v1397 = vrot.slane %v1156, 2
      %v1398 = vor.u32 %v1396, %v1397
      %v1399 = vsel %vm1364, %v1394, %v1398
      %v1400 = vrot.slane %v1168, 1
      %v1401 = vrot.slane %v1164, 2
      %v1402 = vor.u32 %v1400, %v1401
      %v1403 = vsel %vm1364, %v1398, %v1402
      %v1404 = vrot.slane %v1176, 1
      %v1405 = vrot.slane %v1172, 2
      %v1406 = vor.u32 %v1404, %v1405
      %v1407 = vsel %vm1364, %v1402, %v1406
      %v1408 = vrot.slane %v1184, 1
      %v1409 = vrot.slane %v1180, 2
      %v1410 = vor.u32 %v1408, %v1409
      %v1411 = vsel %vm1364, %v1406, %v1410
      %v1412 = vrot.slane %v1192, 1
      %v1413 = vrot.slane %v1188, 2
      %v1414 = vor.u32 %v1412, %v1413
      %v1415 = vsel %vm1364, %v1410, %v1414
      %v1416 = vrot.slane %v1200, 1
      %v1417 = vrot.slane %v1196, 2
      %v1418 = vor.u32 %v1416, %v1417
      %v1419 = vsel %vm1364, %v1414, %v1418
      %v1420 = vrot.slane %v1208, 1
      %v1421 = vrot.slane %v1204, 2
      %v1422 = vor.u32 %v1420, %v1421
      %v1423 = vsel %vm1364, %v1418, %v1422
      %v1424 = vrot.slane %v1216, 1
      %v1425 = vrot.slane %v1212, 2
      %v1426 = vor.u32 %v1424, %v1425
      %v1427 = vsel %vm1364, %v1422, %v1426
      %v1428 = vrot.slane %v1224, 1
      %v1429 = vrot.slane %v1220, 2
      %v1430 = vor.u32 %v1428, %v1429
      %v1431 = vsel %vm1364, %v1426, %v1430
      %v1432 = vshrl.u32 %v1017, 16
      %v1434 = vrot.slane %v1432, 1
      %v1435 = vrot.slane %v1228, 2
      %v1436 = vor.u32 %v1434, %v1435
      %v1437 = vsel %vm1364, %v1430, %v1436
      %v1439 = vshrl.u32 %v1018, 16
      %v1441 = vrot.slane %v1439, 1
      %v1442 = vshll.u32 %v1018, 16
      %v1444 = vrot.slane %v1442, 2
      %v1445 = vor.u32 %v1441, %v1444
      %v1446 = vsel %vm1364, %v1436, %v1445
      %vm1447 = vcmask 1045504
      %v1448 = vrot.slane %v1000, 2
      %v1449 = vrot.slane %v1001, 2
      %v1450 = vsel %vm1447, %v1448, %v1449
      %v1451 = vrot.slane %v1002, 2
      %v1452 = vsel %vm1447, %v1449, %v1451
      %v1453 = vrot.slane %v1003, 2
      %v1454 = vsel %vm1447, %v1451, %v1453
      %v1455 = vrot.slane %v1004, 2
      %v1456 = vsel %vm1447, %v1453, %v1455
      %v1457 = vrot.slane %v1005, 2
      %v1458 = vsel %vm1447, %v1455, %v1457
      %v1459 = vrot.slane %v1006, 2
      %v1460 = vsel %vm1447, %v1457, %v1459
      %v1461 = vrot.slane %v1007, 2
      %v1462 = vsel %vm1447, %v1459, %v1461
      %v1463 = vrot.slane %v1008, 2
      %v1464 = vsel %vm1447, %v1461, %v1463
      %v1465 = vrot.slane %v1009, 2
      %v1466 = vsel %vm1447, %v1463, %v1465
      %v1467 = vrot.slane %v1010, 2
      %v1468 = vsel %vm1447, %v1465, %v1467
      %v1469 = vrot.slane %v1011, 2
      %v1470 = vsel %vm1447, %v1467, %v1469
      %v1471 = vrot.slane %v1012, 2
      %v1472 = vsel %vm1447, %v1469, %v1471
      %v1473 = vrot.slane %v1013, 2
      %v1474 = vsel %vm1447, %v1471, %v1473
      %v1475 = vrot.slane %v1014, 2
      %v1476 = vsel %vm1447, %v1473, %v1475
      %v1477 = vrot.slane %v1015, 2
      %v1478 = vsel %vm1447, %v1475, %v1477
      %v1479 = vrot.slane %v1016, 2
      %v1480 = vsel %vm1447, %v1477, %v1479
      %v1481 = vrot.slane %v1017, 2
      %v1482 = vsel %vm1447, %v1479, %v1481
      %v1483 = vrot.slane %v1018, 2
      %v1484 = vsel %vm1447, %v1481, %v1483
      %1485 = vrot.lane.b32.xlu0 %v1450, 64
      %v1486 = vpop.permute.xlu0 %1485
      %1487 = vrot.lane.b32.xlu0 %v1452, 64
      %v1488 = vpop.permute.xlu0 %1487
      %1489 = vrot.lane.b32.xlu0 %v1454, 64
      %v1490 = vpop.permute.xlu0 %1489
      %1491 = vrot.lane.b32.xlu0 %v1456, 64
      %v1492 = vpop.permute.xlu0 %1491
      %1493 = vrot.lane.b32.xlu0 %v1458, 64
      %v1494 = vpop.permute.xlu0 %1493
      %1495 = vrot.lane.b32.xlu0 %v1460, 64
      %v1496 = vpop.permute.xlu0 %1495
      %1497 = vrot.lane.b32.xlu0 %v1462, 64
      %v1498 = vpop.permute.xlu0 %1497
      %1499 = vrot.lane.b32.xlu0 %v1464, 64
      %v1500 = vpop.permute.xlu0 %1499
      %1501 = vrot.lane.b32.xlu0 %v1466, 64
      %v1502 = vpop.permute.xlu0 %1501
      %1503 = vrot.lane.b32.xlu0 %v1468, 64
      %v1504 = vpop.permute.xlu0 %1503
      %1505 = vrot.lane.b32.xlu0 %v1470, 64
      %v1506 = vpop.permute.xlu0 %1505
      %1507 = vrot.lane.b32.xlu0 %v1472, 64
      %v1508 = vpop.permute.xlu0 %1507
      %1509 = vrot.lane.b32.xlu0 %v1474, 64
      %v1510 = vpop.permute.xlu0 %1509
      %1511 = vrot.lane.b32.xlu0 %v1476, 64
      %v1512 = vpop.permute.xlu0 %1511
      %1513 = vrot.lane.b32.xlu0 %v1478, 64
      %v1514 = vpop.permute.xlu0 %1513
      %1515 = vrot.lane.b32.xlu0 %v1480, 64
      %v1516 = vpop.permute.xlu0 %1515
      %1517 = vrot.lane.b32.xlu0 %v1482, 64
      %v1518 = vpop.permute.xlu0 %1517
      %1519 = vrot.lane.b32.xlu0 %v1484, 64
      %v1520 = vpop.permute.xlu0 %1519
      %v1522 = vrot.slane %v1019, 2
      %v1523 = vsel %vm1447, %v1483, %v1522
      %vm1524 = vsmask.f32 5376
      %v1525 = vrot.slane %v1104, 2
      %v1526 = vrot.slane %v1100, 3
      %v1527 = vor.u32 %v1525, %v1526
      %v1528 = vrot.slane %v1112, 2
      %v1529 = vrot.slane %v1108, 3
      %v1530 = vor.u32 %v1528, %v1529
      %v1531 = vsel %vm1524, %v1527, %v1530
      %v1532 = vrot.slane %v1120, 2
      %v1533 = vrot.slane %v1116, 3
      %v1534 = vor.u32 %v1532, %v1533
      %v1535 = vsel %vm1524, %v1530, %v1534
      %v1536 = vrot.slane %v1128, 2
      %v1537 = vrot.slane %v1124, 3
      %v1538 = vor.u32 %v1536, %v1537
      %v1539 = vsel %vm1524, %v1534, %v1538
      %v1540 = vrot.slane %v1136, 2
      %v1541 = vrot.slane %v1132, 3
      %v1542 = vor.u32 %v1540, %v1541
      %v1543 = vsel %vm1524, %v1538, %v1542
      %v1544 = vrot.slane %v1144, 2
      %v1545 = vrot.slane %v1140, 3
      %v1546 = vor.u32 %v1544, %v1545
      %v1547 = vsel %vm1524, %v1542, %v1546
      %v1548 = vrot.slane %v1152, 2
      %v1549 = vrot.slane %v1148, 3
      %v1550 = vor.u32 %v1548, %v1549
      %v1551 = vsel %vm1524, %v1546, %v1550
      %v1552 = vrot.slane %v1160, 2
      %v1553 = vrot.slane %v1156, 3
      %v1554 = vor.u32 %v1552, %v1553
      %v1555 = vsel %vm1524, %v1550, %v1554
      %v1556 = vrot.slane %v1168, 2
      %v1557 = vrot.slane %v1164, 3
      %v1558 = vor.u32 %v1556, %v1557
      %v1559 = vsel %vm1524, %v1554, %v1558
      %v1560 = vrot.slane %v1176, 2
      %v1561 = vrot.slane %v1172, 3
      %v1562 = vor.u32 %v1560, %v1561
      %v1563 = vsel %vm1524, %v1558, %v1562
      %v1564 = vrot.slane %v1184, 2
      %v1565 = vrot.slane %v1180, 3
      %v1566 = vor.u32 %v1564, %v1565
      %v1567 = vsel %vm1524, %v1562, %v1566
      %v1568 = vrot.slane %v1192, 2
      %v1569 = vrot.slane %v1188, 3
      %v1570 = vor.u32 %v1568, %v1569
      %v1571 = vsel %vm1524, %v1566, %v1570
      %v1572 = vrot.slane %v1200, 2
      %v1573 = vrot.slane %v1196, 3
      %v1574 = vor.u32 %v1572, %v1573
      %v1575 = vsel %vm1524, %v1570, %v1574
      %v1576 = vrot.slane %v1208, 2
      %v1577 = vrot.slane %v1204, 3
      %v1578 = vor.u32 %v1576, %v1577
      %v1579 = vsel %vm1524, %v1574, %v1578
      %v1580 = vrot.slane %v1216, 2
      %v1581 = vrot.slane %v1212, 3
      %v1582 = vor.u32 %v1580, %v1581
      %v1583 = vsel %vm1524, %v1578, %v1582
      %v1584 = vrot.slane %v1224, 2
      %v1585 = vrot.slane %v1220, 3
      %v1586 = vor.u32 %v1584, %v1585
      %v1587 = vsel %vm1524, %v1582, %v1586
      %v1588 = vrot.slane %v1432, 2
      %v1589 = vrot.slane %v1228, 3
      %v1590 = vor.u32 %v1588, %v1589
      %v1591 = vsel %vm1524, %v1586, %v1590
      %v1592 = vrot.slane %v1439, 2
      %v1593 = vrot.slane %v1442, 3
      %v1594 = vor.u32 %v1592, %v1593
      %v1595 = vsel %vm1524, %v1590, %v1594
      %v1597 = vshrl.u32 %v1019, 16
      %v1599 = vrot.slane %v1597, 2
      %v1600 = vshll.u32 %v1019, 16
      %v1602 = vrot.slane %v1600, 3
      %v1603 = vor.u32 %v1599, %v1602
      %v1604 = vsel %vm1524, %v1594, %v1603
      %1605 = vrot.lane.b32.xlu0 %v1531, 64
      %v1606 = vpop.permute.xlu0 %1605
      %1607 = vrot.lane.b32.xlu0 %v1535, 64
      %v1608 = vpop.permute.xlu0 %1607
      %1609 = vrot.lane.b32.xlu0 %v1539, 64
      %v1610 = vpop.permute.xlu0 %1609
      %1611 = vrot.lane.b32.xlu0 %v1543, 64
      %v1612 = vpop.permute.xlu0 %1611
      %1613 = vrot.lane.b32.xlu0 %v1547, 64
      %v1614 = vpop.permute.xlu0 %1613
      %1615 = vrot.lane.b32.xlu0 %v1551, 64
      %v1616 = vpop.permute.xlu0 %1615
      %1617 = vrot.lane.b32.xlu0 %v1555, 64
      %v1618 = vpop.permute.xlu0 %1617
      %1619 = vrot.lane.b32.xlu0 %v1559, 64
      %v1620 = vpop.permute.xlu0 %1619
      %1621 = vrot.lane.b32.xlu0 %v1563, 64
      %v1622 = vpop.permute.xlu0 %1621
      %1623 = vrot.lane.b32.xlu0 %v1567, 64
      %v1624 = vpop.permute.xlu0 %1623
      %1625 = vrot.lane.b32.xlu0 %v1571, 64
      %v1626 = vpop.permute.xlu0 %1625
      %1627 = vrot.lane.b32.xlu0 %v1575, 64
      %v1628 = vpop.permute.xlu0 %1627
      %1629 = vrot.lane.b32.xlu0 %v1579, 64
      %v1630 = vpop.permute.xlu0 %1629
      %1631 = vrot.lane.b32.xlu0 %v1583, 64
      %v1632 = vpop.permute.xlu0 %1631
      %1633 = vrot.lane.b32.xlu0 %v1587, 64
      %v1634 = vpop.permute.xlu0 %1633
      %1635 = vrot.lane.b32.xlu0 %v1591, 64
      %v1636 = vpop.permute.xlu0 %1635
      %1637 = vrot.lane.b32.xlu0 %v1595, 64
      %v1638 = vpop.permute.xlu0 %1637
      %1639 = vrot.lane.b32.xlu0 %v1604, 64
      %v1640 = vpop.permute.xlu0 %1639
      %vm1641 = vcmask 1044480
      %v1642 = vrot.slane %v1001, 3
      %v1643 = vrot.slane %v1002, 3
      %v1644 = vsel %vm1641, %v1642, %v1643
      %v1645 = vrot.slane %v1003, 3
      %v1646 = vsel %vm1641, %v1643, %v1645
      %v1647 = vrot.slane %v1004, 3
      %v1648 = vsel %vm1641, %v1645, %v1647
      %v1649 = vrot.slane %v1005, 3
      %v1650 = vsel %vm1641, %v1647, %v1649
      %v1651 = vrot.slane %v1006, 3
      %v1652 = vsel %vm1641, %v1649, %v1651
      %v1653 = vrot.slane %v1007, 3
      %v1654 = vsel %vm1641, %v1651, %v1653
      %v1655 = vrot.slane %v1008, 3
      %v1656 = vsel %vm1641, %v1653, %v1655
      %v1657 = vrot.slane %v1009, 3
      %v1658 = vsel %vm1641, %v1655, %v1657
      %v1659 = vrot.slane %v1010, 3
      %v1660 = vsel %vm1641, %v1657, %v1659
      %v1661 = vrot.slane %v1011, 3
      %v1662 = vsel %vm1641, %v1659, %v1661
      %v1663 = vrot.slane %v1012, 3
      %v1664 = vsel %vm1641, %v1661, %v1663
      %v1665 = vrot.slane %v1013, 3
      %v1666 = vsel %vm1641, %v1663, %v1665
      %v1667 = vrot.slane %v1014, 3
      %v1668 = vsel %vm1641, %v1665, %v1667
      %v1669 = vrot.slane %v1015, 3
      %v1670 = vsel %vm1641, %v1667, %v1669
      %v1671 = vrot.slane %v1016, 3
      %v1672 = vsel %vm1641, %v1669, %v1671
      %v1673 = vrot.slane %v1017, 3
      %v1674 = vsel %vm1641, %v1671, %v1673
      %v1675 = vrot.slane %v1018, 3
      %v1676 = vsel %vm1641, %v1673, %v1675
      %v1677 = vrot.slane %v1019, 3
      %v1678 = vsel %vm1641, %v1675, %v1677
      %v1680 = vsel %vm219, %v999, %v1233
      %v1683 = vsel %vm219, %v1000, %v1235
      %v1686 = vsel %vm219, %v1001, %v1237
      %v1689 = vsel %vm219, %v1002, %v1239
      %v1692 = vsel %vm219, %v1003, %v1241
      %v1695 = vsel %vm219, %v1004, %v1243
      %v1698 = vsel %vm219, %v1005, %v1245
      %v1701 = vsel %vm219, %v1006, %v1247
      %v1704 = vsel %vm219, %v1007, %v1249
      %v1707 = vsel %vm219, %v1008, %v1251
      %v1710 = vsel %vm219, %v1009, %v1253
      %v1713 = vsel %vm219, %v1010, %v1255
      %v1716 = vsel %vm219, %v1011, %v1257
      %v1719 = vsel %vm219, %v1012, %v1259
      %v1722 = vsel %vm219, %v1013, %v1261
      %v1725 = vsel %vm219, %v1014, %v1263
      %v1728 = vsel %vm219, %v1015, %v1265
      %v1731 = vsel %vm219, %v1016, %v1267
      %v1735 = vsel %vm219, %v1290, %v1329
      %v1739 = vsel %vm219, %v1292, %v1331
      %v1743 = vsel %vm219, %v1294, %v1333
      %v1747 = vsel %vm219, %v1296, %v1335
      %v1751 = vsel %vm219, %v1298, %v1337
      %v1755 = vsel %vm219, %v1300, %v1339
      %v1759 = vsel %vm219, %v1302, %v1341
      %v1763 = vsel %vm219, %v1304, %v1343
      %v1767 = vsel %vm219, %v1306, %v1345
      %v1771 = vsel %vm219, %v1308, %v1347
      %v1775 = vsel %vm219, %v1310, %v1349
      %v1779 = vsel %vm219, %v1312, %v1351
      %v1783 = vsel %vm219, %v1314, %v1353
      %v1787 = vsel %vm219, %v1316, %v1355
      %v1791 = vsel %vm219, %v1318, %v1357
      %v1795 = vsel %vm219, %v1320, %v1359
      %v1799 = vsel %vm219, %v1322, %v1361
      %v1803 = vsel %vm219, %v1324, %v1363
      %v1807 = vsel %vm219, %v1371, %v1486
      %v1811 = vsel %vm219, %v1375, %v1488
      %v1815 = vsel %vm219, %v1379, %v1490
      %v1819 = vsel %vm219, %v1383, %v1492
      %v1823 = vsel %vm219, %v1387, %v1494
      %v1827 = vsel %vm219, %v1391, %v1496
      %v1831 = vsel %vm219, %v1395, %v1498
      %v1835 = vsel %vm219, %v1399, %v1500
      %v1839 = vsel %vm219, %v1403, %v1502
      %v1843 = vsel %vm219, %v1407, %v1504
      %v1847 = vsel %vm219, %v1411, %v1506
      %v1851 = vsel %vm219, %v1415, %v1508
      %v1855 = vsel %vm219, %v1419, %v1510
      %v1859 = vsel %vm219, %v1423, %v1512
      %v1863 = vsel %vm219, %v1427, %v1514
      %v1867 = vsel %vm219, %v1431, %v1516
      %v1871 = vsel %vm219, %v1437, %v1518
      %v1875 = vsel %vm219, %v1446, %v1520
      %v1879 = vsel %vm219, %v1452, %v1606
      %v1883 = vsel %vm219, %v1454, %v1608
      %v1887 = vsel %vm219, %v1456, %v1610
      %v1891 = vsel %vm219, %v1458, %v1612
      %v1895 = vsel %vm219, %v1460, %v1614
      %v1899 = vsel %vm219, %v1462, %v1616
      %v1903 = vsel %vm219, %v1464, %v1618
      %v1907 = vsel %vm219, %v1466, %v1620
      %v1911 = vsel %vm219, %v1468, %v1622
      %v1915 = vsel %vm219, %v1470, %v1624
      %v1919 = vsel %vm219, %v1472, %v1626
      %v1923 = vsel %vm219, %v1474, %v1628
      %v1927 = vsel %vm219, %v1476, %v1630
      %v1931 = vsel %vm219, %v1478, %v1632
      %v1935 = vsel %vm219, %v1480, %v1634
      %v1939 = vsel %vm219, %v1482, %v1636
      %v1943 = vsel %vm219, %v1484, %v1638
      %v1947 = vsel %vm219, %v1523, %v1640
      %v1949 = vld [vmem:[%s2] sm:$0xf]
      %v1950 = vld [vmem:[%s2 + $0x4] sm:$0xf]
      %v1951 = vld [vmem:[%s2 + $0x8] sm:$0xf]
      %v1952 = vld [vmem:[%s2 + $0xc] sm:$0xf]
      %v1953 = vld [vmem:[%s2 + $0x10] sm:$0xf]
      %v1954 = vld [vmem:[%s2 + $0x14] sm:$0xf]
      %v1955 = vld [vmem:[%s2 + $0x18] sm:$0xf]
      %v1956 = vld [vmem:[%s2 + $0x1c] sm:$0xf]
      %v1957 = vld [vmem:[%s2 + $0x20] sm:$0xf]
      %v1958 = vld [vmem:[%s2 + $0x24] sm:$0xf]
      %v1959 = vld [vmem:[%s2 + $0x28] sm:$0xf]
      %v1960 = vld [vmem:[%s2 + $0x2c] sm:$0xf]
      %v1961 = vld [vmem:[%s2 + $0x30] sm:$0xf]
      %v1962 = vld [vmem:[%s2 + $0x34] sm:$0xf]
      %v1963 = vld [vmem:[%s2 + $0x38] sm:$0xf]
      %v1964 = vld [vmem:[%s2 + $0x3c] sm:$0xf]
      %v1965 = vld [vmem:[%s2 + $0x40] sm:$0xf]
      %v1966 = vld [vmem:[%s2 + $0x44] sm:$0xf]
      %v1967 = vld [vmem:[%s2 + $0x48] sm:$0xf]
      %v1968 = vld [vmem:[%s2 + $0x4c] sm:$0xf]
      %v1969 = vld [vmem:[%s2 + $0x50] sm:$0xf]
      %v1970 = vld [vmem:[%s2 + $0x54] sm:$0xf]
      %v1971 = vld [vmem:[%s2 + $0x58] sm:$0xf]
      %v1972 = vld [vmem:[%s2 + $0x5c] sm:$0xf]
      %v1973 = vld [vmem:[%s2 + $0x60] sm:$0xf]
      %v1974 = vld [vmem:[%s2 + $0x64] sm:$0xf]
      %v1975 = vld [vmem:[%s2 + $0x68] sm:$0xf]
      %v1976 = vld [vmem:[%s2 + $0x6c] sm:$0xf]
      %v1977 = vld [vmem:[%s2 + $0x70] sm:$0xf]
      %v1978 = vld [vmem:[%s2 + $0x74] sm:$0xf]
      %v1979 = vld [vmem:[%s2 + $0x78] sm:$0xf]
      %v1980 = vld [vmem:[%s2 + $0x7c] sm:$0xf]
      %v1981 = vld [vmem:[%s2 + $0x80] sm:$0xf]
      %v1982 = vld [vmem:[%s2 + $0x84] sm:$0xf]
      %v1983 = vld [vmem:[%s2 + $0x88] sm:$0xf]
      %v1984 = vld [vmem:[%s2 + $0x8c] sm:$0xf]
      %v1985 = vld [vmem:[%s2 + $0x90] sm:$0xf]
      %v1986 = vld [vmem:[%s2 + $0x94] sm:$0xf]
      %v1987 = vld [vmem:[%s2 + $0x98] sm:$0xf]
      %v1988 = vld [vmem:[%s2 + $0x9c] sm:$0xf]
      %v1989 = vld [vmem:[%s2 + $0xa0] sm:$0xf]
      %v1990 = vld [vmem:[%s2 + $0xa4] sm:$0xf]
      %v1991 = vld [vmem:[%s2 + $0xa8] sm:$0xf]
      %v1992 = vld [vmem:[%s2 + $0xac] sm:$0xf]
      %v1993 = vld [vmem:[%s2 + $0xb0] sm:$0xf]
      %v1994 = vld [vmem:[%s2 + $0xb4] sm:$0xf]
      %v1995 = vld [vmem:[%s2 + $0xb8] sm:$0xf]
      %v1996 = vld [vmem:[%s2 + $0xbc] sm:$0xf]
      %v1997 = vld [vmem:[%s2 + $0xc0] sm:$0xf]
      %v1998 = vld [vmem:[%s2 + $0xc4] sm:$0xf]
      %v1999 = vld [vmem:[%s2 + $0xc8] sm:$0xf]
      %v2000 = vld [vmem:[%s2 + $0xcc] sm:$0xf]
      %v2001 = vld [vmem:[%s2 + $0xd0] sm:$0xf]
      %v2002 = vld [vmem:[%s2 + $0xd4] sm:$0xf]
      %v2003 = vld [vmem:[%s2 + $0xd8] sm:$0xf]
      %v2004 = vld [vmem:[%s2 + $0xdc] sm:$0xf]
      %v2005 = vld [vmem:[%s2 + $0xe0] sm:$0xf]
      %v2006 = vld [vmem:[%s2 + $0xe4] sm:$0xf]
      %v2007 = vld [vmem:[%s2 + $0xe8] sm:$0xf]
      %v2008 = vld [vmem:[%s2 + $0xec] sm:$0xf]
      %v2009 = vld [vmem:[%s2 + $0xf0] sm:$0xf]
      %v2010 = vld [vmem:[%s2 + $0xf4] sm:$0xf]
      %v2011 = vld [vmem:[%s2 + $0xf8] sm:$0xf]
      %v2012 = vld [vmem:[%s2 + $0xfc] sm:$0xf]
      %v2013 = vld [vmem:[%s2 + $0x100] sm:$0xf]
      %v2014 = vld [vmem:[%s2 + $0x104] sm:$0xf]
      %v2015 = vld [vmem:[%s2 + $0x108] sm:$0xf]
      %v2016 = vld [vmem:[%s2 + $0x10c] sm:$0xf]
      %v2017 = vld [vmem:[%s2 + $0x110] sm:$0xf]
      %v2018 = vld [vmem:[%s2 + $0x114] sm:$0xf]
      %v2019 = vld [vmem:[%s2 + $0x118] sm:$0xf]
      %v2020 = vld [vmem:[%s2 + $0x11c] sm:$0xf]
      %v2021 = vld [vmem:[%s3] sm:$0x1]
      %v2023 = vlaneseq
      %v2024 = vshrl.u32 %v2023, 7
      %v2025 = vsub.s32 0, %v2024
      %v2026 = vrot.slane %v2021, %v2025
      %v2100 = vunpack.c.l.b16 %v1949
      %v2101 = vunpack.c.l.b16 %v1950
      %v2102 = vunpack.c.l.b16 %v1951
      %v2103 = vunpack.c.l.b16 %v1952
      %v2104 = vunpack.c.l.b16 %v1953
      %v2105 = vunpack.c.l.b16 %v1954
      %v2106 = vunpack.c.l.b16 %v1955
      %v2107 = vunpack.c.l.b16 %v1956
      %v2108 = vunpack.c.l.b16 %v1957
      %v2109 = vunpack.c.l.b16 %v1958
      %v2110 = vunpack.c.l.b16 %v1959
      %v2111 = vunpack.c.l.b16 %v1960
      %v2112 = vunpack.c.l.b16 %v1961
      %v2113 = vunpack.c.l.b16 %v1962
      %v2114 = vunpack.c.l.b16 %v1963
      %v2115 = vunpack.c.l.b16 %v1964
      %v2116 = vunpack.c.l.b16 %v1965
      %v2117 = vunpack.c.l.b16 %v1966
      %v2118 = vunpack.c.l.b16 %v1967
      %v2119 = vunpack.c.l.b16 %v1968
      %v2120 = vunpack.c.l.b16 %v1969
      %v2121 = vunpack.c.l.b16 %v1970
      %v2122 = vunpack.c.l.b16 %v1971
      %v2123 = vunpack.c.l.b16 %v1972
      %v2124 = vunpack.c.l.b16 %v1973
      %v2125 = vunpack.c.l.b16 %v1974
      %v2126 = vunpack.c.l.b16 %v1975
      %v2127 = vunpack.c.l.b16 %v1976
      %v2128 = vunpack.c.l.b16 %v1977
      %v2129 = vunpack.c.l.b16 %v1978
      %v2130 = vunpack.c.l.b16 %v1979
      %v2131 = vunpack.c.l.b16 %v1980
      %v2132 = vunpack.c.l.b16 %v1981
      %v2133 = vunpack.c.l.b16 %v1982
      %v2134 = vunpack.c.l.b16 %v1983
      %v2135 = vunpack.c.l.b16 %v1984
      %v2136 = vunpack.c.l.b16 %v1985
      %v2137 = vunpack.c.l.b16 %v1986
      %v2138 = vunpack.c.l.b16 %v1987
      %v2139 = vunpack.c.l.b16 %v1988
      %v2140 = vunpack.c.l.b16 %v1989
      %v2141 = vunpack.c.l.b16 %v1990
      %v2142 = vunpack.c.l.b16 %v1991
      %v2143 = vunpack.c.l.b16 %v1992
      %v2144 = vunpack.c.l.b16 %v1993
      %v2145 = vunpack.c.l.b16 %v1994
      %v2146 = vunpack.c.l.b16 %v1995
      %v2147 = vunpack.c.l.b16 %v1996
      %v2148 = vunpack.c.l.b16 %v1997
      %v2149 = vunpack.c.l.b16 %v1998
      %v2150 = vunpack.c.l.b16 %v1999
      %v2151 = vunpack.c.l.b16 %v2000
      %v2152 = vunpack.c.l.b16 %v2001
      %v2153 = vunpack.c.l.b16 %v2002
      %v2154 = vunpack.c.l.b16 %v2003
      %v2155 = vunpack.c.l.b16 %v2004
      %v2156 = vunpack.c.l.b16 %v2005
      %v2157 = vunpack.c.l.b16 %v2006
      %v2158 = vunpack.c.l.b16 %v2007
      %v2159 = vunpack.c.l.b16 %v2008
      %v2160 = vunpack.c.l.b16 %v2009
      %v2161 = vunpack.c.l.b16 %v2010
      %v2162 = vunpack.c.l.b16 %v2011
      %v2163 = vunpack.c.l.b16 %v2012
      %v2164 = vunpack.c.l.b16 %v2013
      %v2165 = vunpack.c.l.b16 %v2014
      %v2166 = vunpack.c.l.b16 %v2015
      %v2167 = vunpack.c.l.b16 %v2016
      %v2168 = vunpack.c.l.b16 %v2017
      %v2169 = vunpack.c.l.b16 %v2018
      %v2170 = vunpack.c.l.b16 %v2019
      %v2171 = vunpack.c.l.b16 %v2020
      %v2172 = vpack.c.b16 %v2101, %v2100
      %v2173 = vpack.c.b16 %v2103, %v2102
      %v2174 = vpack.c.b16 %v2105, %v2104
      %v2175 = vpack.c.b16 %v2107, %v2106
      %v2176 = vpack.c.b16 %v2109, %v2108
      %v2177 = vpack.c.b16 %v2111, %v2110
      %v2178 = vpack.c.b16 %v2113, %v2112
      %v2179 = vpack.c.b16 %v2115, %v2114
      %v2180 = vpack.c.b16 %v2117, %v2116
      %v2181 = vpack.c.b16 %v2119, %v2118
      %v2182 = vpack.c.b16 %v2121, %v2120
      %v2183 = vpack.c.b16 %v2123, %v2122
      %v2184 = vpack.c.b16 %v2125, %v2124
      %v2185 = vpack.c.b16 %v2127, %v2126
      %v2186 = vpack.c.b16 %v2129, %v2128
      %v2187 = vpack.c.b16 %v2131, %v2130
      %v2188 = vpack.c.b16 %v2133, %v2132
      %v2189 = vpack.c.b16 %v2135, %v2134
      %v2190 = vpack.c.b16 %v2137, %v2136
      %v2191 = vpack.c.b16 %v2139, %v2138
      %v2192 = vpack.c.b16 %v2141, %v2140
      %v2193 = vpack.c.b16 %v2143, %v2142
      %v2194 = vpack.c.b16 %v2145, %v2144
      %v2195 = vpack.c.b16 %v2147, %v2146
      %v2196 = vpack.c.b16 %v2149, %v2148
      %v2197 = vpack.c.b16 %v2151, %v2150
      %v2198 = vpack.c.b16 %v2153, %v2152
      %v2199 = vpack.c.b16 %v2155, %v2154
      %v2200 = vpack.c.b16 %v2157, %v2156
      %v2201 = vpack.c.b16 %v2159, %v2158
      %v2202 = vpack.c.b16 %v2161, %v2160
      %v2203 = vpack.c.b16 %v2163, %v2162
      %v2204 = vpack.c.b16 %v2165, %v2164
      %v2205 = vpack.c.b16 %v2167, %v2166
      %v2206 = vpack.c.b16 %v2169, %v2168
      %v2207 = vpack.c.b16 %v2171, %v2170
      %v2245 = vsel %vm219, %v1644, 0
      %v2248 = vsel %vm219, %v1646, 0
      %v2251 = vsel %vm219, %v1648, 0
      %v2254 = vsel %vm219, %v1650, 0
      %v2257 = vsel %vm219, %v1652, 0
      %v2260 = vsel %vm219, %v1654, 0
      %v2263 = vsel %vm219, %v1656, 0
      %v2266 = vsel %vm219, %v1658, 0
      %v2269 = vsel %vm219, %v1660, 0
      %v2272 = vsel %vm219, %v1662, 0
      %v2275 = vsel %vm219, %v1664, 0
      %v2278 = vsel %vm219, %v1666, 0
      %v2281 = vsel %vm219, %v1668, 0
      %v2284 = vsel %vm219, %v1670, 0
      %v2287 = vsel %vm219, %v1672, 0
      %v2290 = vsel %vm219, %v1674, 0
      %v2293 = vsel %vm219, %v1676, 0
      %v2296 = vsel %vm219, %v1678, 0
      %2298 = vmatprep.subr.bf16.mxu0 0
      %2299 = vmatpush1.bf16.msra.mxu0 %v2172
      %2300 = vmatprep.subr.bf16.mxu0 0
      %2301 = vmatpush1.bf16.msra.mxu0 %v2173
      %2302 = vmatprep.subr.bf16.mxu0 0
      %2303 = vmatpush1.bf16.msra.mxu0 %v2174
      %2304 = vmatprep.subr.bf16.mxu0 0
      %2305 = vmatpush1.bf16.msra.mxu0 %v2175
      %2306 = vmatprep.subr.bf16.mxu0 0
      %2307 = vmatpush1.bf16.msra.mxu0 %v2176
      %2308 = vmatprep.subr.bf16.mxu0 0
      %2309 = vmatpush1.bf16.msra.mxu0 %v2177
      %2310 = vmatprep.subr.bf16.mxu0 0
      %2311 = vmatpush1.bf16.msra.mxu0 %v2178
      %2312 = vmatprep.subr.bf16.mxu0 0
      %2313 = vmatpush1.bf16.msra.mxu0 %v2179
      %2314 = vmatprep.subr.bf16.mxu0 0
      %2315 = vmatpush1.bf16.msra.mxu0 %v2180
      %2316 = vmatprep.subr.bf16.mxu0 0
      %2317 = vmatpush1.bf16.msra.mxu0 %v2181
      %2318 = vmatprep.subr.bf16.mxu0 0
      %2319 = vmatpush1.bf16.msra.mxu0 %v2182
      %2320 = vmatprep.subr.bf16.mxu0 0
      %2321 = vmatpush1.bf16.msra.mxu0 %v2183
      %2322 = vmatprep.subr.bf16.mxu0 0
      %2323 = vmatpush1.bf16.msra.mxu0 %v2184
      %2324 = vmatprep.subr.bf16.mxu0 0
      %2325 = vmatpush1.bf16.msra.mxu0 %v2185
      %2326 = vmatprep.subr.bf16.mxu0 0
      %2327 = vmatpush1.bf16.msra.mxu0 %v2186
      %2328 = vmatprep.subr.bf16.mxu0 0
      %2329 = vmatpush1.bf16.msra.mxu0 %v2187
      %2330 = vmatprep.mubr.bf16.mxu0 %v1735
      %2331 = vmatmul.mubr.bf16.gmra.mrb[0].mxu0 %v1680
      %v2332 = vpop.f32.mrb[0].mxu0
      %v2333 = vadd.f32 %v2026, %v2332
      %v2334 = vpop.f32.mrb[0].mxu0
      %v2335 = vpop.f32.mrb[0].mxu0
      %v2336 = vadd.f32 %v2026, %v2335
      %v2337 = vpop.f32.mrb[0].mxu0
      %2338 = vmatprep.mubr.bf16.mxu0 %v1739
      %2339 = vmatmul.mubr.bf16.gmra.mrb[0].mxu0 %v1683
      %v2340 = vpop.f32.mrb[0].mxu0
      %v2341 = vadd.f32 %v2026, %v2340
      %v2342 = vpop.f32.mrb[0].mxu0
      %v2343 = vpop.f32.mrb[0].mxu0
      %v2344 = vadd.f32 %v2026, %v2343
      %v2345 = vpop.f32.mrb[0].mxu0
      %2346 = vmatprep.mubr.bf16.mxu0 %v1743
      %2347 = vmatmul.mubr.bf16.gmra.mrb[0].mxu0 %v1686
      %v2348 = vpop.f32.mrb[0].mxu0
      %v2349 = vadd.f32 %v2026, %v2348
      %v2350 = vpop.f32.mrb[0].mxu0
      %v2351 = vpop.f32.mrb[0].mxu0
      %v2352 = vadd.f32 %v2026, %v2351
      %v2353 = vpop.f32.mrb[0].mxu0
      %2354 = vmatprep.mubr.bf16.mxu0 %v1747
      %2355 = vmatmul.mubr.bf16.gmra.mrb[0].mxu0 %v1689
      %v2356 = vpop.f32.mrb[0].mxu0
      %v2357 = vadd.f32 %v2026, %v2356
      %v2358 = vpop.f32.mrb[0].mxu0
      %v2359 = vpop.f32.mrb[0].mxu0
      %v2360 = vadd.f32 %v2026, %v2359
      %v2361 = vpop.f32.mrb[0].mxu0
      %2362 = vmatprep.mubr.bf16.mxu0 %v1751
      %2363 = vmatmul.mubr.bf16.gmra.mrb[0].mxu0 %v1692
      %v2364 = vpop.f32.mrb[0].mxu0
      %v2365 = vadd.f32 %v2026, %v2364
      %v2366 = vpop.f32.mrb[0].mxu0
      %v2367 = vpop.f32.mrb[0].mxu0
      %v2368 = vadd.f32 %v2026, %v2367
      %v2369 = vpop.f32.mrb[0].mxu0
      %2370 = vmatprep.mubr.bf16.mxu0 %v1755
      %2371 = vmatmul.mubr.bf16.gmra.mrb[0].mxu0 %v1695
      %v2372 = vpop.f32.mrb[0].mxu0
      %v2373 = vadd.f32 %v2026, %v2372
      %v2374 = vpop.f32.mrb[0].mxu0
      %v2375 = vpop.f32.mrb[0].mxu0
      %v2376 = vadd.f32 %v2026, %v2375
      %v2377 = vpop.f32.mrb[0].mxu0
      %2378 = vmatprep.mubr.bf16.mxu0 %v1759
      %2379 = vmatmul.mubr.bf16.gmra.mrb[0].mxu0 %v1698
      %v2380 = vpop.f32.mrb[0].mxu0
      %v2381 = vadd.f32 %v2026, %v2380
      %v2382 = vpop.f32.mrb[0].mxu0
      %v2383 = vpop.f32.mrb[0].mxu0
      %v2384 = vadd.f32 %v2026, %v2383
      %v2385 = vpop.f32.mrb[0].mxu0
      %2386 = vmatprep.mubr.bf16.mxu0 %v1763
      %2387 = vmatmul.mubr.bf16.gmra.mrb[0].mxu0 %v1701
      %v2388 = vpop.f32.mrb[0].mxu0
      %v2389 = vadd.f32 %v2026, %v2388
      %v2390 = vpop.f32.mrb[0].mxu0
      %v2391 = vpop.f32.mrb[0].mxu0
      %v2392 = vadd.f32 %v2026, %v2391
      %v2393 = vpop.f32.mrb[0].mxu0
      %2394 = vmatprep.mubr.bf16.mxu0 %v1767
      %2395 = vmatmul.mubr.bf16.gmra.mrb[0].mxu0 %v1704
      %v2396 = vpop.f32.mrb[0].mxu0
      %v2397 = vadd.f32 %v2026, %v2396
      %v2398 = vpop.f32.mrb[0].mxu0
      %v2399 = vpop.f32.mrb[0].mxu0
      %v2400 = vadd.f32 %v2026, %v2399
      %v2401 = vpop.f32.mrb[0].mxu0
      %2402 = vmatprep.mubr.bf16.mxu0 %v1771
      %2403 = vmatmul.mubr.bf16.gmra.mrb[0].mxu0 %v1707
      %v2404 = vpop.f32.mrb[0].mxu0
      %v2405 = vadd.f32 %v2026, %v2404
      %v2406 = vpop.f32.mrb[0].mxu0
      %v2407 = vpop.f32.mrb[0].mxu0
      %v2408 = vadd.f32 %v2026, %v2407
      %v2409 = vpop.f32.mrb[0].mxu0
      %2410 = vmatprep.mubr.bf16.mxu0 %v1775
      %2411 = vmatmul.mubr.bf16.gmra.mrb[0].mxu0 %v1710
      %v2412 = vpop.f32.mrb[0].mxu0
      %v2413 = vadd.f32 %v2026, %v2412
      %v2414 = vpop.f32.mrb[0].mxu0
      %v2415 = vpop.f32.mrb[0].mxu0
      %v2416 = vadd.f32 %v2026, %v2415
      %v2417 = vpop.f32.mrb[0].mxu0
      %2418 = vmatprep.mubr.bf16.mxu0 %v1779
      %2419 = vmatmul.mubr.bf16.gmra.mrb[0].mxu0 %v1713
      %v2420 = vpop.f32.mrb[0].mxu0
      %v2421 = vadd.f32 %v2026, %v2420
      %v2422 = vpop.f32.mrb[0].mxu0
      %v2423 = vpop.f32.mrb[0].mxu0
      %v2424 = vadd.f32 %v2026, %v2423
      %v2425 = vpop.f32.mrb[0].mxu0
      %2426 = vmatprep.mubr.bf16.mxu0 %v1783
      %2427 = vmatmul.mubr.bf16.gmra.mrb[0].mxu0 %v1716
      %v2428 = vpop.f32.mrb[0].mxu0
      %v2429 = vadd.f32 %v2026, %v2428
      %v2430 = vpop.f32.mrb[0].mxu0
      %v2431 = vpop.f32.mrb[0].mxu0
      %v2432 = vadd.f32 %v2026, %v2431
      %v2433 = vpop.f32.mrb[0].mxu0
      %2434 = vmatprep.mubr.bf16.mxu0 %v1787
      %2435 = vmatmul.mubr.bf16.gmra.mrb[0].mxu0 %v1719
      %v2436 = vpop.f32.mrb[0].mxu0
      %v2437 = vadd.f32 %v2026, %v2436
      %v2438 = vpop.f32.mrb[0].mxu0
      %v2439 = vpop.f32.mrb[0].mxu0
      %v2440 = vadd.f32 %v2026, %v2439
      %v2441 = vpop.f32.mrb[0].mxu0
      %2442 = vmatprep.mubr.bf16.mxu0 %v1791
      %2443 = vmatmul.mubr.bf16.gmra.mrb[0].mxu0 %v1722
      %v2444 = vpop.f32.mrb[0].mxu0
      %v2445 = vadd.f32 %v2026, %v2444
      %v2446 = vpop.f32.mrb[0].mxu0
      %v2447 = vpop.f32.mrb[0].mxu0
      %v2448 = vadd.f32 %v2026, %v2447
      %v2449 = vpop.f32.mrb[0].mxu0
      %2450 = vmatprep.mubr.bf16.mxu0 %v1795
      %2451 = vmatmul.mubr.bf16.gmra.mrb[0].mxu0 %v1725
      %v2452 = vpop.f32.mrb[0].mxu0
      %v2453 = vadd.f32 %v2026, %v2452
      %v2454 = vpop.f32.mrb[0].mxu0
      %v2455 = vpop.f32.mrb[0].mxu0
      %v2456 = vadd.f32 %v2026, %v2455
      %v2457 = vpop.f32.mrb[0].mxu0
      %2458 = vmatprep.mubr.bf16.mxu0 %v1799
      %2459 = vmatmul.mubr.bf16.gmra.mrb[0].mxu0 %v1728
      %v2460 = vpop.f32.mrb[0].mxu0
      %v2461 = vadd.f32 %v2026, %v2460
      %v2462 = vpop.f32.mrb[0].mxu0
      %v2463 = vpop.f32.mrb[0].mxu0
      %v2464 = vadd.f32 %v2026, %v2463
      %v2465 = vpop.f32.mrb[0].mxu0
      %2466 = vmatprep.mubr.bf16.mxu0 %v1803
      %2467 = vmatmul.mubr.bf16.gmra.mrb[0].mxu0 %v1731
      %v2468 = vpop.f32.mrb[0].mxu0
      %v2469 = vadd.f32 %v2026, %v2468
      %v2470 = vpop.f32.mrb[0].mxu0
      %v2471 = vpop.f32.mrb[0].mxu0
      %v2472 = vadd.f32 %v2026, %v2471
      %v2473 = vpop.f32.mrb[0].mxu0
      %2474 = vdwg.mxu0
      %2475 = vmatprep.subr.bf16.mxu0 0
      %2476 = vmatpush1.bf16.msra.mxu0 %v2188
      %2477 = vmatprep.subr.bf16.mxu0 0
      %2478 = vmatpush1.bf16.msra.mxu0 %v2189
      %2479 = vmatprep.subr.bf16.mxu0 0
      %2480 = vmatpush1.bf16.msra.mxu0 %v2190
      %2481 = vmatprep.subr.bf16.mxu0 0
      %2482 = vmatpush1.bf16.msra.mxu0 %v2191
      %2483 = vmatprep.subr.bf16.mxu0 0
      %2484 = vmatpush1.bf16.msra.mxu0 %v2192
      %2485 = vmatprep.subr.bf16.mxu0 0
      %2486 = vmatpush1.bf16.msra.mxu0 %v2193
      %2487 = vmatprep.subr.bf16.mxu0 0
      %2488 = vmatpush1.bf16.msra.mxu0 %v2194
      %2489 = vmatprep.subr.bf16.mxu0 0
      %2490 = vmatpush1.bf16.msra.mxu0 %v2195
      %2491 = vmatprep.subr.bf16.mxu0 0
      %2492 = vmatpush1.bf16.msra.mxu0 %v2196
      %2493 = vmatprep.subr.bf16.mxu0 0
      %2494 = vmatpush1.bf16.msra.mxu0 %v2197
      %2495 = vmatprep.subr.bf16.mxu0 0
      %2496 = vmatpush1.bf16.msra.mxu0 %v2198
      %2497 = vmatprep.subr.bf16.mxu0 0
      %2498 = vmatpush1.bf16.msra.mxu0 %v2199
      %2499 = vmatprep.subr.bf16.mxu0 0
      %2500 = vmatpush1.bf16.msra.mxu0 %v2200
      %2501 = vmatprep.subr.bf16.mxu0 0
      %2502 = vmatpush1.bf16.msra.mxu0 %v2201
      %2503 = vmatprep.subr.bf16.mxu0 0
      %2504 = vmatpush1.bf16.msra.mxu0 %v2202
      %2505 = vmatprep.subr.bf16.mxu0 0
      %2506 = vmatpush1.bf16.msra.mxu0 %v2203
      %2507 = vmatprep.mubr.bf16.mxu0 %v1879
      %2508 = vmatmul.mubr.bf16.gmra.mrb[0].mxu0 %v1807
      %v2509 = vpop.f32.mrb[0].mxu0
      %v2510 = vadd.f32 %v2333, %v2509
      %v2511 = vpop.f32.mrb[0].mxu0
      %v2512 = vpop.f32.mrb[0].mxu0
      %v2513 = vadd.f32 %v2336, %v2512
      %v2514 = vpop.f32.mrb[0].mxu0
      %2515 = vmatprep.mubr.bf16.mxu0 %v1883
      %2516 = vmatmul.mubr.bf16.gmra.mrb[0].mxu0 %v1811
      %v2517 = vpop.f32.mrb[0].mxu0
      %v2518 = vadd.f32 %v2341, %v2517
      %v2519 = vpop.f32.mrb[0].mxu0
      %v2520 = vpop.f32.mrb[0].mxu0
      %v2521 = vadd.f32 %v2344, %v2520
      %v2522 = vpop.f32.mrb[0].mxu0
      %2523 = vmatprep.mubr.bf16.mxu0 %v1887
      %2524 = vmatmul.mubr.bf16.gmra.mrb[0].mxu0 %v1815
      %v2525 = vpop.f32.mrb[0].mxu0
      %v2526 = vadd.f32 %v2349, %v2525
      %v2527 = vpop.f32.mrb[0].mxu0
      %v2528 = vpop.f32.mrb[0].mxu0
      %v2529 = vadd.f32 %v2352, %v2528
      %v2530 = vpop.f32.mrb[0].mxu0
      %2531 = vmatprep.mubr.bf16.mxu0 %v1891
      %2532 = vmatmul.mubr.bf16.gmra.mrb[0].mxu0 %v1819
      %v2533 = vpop.f32.mrb[0].mxu0
      %v2534 = vadd.f32 %v2357, %v2533
      %v2535 = vpop.f32.mrb[0].mxu0
      %v2536 = vpop.f32.mrb[0].mxu0
      %v2537 = vadd.f32 %v2360, %v2536
      %v2538 = vpop.f32.mrb[0].mxu0
      %2539 = vmatprep.mubr.bf16.mxu0 %v1895
      %2540 = vmatmul.mubr.bf16.gmra.mrb[0].mxu0 %v1823
      %v2541 = vpop.f32.mrb[0].mxu0
      %v2542 = vadd.f32 %v2365, %v2541
      %v2543 = vpop.f32.mrb[0].mxu0
      %v2544 = vpop.f32.mrb[0].mxu0
      %v2545 = vadd.f32 %v2368, %v2544
      %v2546 = vpop.f32.mrb[0].mxu0
      %2547 = vmatprep.mubr.bf16.mxu0 %v1899
      %2548 = vmatmul.mubr.bf16.gmra.mrb[0].mxu0 %v1827
      %v2549 = vpop.f32.mrb[0].mxu0
      %v2550 = vadd.f32 %v2373, %v2549
      %v2551 = vpop.f32.mrb[0].mxu0
      %v2552 = vpop.f32.mrb[0].mxu0
      %v2553 = vadd.f32 %v2376, %v2552
      %v2554 = vpop.f32.mrb[0].mxu0
      %2555 = vmatprep.mubr.bf16.mxu0 %v1903
      %2556 = vmatmul.mubr.bf16.gmra.mrb[0].mxu0 %v1831
      %v2557 = vpop.f32.mrb[0].mxu0
      %v2558 = vadd.f32 %v2381, %v2557
      %v2559 = vpop.f32.mrb[0].mxu0
      %v2560 = vpop.f32.mrb[0].mxu0
      %v2561 = vadd.f32 %v2384, %v2560
      %v2562 = vpop.f32.mrb[0].mxu0
      %2563 = vmatprep.mubr.bf16.mxu0 %v1907
      %2564 = vmatmul.mubr.bf16.gmra.mrb[0].mxu0 %v1835
      %v2565 = vpop.f32.mrb[0].mxu0
      %v2566 = vadd.f32 %v2389, %v2565
      %v2567 = vpop.f32.mrb[0].mxu0
      %v2568 = vpop.f32.mrb[0].mxu0
      %v2569 = vadd.f32 %v2392, %v2568
      %v2570 = vpop.f32.mrb[0].mxu0
      %2571 = vmatprep.mubr.bf16.mxu0 %v1911
      %2572 = vmatmul.mubr.bf16.gmra.mrb[0].mxu0 %v1839
      %v2573 = vpop.f32.mrb[0].mxu0
      %v2574 = vadd.f32 %v2397, %v2573
      %v2575 = vpop.f32.mrb[0].mxu0
      %v2576 = vpop.f32.mrb[0].mxu0
      %v2577 = vadd.f32 %v2400, %v2576
      %v2578 = vpop.f32.mrb[0].mxu0
      %2579 = vmatprep.mubr.bf16.mxu0 %v1915
      %2580 = vmatmul.mubr.bf16.gmra.mrb[0].mxu0 %v1843
      %v2581 = vpop.f32.mrb[0].mxu0
      %v2582 = vadd.f32 %v2405, %v2581
      %v2583 = vpop.f32.mrb[0].mxu0
      %v2584 = vpop.f32.mrb[0].mxu0
      %v2585 = vadd.f32 %v2408, %v2584
      %v2586 = vpop.f32.mrb[0].mxu0
      %2587 = vmatprep.mubr.bf16.mxu0 %v1919
      %2588 = vmatmul.mubr.bf16.gmra.mrb[0].mxu0 %v1847
      %v2589 = vpop.f32.mrb[0].mxu0
      %v2590 = vadd.f32 %v2413, %v2589
      %v2591 = vpop.f32.mrb[0].mxu0
      %v2592 = vpop.f32.mrb[0].mxu0
      %v2593 = vadd.f32 %v2416, %v2592
      %v2594 = vpop.f32.mrb[0].mxu0
      %2595 = vmatprep.mubr.bf16.mxu0 %v1923
      %2596 = vmatmul.mubr.bf16.gmra.mrb[0].mxu0 %v1851
      %v2597 = vpop.f32.mrb[0].mxu0
      %v2598 = vadd.f32 %v2421, %v2597
      %v2599 = vpop.f32.mrb[0].mxu0
      %v2600 = vpop.f32.mrb[0].mxu0
      %v2601 = vadd.f32 %v2424, %v2600
      %v2602 = vpop.f32.mrb[0].mxu0
      %2603 = vmatprep.mubr.bf16.mxu0 %v1927
      %2604 = vmatmul.mubr.bf16.gmra.mrb[0].mxu0 %v1855
      %v2605 = vpop.f32.mrb[0].mxu0
      %v2606 = vadd.f32 %v2429, %v2605
      %v2607 = vpop.f32.mrb[0].mxu0
      %v2608 = vpop.f32.mrb[0].mxu0
      %v2609 = vadd.f32 %v2432, %v2608
      %v2610 = vpop.f32.mrb[0].mxu0
      %2611 = vmatprep.mubr.bf16.mxu0 %v1931
      %2612 = vmatmul.mubr.bf16.gmra.mrb[0].mxu0 %v1859
      %v2613 = vpop.f32.mrb[0].mxu0
      %v2614 = vadd.f32 %v2437, %v2613
      %v2615 = vpop.f32.mrb[0].mxu0
      %v2616 = vpop.f32.mrb[0].mxu0
      %v2617 = vadd.f32 %v2440, %v2616
      %v2618 = vpop.f32.mrb[0].mxu0
      %2619 = vmatprep.mubr.bf16.mxu0 %v1935
      %2620 = vmatmul.mubr.bf16.gmra.mrb[0].mxu0 %v1863
      %v2621 = vpop.f32.mrb[0].mxu0
      %v2622 = vadd.f32 %v2445, %v2621
      %v2623 = vpop.f32.mrb[0].mxu0
      %v2624 = vpop.f32.mrb[0].mxu0
      %v2625 = vadd.f32 %v2448, %v2624
      %v2626 = vpop.f32.mrb[0].mxu0
      %2627 = vmatprep.mubr.bf16.mxu0 %v1939
      %2628 = vmatmul.mubr.bf16.gmra.mrb[0].mxu0 %v1867
      %v2629 = vpop.f32.mrb[0].mxu0
      %v2630 = vadd.f32 %v2453, %v2629
      %v2631 = vpop.f32.mrb[0].mxu0
      %v2632 = vpop.f32.mrb[0].mxu0
      %v2633 = vadd.f32 %v2456, %v2632
      %v2634 = vpop.f32.mrb[0].mxu0
      %2635 = vmatprep.mubr.bf16.mxu0 %v1943
      %2636 = vmatmul.mubr.bf16.gmra.mrb[0].mxu0 %v1871
      %v2637 = vpop.f32.mrb[0].mxu0
      %v2638 = vadd.f32 %v2461, %v2637
      %v2639 = vpop.f32.mrb[0].mxu0
      %v2640 = vpop.f32.mrb[0].mxu0
      %v2641 = vadd.f32 %v2464, %v2640
      %v2642 = vpop.f32.mrb[0].mxu0
      %2643 = vmatprep.mubr.bf16.mxu0 %v1947
      %2644 = vmatmul.mubr.bf16.gmra.mrb[0].mxu0 %v1875
      %v2645 = vpop.f32.mrb[0].mxu0
      %v2646 = vadd.f32 %v2469, %v2645
      %v2647 = vpop.f32.mrb[0].mxu0
      %v2648 = vpop.f32.mrb[0].mxu0
      %v2649 = vadd.f32 %v2472, %v2648
      %v2650 = vpop.f32.mrb[0].mxu0
      %2651 = vdwg.mxu0
      %2652 = vmatprep.subr.bf16.mxu0 0
      %2653 = vmatpush1.bf16.msra.mxu0 %v2204
      %2654 = vmatprep.subr.bf16.mxu0 0
      %2655 = vmatpush1.bf16.msra.mxu0 %v2205
      %2656 = vmatprep.subr.bf16.mxu0 0
      %2657 = vmatpush1.bf16.msra.mxu0 %v2206
      %2658 = vmatprep.subr.bf16.mxu0 0
      %2659 = vmatpush1.bf16.msra.mxu0 %v2207
      %2660 = vmatprep.subr.bf16.mxu0 0
      %2661 = vmatpush1.bf16.msra.mxu0 0
      %2662 = vmatprep.subr.bf16.mxu0 0
      %2663 = vmatpush1.bf16.msra.mxu0 0
      %2664 = vmatprep.subr.bf16.mxu0 0
      %2665 = vmatpush1.bf16.msra.mxu0 0
      %2666 = vmatprep.subr.bf16.mxu0 0
      %2667 = vmatpush1.bf16.msra.mxu0 0
      %2668 = vmatprep.subr.bf16.mxu0 0
      %2669 = vmatpush1.bf16.msra.mxu0 0
      %2670 = vmatprep.subr.bf16.mxu0 0
      %2671 = vmatpush1.bf16.msra.mxu0 0
      %2672 = vmatprep.subr.bf16.mxu0 0
      %2673 = vmatpush1.bf16.msra.mxu0 0
      %2674 = vmatprep.subr.bf16.mxu0 0
      %2675 = vmatpush1.bf16.msra.mxu0 0
      %2676 = vmatprep.subr.bf16.mxu0 0
      %2677 = vmatpush1.bf16.msra.mxu0 0
      %2678 = vmatprep.subr.bf16.mxu0 0
      %2679 = vmatpush1.bf16.msra.mxu0 0
      %2680 = vmatprep.subr.bf16.mxu0 0
      %2681 = vmatpush1.bf16.msra.mxu0 0
      %2682 = vmatprep.subr.bf16.mxu0 0
      %2683 = vmatpush1.bf16.msra.mxu0 0
      %2684 = vmatprep.mubr.bf16.mxu0 0
      %2685 = vmatmul.mubr.bf16.gmra.mrb[0].mxu0 %v2245
      %v2686 = vpop.f32.mrb[0].mxu0
      %v2687 = vadd.f32 %v2510, %v2686
      %v2688 = vpop.f32.mrb[0].mxu0
      %v2689 = vpop.f32.mrb[0].mxu0
      %v2690 = vadd.f32 %v2513, %v2689
      %v2691 = vpop.f32.mrb[0].mxu0
      %2692 = vmatprep.mubr.bf16.mxu0 0
      %2693 = vmatmul.mubr.bf16.gmra.mrb[0].mxu0 %v2248
      %v2694 = vpop.f32.mrb[0].mxu0
      %v2695 = vadd.f32 %v2518, %v2694
      %v2696 = vpop.f32.mrb[0].mxu0
      %v2697 = vpop.f32.mrb[0].mxu0
      %v2698 = vadd.f32 %v2521, %v2697
      %v2699 = vpop.f32.mrb[0].mxu0
      %2700 = vmatprep.mubr.bf16.mxu0 0
      %2701 = vmatmul.mubr.bf16.gmra.mrb[0].mxu0 %v2251
      %v2702 = vpop.f32.mrb[0].mxu0
      %v2703 = vadd.f32 %v2526, %v2702
      %v2704 = vpop.f32.mrb[0].mxu0
      %v2705 = vpop.f32.mrb[0].mxu0
      %v2706 = vadd.f32 %v2529, %v2705
      %v2707 = vpop.f32.mrb[0].mxu0
      %2708 = vmatprep.mubr.bf16.mxu0 0
      %2709 = vmatmul.mubr.bf16.gmra.mrb[0].mxu0 %v2254
      %v2710 = vpop.f32.mrb[0].mxu0
      %v2711 = vadd.f32 %v2534, %v2710
      %v2712 = vpop.f32.mrb[0].mxu0
      %v2713 = vpop.f32.mrb[0].mxu0
      %v2714 = vadd.f32 %v2537, %v2713
      %v2715 = vpop.f32.mrb[0].mxu0
      %2716 = vmatprep.mubr.bf16.mxu0 0
      %2717 = vmatmul.mubr.bf16.gmra.mrb[0].mxu0 %v2257
      %v2718 = vpop.f32.mrb[0].mxu0
      %v2719 = vadd.f32 %v2542, %v2718
      %v2720 = vpop.f32.mrb[0].mxu0
      %v2721 = vpop.f32.mrb[0].mxu0
      %v2722 = vadd.f32 %v2545, %v2721
      %v2723 = vpop.f32.mrb[0].mxu0
      %2724 = vmatprep.mubr.bf16.mxu0 0
      %2725 = vmatmul.mubr.bf16.gmra.mrb[0].mxu0 %v2260
      %v2726 = vpop.f32.mrb[0].mxu0
      %v2727 = vadd.f32 %v2550, %v2726
      %v2728 = vpop.f32.mrb[0].mxu0
      %v2729 = vpop.f32.mrb[0].mxu0
      %v2730 = vadd.f32 %v2553, %v2729
      %v2731 = vpop.f32.mrb[0].mxu0
      %2732 = vmatprep.mubr.bf16.mxu0 0
      %2733 = vmatmul.mubr.bf16.gmra.mrb[0].mxu0 %v2263
      %v2734 = vpop.f32.mrb[0].mxu0
      %v2735 = vadd.f32 %v2558, %v2734
      %v2736 = vpop.f32.mrb[0].mxu0
      %v2737 = vpop.f32.mrb[0].mxu0
      %v2738 = vadd.f32 %v2561, %v2737
      %v2739 = vpop.f32.mrb[0].mxu0
      %2740 = vmatprep.mubr.bf16.mxu0 0
      %2741 = vmatmul.mubr.bf16.gmra.mrb[0].mxu0 %v2266
      %v2742 = vpop.f32.mrb[0].mxu0
      %v2743 = vadd.f32 %v2566, %v2742
      %v2744 = vpop.f32.mrb[0].mxu0
      %v2745 = vpop.f32.mrb[0].mxu0
      %v2746 = vadd.f32 %v2569, %v2745
      %v2747 = vpop.f32.mrb[0].mxu0
      %2748 = vmatprep.mubr.bf16.mxu0 0
      %2749 = vmatmul.mubr.bf16.gmra.mrb[0].mxu0 %v2269
      %v2750 = vpop.f32.mrb[0].mxu0
      %v2751 = vadd.f32 %v2574, %v2750
      %v2752 = vpop.f32.mrb[0].mxu0
      %v2753 = vpop.f32.mrb[0].mxu0
      %v2754 = vadd.f32 %v2577, %v2753
      %v2755 = vpop.f32.mrb[0].mxu0
      %2756 = vmatprep.mubr.bf16.mxu0 0
      %2757 = vmatmul.mubr.bf16.gmra.mrb[0].mxu0 %v2272
      %v2758 = vpop.f32.mrb[0].mxu0
      %v2759 = vadd.f32 %v2582, %v2758
      %v2760 = vpop.f32.mrb[0].mxu0
      %v2761 = vpop.f32.mrb[0].mxu0
      %v2762 = vadd.f32 %v2585, %v2761
      %v2763 = vpop.f32.mrb[0].mxu0
      %2764 = vmatprep.mubr.bf16.mxu0 0
      %2765 = vmatmul.mubr.bf16.gmra.mrb[0].mxu0 %v2275
      %v2766 = vpop.f32.mrb[0].mxu0
      %v2767 = vadd.f32 %v2590, %v2766
      %v2768 = vpop.f32.mrb[0].mxu0
      %v2769 = vpop.f32.mrb[0].mxu0
      %v2770 = vadd.f32 %v2593, %v2769
      %v2771 = vpop.f32.mrb[0].mxu0
      %2772 = vmatprep.mubr.bf16.mxu0 0
      %2773 = vmatmul.mubr.bf16.gmra.mrb[0].mxu0 %v2278
      %v2774 = vpop.f32.mrb[0].mxu0
      %v2775 = vadd.f32 %v2598, %v2774
      %v2776 = vpop.f32.mrb[0].mxu0
      %v2777 = vpop.f32.mrb[0].mxu0
      %v2778 = vadd.f32 %v2601, %v2777
      %v2779 = vpop.f32.mrb[0].mxu0
      %2780 = vmatprep.mubr.bf16.mxu0 0
      %2781 = vmatmul.mubr.bf16.gmra.mrb[0].mxu0 %v2281
      %v2782 = vpop.f32.mrb[0].mxu0
      %v2783 = vadd.f32 %v2606, %v2782
      %v2784 = vpop.f32.mrb[0].mxu0
      %v2785 = vpop.f32.mrb[0].mxu0
      %v2786 = vadd.f32 %v2609, %v2785
      %v2787 = vpop.f32.mrb[0].mxu0
      %2788 = vmatprep.mubr.bf16.mxu0 0
      %2789 = vmatmul.mubr.bf16.gmra.mrb[0].mxu0 %v2284
      %v2790 = vpop.f32.mrb[0].mxu0
      %v2791 = vadd.f32 %v2614, %v2790
      %v2792 = vpop.f32.mrb[0].mxu0
      %v2793 = vpop.f32.mrb[0].mxu0
      %v2794 = vadd.f32 %v2617, %v2793
      %v2795 = vpop.f32.mrb[0].mxu0
      %2796 = vmatprep.mubr.bf16.mxu0 0
      %2797 = vmatmul.mubr.bf16.gmra.mrb[0].mxu0 %v2287
      %v2798 = vpop.f32.mrb[0].mxu0
      %v2799 = vadd.f32 %v2622, %v2798
      %v2800 = vpop.f32.mrb[0].mxu0
      %v2801 = vpop.f32.mrb[0].mxu0
      %v2802 = vadd.f32 %v2625, %v2801
      %v2803 = vpop.f32.mrb[0].mxu0
      %2804 = vmatprep.mubr.bf16.mxu0 0
      %2805 = vmatmul.mubr.bf16.gmra.mrb[0].mxu0 %v2290
      %v2806 = vpop.f32.mrb[0].mxu0
      %v2807 = vadd.f32 %v2630, %v2806
      %v2808 = vpop.f32.mrb[0].mxu0
      %v2809 = vpop.f32.mrb[0].mxu0
      %v2810 = vadd.f32 %v2633, %v2809
      %v2811 = vpop.f32.mrb[0].mxu0
      %2812 = vmatprep.mubr.bf16.mxu0 0
      %2813 = vmatmul.mubr.bf16.gmra.mrb[0].mxu0 %v2293
      %v2814 = vpop.f32.mrb[0].mxu0
      %v2815 = vadd.f32 %v2638, %v2814
      %v2816 = vpop.f32.mrb[0].mxu0
      %v2817 = vpop.f32.mrb[0].mxu0
      %v2818 = vadd.f32 %v2641, %v2817
      %v2819 = vpop.f32.mrb[0].mxu0
      %2820 = vmatprep.mubr.bf16.mxu0 0
      %2821 = vmatmul.mubr.bf16.gmra.mrb[0].mxu0 %v2296
      %v2822 = vpop.f32.mrb[0].mxu0
      %v2823 = vadd.f32 %v2646, %v2822
      %v2824 = vpop.f32.mrb[0].mxu0
      %v2825 = vpop.f32.mrb[0].mxu0
      %v2826 = vadd.f32 %v2649, %v2825
      %v2827 = vpop.f32.mrb[0].mxu0
      %2828 = vdwg.mxu0
      %v2829 = vmax.f32 %v2687, 0.0
      %v2830 = vmax.f32 %v2690, 0.0
      %v2831 = vmax.f32 %v2695, 0.0
      %v2832 = vmax.f32 %v2698, 0.0
      %v2833 = vmax.f32 %v2703, 0.0
      %v2834 = vmax.f32 %v2706, 0.0
      %v2835 = vmax.f32 %v2711, 0.0
      %v2836 = vmax.f32 %v2714, 0.0
      %v2837 = vmax.f32 %v2719, 0.0
      %v2838 = vmax.f32 %v2722, 0.0
      %v2839 = vmax.f32 %v2727, 0.0
      %v2840 = vmax.f32 %v2730, 0.0
      %v2841 = vmax.f32 %v2735, 0.0
      %v2842 = vmax.f32 %v2738, 0.0
      %v2843 = vmax.f32 %v2743, 0.0
      %v2844 = vmax.f32 %v2746, 0.0
      %v2845 = vmax.f32 %v2751, 0.0
      %v2846 = vmax.f32 %v2754, 0.0
      %v2847 = vmax.f32 %v2759, 0.0
      %v2848 = vmax.f32 %v2762, 0.0
      %v2849 = vmax.f32 %v2767, 0.0
      %v2850 = vmax.f32 %v2770, 0.0
      %v2851 = vmax.f32 %v2775, 0.0
      %v2852 = vmax.f32 %v2778, 0.0
      %v2853 = vmax.f32 %v2783, 0.0
      %v2854 = vmax.f32 %v2786, 0.0
      %v2855 = vmax.f32 %v2791, 0.0
      %v2856 = vmax.f32 %v2794, 0.0
      %v2857 = vmax.f32 %v2799, 0.0
      %v2858 = vmax.f32 %v2802, 0.0
      %v2859 = vmax.f32 %v2807, 0.0
      %v2860 = vmax.f32 %v2810, 0.0
      %v2861 = vmax.f32 %v2815, 0.0
      %v2862 = vmax.f32 %v2818, 0.0
      %v2863 = vmax.f32 %v2823, 0.0
      %v2864 = vmax.f32 %v2826, 0.0
      %v2865 = vsel %vm837, 1, 0
      %v2866 = vsel %vm838, 1, 0
      %v2867 = vsel %vm839, 1, 0
      %v2868 = vsel %vm840, 1, 0
      %v2869 = vsel %vm841, 1, 0
      %v2870 = vsel %vm842, 1, 0
      %v2871 = vsel %vm843, 1, 0
      %v2872 = vsel %vm844, 1, 0
      %v2873 = vsel %vm845, 1, 0
      %v2874 = vsel %vm846, 1, 0
      %v2875 = vsel %vm847, 1, 0
      %v2876 = vsel %vm848, 1, 0
      %v2877 = vsel %vm849, 1, 0
      %v2878 = vsel %vm850, 1, 0
      %v2879 = vsel %vm851, 1, 0
      %v2880 = vsel %vm852, 1, 0
      %v2881 = vsel %vm853, 1, 0
      %v2882 = vsel %vm854, 1, 0
      %v2883 = vsel %vm855, 1, 0
      %v2884 = vsel %vm856, 1, 0
      %v2885 = vsel %vm857, 1, 0
      %v2886 = vsel %vm858, 1, 0
      %v2887 = vsel %vm859, 1, 0
      %v2888 = vsel %vm860, 1, 0
      %v2889 = vsel %vm861, 1, 0
      %v2890 = vsel %vm862, 1, 0
      %v2891 = vsel %vm863, 1, 0
      %v2892 = vsel %vm864, 1, 0
      %v2893 = vsel %vm865, 1, 0
      %v2894 = vsel %vm866, 1, 0
      %v2895 = vsel %vm867, 1, 0
      %v2896 = vsel %vm868, 1, 0
      %v2897 = vsel %vm869, 1, 0
      %v2898 = vsel %vm870, 1, 0
      %v2899 = vsel %vm871, 1, 0
      %v2900 = vsel %vm872, 1, 0
      %vm2901 = vcmp.eq.s32.totalorder %v2865, 1
      %vm2902 = vcmp.eq.s32.totalorder %v2866, 1
      %vm2903 = vcmp.eq.s32.totalorder %v2867, 1
      %vm2904 = vcmp.eq.s32.totalorder %v2868, 1
      %vm2905 = vcmp.eq.s32.totalorder %v2869, 1
      %vm2906 = vcmp.eq.s32.totalorder %v2870, 1
      %vm2907 = vcmp.eq.s32.totalorder %v2871, 1
      %vm2908 = vcmp.eq.s32.totalorder %v2872, 1
      %vm2909 = vcmp.eq.s32.totalorder %v2873, 1
      %vm2910 = vcmp.eq.s32.totalorder %v2874, 1
      %vm2911 = vcmp.eq.s32.totalorder %v2875, 1
      %vm2912 = vcmp.eq.s32.totalorder %v2876, 1
      %vm2913 = vcmp.eq.s32.totalorder %v2877, 1
      %vm2914 = vcmp.eq.s32.totalorder %v2878, 1
      %vm2915 = vcmp.eq.s32.totalorder %v2879, 1
      %vm2916 = vcmp.eq.s32.totalorder %v2880, 1
      %vm2917 = vcmp.eq.s32.totalorder %v2881, 1
      %vm2918 = vcmp.eq.s32.totalorder %v2882, 1
      %vm2919 = vcmp.eq.s32.totalorder %v2883, 1
      %vm2920 = vcmp.eq.s32.totalorder %v2884, 1
      %vm2921 = vcmp.eq.s32.totalorder %v2885, 1
      %vm2922 = vcmp.eq.s32.totalorder %v2886, 1
      %vm2923 = vcmp.eq.s32.totalorder %v2887, 1
      %vm2924 = vcmp.eq.s32.totalorder %v2888, 1
      %vm2925 = vcmp.eq.s32.totalorder %v2889, 1
      %vm2926 = vcmp.eq.s32.totalorder %v2890, 1
      %vm2927 = vcmp.eq.s32.totalorder %v2891, 1
      %vm2928 = vcmp.eq.s32.totalorder %v2892, 1
      %vm2929 = vcmp.eq.s32.totalorder %v2893, 1
      %vm2930 = vcmp.eq.s32.totalorder %v2894, 1
      %vm2931 = vcmp.eq.s32.totalorder %v2895, 1
      %vm2932 = vcmp.eq.s32.totalorder %v2896, 1
      %vm2933 = vcmp.eq.s32.totalorder %v2897, 1
      %vm2934 = vcmp.eq.s32.totalorder %v2898, 1
      %vm2935 = vcmp.eq.s32.totalorder %v2899, 1
      %vm2936 = vcmp.eq.s32.totalorder %v2900, 1
      %v2937 = vsel %vm2901, %v2829, 0.0
      %v2938 = vsel %vm2902, %v2830, 0.0
      %v2939 = vsel %vm2903, %v2831, 0.0
      %v2940 = vsel %vm2904, %v2832, 0.0
      %v2941 = vsel %vm2905, %v2833, 0.0
      %v2942 = vsel %vm2906, %v2834, 0.0
      %v2943 = vsel %vm2907, %v2835, 0.0
      %v2944 = vsel %vm2908, %v2836, 0.0
      %v2945 = vsel %vm2909, %v2837, 0.0
      %v2946 = vsel %vm2910, %v2838, 0.0
      %v2947 = vsel %vm2911, %v2839, 0.0
      %v2948 = vsel %vm2912, %v2840, 0.0
      %v2949 = vsel %vm2913, %v2841, 0.0
      %v2950 = vsel %vm2914, %v2842, 0.0
      %v2951 = vsel %vm2915, %v2843, 0.0
      %v2952 = vsel %vm2916, %v2844, 0.0
      %v2953 = vsel %vm2917, %v2845, 0.0
      %v2954 = vsel %vm2918, %v2846, 0.0
      %v2955 = vsel %vm2919, %v2847, 0.0
      %v2956 = vsel %vm2920, %v2848, 0.0
      %v2957 = vsel %vm2921, %v2849, 0.0
      %v2958 = vsel %vm2922, %v2850, 0.0
      %v2959 = vsel %vm2923, %v2851, 0.0
      %v2960 = vsel %vm2924, %v2852, 0.0
      %v2961 = vsel %vm2925, %v2853, 0.0
      %v2962 = vsel %vm2926, %v2854, 0.0
      %v2963 = vsel %vm2927, %v2855, 0.0
      %v2964 = vsel %vm2928, %v2856, 0.0
      %v2965 = vsel %vm2929, %v2857, 0.0
      %v2966 = vsel %vm2930, %v2858, 0.0
      %v2967 = vsel %vm2931, %v2859, 0.0
      %v2968 = vsel %vm2932, %v2860, 0.0
      %v2969 = vsel %vm2933, %v2861, 0.0
      %v2970 = vsel %vm2934, %v2862, 0.0
      %v2971 = vsel %vm2935, %v2863, 0.0
      %v2972 = vsel %vm2936, %v2864, 0.0
      %v2973 = vpack.c.bf16 %v2938, %v2937
      %v2974 = vpack.c.bf16 %v2940, %v2939
      %v2975 = vpack.c.bf16 %v2942, %v2941
      %v2976 = vpack.c.bf16 %v2944, %v2943
      %v2977 = vpack.c.bf16 %v2946, %v2945
      %v2978 = vpack.c.bf16 %v2948, %v2947
      %v2979 = vpack.c.bf16 %v2950, %v2949
      %v2980 = vpack.c.bf16 %v2952, %v2951
      %v2981 = vpack.c.bf16 %v2954, %v2953
      %v2982 = vpack.c.bf16 %v2956, %v2955
      %v2983 = vpack.c.bf16 %v2958, %v2957
      %v2984 = vpack.c.bf16 %v2960, %v2959
      %v2985 = vpack.c.bf16 %v2962, %v2961
      %v2986 = vpack.c.bf16 %v2964, %v2963
      %v2987 = vpack.c.bf16 %v2966, %v2965
      %v2988 = vpack.c.bf16 %v2968, %v2967
      %v2989 = vpack.c.bf16 %v2970, %v2969
      %v2990 = vpack.c.bf16 %v2972, %v2971
      %2991 = vst.msk [vmem:[#allocation2 + $0x10] sm:$0xff] %vm219, %v2973
      %2992 = vst.msk [vmem:[#allocation2 + $0x18] sm:$0xff] %vm219, %v2974
      %2993 = vst.msk [vmem:[#allocation2 + $0x20] sm:$0xff] %vm219, %v2975
      %2994 = vst.msk [vmem:[#allocation2 + $0x28] sm:$0xff] %vm219, %v2976
      %2995 = vst.msk [vmem:[#allocation2 + $0x30] sm:$0xff] %vm219, %v2977
      %2996 = vst.msk [vmem:[#allocation2 + $0x38] sm:$0xff] %vm219, %v2978
      %2997 = vst.msk [vmem:[#allocation2 + $0x40] sm:$0xff] %vm219, %v2979
      %2998 = vst.msk [vmem:[#allocation2 + $0x48] sm:$0xff] %vm219, %v2980
      %2999 = vst.msk [vmem:[#allocation2 + $0x50] sm:$0xff] %vm219, %v2981
      %3000 = vst.msk [vmem:[#allocation2 + $0x58] sm:$0xff] %vm219, %v2982
      %3001 = vst.msk [vmem:[#allocation2 + $0x60] sm:$0xff] %vm219, %v2983
      %3002 = vst.msk [vmem:[#allocation2 + $0x68] sm:$0xff] %vm219, %v2984
      %3003 = vst.msk [vmem:[#allocation2 + $0x70] sm:$0xff] %vm219, %v2985
      %3004 = vst.msk [vmem:[#allocation2 + $0x78] sm:$0xff] %vm219, %v2986
      %3005 = vst.msk [vmem:[#allocation2 + $0x80] sm:$0xff] %vm219, %v2987
      %3006 = vst.msk [vmem:[#allocation2 + $0x88] sm:$0xff] %vm219, %v2988
      %3007 = vst.msk [vmem:[#allocation2 + $0x90] sm:$0xff] %vm219, %v2989
      %3008 = vst.msk [vmem:[#allocation2 + $0x98] sm:$0xff] %vm219, %v2990
      %v3009 = vld [vmem:[#allocation2] sm:$0xff]
      %v3010 = vld [vmem:[#allocation2 + $0x8] sm:$0xff]
      %v3011 = vld [vmem:[#allocation2 + $0x10] sm:$0xff]
      %v3012 = vld [vmem:[#allocation2 + $0x18] sm:$0xff]
      %v3013 = vld [vmem:[#allocation2 + $0x20] sm:$0xff]
      %v3014 = vld [vmem:[#allocation2 + $0x28] sm:$0xff]
      %v3015 = vld [vmem:[#allocation2 + $0x30] sm:$0xff]
      %v3016 = vld [vmem:[#allocation2 + $0x38] sm:$0xff]
      %v3017 = vld [vmem:[#allocation2 + $0x40] sm:$0xff]
      %v3018 = vld [vmem:[#allocation2 + $0x48] sm:$0xff]
      %v3019 = vld [vmem:[#allocation2 + $0x50] sm:$0xff]
      %v3020 = vld [vmem:[#allocation2 + $0x58] sm:$0xff]
      %v3021 = vld [vmem:[#allocation2 + $0x60] sm:$0xff]
      %v3022 = vld [vmem:[#allocation2 + $0x68] sm:$0xff]
      %v3023 = vld [vmem:[#allocation2 + $0x70] sm:$0xff]
      %v3024 = vld [vmem:[#allocation2 + $0x78] sm:$0xff]
      %v3025 = vld [vmem:[#allocation2 + $0x80] sm:$0xff]
      %v3026 = vld [vmem:[#allocation2 + $0x88] sm:$0xff]
      %v3027 = vld [vmem:[#allocation2 + $0x90] sm:$0xff]
      %v3028 = vld [vmem:[#allocation2 + $0x98] sm:$0xff]
      %v3029 = vld [vmem:[#allocation2 + $0xa0] sm:$0xff]
      %v3030 = vld [vmem:[#allocation2 + $0xa8] sm:$0xff]
      %v3032 = vshrl.u32 %v3009, 16
      %v3034 = vshll.u32 %v3009, 16
      %v3036 = vrot.slane %v3034, 1
      %v3037 = vor.u32 %v3032, %v3036
      %v3039 = vshll.u32 %v3010, 16
      %v3041 = vrot.slane %v3039, 1
      %v3042 = vsel %vm1083, %v3037, %v3041
      %v3043 = vshrl.u32 %v3010, 16
      %v3045 = vor.u32 %v3043, %v3041
      %v3047 = vshll.u32 %v3011, 16
      %v3049 = vrot.slane %v3047, 1
      %v3050 = vsel %vm1083, %v3045, %v3049
      %v3051 = vshrl.u32 %v3011, 16
      %v3053 = vor.u32 %v3051, %v3049
      %v3055 = vshll.u32 %v3012, 16
      %v3057 = vrot.slane %v3055, 1
      %v3058 = vsel %vm1083, %v3053, %v3057
      %v3059 = vshrl.u32 %v3012, 16
      %v3061 = vor.u32 %v3059, %v3057
      %v3063 = vshll.u32 %v3013, 16
      %v3065 = vrot.slane %v3063, 1
      %v3066 = vsel %vm1083, %v3061, %v3065
      %v3067 = vshrl.u32 %v3013, 16
      %v3069 = vor.u32 %v3067, %v3065
      %v3071 = vshll.u32 %v3014, 16
      %v3073 = vrot.slane %v3071, 1
      %v3074 = vsel %vm1083, %v3069, %v3073
      %v3075 = vshrl.u32 %v3014, 16
      %v3077 = vor.u32 %v3075, %v3073
      %v3079 = vshll.u32 %v3015, 16
      %v3081 = vrot.slane %v3079, 1
      %v3082 = vsel %vm1083, %v3077, %v3081
      %v3083 = vshrl.u32 %v3015, 16
      %v3085 = vor.u32 %v3083, %v3081
      %v3087 = vshll.u32 %v3016, 16
      %v3089 = vrot.slane %v3087, 1
      %v3090 = vsel %vm1083, %v3085, %v3089
      %v3091 = vshrl.u32 %v3016, 16
      %v3093 = vor.u32 %v3091, %v3089
      %v3095 = vshll.u32 %v3017, 16
      %v3097 = vrot.slane %v3095, 1
      %v3098 = vsel %vm1083, %v3093, %v3097
      %v3099 = vshrl.u32 %v3017, 16
      %v3101 = vor.u32 %v3099, %v3097
      %v3103 = vshll.u32 %v3018, 16
      %v3105 = vrot.slane %v3103, 1
      %v3106 = vsel %vm1083, %v3101, %v3105
      %v3107 = vshrl.u32 %v3018, 16
      %v3109 = vor.u32 %v3107, %v3105
      %v3111 = vshll.u32 %v3019, 16
      %v3113 = vrot.slane %v3111, 1
      %v3114 = vsel %vm1083, %v3109, %v3113
      %v3115 = vshrl.u32 %v3019, 16
      %v3117 = vor.u32 %v3115, %v3113
      %v3119 = vshll.u32 %v3020, 16
      %v3121 = vrot.slane %v3119, 1
      %v3122 = vsel %vm1083, %v3117, %v3121
      %v3123 = vshrl.u32 %v3020, 16
      %v3125 = vor.u32 %v3123, %v3121
      %v3127 = vshll.u32 %v3021, 16
      %v3129 = vrot.slane %v3127, 1
      %v3130 = vsel %vm1083, %v3125, %v3129
      %v3131 = vshrl.u32 %v3021, 16
      %v3133 = vor.u32 %v3131, %v3129
      %v3135 = vshll.u32 %v3022, 16
      %v3137 = vrot.slane %v3135, 1
      %v3138 = vsel %vm1083, %v3133, %v3137
      %v3139 = vshrl.u32 %v3022, 16
      %v3141 = vor.u32 %v3139, %v3137
      %v3143 = vshll.u32 %v3023, 16
      %v3145 = vrot.slane %v3143, 1
      %v3146 = vsel %vm1083, %v3141, %v3145
      %v3147 = vshrl.u32 %v3023, 16
      %v3149 = vor.u32 %v3147, %v3145
      %v3151 = vshll.u32 %v3024, 16
      %v3153 = vrot.slane %v3151, 1
      %v3154 = vsel %vm1083, %v3149, %v3153
      %v3155 = vshrl.u32 %v3024, 16
      %v3157 = vor.u32 %v3155, %v3153
      %v3159 = vshll.u32 %v3025, 16
      %v3161 = vrot.slane %v3159, 1
      %v3162 = vsel %vm1083, %v3157, %v3161
      %v3163 = vshrl.u32 %v3025, 16
      %v3165 = vor.u32 %v3163, %v3161
      %v3167 = vshll.u32 %v3026, 16
      %v3169 = vrot.slane %v3167, 1
      %v3170 = vsel %vm1083, %v3165, %v3169
      %v3171 = vshrl.u32 %v3026, 16
      %v3173 = vor.u32 %v3171, %v3169
      %v3175 = vshll.u32 %v3027, 16
      %v3177 = vrot.slane %v3175, 1
      %v3178 = vsel %vm1083, %v3173, %v3177
      %v3179 = vshrl.u32 %v3027, 16
      %v3181 = vor.u32 %v3179, %v3177
      %3182 = vrot.lane.b32.xlu0 %v3042, 64
      %v3183 = vpop.permute.xlu0 %3182
      %3184 = vrot.lane.b32.xlu0 %v3050, 64
      %v3185 = vpop.permute.xlu0 %3184
      %3186 = vrot.lane.b32.xlu0 %v3058, 64
      %v3187 = vpop.permute.xlu0 %3186
      %3188 = vrot.lane.b32.xlu0 %v3066, 64
      %v3189 = vpop.permute.xlu0 %3188
      %3190 = vrot.lane.b32.xlu0 %v3074, 64
      %v3191 = vpop.permute.xlu0 %3190
      %3192 = vrot.lane.b32.xlu0 %v3082, 64
      %v3193 = vpop.permute.xlu0 %3192
      %3194 = vrot.lane.b32.xlu0 %v3090, 64
      %v3195 = vpop.permute.xlu0 %3194
      %3196 = vrot.lane.b32.xlu0 %v3098, 64
      %v3197 = vpop.permute.xlu0 %3196
      %3198 = vrot.lane.b32.xlu0 %v3106, 64
      %v3199 = vpop.permute.xlu0 %3198
      %3200 = vrot.lane.b32.xlu0 %v3114, 64
      %v3201 = vpop.permute.xlu0 %3200
      %3202 = vrot.lane.b32.xlu0 %v3122, 64
      %v3203 = vpop.permute.xlu0 %3202
      %3204 = vrot.lane.b32.xlu0 %v3130, 64
      %v3205 = vpop.permute.xlu0 %3204
      %3206 = vrot.lane.b32.xlu0 %v3138, 64
      %v3207 = vpop.permute.xlu0 %3206
      %3208 = vrot.lane.b32.xlu0 %v3146, 64
      %v3209 = vpop.permute.xlu0 %3208
      %3210 = vrot.lane.b32.xlu0 %v3154, 64
      %v3211 = vpop.permute.xlu0 %3210
      %3212 = vrot.lane.b32.xlu0 %v3162, 64
      %v3213 = vpop.permute.xlu0 %3212
      %3214 = vrot.lane.b32.xlu0 %v3170, 64
      %v3215 = vpop.permute.xlu0 %3214
      %3216 = vrot.lane.b32.xlu0 %v3178, 64
      %v3217 = vpop.permute.xlu0 %3216
      %3218 = vrot.lane.b32.xlu0 %v3181, 64
      %v3219 = vpop.permute.xlu0 %3218
      %v3239 = vrot.slane %v3009, 1
      %v3240 = vrot.slane %v3010, 1
      %v3241 = vsel %vm1287, %v3239, %v3240
      %v3242 = vrot.slane %v3011, 1
      %v3243 = vsel %vm1287, %v3240, %v3242
      %v3244 = vrot.slane %v3012, 1
      %v3245 = vsel %vm1287, %v3242, %v3244
      %v3246 = vrot.slane %v3013, 1
      %v3247 = vsel %vm1287, %v3244, %v3246
      %v3248 = vrot.slane %v3014, 1
      %v3249 = vsel %vm1287, %v3246, %v3248
      %v3250 = vrot.slane %v3015, 1
      %v3251 = vsel %vm1287, %v3248, %v3250
      %v3252 = vrot.slane %v3016, 1
      %v3253 = vsel %vm1287, %v3250, %v3252
      %v3254 = vrot.slane %v3017, 1
      %v3255 = vsel %vm1287, %v3252, %v3254
      %v3256 = vrot.slane %v3018, 1
      %v3257 = vsel %vm1287, %v3254, %v3256
      %v3258 = vrot.slane %v3019, 1
      %v3259 = vsel %vm1287, %v3256, %v3258
      %v3260 = vrot.slane %v3020, 1
      %v3261 = vsel %vm1287, %v3258, %v3260
      %v3262 = vrot.slane %v3021, 1
      %v3263 = vsel %vm1287, %v3260, %v3262
      %v3264 = vrot.slane %v3022, 1
      %v3265 = vsel %vm1287, %v3262, %v3264
      %v3266 = vrot.slane %v3023, 1
      %v3267 = vsel %vm1287, %v3264, %v3266
      %v3268 = vrot.slane %v3024, 1
      %v3269 = vsel %vm1287, %v3266, %v3268
      %v3270 = vrot.slane %v3025, 1
      %v3271 = vsel %vm1287, %v3268, %v3270
      %v3272 = vrot.slane %v3026, 1
      %v3273 = vsel %vm1287, %v3270, %v3272
      %v3274 = vrot.slane %v3027, 1
      %v3275 = vsel %vm1287, %v3272, %v3274
      %v3277 = vrot.slane %v3028, 1
      %v3278 = vsel %vm1287, %v3274, %v3277
      %3279 = vrot.lane.b32.xlu0 %v3243, 64
      %v3280 = vpop.permute.xlu0 %3279
      %3281 = vrot.lane.b32.xlu0 %v3245, 64
      %v3282 = vpop.permute.xlu0 %3281
      %3283 = vrot.lane.b32.xlu0 %v3247, 64
      %v3284 = vpop.permute.xlu0 %3283
      %3285 = vrot.lane.b32.xlu0 %v3249, 64
      %v3286 = vpop.permute.xlu0 %3285
      %3287 = vrot.lane.b32.xlu0 %v3251, 64
      %v3288 = vpop.permute.xlu0 %3287
      %3289 = vrot.lane.b32.xlu0 %v3253, 64
      %v3290 = vpop.permute.xlu0 %3289
      %3291 = vrot.lane.b32.xlu0 %v3255, 64
      %v3292 = vpop.permute.xlu0 %3291
      %3293 = vrot.lane.b32.xlu0 %v3257, 64
      %v3294 = vpop.permute.xlu0 %3293
      %3295 = vrot.lane.b32.xlu0 %v3259, 64
      %v3296 = vpop.permute.xlu0 %3295
      %3297 = vrot.lane.b32.xlu0 %v3261, 64
      %v3298 = vpop.permute.xlu0 %3297
      %3299 = vrot.lane.b32.xlu0 %v3263, 64
      %v3300 = vpop.permute.xlu0 %3299
      %3301 = vrot.lane.b32.xlu0 %v3265, 64
      %v3302 = vpop.permute.xlu0 %3301
      %3303 = vrot.lane.b32.xlu0 %v3267, 64
      %v3304 = vpop.permute.xlu0 %3303
      %3305 = vrot.lane.b32.xlu0 %v3269, 64
      %v3306 = vpop.permute.xlu0 %3305
      %3307 = vrot.lane.b32.xlu0 %v3271, 64
      %v3308 = vpop.permute.xlu0 %3307
      %3309 = vrot.lane.b32.xlu0 %v3273, 64
      %v3310 = vpop.permute.xlu0 %3309
      %3311 = vrot.lane.b32.xlu0 %v3275, 64
      %v3312 = vpop.permute.xlu0 %3311
      %3313 = vrot.lane.b32.xlu0 %v3278, 64
      %v3314 = vpop.permute.xlu0 %3313
      %3315 = vrot.lane.b32.xlu0 %v3277, 64
      %v3316 = vpop.permute.xlu0 %3315
      %v3317 = vrot.slane %v3051, 1
      %v3318 = vrot.slane %v3047, 2
      %v3319 = vor.u32 %v3317, %v3318
      %v3320 = vrot.slane %v3059, 1
      %v3321 = vrot.slane %v3055, 2
      %v3322 = vor.u32 %v3320, %v3321
      %v3323 = vsel %vm1364, %v3319, %v3322
      %v3324 = vrot.slane %v3067, 1
      %v3325 = vrot.slane %v3063, 2
      %v3326 = vor.u32 %v3324, %v3325
      %v3327 = vsel %vm1364, %v3322, %v3326
      %v3328 = vrot.slane %v3075, 1
      %v3329 = vrot.slane %v3071, 2
      %v3330 = vor.u32 %v3328, %v3329
      %v3331 = vsel %vm1364, %v3326, %v3330
      %v3332 = vrot.slane %v3083, 1
      %v3333 = vrot.slane %v3079, 2
      %v3334 = vor.u32 %v3332, %v3333
      %v3335 = vsel %vm1364, %v3330, %v3334
      %v3336 = vrot.slane %v3091, 1
      %v3337 = vrot.slane %v3087, 2
      %v3338 = vor.u32 %v3336, %v3337
      %v3339 = vsel %vm1364, %v3334, %v3338
      %v3340 = vrot.slane %v3099, 1
      %v3341 = vrot.slane %v3095, 2
      %v3342 = vor.u32 %v3340, %v3341
      %v3343 = vsel %vm1364, %v3338, %v3342
      %v3344 = vrot.slane %v3107, 1
      %v3345 = vrot.slane %v3103, 2
      %v3346 = vor.u32 %v3344, %v3345
      %v3347 = vsel %vm1364, %v3342, %v3346
      %v3348 = vrot.slane %v3115, 1
      %v3349 = vrot.slane %v3111, 2
      %v3350 = vor.u32 %v3348, %v3349
      %v3351 = vsel %vm1364, %v3346, %v3350
      %v3352 = vrot.slane %v3123, 1
      %v3353 = vrot.slane %v3119, 2
      %v3354 = vor.u32 %v3352, %v3353
      %v3355 = vsel %vm1364, %v3350, %v3354
      %v3356 = vrot.slane %v3131, 1
      %v3357 = vrot.slane %v3127, 2
      %v3358 = vor.u32 %v3356, %v3357
      %v3359 = vsel %vm1364, %v3354, %v3358
      %v3360 = vrot.slane %v3139, 1
      %v3361 = vrot.slane %v3135, 2
      %v3362 = vor.u32 %v3360, %v3361
      %v3363 = vsel %vm1364, %v3358, %v3362
      %v3364 = vrot.slane %v3147, 1
      %v3365 = vrot.slane %v3143, 2
      %v3366 = vor.u32 %v3364, %v3365
      %v3367 = vsel %vm1364, %v3362, %v3366
      %v3368 = vrot.slane %v3155, 1
      %v3369 = vrot.slane %v3151, 2
      %v3370 = vor.u32 %v3368, %v3369
      %v3371 = vsel %vm1364, %v3366, %v3370
      %v3372 = vrot.slane %v3163, 1
      %v3373 = vrot.slane %v3159, 2
      %v3374 = vor.u32 %v3372, %v3373
      %v3375 = vsel %vm1364, %v3370, %v3374
      %v3376 = vrot.slane %v3171, 1
      %v3377 = vrot.slane %v3167, 2
      %v3378 = vor.u32 %v3376, %v3377
      %v3379 = vsel %vm1364, %v3374, %v3378
      %v3380 = vrot.slane %v3179, 1
      %v3381 = vrot.slane %v3175, 2
      %v3382 = vor.u32 %v3380, %v3381
      %v3383 = vsel %vm1364, %v3378, %v3382
      %v3385 = vshrl.u32 %v3028, 16
      %v3387 = vrot.slane %v3385, 1
      %v3388 = vshll.u32 %v3028, 16
      %v3390 = vrot.slane %v3388, 2
      %v3391 = vor.u32 %v3387, %v3390
      %v3392 = vsel %vm1364, %v3382, %v3391
      %v3394 = vrot.slane %v3011, 2
      %v3395 = vrot.slane %v3012, 2
      %v3396 = vsel %vm1447, %v3394, %v3395
      %v3397 = vrot.slane %v3013, 2
      %v3398 = vsel %vm1447, %v3395, %v3397
      %v3399 = vrot.slane %v3014, 2
      %v3400 = vsel %vm1447, %v3397, %v3399
      %v3401 = vrot.slane %v3015, 2
      %v3402 = vsel %vm1447, %v3399, %v3401
      %v3403 = vrot.slane %v3016, 2
      %v3404 = vsel %vm1447, %v3401, %v3403
      %v3405 = vrot.slane %v3017, 2
      %v3406 = vsel %vm1447, %v3403, %v3405
      %v3407 = vrot.slane %v3018, 2
      %v3408 = vsel %vm1447, %v3405, %v3407
      %v3409 = vrot.slane %v3019, 2
      %v3410 = vsel %vm1447, %v3407, %v3409
      %v3411 = vrot.slane %v3020, 2
      %v3412 = vsel %vm1447, %v3409, %v3411
      %v3413 = vrot.slane %v3021, 2
      %v3414 = vsel %vm1447, %v3411, %v3413
      %v3415 = vrot.slane %v3022, 2
      %v3416 = vsel %vm1447, %v3413, %v3415
      %v3417 = vrot.slane %v3023, 2
      %v3418 = vsel %vm1447, %v3415, %v3417
      %v3419 = vrot.slane %v3024, 2
      %v3420 = vsel %vm1447, %v3417, %v3419
      %v3421 = vrot.slane %v3025, 2
      %v3422 = vsel %vm1447, %v3419, %v3421
      %v3423 = vrot.slane %v3026, 2
      %v3424 = vsel %vm1447, %v3421, %v3423
      %v3425 = vrot.slane %v3027, 2
      %v3426 = vsel %vm1447, %v3423, %v3425
      %v3427 = vrot.slane %v3028, 2
      %v3428 = vsel %vm1447, %v3425, %v3427
      %v3429 = vrot.slane %v3029, 2
      %v3430 = vsel %vm1447, %v3427, %v3429
      %3431 = vrot.lane.b32.xlu0 %v3394, 64
      %v3432 = vpop.permute.xlu0 %3431
      %3433 = vrot.lane.b32.xlu0 %v3396, 64
      %v3434 = vpop.permute.xlu0 %3433
      %3435 = vrot.lane.b32.xlu0 %v3398, 64
      %v3436 = vpop.permute.xlu0 %3435
      %3437 = vrot.lane.b32.xlu0 %v3400, 64
      %v3438 = vpop.permute.xlu0 %3437
      %3439 = vrot.lane.b32.xlu0 %v3402, 64
      %v3440 = vpop.permute.xlu0 %3439
      %3441 = vrot.lane.b32.xlu0 %v3404, 64
      %v3442 = vpop.permute.xlu0 %3441
      %3443 = vrot.lane.b32.xlu0 %v3406, 64
      %v3444 = vpop.permute.xlu0 %3443
      %3445 = vrot.lane.b32.xlu0 %v3408, 64
      %v3446 = vpop.permute.xlu0 %3445
      %3447 = vrot.lane.b32.xlu0 %v3410, 64
      %v3448 = vpop.permute.xlu0 %3447
      %3449 = vrot.lane.b32.xlu0 %v3412, 64
      %v3450 = vpop.permute.xlu0 %3449
      %3451 = vrot.lane.b32.xlu0 %v3414, 64
      %v3452 = vpop.permute.xlu0 %3451
      %3453 = vrot.lane.b32.xlu0 %v3416, 64
      %v3454 = vpop.permute.xlu0 %3453
      %3455 = vrot.lane.b32.xlu0 %v3418, 64
      %v3456 = vpop.permute.xlu0 %3455
      %3457 = vrot.lane.b32.xlu0 %v3420, 64
      %v3458 = vpop.permute.xlu0 %3457
      %3459 = vrot.lane.b32.xlu0 %v3422, 64
      %v3460 = vpop.permute.xlu0 %3459
      %3461 = vrot.lane.b32.xlu0 %v3424, 64
      %v3462 = vpop.permute.xlu0 %3461
      %3463 = vrot.lane.b32.xlu0 %v3426, 64
      %v3464 = vpop.permute.xlu0 %3463
      %3465 = vrot.lane.b32.xlu0 %v3428, 64
      %v3466 = vpop.permute.xlu0 %3465
      %3467 = vrot.lane.b32.xlu0 %v3430, 64
      %v3468 = vpop.permute.xlu0 %3467
      %v3470 = vrot.slane %v3030, 2
      %v3471 = vsel %vm1447, %v3429, %v3470
      %v3472 = vrot.slane %v3059, 2
      %v3473 = vrot.slane %v3055, 3
      %v3474 = vor.u32 %v3472, %v3473
      %v3475 = vrot.slane %v3067, 2
      %v3476 = vrot.slane %v3063, 3
      %v3477 = vor.u32 %v3475, %v3476
      %v3478 = vsel %vm1524, %v3474, %v3477
      %v3479 = vrot.slane %v3075, 2
      %v3480 = vrot.slane %v3071, 3
      %v3481 = vor.u32 %v3479, %v3480
      %v3482 = vsel %vm1524, %v3477, %v3481
      %v3483 = vrot.slane %v3083, 2
      %v3484 = vrot.slane %v3079, 3
      %v3485 = vor.u32 %v3483, %v3484
      %v3486 = vsel %vm1524, %v3481, %v3485
      %v3487 = vrot.slane %v3091, 2
      %v3488 = vrot.slane %v3087, 3
      %v3489 = vor.u32 %v3487, %v3488
      %v3490 = vsel %vm1524, %v3485, %v3489
      %v3491 = vrot.slane %v3099, 2
      %v3492 = vrot.slane %v3095, 3
      %v3493 = vor.u32 %v3491, %v3492
      %v3494 = vsel %vm1524, %v3489, %v3493
      %v3495 = vrot.slane %v3107, 2
      %v3496 = vrot.slane %v3103, 3
      %v3497 = vor.u32 %v3495, %v3496
      %v3498 = vsel %vm1524, %v3493, %v3497
      %v3499 = vrot.slane %v3115, 2
      %v3500 = vrot.slane %v3111, 3
      %v3501 = vor.u32 %v3499, %v3500
      %v3502 = vsel %vm1524, %v3497, %v3501
      %v3503 = vrot.slane %v3123, 2
      %v3504 = vrot.slane %v3119, 3
      %v3505 = vor.u32 %v3503, %v3504
      %v3506 = vsel %vm1524, %v3501, %v3505
      %v3507 = vrot.slane %v3131, 2
      %v3508 = vrot.slane %v3127, 3
      %v3509 = vor.u32 %v3507, %v3508
      %v3510 = vsel %vm1524, %v3505, %v3509
      %v3511 = vrot.slane %v3139, 2
      %v3512 = vrot.slane %v3135, 3
      %v3513 = vor.u32 %v3511, %v3512
      %v3514 = vsel %vm1524, %v3509, %v3513
      %v3515 = vrot.slane %v3147, 2
      %v3516 = vrot.slane %v3143, 3
      %v3517 = vor.u32 %v3515, %v3516
      %v3518 = vsel %vm1524, %v3513, %v3517
      %v3519 = vrot.slane %v3155, 2
      %v3520 = vrot.slane %v3151, 3
      %v3521 = vor.u32 %v3519, %v3520
      %v3522 = vsel %vm1524, %v3517, %v3521
      %v3523 = vrot.slane %v3163, 2
      %v3524 = vrot.slane %v3159, 3
      %v3525 = vor.u32 %v3523, %v3524
      %v3526 = vsel %vm1524, %v3521, %v3525
      %v3527 = vrot.slane %v3171, 2
      %v3528 = vrot.slane %v3167, 3
      %v3529 = vor.u32 %v3527, %v3528
      %v3530 = vsel %vm1524, %v3525, %v3529
      %v3531 = vrot.slane %v3179, 2
      %v3532 = vrot.slane %v3175, 3
      %v3533 = vor.u32 %v3531, %v3532
      %v3534 = vsel %vm1524, %v3529, %v3533
      %v3535 = vrot.slane %v3385, 2
      %v3536 = vrot.slane %v3388, 3
      %v3537 = vor.u32 %v3535, %v3536
      %v3538 = vsel %vm1524, %v3533, %v3537
      %v3540 = vshrl.u32 %v3029, 16
      %v3542 = vrot.slane %v3540, 2
      %v3543 = vshll.u32 %v3029, 16
      %v3545 = vrot.slane %v3543, 3
      %v3546 = vor.u32 %v3542, %v3545
      %v3547 = vsel %vm1524, %v3537, %v3546
      %v3549 = vshrl.u32 %v3030, 16
      %v3551 = vrot.slane %v3549, 2
      %v3552 = vshll.u32 %v3030, 16
      %v3554 = vrot.slane %v3552, 3
      %v3555 = vor.u32 %v3551, %v3554
      %v3556 = vsel %vm1524, %v3546, %v3555
      %3557 = vrot.lane.b32.xlu0 %v3474, 64
      %v3558 = vpop.permute.xlu0 %3557
      %3559 = vrot.lane.b32.xlu0 %v3478, 64
      %v3560 = vpop.permute.xlu0 %3559
      %3561 = vrot.lane.b32.xlu0 %v3482, 64
      %v3562 = vpop.permute.xlu0 %3561
      %3563 = vrot.lane.b32.xlu0 %v3486, 64
      %v3564 = vpop.permute.xlu0 %3563
      %3565 = vrot.lane.b32.xlu0 %v3490, 64
      %v3566 = vpop.permute.xlu0 %3565
      %3567 = vrot.lane.b32.xlu0 %v3494, 64
      %v3568 = vpop.permute.xlu0 %3567
      %3569 = vrot.lane.b32.xlu0 %v3498, 64
      %v3570 = vpop.permute.xlu0 %3569
      %3571 = vrot.lane.b32.xlu0 %v3502, 64
      %v3572 = vpop.permute.xlu0 %3571
      %3573 = vrot.lane.b32.xlu0 %v3506, 64
      %v3574 = vpop.permute.xlu0 %3573
      %3575 = vrot.lane.b32.xlu0 %v3510, 64
      %v3576 = vpop.permute.xlu0 %3575
      %3577 = vrot.lane.b32.xlu0 %v3514, 64
      %v3578 = vpop.permute.xlu0 %3577
      %3579 = vrot.lane.b32.xlu0 %v3518, 64
      %v3580 = vpop.permute.xlu0 %3579
      %3581 = vrot.lane.b32.xlu0 %v3522, 64
      %v3582 = vpop.permute.xlu0 %3581
      %3583 = vrot.lane.b32.xlu0 %v3526, 64
      %v3584 = vpop.permute.xlu0 %3583
      %3585 = vrot.lane.b32.xlu0 %v3530, 64
      %v3586 = vpop.permute.xlu0 %3585
      %3587 = vrot.lane.b32.xlu0 %v3534, 64
      %v3588 = vpop.permute.xlu0 %3587
      %3589 = vrot.lane.b32.xlu0 %v3538, 64
      %v3590 = vpop.permute.xlu0 %3589
      %3591 = vrot.lane.b32.xlu0 %v3547, 64
      %v3592 = vpop.permute.xlu0 %3591
      %3593 = vrot.lane.b32.xlu0 %v3556, 64
      %v3594 = vpop.permute.xlu0 %3593
      %v3595 = vrot.slane %v3012, 3
      %v3596 = vrot.slane %v3013, 3
      %v3597 = vsel %vm1641, %v3595, %v3596
      %v3598 = vrot.slane %v3014, 3
      %v3599 = vsel %vm1641, %v3596, %v3598
      %v3600 = vrot.slane %v3015, 3
      %v3601 = vsel %vm1641, %v3598, %v3600
      %v3602 = vrot.slane %v3016, 3
      %v3603 = vsel %vm1641, %v3600, %v3602
      %v3604 = vrot.slane %v3017, 3
      %v3605 = vsel %vm1641, %v3602, %v3604
      %v3606 = vrot.slane %v3018, 3
      %v3607 = vsel %vm1641, %v3604, %v3606
      %v3608 = vrot.slane %v3019, 3
      %v3609 = vsel %vm1641, %v3606, %v3608
      %v3610 = vrot.slane %v3020, 3
      %v3611 = vsel %vm1641, %v3608, %v3610
      %v3612 = vrot.slane %v3021, 3
      %v3613 = vsel %vm1641, %v3610, %v3612
      %v3614 = vrot.slane %v3022, 3
      %v3615 = vsel %vm1641, %v3612, %v3614
      %v3616 = vrot.slane %v3023, 3
      %v3617 = vsel %vm1641, %v3614, %v3616
      %v3618 = vrot.slane %v3024, 3
      %v3619 = vsel %vm1641, %v3616, %v3618
      %v3620 = vrot.slane %v3025, 3
      %v3621 = vsel %vm1641, %v3618, %v3620
      %v3622 = vrot.slane %v3026, 3
      %v3623 = vsel %vm1641, %v3620, %v3622
      %v3624 = vrot.slane %v3027, 3
      %v3625 = vsel %vm1641, %v3622, %v3624
      %v3626 = vrot.slane %v3028, 3
      %v3627 = vsel %vm1641, %v3624, %v3626
      %v3628 = vrot.slane %v3029, 3
      %v3629 = vsel %vm1641, %v3626, %v3628
      %v3630 = vrot.slane %v3030, 3
      %v3631 = vsel %vm1641, %v3628, %v3630
      %v3633 = vsel %vm219, %v3009, %v3183
      %v3635 = vsel %vm219, %v3010, %v3185
      %v3637 = vsel %vm219, %v3011, %v3187
      %v3639 = vsel %vm219, %v3012, %v3189
      %v3641 = vsel %vm219, %v3013, %v3191
      %v3643 = vsel %vm219, %v3014, %v3193
      %v3645 = vsel %vm219, %v3015, %v3195
      %v3647 = vsel %vm219, %v3016, %v3197
      %v3649 = vsel %vm219, %v3017, %v3199
      %v3651 = vsel %vm219, %v3018, %v3201
      %v3653 = vsel %vm219, %v3019, %v3203
      %v3655 = vsel %vm219, %v3020, %v3205
      %v3657 = vsel %vm219, %v3021, %v3207
      %v3659 = vsel %vm219, %v3022, %v3209
      %v3661 = vsel %vm219, %v3023, %v3211
      %v3663 = vsel %vm219, %v3024, %v3213
      %v3665 = vsel %vm219, %v3025, %v3215
      %v3667 = vsel %vm219, %v3026, %v3217
      %v3669 = vsel %vm219, %v3027, %v3219
      %v3672 = vsel %vm219, %v3241, %v3280
      %v3675 = vsel %vm219, %v3243, %v3282
      %v3678 = vsel %vm219, %v3245, %v3284
      %v3681 = vsel %vm219, %v3247, %v3286
      %v3684 = vsel %vm219, %v3249, %v3288
      %v3687 = vsel %vm219, %v3251, %v3290
      %v3690 = vsel %vm219, %v3253, %v3292
      %v3693 = vsel %vm219, %v3255, %v3294
      %v3696 = vsel %vm219, %v3257, %v3296
      %v3699 = vsel %vm219, %v3259, %v3298
      %v3702 = vsel %vm219, %v3261, %v3300
      %v3705 = vsel %vm219, %v3263, %v3302
      %v3708 = vsel %vm219, %v3265, %v3304
      %v3711 = vsel %vm219, %v3267, %v3306
      %v3714 = vsel %vm219, %v3269, %v3308
      %v3717 = vsel %vm219, %v3271, %v3310
      %v3720 = vsel %vm219, %v3273, %v3312
      %v3723 = vsel %vm219, %v3275, %v3314
      %v3726 = vsel %vm219, %v3274, %v3316
      %v3729 = vsel %vm219, %v3319, %v3432
      %v3732 = vsel %vm219, %v3323, %v3434
      %v3735 = vsel %vm219, %v3327, %v3436
      %v3738 = vsel %vm219, %v3331, %v3438
      %v3741 = vsel %vm219, %v3335, %v3440
      %v3744 = vsel %vm219, %v3339, %v3442
      %v3747 = vsel %vm219, %v3343, %v3444
      %v3750 = vsel %vm219, %v3347, %v3446
      %v3753 = vsel %vm219, %v3351, %v3448
      %v3756 = vsel %vm219, %v3355, %v3450
      %v3759 = vsel %vm219, %v3359, %v3452
      %v3762 = vsel %vm219, %v3363, %v3454
      %v3765 = vsel %vm219, %v3367, %v3456
      %v3768 = vsel %vm219, %v3371, %v3458
      %v3771 = vsel %vm219, %v3375, %v3460
      %v3774 = vsel %vm219, %v3379, %v3462
      %v3777 = vsel %vm219, %v3383, %v3464
      %v3780 = vsel %vm219, %v3392, %v3466
      %v3783 = vsel %vm219, %v3391, %v3468
      %v3786 = vsel %vm219, %v3395, %v3558
      %v3789 = vsel %vm219, %v3398, %v3560
      %v3792 = vsel %vm219, %v3400, %v3562
      %v3795 = vsel %vm219, %v3402, %v3564
      %v3798 = vsel %vm219, %v3404, %v3566
      %v3801 = vsel %vm219, %v3406, %v3568
      %v3804 = vsel %vm219, %v3408, %v3570
      %v3807 = vsel %vm219, %v3410, %v3572
      %v3810 = vsel %vm219, %v3412, %v3574
      %v3813 = vsel %vm219, %v3414, %v3576
      %v3816 = vsel %vm219, %v3416, %v3578
      %v3819 = vsel %vm219, %v3418, %v3580
      %v3822 = vsel %vm219, %v3420, %v3582
      %v3825 = vsel %vm219, %v3422, %v3584
      %v3828 = vsel %vm219, %v3424, %v3586
      %v3831 = vsel %vm219, %v3426, %v3588
      %v3834 = vsel %vm219, %v3428, %v3590
      %v3837 = vsel %vm219, %v3430, %v3592
      %v3840 = vsel %vm219, %v3471, %v3594
      %s3841 = scalar_lea.vmem %s2, 288
      %v3842 = vld [vmem:[%s3841] sm:$0xf]
      %v3843 = vld [vmem:[%s3841 + $0x4] sm:$0xf]
      %v3844 = vld [vmem:[%s3841 + $0x8] sm:$0xf]
      %v3845 = vld [vmem:[%s3841 + $0xc] sm:$0xf]
      %v3846 = vld [vmem:[%s3841 + $0x10] sm:$0xf]
      %v3847 = vld [vmem:[%s3841 + $0x14] sm:$0xf]
      %v3848 = vld [vmem:[%s3841 + $0x18] sm:$0xf]
      %v3849 = vld [vmem:[%s3841 + $0x1c] sm:$0xf]
      %v3850 = vld [vmem:[%s3841 + $0x20] sm:$0xf]
      %v3851 = vld [vmem:[%s3841 + $0x24] sm:$0xf]
      %v3852 = vld [vmem:[%s3841 + $0x28] sm:$0xf]
      %v3853 = vld [vmem:[%s3841 + $0x2c] sm:$0xf]
      %v3854 = vld [vmem:[%s3841 + $0x30] sm:$0xf]
      %v3855 = vld [vmem:[%s3841 + $0x34] sm:$0xf]
      %v3856 = vld [vmem:[%s3841 + $0x38] sm:$0xf]
      %v3857 = vld [vmem:[%s3841 + $0x3c] sm:$0xf]
      %v3858 = vld [vmem:[%s3841 + $0x40] sm:$0xf]
      %v3859 = vld [vmem:[%s3841 + $0x44] sm:$0xf]
      %v3860 = vld [vmem:[%s3841 + $0x48] sm:$0xf]
      %v3861 = vld [vmem:[%s3841 + $0x4c] sm:$0xf]
      %v3862 = vld [vmem:[%s3841 + $0x50] sm:$0xf]
      %v3863 = vld [vmem:[%s3841 + $0x54] sm:$0xf]
      %v3864 = vld [vmem:[%s3841 + $0x58] sm:$0xf]
      %v3865 = vld [vmem:[%s3841 + $0x5c] sm:$0xf]
      %v3866 = vld [vmem:[%s3841 + $0x60] sm:$0xf]
      %v3867 = vld [vmem:[%s3841 + $0x64] sm:$0xf]
      %v3868 = vld [vmem:[%s3841 + $0x68] sm:$0xf]
      %v3869 = vld [vmem:[%s3841 + $0x6c] sm:$0xf]
      %v3870 = vld [vmem:[%s3841 + $0x70] sm:$0xf]
      %v3871 = vld [vmem:[%s3841 + $0x74] sm:$0xf]
      %v3872 = vld [vmem:[%s3841 + $0x78] sm:$0xf]
      %v3873 = vld [vmem:[%s3841 + $0x7c] sm:$0xf]
      %v3874 = vld [vmem:[%s3841 + $0x80] sm:$0xf]
      %v3875 = vld [vmem:[%s3841 + $0x84] sm:$0xf]
      %v3876 = vld [vmem:[%s3841 + $0x88] sm:$0xf]
      %v3877 = vld [vmem:[%s3841 + $0x8c] sm:$0xf]
      %v3878 = vld [vmem:[%s3841 + $0x90] sm:$0xf]
      %v3879 = vld [vmem:[%s3841 + $0x94] sm:$0xf]
      %v3880 = vld [vmem:[%s3841 + $0x98] sm:$0xf]
      %v3881 = vld [vmem:[%s3841 + $0x9c] sm:$0xf]
      %v3882 = vld [vmem:[%s3841 + $0xa0] sm:$0xf]
      %v3883 = vld [vmem:[%s3841 + $0xa4] sm:$0xf]
      %v3884 = vld [vmem:[%s3841 + $0xa8] sm:$0xf]
      %v3885 = vld [vmem:[%s3841 + $0xac] sm:$0xf]
      %v3886 = vld [vmem:[%s3841 + $0xb0] sm:$0xf]
      %v3887 = vld [vmem:[%s3841 + $0xb4] sm:$0xf]
      %v3888 = vld [vmem:[%s3841 + $0xb8] sm:$0xf]
      %v3889 = vld [vmem:[%s3841 + $0xbc] sm:$0xf]
      %v3890 = vld [vmem:[%s3841 + $0xc0] sm:$0xf]
      %v3891 = vld [vmem:[%s3841 + $0xc4] sm:$0xf]
      %v3892 = vld [vmem:[%s3841 + $0xc8] sm:$0xf]
      %v3893 = vld [vmem:[%s3841 + $0xcc] sm:$0xf]
      %v3894 = vld [vmem:[%s3841 + $0xd0] sm:$0xf]
      %v3895 = vld [vmem:[%s3841 + $0xd4] sm:$0xf]
      %v3896 = vld [vmem:[%s3841 + $0xd8] sm:$0xf]
      %v3897 = vld [vmem:[%s3841 + $0xdc] sm:$0xf]
      %v3898 = vld [vmem:[%s3841 + $0xe0] sm:$0xf]
      %v3899 = vld [vmem:[%s3841 + $0xe4] sm:$0xf]
      %v3900 = vld [vmem:[%s3841 + $0xe8] sm:$0xf]
      %v3901 = vld [vmem:[%s3841 + $0xec] sm:$0xf]
      %v3902 = vld [vmem:[%s3841 + $0xf0] sm:$0xf]
      %v3903 = vld [vmem:[%s3841 + $0xf4] sm:$0xf]
      %v3904 = vld [vmem:[%s3841 + $0xf8] sm:$0xf]
      %v3905 = vld [vmem:[%s3841 + $0xfc] sm:$0xf]
      %v3906 = vld [vmem:[%s3841 + $0x100] sm:$0xf]
      %v3907 = vld [vmem:[%s3841 + $0x104] sm:$0xf]
      %v3908 = vld [vmem:[%s3841 + $0x108] sm:$0xf]
      %v3909 = vld [vmem:[%s3841 + $0x10c] sm:$0xf]
      %v3910 = vld [vmem:[%s3841 + $0x110] sm:$0xf]
      %v3911 = vld [vmem:[%s3841 + $0x114] sm:$0xf]
      %v3912 = vld [vmem:[%s3841 + $0x118] sm:$0xf]
      %v3913 = vld [vmem:[%s3841 + $0x11c] sm:$0xf]
      %s3914 = scalar_lea.vmem %s3, 1
      %v3915 = vld [vmem:[%s3914] sm:$0x1]
      %v3917 = vlaneseq
      %v3918 = vshrl.u32 %v3917, 7
      %v3919 = vsub.s32 0, %v3918
      %v3920 = vrot.slane %v3915, %v3919
      %vm3922 = vsmask.f32 1280
      %v3923 = vshrl.u32 %v3633, 16
      %v3925 = vrot.slane %v3923, 6
      %v3926 = vshll.u32 %v3633, 16
      %v3928 = vrot.slane %v3926, 7
      %v3929 = vor.u32 %v3925, %v3928
      %v3930 = vshrl.u32 %v3635, 16
      %v3932 = vrot.slane %v3930, 6
      %v3933 = vshll.u32 %v3635, 16
      %v3935 = vrot.slane %v3933, 7
      %v3936 = vor.u32 %v3932, %v3935
      %v3937 = vsel %vm3922, %v3929, %v3936
      %v3938 = vshrl.u32 %v3672, 16
      %v3940 = vrot.slane %v3938, 6
      %v3941 = vshll.u32 %v3672, 16
      %v3943 = vrot.slane %v3941, 7
      %v3944 = vor.u32 %v3940, %v3943
      %v3945 = vshrl.u32 %v3675, 16
      %v3947 = vrot.slane %v3945, 6
      %v3948 = vshll.u32 %v3675, 16
      %v3950 = vrot.slane %v3948, 7
      %v3951 = vor.u32 %v3947, %v3950
      %v3952 = vsel %vm3922, %v3944, %v3951
      %v3953 = vshrl.u32 %v3729, 16
      %v3955 = vrot.slane %v3953, 6
      %v3956 = vshll.u32 %v3729, 16
      %v3958 = vrot.slane %v3956, 7
      %v3959 = vor.u32 %v3955, %v3958
      %v3960 = vshrl.u32 %v3732, 16
      %v3962 = vrot.slane %v3960, 6
      %v3963 = vshll.u32 %v3732, 16
      %v3965 = vrot.slane %v3963, 7
      %v3966 = vor.u32 %v3962, %v3965
      %v3967 = vsel %vm3922, %v3959, %v3966
      %v3968 = vshrl.u32 %v3786, 16
      %v3970 = vrot.slane %v3968, 6
      %v3971 = vshll.u32 %v3786, 16
      %v3973 = vrot.slane %v3971, 7
      %v3974 = vor.u32 %v3970, %v3973
      %v3975 = vshrl.u32 %v3789, 16
      %v3977 = vrot.slane %v3975, 6
      %v3978 = vshll.u32 %v3789, 16
      %v3980 = vrot.slane %v3978, 7
      %v3981 = vor.u32 %v3977, %v3980
      %v3982 = vsel %vm3922, %v3974, %v3981
      %v3984 = vshrl.u32 %v3595, 16
      %v3986 = vrot.slane %v3984, 6
      %v3987 = vshll.u32 %v3595, 16
      %v3989 = vrot.slane %v3987, 7
      %v3990 = vor.u32 %v3986, %v3989
      %v3992 = vshrl.u32 %v3597, 16
      %v3994 = vrot.slane %v3992, 6
      %v3995 = vshll.u32 %v3597, 16
      %v3997 = vrot.slane %v3995, 7
      %v3998 = vor.u32 %v3994, %v3997
      %v3999 = vsel %vm3922, %v3990, %v3998
      %v4000 = vshrl.u32 %v3637, 16
      %v4002 = vrot.slane %v4000, 6
      %v4003 = vshll.u32 %v3637, 16
      %v4005 = vrot.slane %v4003, 7
      %v4006 = vor.u32 %v4002, %v4005
      %v4007 = vsel %vm3922, %v3936, %v4006
      %v4008 = vshrl.u32 %v3678, 16
      %v4010 = vrot.slane %v4008, 6
      %v4011 = vshll.u32 %v3678, 16
      %v4013 = vrot.slane %v4011, 7
      %v4014 = vor.u32 %v4010, %v4013
      %v4015 = vsel %vm3922, %v3951, %v4014
      %v4016 = vshrl.u32 %v3735, 16
      %v4018 = vrot.slane %v4016, 6
      %v4019 = vshll.u32 %v3735, 16
      %v4021 = vrot.slane %v4019, 7
      %v4022 = vor.u32 %v4018, %v4021
      %v4023 = vsel %vm3922, %v3966, %v4022
      %v4024 = vshrl.u32 %v3792, 16
      %v4026 = vrot.slane %v4024, 6
      %v4027 = vshll.u32 %v3792, 16
      %v4029 = vrot.slane %v4027, 7
      %v4030 = vor.u32 %v4026, %v4029
      %v4031 = vsel %vm3922, %v3981, %v4030
      %v4033 = vshrl.u32 %v3599, 16
      %v4035 = vrot.slane %v4033, 6
      %v4036 = vshll.u32 %v3599, 16
      %v4038 = vrot.slane %v4036, 7
      %v4039 = vor.u32 %v4035, %v4038
      %v4040 = vsel %vm3922, %v3998, %v4039
      %v4041 = vshrl.u32 %v3639, 16
      %v4043 = vrot.slane %v4041, 6
      %v4044 = vshll.u32 %v3639, 16
      %v4046 = vrot.slane %v4044, 7
      %v4047 = vor.u32 %v4043, %v4046
      %v4048 = vsel %vm3922, %v4006, %v4047
      %v4049 = vshrl.u32 %v3681, 16
      %v4051 = vrot.slane %v4049, 6
      %v4052 = vshll.u32 %v3681, 16
      %v4054 = vrot.slane %v4052, 7
      %v4055 = vor.u32 %v4051, %v4054
      %v4056 = vsel %vm3922, %v4014, %v4055
      %v4057 = vshrl.u32 %v3738, 16
      %v4059 = vrot.slane %v4057, 6
      %v4060 = vshll.u32 %v3738, 16
      %v4062 = vrot.slane %v4060, 7
      %v4063 = vor.u32 %v4059, %v4062
      %v4064 = vsel %vm3922, %v4022, %v4063
      %v4065 = vshrl.u32 %v3795, 16
      %v4067 = vrot.slane %v4065, 6
      %v4068 = vshll.u32 %v3795, 16
      %v4070 = vrot.slane %v4068, 7
      %v4071 = vor.u32 %v4067, %v4070
      %v4072 = vsel %vm3922, %v4030, %v4071
      %v4074 = vshrl.u32 %v3601, 16
      %v4076 = vrot.slane %v4074, 6
      %v4077 = vshll.u32 %v3601, 16
      %v4079 = vrot.slane %v4077, 7
      %v4080 = vor.u32 %v4076, %v4079
      %v4081 = vsel %vm3922, %v4039, %v4080
      %v4082 = vshrl.u32 %v3641, 16
      %v4084 = vrot.slane %v4082, 6
      %v4085 = vshll.u32 %v3641, 16
      %v4087 = vrot.slane %v4085, 7
      %v4088 = vor.u32 %v4084, %v4087
      %v4089 = vsel %vm3922, %v4047, %v4088
      %v4090 = vshrl.u32 %v3684, 16
      %v4092 = vrot.slane %v4090, 6
      %v4093 = vshll.u32 %v3684, 16
      %v4095 = vrot.slane %v4093, 7
      %v4096 = vor.u32 %v4092, %v4095
      %v4097 = vsel %vm3922, %v4055, %v4096
      %v4098 = vshrl.u32 %v3741, 16
      %v4100 = vrot.slane %v4098, 6
      %v4101 = vshll.u32 %v3741, 16
      %v4103 = vrot.slane %v4101, 7
      %v4104 = vor.u32 %v4100, %v4103
      %v4105 = vsel %vm3922, %v4063, %v4104
      %v4106 = vshrl.u32 %v3798, 16
      %v4108 = vrot.slane %v4106, 6
      %v4109 = vshll.u32 %v3798, 16
      %v4111 = vrot.slane %v4109, 7
      %v4112 = vor.u32 %v4108, %v4111
      %v4113 = vsel %vm3922, %v4071, %v4112
      %v4115 = vshrl.u32 %v3603, 16
      %v4117 = vrot.slane %v4115, 6
      %v4118 = vshll.u32 %v3603, 16
      %v4120 = vrot.slane %v4118, 7
      %v4121 = vor.u32 %v4117, %v4120
      %v4122 = vsel %vm3922, %v4080, %v4121
      %v4123 = vshrl.u32 %v3643, 16
      %v4125 = vrot.slane %v4123, 6
      %v4126 = vshll.u32 %v3643, 16
      %v4128 = vrot.slane %v4126, 7
      %v4129 = vor.u32 %v4125, %v4128
      %v4130 = vsel %vm3922, %v4088, %v4129
      %v4131 = vshrl.u32 %v3687, 16
      %v4133 = vrot.slane %v4131, 6
      %v4134 = vshll.u32 %v3687, 16
      %v4136 = vrot.slane %v4134, 7
      %v4137 = vor.u32 %v4133, %v4136
      %v4138 = vsel %vm3922, %v4096, %v4137
      %v4139 = vshrl.u32 %v3744, 16
      %v4141 = vrot.slane %v4139, 6
      %v4142 = vshll.u32 %v3744, 16
      %v4144 = vrot.slane %v4142, 7
      %v4145 = vor.u32 %v4141, %v4144
      %v4146 = vsel %vm3922, %v4104, %v4145
      %v4147 = vshrl.u32 %v3801, 16
      %v4149 = vrot.slane %v4147, 6
      %v4150 = vshll.u32 %v3801, 16
      %v4152 = vrot.slane %v4150, 7
      %v4153 = vor.u32 %v4149, %v4152
      %v4154 = vsel %vm3922, %v4112, %v4153
      %v4156 = vshrl.u32 %v3605, 16
      %v4158 = vrot.slane %v4156, 6
      %v4159 = vshll.u32 %v3605, 16
      %v4161 = vrot.slane %v4159, 7
      %v4162 = vor.u32 %v4158, %v4161
      %v4163 = vsel %vm3922, %v4121, %v4162
      %v4164 = vshrl.u32 %v3645, 16
      %v4166 = vrot.slane %v4164, 6
      %v4167 = vshll.u32 %v3645, 16
      %v4169 = vrot.slane %v4167, 7
      %v4170 = vor.u32 %v4166, %v4169
      %v4171 = vsel %vm3922, %v4129, %v4170
      %v4172 = vshrl.u32 %v3690, 16
      %v4174 = vrot.slane %v4172, 6
      %v4175 = vshll.u32 %v3690, 16
      %v4177 = vrot.slane %v4175, 7
      %v4178 = vor.u32 %v4174, %v4177
      %v4179 = vsel %vm3922, %v4137, %v4178
      %v4180 = vshrl.u32 %v3747, 16
      %v4182 = vrot.slane %v4180, 6
      %v4183 = vshll.u32 %v3747, 16
      %v4185 = vrot.slane %v4183, 7
      %v4186 = vor.u32 %v4182, %v4185
      %v4187 = vsel %vm3922, %v4145, %v4186
      %v4188 = vshrl.u32 %v3804, 16
      %v4190 = vrot.slane %v4188, 6
      %v4191 = vshll.u32 %v3804, 16
      %v4193 = vrot.slane %v4191, 7
      %v4194 = vor.u32 %v4190, %v4193
      %v4195 = vsel %vm3922, %v4153, %v4194
      %v4197 = vshrl.u32 %v3607, 16
      %v4199 = vrot.slane %v4197, 6
      %v4200 = vshll.u32 %v3607, 16
      %v4202 = vrot.slane %v4200, 7
      %v4203 = vor.u32 %v4199, %v4202
      %v4204 = vsel %vm3922, %v4162, %v4203
      %v4205 = vshrl.u32 %v3647, 16
      %v4207 = vrot.slane %v4205, 6
      %v4208 = vshll.u32 %v3647, 16
      %v4210 = vrot.slane %v4208, 7
      %v4211 = vor.u32 %v4207, %v4210
      %v4212 = vsel %vm3922, %v4170, %v4211
      %v4213 = vshrl.u32 %v3693, 16
      %v4215 = vrot.slane %v4213, 6
      %v4216 = vshll.u32 %v3693, 16
      %v4218 = vrot.slane %v4216, 7
      %v4219 = vor.u32 %v4215, %v4218
      %v4220 = vsel %vm3922, %v4178, %v4219
      %v4221 = vshrl.u32 %v3750, 16
      %v4223 = vrot.slane %v4221, 6
      %v4224 = vshll.u32 %v3750, 16
      %v4226 = vrot.slane %v4224, 7
      %v4227 = vor.u32 %v4223, %v4226
      %v4228 = vsel %vm3922, %v4186, %v4227
      %v4229 = vshrl.u32 %v3807, 16
      %v4231 = vrot.slane %v4229, 6
      %v4232 = vshll.u32 %v3807, 16
      %v4234 = vrot.slane %v4232, 7
      %v4235 = vor.u32 %v4231, %v4234
      %v4236 = vsel %vm3922, %v4194, %v4235
      %v4238 = vshrl.u32 %v3609, 16
      %v4240 = vrot.slane %v4238, 6
      %v4241 = vshll.u32 %v3609, 16
      %v4243 = vrot.slane %v4241, 7
      %v4244 = vor.u32 %v4240, %v4243
      %v4245 = vsel %vm3922, %v4203, %v4244
      %v4246 = vshrl.u32 %v3649, 16
      %v4248 = vrot.slane %v4246, 6
      %v4249 = vshll.u32 %v3649, 16
      %v4251 = vrot.slane %v4249, 7
      %v4252 = vor.u32 %v4248, %v4251
      %v4253 = vsel %vm3922, %v4211, %v4252
      %v4254 = vshrl.u32 %v3696, 16
      %v4256 = vrot.slane %v4254, 6
      %v4257 = vshll.u32 %v3696, 16
      %v4259 = vrot.slane %v4257, 7
      %v4260 = vor.u32 %v4256, %v4259
      %v4261 = vsel %vm3922, %v4219, %v4260
      %v4262 = vshrl.u32 %v3753, 16
      %v4264 = vrot.slane %v4262, 6
      %v4265 = vshll.u32 %v3753, 16
      %v4267 = vrot.slane %v4265, 7
      %v4268 = vor.u32 %v4264, %v4267
      %v4269 = vsel %vm3922, %v4227, %v4268
      %v4270 = vshrl.u32 %v3810, 16
      %v4272 = vrot.slane %v4270, 6
      %v4273 = vshll.u32 %v3810, 16
      %v4275 = vrot.slane %v4273, 7
      %v4276 = vor.u32 %v4272, %v4275
      %v4277 = vsel %vm3922, %v4235, %v4276
      %v4279 = vshrl.u32 %v3611, 16
      %v4281 = vrot.slane %v4279, 6
      %v4282 = vshll.u32 %v3611, 16
      %v4284 = vrot.slane %v4282, 7
      %v4285 = vor.u32 %v4281, %v4284
      %v4286 = vsel %vm3922, %v4244, %v4285
      %v4287 = vshrl.u32 %v3651, 16
      %v4289 = vrot.slane %v4287, 6
      %v4290 = vshll.u32 %v3651, 16
      %v4292 = vrot.slane %v4290, 7
      %v4293 = vor.u32 %v4289, %v4292
      %v4294 = vsel %vm3922, %v4252, %v4293
      %v4295 = vshrl.u32 %v3699, 16
      %v4297 = vrot.slane %v4295, 6
      %v4298 = vshll.u32 %v3699, 16
      %v4300 = vrot.slane %v4298, 7
      %v4301 = vor.u32 %v4297, %v4300
      %v4302 = vsel %vm3922, %v4260, %v4301
      %v4303 = vshrl.u32 %v3756, 16
      %v4305 = vrot.slane %v4303, 6
      %v4306 = vshll.u32 %v3756, 16
      %v4308 = vrot.slane %v4306, 7
      %v4309 = vor.u32 %v4305, %v4308
      %v4310 = vsel %vm3922, %v4268, %v4309
      %v4311 = vshrl.u32 %v3813, 16
      %v4313 = vrot.slane %v4311, 6
      %v4314 = vshll.u32 %v3813, 16
      %v4316 = vrot.slane %v4314, 7
      %v4317 = vor.u32 %v4313, %v4316
      %v4318 = vsel %vm3922, %v4276, %v4317
      %v4320 = vshrl.u32 %v3613, 16
      %v4322 = vrot.slane %v4320, 6
      %v4323 = vshll.u32 %v3613, 16
      %v4325 = vrot.slane %v4323, 7
      %v4326 = vor.u32 %v4322, %v4325
      %v4327 = vsel %vm3922, %v4285, %v4326
      %v4328 = vshrl.u32 %v3653, 16
      %v4330 = vrot.slane %v4328, 6
      %v4331 = vshll.u32 %v3653, 16
      %v4333 = vrot.slane %v4331, 7
      %v4334 = vor.u32 %v4330, %v4333
      %v4335 = vsel %vm3922, %v4293, %v4334
      %v4336 = vshrl.u32 %v3702, 16
      %v4338 = vrot.slane %v4336, 6
      %v4339 = vshll.u32 %v3702, 16
      %v4341 = vrot.slane %v4339, 7
      %v4342 = vor.u32 %v4338, %v4341
      %v4343 = vsel %vm3922, %v4301, %v4342
      %v4344 = vshrl.u32 %v3759, 16
      %v4346 = vrot.slane %v4344, 6
      %v4347 = vshll.u32 %v3759, 16
      %v4349 = vrot.slane %v4347, 7
      %v4350 = vor.u32 %v4346, %v4349
      %v4351 = vsel %vm3922, %v4309, %v4350
      %v4352 = vshrl.u32 %v3816, 16
      %v4354 = vrot.slane %v4352, 6
      %v4355 = vshll.u32 %v3816, 16
      %v4357 = vrot.slane %v4355, 7
      %v4358 = vor.u32 %v4354, %v4357
      %v4359 = vsel %vm3922, %v4317, %v4358
      %v4361 = vshrl.u32 %v3615, 16
      %v4363 = vrot.slane %v4361, 6
      %v4364 = vshll.u32 %v3615, 16
      %v4366 = vrot.slane %v4364, 7
      %v4367 = vor.u32 %v4363, %v4366
      %v4368 = vsel %vm3922, %v4326, %v4367
      %v4369 = vshrl.u32 %v3655, 16
      %v4371 = vrot.slane %v4369, 6
      %v4372 = vshll.u32 %v3655, 16
      %v4374 = vrot.slane %v4372, 7
      %v4375 = vor.u32 %v4371, %v4374
      %v4376 = vsel %vm3922, %v4334, %v4375
      %v4377 = vshrl.u32 %v3705, 16
      %v4379 = vrot.slane %v4377, 6
      %v4380 = vshll.u32 %v3705, 16
      %v4382 = vrot.slane %v4380, 7
      %v4383 = vor.u32 %v4379, %v4382
      %v4384 = vsel %vm3922, %v4342, %v4383
      %v4385 = vshrl.u32 %v3762, 16
      %v4387 = vrot.slane %v4385, 6
      %v4388 = vshll.u32 %v3762, 16
      %v4390 = vrot.slane %v4388, 7
      %v4391 = vor.u32 %v4387, %v4390
      %v4392 = vsel %vm3922, %v4350, %v4391
      %v4393 = vshrl.u32 %v3819, 16
      %v4395 = vrot.slane %v4393, 6
      %v4396 = vshll.u32 %v3819, 16
      %v4398 = vrot.slane %v4396, 7
      %v4399 = vor.u32 %v4395, %v4398
      %v4400 = vsel %vm3922, %v4358, %v4399
      %v4402 = vshrl.u32 %v3617, 16
      %v4404 = vrot.slane %v4402, 6
      %v4405 = vshll.u32 %v3617, 16
      %v4407 = vrot.slane %v4405, 7
      %v4408 = vor.u32 %v4404, %v4407
      %v4409 = vsel %vm3922, %v4367, %v4408
      %v4410 = vshrl.u32 %v3657, 16
      %v4412 = vrot.slane %v4410, 6
      %v4413 = vshll.u32 %v3657, 16
      %v4415 = vrot.slane %v4413, 7
      %v4416 = vor.u32 %v4412, %v4415
      %v4417 = vsel %vm3922, %v4375, %v4416
      %v4418 = vshrl.u32 %v3708, 16
      %v4420 = vrot.slane %v4418, 6
      %v4421 = vshll.u32 %v3708, 16
      %v4423 = vrot.slane %v4421, 7
      %v4424 = vor.u32 %v4420, %v4423
      %v4425 = vsel %vm3922, %v4383, %v4424
      %v4426 = vshrl.u32 %v3765, 16
      %v4428 = vrot.slane %v4426, 6
      %v4429 = vshll.u32 %v3765, 16
      %v4431 = vrot.slane %v4429, 7
      %v4432 = vor.u32 %v4428, %v4431
      %v4433 = vsel %vm3922, %v4391, %v4432
      %v4434 = vshrl.u32 %v3822, 16
      %v4436 = vrot.slane %v4434, 6
      %v4437 = vshll.u32 %v3822, 16
      %v4439 = vrot.slane %v4437, 7
      %v4440 = vor.u32 %v4436, %v4439
      %v4441 = vsel %vm3922, %v4399, %v4440
      %v4443 = vshrl.u32 %v3619, 16
      %v4445 = vrot.slane %v4443, 6
      %v4446 = vshll.u32 %v3619, 16
      %v4448 = vrot.slane %v4446, 7
      %v4449 = vor.u32 %v4445, %v4448
      %v4450 = vsel %vm3922, %v4408, %v4449
      %v4451 = vshrl.u32 %v3659, 16
      %v4453 = vrot.slane %v4451, 6
      %v4454 = vshll.u32 %v3659, 16
      %v4456 = vrot.slane %v4454, 7
      %v4457 = vor.u32 %v4453, %v4456
      %v4458 = vsel %vm3922, %v4416, %v4457
      %v4459 = vshrl.u32 %v3711, 16
      %v4461 = vrot.slane %v4459, 6
      %v4462 = vshll.u32 %v3711, 16
      %v4464 = vrot.slane %v4462, 7
      %v4465 = vor.u32 %v4461, %v4464
      %v4466 = vsel %vm3922, %v4424, %v4465
      %v4467 = vshrl.u32 %v3768, 16
      %v4469 = vrot.slane %v4467, 6
      %v4470 = vshll.u32 %v3768, 16
      %v4472 = vrot.slane %v4470, 7
      %v4473 = vor.u32 %v4469, %v4472
      %v4474 = vsel %vm3922, %v4432, %v4473
      %v4475 = vshrl.u32 %v3825, 16
      %v4477 = vrot.slane %v4475, 6
      %v4478 = vshll.u32 %v3825, 16
      %v4480 = vrot.slane %v4478, 7
      %v4481 = vor.u32 %v4477, %v4480
      %v4482 = vsel %vm3922, %v4440, %v4481
      %v4484 = vshrl.u32 %v3621, 16
      %v4486 = vrot.slane %v4484, 6
      %v4487 = vshll.u32 %v3621, 16
      %v4489 = vrot.slane %v4487, 7
      %v4490 = vor.u32 %v4486, %v4489
      %v4491 = vsel %vm3922, %v4449, %v4490
      %v4492 = vshrl.u32 %v3661, 16
      %v4494 = vrot.slane %v4492, 6
      %v4495 = vshll.u32 %v3661, 16
      %v4497 = vrot.slane %v4495, 7
      %v4498 = vor.u32 %v4494, %v4497
      %v4499 = vsel %vm3922, %v4457, %v4498
      %v4500 = vshrl.u32 %v3714, 16
      %v4502 = vrot.slane %v4500, 6
      %v4503 = vshll.u32 %v3714, 16
      %v4505 = vrot.slane %v4503, 7
      %v4506 = vor.u32 %v4502, %v4505
      %v4507 = vsel %vm3922, %v4465, %v4506
      %v4508 = vshrl.u32 %v3771, 16
      %v4510 = vrot.slane %v4508, 6
      %v4511 = vshll.u32 %v3771, 16
      %v4513 = vrot.slane %v4511, 7
      %v4514 = vor.u32 %v4510, %v4513
      %v4515 = vsel %vm3922, %v4473, %v4514
      %v4516 = vshrl.u32 %v3828, 16
      %v4518 = vrot.slane %v4516, 6
      %v4519 = vshll.u32 %v3828, 16
      %v4521 = vrot.slane %v4519, 7
      %v4522 = vor.u32 %v4518, %v4521
      %v4523 = vsel %vm3922, %v4481, %v4522
      %v4525 = vshrl.u32 %v3623, 16
      %v4527 = vrot.slane %v4525, 6
      %v4528 = vshll.u32 %v3623, 16
      %v4530 = vrot.slane %v4528, 7
      %v4531 = vor.u32 %v4527, %v4530
      %v4532 = vsel %vm3922, %v4490, %v4531
      %v4533 = vshrl.u32 %v3663, 16
      %v4535 = vrot.slane %v4533, 6
      %v4536 = vshll.u32 %v3663, 16
      %v4538 = vrot.slane %v4536, 7
      %v4539 = vor.u32 %v4535, %v4538
      %v4540 = vsel %vm3922, %v4498, %v4539
      %v4541 = vshrl.u32 %v3717, 16
      %v4543 = vrot.slane %v4541, 6
      %v4544 = vshll.u32 %v3717, 16
      %v4546 = vrot.slane %v4544, 7
      %v4547 = vor.u32 %v4543, %v4546
      %v4548 = vsel %vm3922, %v4506, %v4547
      %v4549 = vshrl.u32 %v3774, 16
      %v4551 = vrot.slane %v4549, 6
      %v4552 = vshll.u32 %v3774, 16
      %v4554 = vrot.slane %v4552, 7
      %v4555 = vor.u32 %v4551, %v4554
      %v4556 = vsel %vm3922, %v4514, %v4555
      %v4557 = vshrl.u32 %v3831, 16
      %v4559 = vrot.slane %v4557, 6
      %v4560 = vshll.u32 %v3831, 16
      %v4562 = vrot.slane %v4560, 7
      %v4563 = vor.u32 %v4559, %v4562
      %v4564 = vsel %vm3922, %v4522, %v4563
      %v4566 = vshrl.u32 %v3625, 16
      %v4568 = vrot.slane %v4566, 6
      %v4569 = vshll.u32 %v3625, 16
      %v4571 = vrot.slane %v4569, 7
      %v4572 = vor.u32 %v4568, %v4571
      %v4573 = vsel %vm3922, %v4531, %v4572
      %v4574 = vshrl.u32 %v3665, 16
      %v4576 = vrot.slane %v4574, 6
      %v4577 = vshll.u32 %v3665, 16
      %v4579 = vrot.slane %v4577, 7
      %v4580 = vor.u32 %v4576, %v4579
      %v4581 = vsel %vm3922, %v4539, %v4580
      %v4582 = vshrl.u32 %v3720, 16
      %v4584 = vrot.slane %v4582, 6
      %v4585 = vshll.u32 %v3720, 16
      %v4587 = vrot.slane %v4585, 7
      %v4588 = vor.u32 %v4584, %v4587
      %v4589 = vsel %vm3922, %v4547, %v4588
      %v4590 = vshrl.u32 %v3777, 16
      %v4592 = vrot.slane %v4590, 6
      %v4593 = vshll.u32 %v3777, 16
      %v4595 = vrot.slane %v4593, 7
      %v4596 = vor.u32 %v4592, %v4595
      %v4597 = vsel %vm3922, %v4555, %v4596
      %v4598 = vshrl.u32 %v3834, 16
      %v4600 = vrot.slane %v4598, 6
      %v4601 = vshll.u32 %v3834, 16
      %v4603 = vrot.slane %v4601, 7
      %v4604 = vor.u32 %v4600, %v4603
      %v4605 = vsel %vm3922, %v4563, %v4604
      %v4607 = vshrl.u32 %v3627, 16
      %v4609 = vrot.slane %v4607, 6
      %v4610 = vshll.u32 %v3627, 16
      %v4612 = vrot.slane %v4610, 7
      %v4613 = vor.u32 %v4609, %v4612
      %v4614 = vsel %vm3922, %v4572, %v4613
      %v4615 = vshrl.u32 %v3667, 16
      %v4617 = vrot.slane %v4615, 6
      %v4618 = vshll.u32 %v3667, 16
      %v4620 = vrot.slane %v4618, 7
      %v4621 = vor.u32 %v4617, %v4620
      %v4622 = vsel %vm3922, %v4580, %v4621
      %v4623 = vshrl.u32 %v3723, 16
      %v4625 = vrot.slane %v4623, 6
      %v4626 = vshll.u32 %v3723, 16
      %v4628 = vrot.slane %v4626, 7
      %v4629 = vor.u32 %v4625, %v4628
      %v4630 = vsel %vm3922, %v4588, %v4629
      %v4631 = vshrl.u32 %v3780, 16
      %v4633 = vrot.slane %v4631, 6
      %v4634 = vshll.u32 %v3780, 16
      %v4636 = vrot.slane %v4634, 7
      %v4637 = vor.u32 %v4633, %v4636
      %v4638 = vsel %vm3922, %v4596, %v4637
      %v4639 = vshrl.u32 %v3837, 16
      %v4641 = vrot.slane %v4639, 6
      %v4642 = vshll.u32 %v3837, 16
      %v4644 = vrot.slane %v4642, 7
      %v4645 = vor.u32 %v4641, %v4644
      %v4646 = vsel %vm3922, %v4604, %v4645
      %v4648 = vshrl.u32 %v3629, 16
      %v4650 = vrot.slane %v4648, 6
      %v4651 = vshll.u32 %v3629, 16
      %v4653 = vrot.slane %v4651, 7
      %v4654 = vor.u32 %v4650, %v4653
      %v4655 = vsel %vm3922, %v4613, %v4654
      %v4656 = vshrl.u32 %v3669, 16
      %v4658 = vrot.slane %v4656, 6
      %v4659 = vshll.u32 %v3669, 16
      %v4661 = vrot.slane %v4659, 7
      %v4662 = vor.u32 %v4658, %v4661
      %v4663 = vsel %vm3922, %v4621, %v4662
      %v4664 = vshrl.u32 %v3726, 16
      %v4666 = vrot.slane %v4664, 6
      %v4667 = vshll.u32 %v3726, 16
      %v4669 = vrot.slane %v4667, 7
      %v4670 = vor.u32 %v4666, %v4669
      %v4671 = vsel %vm3922, %v4629, %v4670
      %v4672 = vshrl.u32 %v3783, 16
      %v4674 = vrot.slane %v4672, 6
      %v4675 = vshll.u32 %v3783, 16
      %v4677 = vrot.slane %v4675, 7
      %v4678 = vor.u32 %v4674, %v4677
      %v4679 = vsel %vm3922, %v4637, %v4678
      %v4680 = vshrl.u32 %v3840, 16
      %v4682 = vrot.slane %v4680, 6
      %v4683 = vshll.u32 %v3840, 16
      %v4685 = vrot.slane %v4683, 7
      %v4686 = vor.u32 %v4682, %v4685
      %v4687 = vsel %vm3922, %v4645, %v4686
      %v4689 = vshrl.u32 %v3631, 16
      %v4691 = vrot.slane %v4689, 6
      %v4692 = vshll.u32 %v3631, 16
      %v4694 = vrot.slane %v4692, 7
      %v4695 = vor.u32 %v4691, %v4694
      %v4696 = vsel %vm3922, %v4654, %v4695
      %v4841 = vunpack.c.l.b16 %v3842
      %v4842 = vunpack.c.l.b16 %v3843
      %v4843 = vunpack.c.l.b16 %v3844
      %v4844 = vunpack.c.l.b16 %v3845
      %v4845 = vunpack.c.l.b16 %v3846
      %v4846 = vunpack.c.l.b16 %v3847
      %v4847 = vunpack.c.l.b16 %v3848
      %v4848 = vunpack.c.l.b16 %v3849
      %v4849 = vunpack.c.l.b16 %v3850
      %v4850 = vunpack.c.l.b16 %v3851
      %v4851 = vunpack.c.l.b16 %v3852
      %v4852 = vunpack.c.l.b16 %v3853
      %v4853 = vunpack.c.l.b16 %v3854
      %v4854 = vunpack.c.l.b16 %v3855
      %v4855 = vunpack.c.l.b16 %v3856
      %v4856 = vunpack.c.l.b16 %v3857
      %v4857 = vunpack.c.l.b16 %v3858
      %v4858 = vunpack.c.l.b16 %v3859
      %v4859 = vunpack.c.l.b16 %v3860
      %v4860 = vunpack.c.l.b16 %v3861
      %v4861 = vunpack.c.l.b16 %v3862
      %v4862 = vunpack.c.l.b16 %v3863
      %v4863 = vunpack.c.l.b16 %v3864
      %v4864 = vunpack.c.l.b16 %v3865
      %v4865 = vunpack.c.l.b16 %v3866
      %v4866 = vunpack.c.l.b16 %v3867
      %v4867 = vunpack.c.l.b16 %v3868
      %v4868 = vunpack.c.l.b16 %v3869
      %v4869 = vunpack.c.l.b16 %v3870
      %v4870 = vunpack.c.l.b16 %v3871
      %v4871 = vunpack.c.l.b16 %v3872
      %v4872 = vunpack.c.l.b16 %v3873
      %v4873 = vunpack.c.l.b16 %v3874
      %v4874 = vunpack.c.l.b16 %v3875
      %v4875 = vunpack.c.l.b16 %v3876
      %v4876 = vunpack.c.l.b16 %v3877
      %v4877 = vunpack.c.l.b16 %v3878
      %v4878 = vunpack.c.l.b16 %v3879
      %v4879 = vunpack.c.l.b16 %v3880
      %v4880 = vunpack.c.l.b16 %v3881
      %v4881 = vunpack.c.l.b16 %v3882
      %v4882 = vunpack.c.l.b16 %v3883
      %v4883 = vunpack.c.l.b16 %v3884
      %v4884 = vunpack.c.l.b16 %v3885
      %v4885 = vunpack.c.l.b16 %v3886
      %v4886 = vunpack.c.l.b16 %v3887
      %v4887 = vunpack.c.l.b16 %v3888
      %v4888 = vunpack.c.l.b16 %v3889
      %v4889 = vunpack.c.l.b16 %v3890
      %v4890 = vunpack.c.l.b16 %v3891
      %v4891 = vunpack.c.l.b16 %v3892
      %v4892 = vunpack.c.l.b16 %v3893
      %v4893 = vunpack.c.l.b16 %v3894
      %v4894 = vunpack.c.l.b16 %v3895
      %v4895 = vunpack.c.l.b16 %v3896
      %v4896 = vunpack.c.l.b16 %v3897
      %v4897 = vunpack.c.l.b16 %v3898
      %v4898 = vunpack.c.l.b16 %v3899
      %v4899 = vunpack.c.l.b16 %v3900
      %v4900 = vunpack.c.l.b16 %v3901
      %v4901 = vunpack.c.l.b16 %v3902
      %v4902 = vunpack.c.l.b16 %v3903
      %v4903 = vunpack.c.l.b16 %v3904
      %v4904 = vunpack.c.l.b16 %v3905
      %v4905 = vunpack.c.l.b16 %v3906
      %v4906 = vunpack.c.l.b16 %v3907
      %v4907 = vunpack.c.l.b16 %v3908
      %v4908 = vunpack.c.l.b16 %v3909
      %v4909 = vunpack.c.l.b16 %v3910
      %v4910 = vunpack.c.l.b16 %v3911
      %v4911 = vunpack.c.l.b16 %v3912
      %v4912 = vunpack.c.l.b16 %v3913
      %v4913 = vpack.c.b16 %v4842, %v4841
      %v4914 = vpack.c.b16 %v4844, %v4843
      %v4915 = vpack.c.b16 %v4846, %v4845
      %v4916 = vpack.c.b16 %v4848, %v4847
      %v4917 = vpack.c.b16 %v4850, %v4849
      %v4918 = vpack.c.b16 %v4852, %v4851
      %v4919 = vpack.c.b16 %v4854, %v4853
      %v4920 = vpack.c.b16 %v4856, %v4855
      %v4921 = vpack.c.b16 %v4858, %v4857
      %v4922 = vpack.c.b16 %v4860, %v4859
      %v4923 = vpack.c.b16 %v4862, %v4861
      %v4924 = vpack.c.b16 %v4864, %v4863
      %v4925 = vpack.c.b16 %v4866, %v4865
      %v4926 = vpack.c.b16 %v4868, %v4867
      %v4927 = vpack.c.b16 %v4870, %v4869
      %v4928 = vpack.c.b16 %v4872, %v4871
      %v4929 = vpack.c.b16 %v4874, %v4873
      %v4930 = vpack.c.b16 %v4876, %v4875
      %v4931 = vpack.c.b16 %v4878, %v4877
      %v4932 = vpack.c.b16 %v4880, %v4879
      %v4933 = vpack.c.b16 %v4882, %v4881
      %v4934 = vpack.c.b16 %v4884, %v4883
      %v4935 = vpack.c.b16 %v4886, %v4885
      %v4936 = vpack.c.b16 %v4888, %v4887
      %v4937 = vpack.c.b16 %v4890, %v4889
      %v4938 = vpack.c.b16 %v4892, %v4891
      %v4939 = vpack.c.b16 %v4894, %v4893
      %v4940 = vpack.c.b16 %v4896, %v4895
      %v4941 = vpack.c.b16 %v4898, %v4897
      %v4942 = vpack.c.b16 %v4900, %v4899
      %v4943 = vpack.c.b16 %v4902, %v4901
      %v4944 = vpack.c.b16 %v4904, %v4903
      %v4945 = vpack.c.b16 %v4906, %v4905
      %v4946 = vpack.c.b16 %v4908, %v4907
      %v4947 = vpack.c.b16 %v4910, %v4909
      %v4948 = vpack.c.b16 %v4912, %v4911
      %v4986 = vsel %vm219, %v3999, 0
      %v4989 = vsel %vm219, %v4040, 0
      %v4992 = vsel %vm219, %v4081, 0
      %v4995 = vsel %vm219, %v4122, 0
      %v4998 = vsel %vm219, %v4163, 0
      %v5001 = vsel %vm219, %v4204, 0
      %v5004 = vsel %vm219, %v4245, 0
      %v5007 = vsel %vm219, %v4286, 0
      %v5010 = vsel %vm219, %v4327, 0
      %v5013 = vsel %vm219, %v4368, 0
      %v5016 = vsel %vm219, %v4409, 0
      %v5019 = vsel %vm219, %v4450, 0
      %v5022 = vsel %vm219, %v4491, 0
      %v5025 = vsel %vm219, %v4532, 0
      %v5028 = vsel %vm219, %v4573, 0
      %v5031 = vsel %vm219, %v4614, 0
      %v5034 = vsel %vm219, %v4655, 0
      %v5037 = vsel %vm219, %v4696, 0
      %5039 = vmatprep.subr.bf16.mxu0 0
      %5040 = vmatpush1.bf16.msra.mxu0 %v4913
      %5041 = vmatprep.subr.bf16.mxu0 0
      %5042 = vmatpush1.bf16.msra.mxu0 %v4914
      %5043 = vmatprep.subr.bf16.mxu0 0
      %5044 = vmatpush1.bf16.msra.mxu0 %v4915
      %5045 = vmatprep.subr.bf16.mxu0 0
      %5046 = vmatpush1.bf16.msra.mxu0 %v4916
      %5047 = vmatprep.subr.bf16.mxu0 0
      %5048 = vmatpush1.bf16.msra.mxu0 %v4917
      %5049 = vmatprep.subr.bf16.mxu0 0
      %5050 = vmatpush1.bf16.msra.mxu0 %v4918
      %5051 = vmatprep.subr.bf16.mxu0 0
      %5052 = vmatpush1.bf16.msra.mxu0 %v4919
      %5053 = vmatprep.subr.bf16.mxu0 0
      %5054 = vmatpush1.bf16.msra.mxu0 %v4920
      %5055 = vmatprep.subr.bf16.mxu0 0
      %5056 = vmatpush1.bf16.msra.mxu0 %v4921
      %5057 = vmatprep.subr.bf16.mxu0 0
      %5058 = vmatpush1.bf16.msra.mxu0 %v4922
      %5059 = vmatprep.subr.bf16.mxu0 0
      %5060 = vmatpush1.bf16.msra.mxu0 %v4923
      %5061 = vmatprep.subr.bf16.mxu0 0
      %5062 = vmatpush1.bf16.msra.mxu0 %v4924
      %5063 = vmatprep.subr.bf16.mxu0 0
      %5064 = vmatpush1.bf16.msra.mxu0 %v4925
      %5065 = vmatprep.subr.bf16.mxu0 0
      %5066 = vmatpush1.bf16.msra.mxu0 %v4926
      %5067 = vmatprep.subr.bf16.mxu0 0
      %5068 = vmatpush1.bf16.msra.mxu0 %v4927
      %5069 = vmatprep.subr.bf16.mxu0 0
      %5070 = vmatpush1.bf16.msra.mxu0 %v4928
      %5071 = vmatprep.mubr.bf16.mxu0 %v3952
      %5072 = vmatmul.mubr.bf16.gmra.mrb[0].mxu0 %v3937
      %v5073 = vpop.f32.mrb[0].mxu0
      %v5074 = vadd.f32 %v3920, %v5073
      %v5075 = vpop.f32.mrb[0].mxu0
      %v5076 = vpop.f32.mrb[0].mxu0
      %v5077 = vadd.f32 %v3920, %v5076
      %v5078 = vpop.f32.mrb[0].mxu0
      %5079 = vmatprep.mubr.bf16.mxu0 %v4015
      %5080 = vmatmul.mubr.bf16.gmra.mrb[0].mxu0 %v4007
      %v5081 = vpop.f32.mrb[0].mxu0
      %v5082 = vadd.f32 %v3920, %v5081
      %v5083 = vpop.f32.mrb[0].mxu0
      %v5084 = vpop.f32.mrb[0].mxu0
      %v5085 = vadd.f32 %v3920, %v5084
      %v5086 = vpop.f32.mrb[0].mxu0
      %5087 = vmatprep.mubr.bf16.mxu0 %v4056
      %5088 = vmatmul.mubr.bf16.gmra.mrb[0].mxu0 %v4048
      %v5089 = vpop.f32.mrb[0].mxu0
      %v5090 = vadd.f32 %v3920, %v5089
      %v5091 = vpop.f32.mrb[0].mxu0
      %v5092 = vpop.f32.mrb[0].mxu0
      %v5093 = vadd.f32 %v3920, %v5092
      %v5094 = vpop.f32.mrb[0].mxu0
      %5095 = vmatprep.mubr.bf16.mxu0 %v4097
      %5096 = vmatmul.mubr.bf16.gmra.mrb[0].mxu0 %v4089
      %v5097 = vpop.f32.mrb[0].mxu0
      %v5098 = vadd.f32 %v3920, %v5097
      %v5099 = vpop.f32.mrb[0].mxu0
      %v5100 = vpop.f32.mrb[0].mxu0
      %v5101 = vadd.f32 %v3920, %v5100
      %v5102 = vpop.f32.mrb[0].mxu0
      %5103 = vmatprep.mubr.bf16.mxu0 %v4138
      %5104 = vmatmul.mubr.bf16.gmra.mrb[0].mxu0 %v4130
      %v5105 = vpop.f32.mrb[0].mxu0
      %v5106 = vadd.f32 %v3920, %v5105
      %v5107 = vpop.f32.mrb[0].mxu0
      %v5108 = vpop.f32.mrb[0].mxu0
      %v5109 = vadd.f32 %v3920, %v5108
      %v5110 = vpop.f32.mrb[0].mxu0
      %5111 = vmatprep.mubr.bf16.mxu0 %v4179
      %5112 = vmatmul.mubr.bf16.gmra.mrb[0].mxu0 %v4171
      %v5113 = vpop.f32.mrb[0].mxu0
      %v5114 = vadd.f32 %v3920, %v5113
      %v5115 = vpop.f32.mrb[0].mxu0
      %v5116 = vpop.f32.mrb[0].mxu0
      %v5117 = vadd.f32 %v3920, %v5116
      %v5118 = vpop.f32.mrb[0].mxu0
      %5119 = vmatprep.mubr.bf16.mxu0 %v4220
      %5120 = vmatmul.mubr.bf16.gmra.mrb[0].mxu0 %v4212
      %v5121 = vpop.f32.mrb[0].mxu0
      %v5122 = vadd.f32 %v3920, %v5121
      %v5123 = vpop.f32.mrb[0].mxu0
      %v5124 = vpop.f32.mrb[0].mxu0
      %v5125 = vadd.f32 %v3920, %v5124
      %v5126 = vpop.f32.mrb[0].mxu0
      %5127 = vmatprep.mubr.bf16.mxu0 %v4261
      %5128 = vmatmul.mubr.bf16.gmra.mrb[0].mxu0 %v4253
      %v5129 = vpop.f32.mrb[0].mxu0
      %v5130 = vadd.f32 %v3920, %v5129
      %v5131 = vpop.f32.mrb[0].mxu0
      %v5132 = vpop.f32.mrb[0].mxu0
      %v5133 = vadd.f32 %v3920, %v5132
      %v5134 = vpop.f32.mrb[0].mxu0
      %5135 = vmatprep.mubr.bf16.mxu0 %v4302
      %5136 = vmatmul.mubr.bf16.gmra.mrb[0].mxu0 %v4294
      %v5137 = vpop.f32.mrb[0].mxu0
      %v5138 = vadd.f32 %v3920, %v5137
      %v5139 = vpop.f32.mrb[0].mxu0
      %v5140 = vpop.f32.mrb[0].mxu0
      %v5141 = vadd.f32 %v3920, %v5140
      %v5142 = vpop.f32.mrb[0].mxu0
      %5143 = vmatprep.mubr.bf16.mxu0 %v4343
      %5144 = vmatmul.mubr.bf16.gmra.mrb[0].mxu0 %v4335
      %v5145 = vpop.f32.mrb[0].mxu0
      %v5146 = vadd.f32 %v3920, %v5145
      %v5147 = vpop.f32.mrb[0].mxu0
      %v5148 = vpop.f32.mrb[0].mxu0
      %v5149 = vadd.f32 %v3920, %v5148
      %v5150 = vpop.f32.mrb[0].mxu0
      %5151 = vmatprep.mubr.bf16.mxu0 %v4384
      %5152 = vmatmul.mubr.bf16.gmra.mrb[0].mxu0 %v4376
      %v5153 = vpop.f32.mrb[0].mxu0
      %v5154 = vadd.f32 %v3920, %v5153
      %v5155 = vpop.f32.mrb[0].mxu0
      %v5156 = vpop.f32.mrb[0].mxu0
      %v5157 = vadd.f32 %v3920, %v5156
      %v5158 = vpop.f32.mrb[0].mxu0
      %5159 = vmatprep.mubr.bf16.mxu0 %v4425
      %5160 = vmatmul.mubr.bf16.gmra.mrb[0].mxu0 %v4417
      %v5161 = vpop.f32.mrb[0].mxu0
      %v5162 = vadd.f32 %v3920, %v5161
      %v5163 = vpop.f32.mrb[0].mxu0
      %v5164 = vpop.f32.mrb[0].mxu0
      %v5165 = vadd.f32 %v3920, %v5164
      %v5166 = vpop.f32.mrb[0].mxu0
      %5167 = vmatprep.mubr.bf16.mxu0 %v4466
      %5168 = vmatmul.mubr.bf16.gmra.mrb[0].mxu0 %v4458
      %v5169 = vpop.f32.mrb[0].mxu0
      %v5170 = vadd.f32 %v3920, %v5169
      %v5171 = vpop.f32.mrb[0].mxu0
      %v5172 = vpop.f32.mrb[0].mxu0
      %v5173 = vadd.f32 %v3920, %v5172
      %v5174 = vpop.f32.mrb[0].mxu0
      %5175 = vmatprep.mubr.bf16.mxu0 %v4507
      %5176 = vmatmul.mubr.bf16.gmra.mrb[0].mxu0 %v4499
      %v5177 = vpop.f32.mrb[0].mxu0
      %v5178 = vadd.f32 %v3920, %v5177
      %v5179 = vpop.f32.mrb[0].mxu0
      %v5180 = vpop.f32.mrb[0].mxu0
      %v5181 = vadd.f32 %v3920, %v5180
      %v5182 = vpop.f32.mrb[0].mxu0
      %5183 = vmatprep.mubr.bf16.mxu0 %v4548
      %5184 = vmatmul.mubr.bf16.gmra.mrb[0].mxu0 %v4540
      %v5185 = vpop.f32.mrb[0].mxu0
      %v5186 = vadd.f32 %v3920, %v5185
      %v5187 = vpop.f32.mrb[0].mxu0
      %v5188 = vpop.f32.mrb[0].mxu0
      %v5189 = vadd.f32 %v3920, %v5188
      %v5190 = vpop.f32.mrb[0].mxu0
      %5191 = vmatprep.mubr.bf16.mxu0 %v4589
      %5192 = vmatmul.mubr.bf16.gmra.mrb[0].mxu0 %v4581
      %v5193 = vpop.f32.mrb[0].mxu0
      %v5194 = vadd.f32 %v3920, %v5193
      %v5195 = vpop.f32.mrb[0].mxu0
      %v5196 = vpop.f32.mrb[0].mxu0
      %v5197 = vadd.f32 %v3920, %v5196
      %v5198 = vpop.f32.mrb[0].mxu0
      %5199 = vmatprep.mubr.bf16.mxu0 %v4630
      %5200 = vmatmul.mubr.bf16.gmra.mrb[0].mxu0 %v4622
      %v5201 = vpop.f32.mrb[0].mxu0
      %v5202 = vadd.f32 %v3920, %v5201
      %v5203 = vpop.f32.mrb[0].mxu0
      %v5204 = vpop.f32.mrb[0].mxu0
      %v5205 = vadd.f32 %v3920, %v5204
      %v5206 = vpop.f32.mrb[0].mxu0
      %5207 = vmatprep.mubr.bf16.mxu0 %v4671
      %5208 = vmatmul.mubr.bf16.gmra.mrb[0].mxu0 %v4663
      %v5209 = vpop.f32.mrb[0].mxu0
      %v5210 = vadd.f32 %v3920, %v5209
      %v5211 = vpop.f32.mrb[0].mxu0
      %v5212 = vpop.f32.mrb[0].mxu0
      %v5213 = vadd.f32 %v3920, %v5212
      %v5214 = vpop.f32.mrb[0].mxu0
      %5215 = vdwg.mxu0
      %5216 = vmatprep.subr.bf16.mxu0 0
      %5217 = vmatpush1.bf16.msra.mxu0 %v4929
      %5218 = vmatprep.subr.bf16.mxu0 0
      %5219 = vmatpush1.bf16.msra.mxu0 %v4930
      %5220 = vmatprep.subr.bf16.mxu0 0
      %5221 = vmatpush1.bf16.msra.mxu0 %v4931
      %5222 = vmatprep.subr.bf16.mxu0 0
      %5223 = vmatpush1.bf16.msra.mxu0 %v4932
      %5224 = vmatprep.subr.bf16.mxu0 0
      %5225 = vmatpush1.bf16.msra.mxu0 %v4933
      %5226 = vmatprep.subr.bf16.mxu0 0
      %5227 = vmatpush1.bf16.msra.mxu0 %v4934
      %5228 = vmatprep.subr.bf16.mxu0 0
      %5229 = vmatpush1.bf16.msra.mxu0 %v4935
      %5230 = vmatprep.subr.bf16.mxu0 0
      %5231 = vmatpush1.bf16.msra.mxu0 %v4936
      %5232 = vmatprep.subr.bf16.mxu0 0
      %5233 = vmatpush1.bf16.msra.mxu0 %v4937
      %5234 = vmatprep.subr.bf16.mxu0 0
      %5235 = vmatpush1.bf16.msra.mxu0 %v4938
      %5236 = vmatprep.subr.bf16.mxu0 0
      %5237 = vmatpush1.bf16.msra.mxu0 %v4939
      %5238 = vmatprep.subr.bf16.mxu0 0
      %5239 = vmatpush1.bf16.msra.mxu0 %v4940
      %5240 = vmatprep.subr.bf16.mxu0 0
      %5241 = vmatpush1.bf16.msra.mxu0 %v4941
      %5242 = vmatprep.subr.bf16.mxu0 0
      %5243 = vmatpush1.bf16.msra.mxu0 %v4942
      %5244 = vmatprep.subr.bf16.mxu0 0
      %5245 = vmatpush1.bf16.msra.mxu0 %v4943
      %5246 = vmatprep.subr.bf16.mxu0 0
      %5247 = vmatpush1.bf16.msra.mxu0 %v4944
      %5248 = vmatprep.mubr.bf16.mxu0 %v3982
      %5249 = vmatmul.mubr.bf16.gmra.mrb[0].mxu0 %v3967
      %v5250 = vpop.f32.mrb[0].mxu0
      %v5251 = vadd.f32 %v5074, %v5250
      %v5252 = vpop.f32.mrb[0].mxu0
      %v5253 = vpop.f32.mrb[0].mxu0
      %v5254 = vadd.f32 %v5077, %v5253
      %v5255 = vpop.f32.mrb[0].mxu0
      %5256 = vmatprep.mubr.bf16.mxu0 %v4031
      %5257 = vmatmul.mubr.bf16.gmra.mrb[0].mxu0 %v4023
      %v5258 = vpop.f32.mrb[0].mxu0
      %v5259 = vadd.f32 %v5082, %v5258
      %v5260 = vpop.f32.mrb[0].mxu0
      %v5261 = vpop.f32.mrb[0].mxu0
      %v5262 = vadd.f32 %v5085, %v5261
      %v5263 = vpop.f32.mrb[0].mxu0
      %5264 = vmatprep.mubr.bf16.mxu0 %v4072
      %5265 = vmatmul.mubr.bf16.gmra.mrb[0].mxu0 %v4064
      %v5266 = vpop.f32.mrb[0].mxu0
      %v5267 = vadd.f32 %v5090, %v5266
      %v5268 = vpop.f32.mrb[0].mxu0
      %v5269 = vpop.f32.mrb[0].mxu0
      %v5270 = vadd.f32 %v5093, %v5269
      %v5271 = vpop.f32.mrb[0].mxu0
      %5272 = vmatprep.mubr.bf16.mxu0 %v4113
      %5273 = vmatmul.mubr.bf16.gmra.mrb[0].mxu0 %v4105
      %v5274 = vpop.f32.mrb[0].mxu0
      %v5275 = vadd.f32 %v5098, %v5274
      %v5276 = vpop.f32.mrb[0].mxu0
      %v5277 = vpop.f32.mrb[0].mxu0
      %v5278 = vadd.f32 %v5101, %v5277
      %v5279 = vpop.f32.mrb[0].mxu0
      %5280 = vmatprep.mubr.bf16.mxu0 %v4154
      %5281 = vmatmul.mubr.bf16.gmra.mrb[0].mxu0 %v4146
      %v5282 = vpop.f32.mrb[0].mxu0
      %v5283 = vadd.f32 %v5106, %v5282
      %v5284 = vpop.f32.mrb[0].mxu0
      %v5285 = vpop.f32.mrb[0].mxu0
      %v5286 = vadd.f32 %v5109, %v5285
      %v5287 = vpop.f32.mrb[0].mxu0
      %5288 = vmatprep.mubr.bf16.mxu0 %v4195
      %5289 = vmatmul.mubr.bf16.gmra.mrb[0].mxu0 %v4187
      %v5290 = vpop.f32.mrb[0].mxu0
      %v5291 = vadd.f32 %v5114, %v5290
      %v5292 = vpop.f32.mrb[0].mxu0
      %v5293 = vpop.f32.mrb[0].mxu0
      %v5294 = vadd.f32 %v5117, %v5293
      %v5295 = vpop.f32.mrb[0].mxu0
      %5296 = vmatprep.mubr.bf16.mxu0 %v4236
      %5297 = vmatmul.mubr.bf16.gmra.mrb[0].mxu0 %v4228
      %v5298 = vpop.f32.mrb[0].mxu0
      %v5299 = vadd.f32 %v5122, %v5298
      %v5300 = vpop.f32.mrb[0].mxu0
      %v5301 = vpop.f32.mrb[0].mxu0
      %v5302 = vadd.f32 %v5125, %v5301
      %v5303 = vpop.f32.mrb[0].mxu0
      %5304 = vmatprep.mubr.bf16.mxu0 %v4277
      %5305 = vmatmul.mubr.bf16.gmra.mrb[0].mxu0 %v4269
      %v5306 = vpop.f32.mrb[0].mxu0
      %v5307 = vadd.f32 %v5130, %v5306
      %v5308 = vpop.f32.mrb[0].mxu0
      %v5309 = vpop.f32.mrb[0].mxu0
      %v5310 = vadd.f32 %v5133, %v5309
      %v5311 = vpop.f32.mrb[0].mxu0
      %5312 = vmatprep.mubr.bf16.mxu0 %v4318
      %5313 = vmatmul.mubr.bf16.gmra.mrb[0].mxu0 %v4310
      %v5314 = vpop.f32.mrb[0].mxu0
      %v5315 = vadd.f32 %v5138, %v5314
      %v5316 = vpop.f32.mrb[0].mxu0
      %v5317 = vpop.f32.mrb[0].mxu0
      %v5318 = vadd.f32 %v5141, %v5317
      %v5319 = vpop.f32.mrb[0].mxu0
      %5320 = vmatprep.mubr.bf16.mxu0 %v4359
      %5321 = vmatmul.mubr.bf16.gmra.mrb[0].mxu0 %v4351
      %v5322 = vpop.f32.mrb[0].mxu0
      %v5323 = vadd.f32 %v5146, %v5322
      %v5324 = vpop.f32.mrb[0].mxu0
      %v5325 = vpop.f32.mrb[0].mxu0
      %v5326 = vadd.f32 %v5149, %v5325
      %v5327 = vpop.f32.mrb[0].mxu0
      %5328 = vmatprep.mubr.bf16.mxu0 %v4400
      %5329 = vmatmul.mubr.bf16.gmra.mrb[0].mxu0 %v4392
      %v5330 = vpop.f32.mrb[0].mxu0
      %v5331 = vadd.f32 %v5154, %v5330
      %v5332 = vpop.f32.mrb[0].mxu0
      %v5333 = vpop.f32.mrb[0].mxu0
      %v5334 = vadd.f32 %v5157, %v5333
      %v5335 = vpop.f32.mrb[0].mxu0
      %5336 = vmatprep.mubr.bf16.mxu0 %v4441
      %5337 = vmatmul.mubr.bf16.gmra.mrb[0].mxu0 %v4433
      %v5338 = vpop.f32.mrb[0].mxu0
      %v5339 = vadd.f32 %v5162, %v5338
      %v5340 = vpop.f32.mrb[0].mxu0
      %v5341 = vpop.f32.mrb[0].mxu0
      %v5342 = vadd.f32 %v5165, %v5341
      %v5343 = vpop.f32.mrb[0].mxu0
      %5344 = vmatprep.mubr.bf16.mxu0 %v4482
      %5345 = vmatmul.mubr.bf16.gmra.mrb[0].mxu0 %v4474
      %v5346 = vpop.f32.mrb[0].mxu0
      %v5347 = vadd.f32 %v5170, %v5346
      %v5348 = vpop.f32.mrb[0].mxu0
      %v5349 = vpop.f32.mrb[0].mxu0
      %v5350 = vadd.f32 %v5173, %v5349
      %v5351 = vpop.f32.mrb[0].mxu0
      %5352 = vmatprep.mubr.bf16.mxu0 %v4523
      %5353 = vmatmul.mubr.bf16.gmra.mrb[0].mxu0 %v4515
      %v5354 = vpop.f32.mrb[0].mxu0
      %v5355 = vadd.f32 %v5178, %v5354
      %v5356 = vpop.f32.mrb[0].mxu0
      %v5357 = vpop.f32.mrb[0].mxu0
      %v5358 = vadd.f32 %v5181, %v5357
      %v5359 = vpop.f32.mrb[0].mxu0
      %5360 = vmatprep.mubr.bf16.mxu0 %v4564
      %5361 = vmatmul.mubr.bf16.gmra.mrb[0].mxu0 %v4556
      %v5362 = vpop.f32.mrb[0].mxu0
      %v5363 = vadd.f32 %v5186, %v5362
      %v5364 = vpop.f32.mrb[0].mxu0
      %v5365 = vpop.f32.mrb[0].mxu0
      %v5366 = vadd.f32 %v5189, %v5365
      %v5367 = vpop.f32.mrb[0].mxu0
      %5368 = vmatprep.mubr.bf16.mxu0 %v4605
      %5369 = vmatmul.mubr.bf16.gmra.mrb[0].mxu0 %v4597
      %v5370 = vpop.f32.mrb[0].mxu0
      %v5371 = vadd.f32 %v5194, %v5370
      %v5372 = vpop.f32.mrb[0].mxu0
      %v5373 = vpop.f32.mrb[0].mxu0
      %v5374 = vadd.f32 %v5197, %v5373
      %v5375 = vpop.f32.mrb[0].mxu0
      %5376 = vmatprep.mubr.bf16.mxu0 %v4646
      %5377 = vmatmul.mubr.bf16.gmra.mrb[0].mxu0 %v4638
      %v5378 = vpop.f32.mrb[0].mxu0
      %v5379 = vadd.f32 %v5202, %v5378
      %v5380 = vpop.f32.mrb[0].mxu0
      %v5381 = vpop.f32.mrb[0].mxu0
      %v5382 = vadd.f32 %v5205, %v5381
      %v5383 = vpop.f32.mrb[0].mxu0
      %5384 = vmatprep.mubr.bf16.mxu0 %v4687
      %5385 = vmatmul.mubr.bf16.gmra.mrb[0].mxu0 %v4679
      %v5386 = vpop.f32.mrb[0].mxu0
      %v5387 = vadd.f32 %v5210, %v5386
      %v5388 = vpop.f32.mrb[0].mxu0
      %v5389 = vpop.f32.mrb[0].mxu0
      %v5390 = vadd.f32 %v5213, %v5389
      %v5391 = vpop.f32.mrb[0].mxu0
      %5392 = vdwg.mxu0
      %5393 = vmatprep.subr.bf16.mxu0 0
      %5394 = vmatpush1.bf16.msra.mxu0 %v4945
      %5395 = vmatprep.subr.bf16.mxu0 0
      %5396 = vmatpush1.bf16.msra.mxu0 %v4946
      %5397 = vmatprep.subr.bf16.mxu0 0
      %5398 = vmatpush1.bf16.msra.mxu0 %v4947
      %5399 = vmatprep.subr.bf16.mxu0 0
      %5400 = vmatpush1.bf16.msra.mxu0 %v4948
      %5401 = vmatprep.subr.bf16.mxu0 0
      %5402 = vmatpush1.bf16.msra.mxu0 0
      %5403 = vmatprep.subr.bf16.mxu0 0
      %5404 = vmatpush1.bf16.msra.mxu0 0
      %5405 = vmatprep.subr.bf16.mxu0 0
      %5406 = vmatpush1.bf16.msra.mxu0 0
      %5407 = vmatprep.subr.bf16.mxu0 0
      %5408 = vmatpush1.bf16.msra.mxu0 0
      %5409 = vmatprep.subr.bf16.mxu0 0
      %5410 = vmatpush1.bf16.msra.mxu0 0
      %5411 = vmatprep.subr.bf16.mxu0 0
      %5412 = vmatpush1.bf16.msra.mxu0 0
      %5413 = vmatprep.subr.bf16.mxu0 0
      %5414 = vmatpush1.bf16.msra.mxu0 0
      %5415 = vmatprep.subr.bf16.mxu0 0
      %5416 = vmatpush1.bf16.msra.mxu0 0
      %5417 = vmatprep.subr.bf16.mxu0 0
      %5418 = vmatpush1.bf16.msra.mxu0 0
      %5419 = vmatprep.subr.bf16.mxu0 0
      %5420 = vmatpush1.bf16.msra.mxu0 0
      %5421 = vmatprep.subr.bf16.mxu0 0
      %5422 = vmatpush1.bf16.msra.mxu0 0
      %5423 = vmatprep.subr.bf16.mxu0 0
      %5424 = vmatpush1.bf16.msra.mxu0 0
      %5425 = vmatprep.mubr.bf16.mxu0 0
      %5426 = vmatmul.mubr.bf16.gmra.mrb[0].mxu0 %v4986
      %v5427 = vpop.f32.mrb[0].mxu0
      %v5428 = vadd.f32 %v5251, %v5427
      %v5429 = vpop.f32.mrb[0].mxu0
      %v5430 = vpop.f32.mrb[0].mxu0
      %v5431 = vadd.f32 %v5254, %v5430
      %v5432 = vpop.f32.mrb[0].mxu0
      %5433 = vmatprep.mubr.bf16.mxu0 0
      %5434 = vmatmul.mubr.bf16.gmra.mrb[0].mxu0 %v4989
      %v5435 = vpop.f32.mrb[0].mxu0
      %v5436 = vadd.f32 %v5259, %v5435
      %v5437 = vpop.f32.mrb[0].mxu0
      %v5438 = vpop.f32.mrb[0].mxu0
      %v5439 = vadd.f32 %v5262, %v5438
      %v5440 = vpop.f32.mrb[0].mxu0
      %5441 = vmatprep.mubr.bf16.mxu0 0
      %5442 = vmatmul.mubr.bf16.gmra.mrb[0].mxu0 %v4992
      %v5443 = vpop.f32.mrb[0].mxu0
      %v5444 = vadd.f32 %v5267, %v5443
      %v5445 = vpop.f32.mrb[0].mxu0
      %v5446 = vpop.f32.mrb[0].mxu0
      %v5447 = vadd.f32 %v5270, %v5446
      %v5448 = vpop.f32.mrb[0].mxu0
      %5449 = vmatprep.mubr.bf16.mxu0 0
      %5450 = vmatmul.mubr.bf16.gmra.mrb[0].mxu0 %v4995
      %v5451 = vpop.f32.mrb[0].mxu0
      %v5452 = vadd.f32 %v5275, %v5451
      %v5453 = vpop.f32.mrb[0].mxu0
      %v5454 = vpop.f32.mrb[0].mxu0
      %v5455 = vadd.f32 %v5278, %v5454
      %v5456 = vpop.f32.mrb[0].mxu0
      %5457 = vmatprep.mubr.bf16.mxu0 0
      %5458 = vmatmul.mubr.bf16.gmra.mrb[0].mxu0 %v4998
      %v5459 = vpop.f32.mrb[0].mxu0
      %v5460 = vadd.f32 %v5283, %v5459
      %v5461 = vpop.f32.mrb[0].mxu0
      %v5462 = vpop.f32.mrb[0].mxu0
      %v5463 = vadd.f32 %v5286, %v5462
      %v5464 = vpop.f32.mrb[0].mxu0
      %5465 = vmatprep.mubr.bf16.mxu0 0
      %5466 = vmatmul.mubr.bf16.gmra.mrb[0].mxu0 %v5001
      %v5467 = vpop.f32.mrb[0].mxu0
      %v5468 = vadd.f32 %v5291, %v5467
      %v5469 = vpop.f32.mrb[0].mxu0
      %v5470 = vpop.f32.mrb[0].mxu0
      %v5471 = vadd.f32 %v5294, %v5470
      %v5472 = vpop.f32.mrb[0].mxu0
      %5473 = vmatprep.mubr.bf16.mxu0 0
      %5474 = vmatmul.mubr.bf16.gmra.mrb[0].mxu0 %v5004
      %v5475 = vpop.f32.mrb[0].mxu0
      %v5476 = vadd.f32 %v5299, %v5475
      %v5477 = vpop.f32.mrb[0].mxu0
      %v5478 = vpop.f32.mrb[0].mxu0
      %v5479 = vadd.f32 %v5302, %v5478
      %v5480 = vpop.f32.mrb[0].mxu0
      %5481 = vmatprep.mubr.bf16.mxu0 0
      %5482 = vmatmul.mubr.bf16.gmra.mrb[0].mxu0 %v5007
      %v5483 = vpop.f32.mrb[0].mxu0
      %v5484 = vadd.f32 %v5307, %v5483
      %v5485 = vpop.f32.mrb[0].mxu0
      %v5486 = vpop.f32.mrb[0].mxu0
      %v5487 = vadd.f32 %v5310, %v5486
      %v5488 = vpop.f32.mrb[0].mxu0
      %5489 = vmatprep.mubr.bf16.mxu0 0
      %5490 = vmatmul.mubr.bf16.gmra.mrb[0].mxu0 %v5010
      %v5491 = vpop.f32.mrb[0].mxu0
      %v5492 = vadd.f32 %v5315, %v5491
      %v5493 = vpop.f32.mrb[0].mxu0
      %v5494 = vpop.f32.mrb[0].mxu0
      %v5495 = vadd.f32 %v5318, %v5494
      %v5496 = vpop.f32.mrb[0].mxu0
      %5497 = vmatprep.mubr.bf16.mxu0 0
      %5498 = vmatmul.mubr.bf16.gmra.mrb[0].mxu0 %v5013
      %v5499 = vpop.f32.mrb[0].mxu0
      %v5500 = vadd.f32 %v5323, %v5499
      %v5501 = vpop.f32.mrb[0].mxu0
      %v5502 = vpop.f32.mrb[0].mxu0
      %v5503 = vadd.f32 %v5326, %v5502
      %v5504 = vpop.f32.mrb[0].mxu0
      %5505 = vmatprep.mubr.bf16.mxu0 0
      %5506 = vmatmul.mubr.bf16.gmra.mrb[0].mxu0 %v5016
      %v5507 = vpop.f32.mrb[0].mxu0
      %v5508 = vadd.f32 %v5331, %v5507
      %v5509 = vpop.f32.mrb[0].mxu0
      %v5510 = vpop.f32.mrb[0].mxu0
      %v5511 = vadd.f32 %v5334, %v5510
      %v5512 = vpop.f32.mrb[0].mxu0
      %5513 = vmatprep.mubr.bf16.mxu0 0
      %5514 = vmatmul.mubr.bf16.gmra.mrb[0].mxu0 %v5019
      %v5515 = vpop.f32.mrb[0].mxu0
      %v5516 = vadd.f32 %v5339, %v5515
      %v5517 = vpop.f32.mrb[0].mxu0
      %v5518 = vpop.f32.mrb[0].mxu0
      %v5519 = vadd.f32 %v5342, %v5518
      %v5520 = vpop.f32.mrb[0].mxu0
      %5521 = vmatprep.mubr.bf16.mxu0 0
      %5522 = vmatmul.mubr.bf16.gmra.mrb[0].mxu0 %v5022
      %v5523 = vpop.f32.mrb[0].mxu0
      %v5524 = vadd.f32 %v5347, %v5523
      %v5525 = vpop.f32.mrb[0].mxu0
      %v5526 = vpop.f32.mrb[0].mxu0
      %v5527 = vadd.f32 %v5350, %v5526
      %v5528 = vpop.f32.mrb[0].mxu0
      %5529 = vmatprep.mubr.bf16.mxu0 0
      %5530 = vmatmul.mubr.bf16.gmra.mrb[0].mxu0 %v5025
      %v5531 = vpop.f32.mrb[0].mxu0
      %v5532 = vadd.f32 %v5355, %v5531
      %v5533 = vpop.f32.mrb[0].mxu0
      %v5534 = vpop.f32.mrb[0].mxu0
      %v5535 = vadd.f32 %v5358, %v5534
      %v5536 = vpop.f32.mrb[0].mxu0
      %5537 = vmatprep.mubr.bf16.mxu0 0
      %5538 = vmatmul.mubr.bf16.gmra.mrb[0].mxu0 %v5028
      %v5539 = vpop.f32.mrb[0].mxu0
      %v5540 = vadd.f32 %v5363, %v5539
      %v5541 = vpop.f32.mrb[0].mxu0
      %v5542 = vpop.f32.mrb[0].mxu0
      %v5543 = vadd.f32 %v5366, %v5542
      %v5544 = vpop.f32.mrb[0].mxu0
      %5545 = vmatprep.mubr.bf16.mxu0 0
      %5546 = vmatmul.mubr.bf16.gmra.mrb[0].mxu0 %v5031
      %v5547 = vpop.f32.mrb[0].mxu0
      %v5548 = vadd.f32 %v5371, %v5547
      %v5549 = vpop.f32.mrb[0].mxu0
      %v5550 = vpop.f32.mrb[0].mxu0
      %v5551 = vadd.f32 %v5374, %v5550
      %v5552 = vpop.f32.mrb[0].mxu0
      %5553 = vmatprep.mubr.bf16.mxu0 0
      %5554 = vmatmul.mubr.bf16.gmra.mrb[0].mxu0 %v5034
      %v5555 = vpop.f32.mrb[0].mxu0
      %v5556 = vadd.f32 %v5379, %v5555
      %v5557 = vpop.f32.mrb[0].mxu0
      %v5558 = vpop.f32.mrb[0].mxu0
      %v5559 = vadd.f32 %v5382, %v5558
      %v5560 = vpop.f32.mrb[0].mxu0
      %5561 = vmatprep.mubr.bf16.mxu0 0
      %5562 = vmatmul.mubr.bf16.gmra.mrb[0].mxu0 %v5037
      %v5563 = vpop.f32.mrb[0].mxu0
      %v5564 = vadd.f32 %v5387, %v5563
      %v5565 = vpop.f32.mrb[0].mxu0
      %v5566 = vpop.f32.mrb[0].mxu0
      %v5567 = vadd.f32 %v5390, %v5566
      %v5568 = vpop.f32.mrb[0].mxu0
      %5569 = vdwg.mxu0
      %v5571 = vshrl.u32 %v1062, 16
      %v5573 = vshll.u32 %v1062, 16
      %v5575 = vrot.slane %v5573, 1
      %v5576 = vor.u32 %v5571, %v5575
      %v5578 = vshll.u32 %v1063, 16
      %v5580 = vrot.slane %v5578, 1
      %v5581 = vsel %vm1083, %v5576, %v5580
      %v5582 = vshrl.u32 %v1063, 16
      %v5584 = vor.u32 %v5582, %v5580
      %v5586 = vshll.u32 %v1064, 16
      %v5588 = vrot.slane %v5586, 1
      %v5589 = vsel %vm1083, %v5584, %v5588
      %v5590 = vshrl.u32 %v1064, 16
      %v5592 = vor.u32 %v5590, %v5588
      %v5594 = vshll.u32 %v1065, 16
      %v5596 = vrot.slane %v5594, 1
      %v5597 = vsel %vm1083, %v5592, %v5596
      %v5598 = vshrl.u32 %v1065, 16
      %v5600 = vor.u32 %v5598, %v5596
      %v5602 = vshll.u32 %v1066, 16
      %v5604 = vrot.slane %v5602, 1
      %v5605 = vsel %vm1083, %v5600, %v5604
      %v5606 = vshrl.u32 %v1066, 16
      %v5608 = vor.u32 %v5606, %v5604
      %v5610 = vshll.u32 %v1067, 16
      %v5612 = vrot.slane %v5610, 1
      %v5613 = vsel %vm1083, %v5608, %v5612
      %v5614 = vshrl.u32 %v1067, 16
      %v5616 = vor.u32 %v5614, %v5612
      %v5618 = vshll.u32 %v1068, 16
      %v5620 = vrot.slane %v5618, 1
      %v5621 = vsel %vm1083, %v5616, %v5620
      %v5622 = vshrl.u32 %v1068, 16
      %v5624 = vor.u32 %v5622, %v5620
      %v5626 = vshll.u32 %v1069, 16
      %v5628 = vrot.slane %v5626, 1
      %v5629 = vsel %vm1083, %v5624, %v5628
      %v5630 = vshrl.u32 %v1069, 16
      %v5632 = vor.u32 %v5630, %v5628
      %v5634 = vshll.u32 %v1070, 16
      %v5636 = vrot.slane %v5634, 1
      %v5637 = vsel %vm1083, %v5632, %v5636
      %v5638 = vshrl.u32 %v1070, 16
      %v5640 = vor.u32 %v5638, %v5636
      %v5642 = vshll.u32 %v1071, 16
      %v5644 = vrot.slane %v5642, 1
      %v5645 = vsel %vm1083, %v5640, %v5644
      %v5646 = vshrl.u32 %v1071, 16
      %v5648 = vor.u32 %v5646, %v5644
      %v5650 = vshll.u32 %v1072, 16
      %v5652 = vrot.slane %v5650, 1
      %v5653 = vsel %vm1083, %v5648, %v5652
      %v5654 = vshrl.u32 %v1072, 16
      %v5656 = vor.u32 %v5654, %v5652
      %v5658 = vshll.u32 %v1073, 16
      %v5660 = vrot.slane %v5658, 1
      %v5661 = vsel %vm1083, %v5656, %v5660
      %v5662 = vshrl.u32 %v1073, 16
      %v5664 = vor.u32 %v5662, %v5660
      %v5666 = vshll.u32 %v1074, 16
      %v5668 = vrot.slane %v5666, 1
      %v5669 = vsel %vm1083, %v5664, %v5668
      %v5670 = vshrl.u32 %v1074, 16
      %v5672 = vor.u32 %v5670, %v5668
      %v5674 = vshll.u32 %v1075, 16
      %v5676 = vrot.slane %v5674, 1
      %v5677 = vsel %vm1083, %v5672, %v5676
      %v5678 = vshrl.u32 %v1075, 16
      %v5680 = vor.u32 %v5678, %v5676
      %v5682 = vshll.u32 %v1076, 16
      %v5684 = vrot.slane %v5682, 1
      %v5685 = vsel %vm1083, %v5680, %v5684
      %v5686 = vshrl.u32 %v1076, 16
      %v5688 = vor.u32 %v5686, %v5684
      %v5690 = vshll.u32 %v1077, 16
      %v5692 = vrot.slane %v5690, 1
      %v5693 = vsel %vm1083, %v5688, %v5692
      %v5694 = vshrl.u32 %v1077, 16
      %v5696 = vor.u32 %v5694, %v5692
      %v5698 = vshll.u32 %v1078, 16
      %v5700 = vrot.slane %v5698, 1
      %v5701 = vsel %vm1083, %v5696, %v5700
      %v5702 = vshrl.u32 %v1078, 16
      %v5704 = vor.u32 %v5702, %v5700
      %v5706 = vshll.u32 %v1079, 16
      %v5708 = vrot.slane %v5706, 1
      %v5709 = vsel %vm1083, %v5704, %v5708
      %v5710 = vshrl.u32 %v1079, 16
      %v5712 = vor.u32 %v5710, %v5708
      %v5714 = vshll.u32 %v1080, 16
      %v5716 = vrot.slane %v5714, 1
      %v5717 = vsel %vm1083, %v5712, %v5716
      %5718 = vrot.lane.b32.xlu0 %v5581, 64
      %v5719 = vpop.permute.xlu0 %5718
      %5720 = vrot.lane.b32.xlu0 %v5589, 64
      %v5721 = vpop.permute.xlu0 %5720
      %5722 = vrot.lane.b32.xlu0 %v5597, 64
      %v5723 = vpop.permute.xlu0 %5722
      %5724 = vrot.lane.b32.xlu0 %v5605, 64
      %v5725 = vpop.permute.xlu0 %5724
      %5726 = vrot.lane.b32.xlu0 %v5613, 64
      %v5727 = vpop.permute.xlu0 %5726
      %5728 = vrot.lane.b32.xlu0 %v5621, 64
      %v5729 = vpop.permute.xlu0 %5728
      %5730 = vrot.lane.b32.xlu0 %v5629, 64
      %v5731 = vpop.permute.xlu0 %5730
      %5732 = vrot.lane.b32.xlu0 %v5637, 64
      %v5733 = vpop.permute.xlu0 %5732
      %5734 = vrot.lane.b32.xlu0 %v5645, 64
      %v5735 = vpop.permute.xlu0 %5734
      %5736 = vrot.lane.b32.xlu0 %v5653, 64
      %v5737 = vpop.permute.xlu0 %5736
      %5738 = vrot.lane.b32.xlu0 %v5661, 64
      %v5739 = vpop.permute.xlu0 %5738
      %5740 = vrot.lane.b32.xlu0 %v5669, 64
      %v5741 = vpop.permute.xlu0 %5740
      %5742 = vrot.lane.b32.xlu0 %v5677, 64
      %v5743 = vpop.permute.xlu0 %5742
      %5744 = vrot.lane.b32.xlu0 %v5685, 64
      %v5745 = vpop.permute.xlu0 %5744
      %5746 = vrot.lane.b32.xlu0 %v5693, 64
      %v5747 = vpop.permute.xlu0 %5746
      %5748 = vrot.lane.b32.xlu0 %v5701, 64
      %v5749 = vpop.permute.xlu0 %5748
      %5750 = vrot.lane.b32.xlu0 %v5709, 64
      %v5751 = vpop.permute.xlu0 %5750
      %5752 = vrot.lane.b32.xlu0 %v5717, 64
      %v5753 = vpop.permute.xlu0 %5752
      %v5773 = vrot.slane %v1062, 1
      %v5774 = vrot.slane %v1063, 1
      %v5775 = vsel %vm1287, %v5773, %v5774
      %v5776 = vrot.slane %v1064, 1
      %v5777 = vsel %vm1287, %v5774, %v5776
      %v5778 = vrot.slane %v1065, 1
      %v5779 = vsel %vm1287, %v5776, %v5778
      %v5780 = vrot.slane %v1066, 1
      %v5781 = vsel %vm1287, %v5778, %v5780
      %v5782 = vrot.slane %v1067, 1
      %v5783 = vsel %vm1287, %v5780, %v5782
      %v5784 = vrot.slane %v1068, 1
      %v5785 = vsel %vm1287, %v5782, %v5784
      %v5786 = vrot.slane %v1069, 1
      %v5787 = vsel %vm1287, %v5784, %v5786
      %v5788 = vrot.slane %v1070, 1
      %v5789 = vsel %vm1287, %v5786, %v5788
      %v5790 = vrot.slane %v1071, 1
      %v5791 = vsel %vm1287, %v5788, %v5790
      %v5792 = vrot.slane %v1072, 1
      %v5793 = vsel %vm1287, %v5790, %v5792
      %v5794 = vrot.slane %v1073, 1
      %v5795 = vsel %vm1287, %v5792, %v5794
      %v5796 = vrot.slane %v1074, 1
      %v5797 = vsel %vm1287, %v5794, %v5796
      %v5798 = vrot.slane %v1075, 1
      %v5799 = vsel %vm1287, %v5796, %v5798
      %v5800 = vrot.slane %v1076, 1
      %v5801 = vsel %vm1287, %v5798, %v5800
      %v5802 = vrot.slane %v1077, 1
      %v5803 = vsel %vm1287, %v5800, %v5802
      %v5804 = vrot.slane %v1078, 1
      %v5805 = vsel %vm1287, %v5802, %v5804
      %v5806 = vrot.slane %v1079, 1
      %v5807 = vsel %vm1287, %v5804, %v5806
      %v5808 = vrot.slane %v1080, 1
      %v5809 = vsel %vm1287, %v5806, %v5808
      %v5811 = vrot.slane %v1081, 1
      %v5812 = vsel %vm1287, %v5808, %v5811
      %5813 = vrot.lane.b32.xlu0 %v5777, 64
      %v5814 = vpop.permute.xlu0 %5813
      %5815 = vrot.lane.b32.xlu0 %v5779, 64
      %v5816 = vpop.permute.xlu0 %5815
      %5817 = vrot.lane.b32.xlu0 %v5781, 64
      %v5818 = vpop.permute.xlu0 %5817
      %5819 = vrot.lane.b32.xlu0 %v5783, 64
      %v5820 = vpop.permute.xlu0 %5819
      %5821 = vrot.lane.b32.xlu0 %v5785, 64
      %v5822 = vpop.permute.xlu0 %5821
      %5823 = vrot.lane.b32.xlu0 %v5787, 64
      %v5824 = vpop.permute.xlu0 %5823
      %5825 = vrot.lane.b32.xlu0 %v5789, 64
      %v5826 = vpop.permute.xlu0 %5825
      %5827 = vrot.lane.b32.xlu0 %v5791, 64
      %v5828 = vpop.permute.xlu0 %5827
      %5829 = vrot.lane.b32.xlu0 %v5793, 64
      %v5830 = vpop.permute.xlu0 %5829
      %5831 = vrot.lane.b32.xlu0 %v5795, 64
      %v5832 = vpop.permute.xlu0 %5831
      %5833 = vrot.lane.b32.xlu0 %v5797, 64
      %v5834 = vpop.permute.xlu0 %5833
      %5835 = vrot.lane.b32.xlu0 %v5799, 64
      %v5836 = vpop.permute.xlu0 %5835
      %5837 = vrot.lane.b32.xlu0 %v5801, 64
      %v5838 = vpop.permute.xlu0 %5837
      %5839 = vrot.lane.b32.xlu0 %v5803, 64
      %v5840 = vpop.permute.xlu0 %5839
      %5841 = vrot.lane.b32.xlu0 %v5805, 64
      %v5842 = vpop.permute.xlu0 %5841
      %5843 = vrot.lane.b32.xlu0 %v5807, 64
      %v5844 = vpop.permute.xlu0 %5843
      %5845 = vrot.lane.b32.xlu0 %v5809, 64
      %v5846 = vpop.permute.xlu0 %5845
      %5847 = vrot.lane.b32.xlu0 %v5812, 64
      %v5848 = vpop.permute.xlu0 %5847
      %v5849 = vrot.slane %v5582, 1
      %v5850 = vrot.slane %v5578, 2
      %v5851 = vor.u32 %v5849, %v5850
      %v5852 = vrot.slane %v5590, 1
      %v5853 = vrot.slane %v5586, 2
      %v5854 = vor.u32 %v5852, %v5853
      %v5855 = vsel %vm1364, %v5851, %v5854
      %v5856 = vrot.slane %v5598, 1
      %v5857 = vrot.slane %v5594, 2
      %v5858 = vor.u32 %v5856, %v5857
      %v5859 = vsel %vm1364, %v5854, %v5858
      %v5860 = vrot.slane %v5606, 1
      %v5861 = vrot.slane %v5602, 2
      %v5862 = vor.u32 %v5860, %v5861
      %v5863 = vsel %vm1364, %v5858, %v5862
      %v5864 = vrot.slane %v5614, 1
      %v5865 = vrot.slane %v5610, 2
      %v5866 = vor.u32 %v5864, %v5865
      %v5867 = vsel %vm1364, %v5862, %v5866
      %v5868 = vrot.slane %v5622, 1
      %v5869 = vrot.slane %v5618, 2
      %v5870 = vor.u32 %v5868, %v5869
      %v5871 = vsel %vm1364, %v5866, %v5870
      %v5872 = vrot.slane %v5630, 1
      %v5873 = vrot.slane %v5626, 2
      %v5874 = vor.u32 %v5872, %v5873
      %v5875 = vsel %vm1364, %v5870, %v5874
      %v5876 = vrot.slane %v5638, 1
      %v5877 = vrot.slane %v5634, 2
      %v5878 = vor.u32 %v5876, %v5877
      %v5879 = vsel %vm1364, %v5874, %v5878
      %v5880 = vrot.slane %v5646, 1
      %v5881 = vrot.slane %v5642, 2
      %v5882 = vor.u32 %v5880, %v5881
      %v5883 = vsel %vm1364, %v5878, %v5882
      %v5884 = vrot.slane %v5654, 1
      %v5885 = vrot.slane %v5650, 2
      %v5886 = vor.u32 %v5884, %v5885
      %v5887 = vsel %vm1364, %v5882, %v5886
      %v5888 = vrot.slane %v5662, 1
      %v5889 = vrot.slane %v5658, 2
      %v5890 = vor.u32 %v5888, %v5889
      %v5891 = vsel %vm1364, %v5886, %v5890
      %v5892 = vrot.slane %v5670, 1
      %v5893 = vrot.slane %v5666, 2
      %v5894 = vor.u32 %v5892, %v5893
      %v5895 = vsel %vm1364, %v5890, %v5894
      %v5896 = vrot.slane %v5678, 1
      %v5897 = vrot.slane %v5674, 2
      %v5898 = vor.u32 %v5896, %v5897
      %v5899 = vsel %vm1364, %v5894, %v5898
      %v5900 = vrot.slane %v5686, 1
      %v5901 = vrot.slane %v5682, 2
      %v5902 = vor.u32 %v5900, %v5901
      %v5903 = vsel %vm1364, %v5898, %v5902
      %v5904 = vrot.slane %v5694, 1
      %v5905 = vrot.slane %v5690, 2
      %v5906 = vor.u32 %v5904, %v5905
      %v5907 = vsel %vm1364, %v5902, %v5906
      %v5908 = vrot.slane %v5702, 1
      %v5909 = vrot.slane %v5698, 2
      %v5910 = vor.u32 %v5908, %v5909
      %v5911 = vsel %vm1364, %v5906, %v5910
      %v5912 = vrot.slane %v5710, 1
      %v5913 = vrot.slane %v5706, 2
      %v5914 = vor.u32 %v5912, %v5913
      %v5915 = vsel %vm1364, %v5910, %v5914
      %v5916 = vshrl.u32 %v1080, 16
      %v5918 = vrot.slane %v5916, 1
      %v5919 = vrot.slane %v5714, 2
      %v5920 = vor.u32 %v5918, %v5919
      %v5921 = vsel %vm1364, %v5914, %v5920
      %v5923 = vshrl.u32 %v1081, 16
      %v5925 = vrot.slane %v5923, 1
      %v5926 = vshll.u32 %v1081, 16
      %v5928 = vrot.slane %v5926, 2
      %v5929 = vor.u32 %v5925, %v5928
      %v5930 = vsel %vm1364, %v5920, %v5929
      %v5931 = vrot.slane %v1063, 2
      %v5932 = vrot.slane %v1064, 2
      %v5933 = vsel %vm1447, %v5931, %v5932
      %v5934 = vrot.slane %v1065, 2
      %v5935 = vsel %vm1447, %v5932, %v5934
      %v5936 = vrot.slane %v1066, 2
      %v5937 = vsel %vm1447, %v5934, %v5936
      %v5938 = vrot.slane %v1067, 2
      %v5939 = vsel %vm1447, %v5936, %v5938
      %v5940 = vrot.slane %v1068, 2
      %v5941 = vsel %vm1447, %v5938, %v5940
      %v5942 = vrot.slane %v1069, 2
      %v5943 = vsel %vm1447, %v5940, %v5942
      %v5944 = vrot.slane %v1070, 2
      %v5945 = vsel %vm1447, %v5942, %v5944
      %v5946 = vrot.slane %v1071, 2
      %v5947 = vsel %vm1447, %v5944, %v5946
      %v5948 = vrot.slane %v1072, 2
      %v5949 = vsel %vm1447, %v5946, %v5948
      %v5950 = vrot.slane %v1073, 2
      %v5951 = vsel %vm1447, %v5948, %v5950
      %v5952 = vrot.slane %v1074, 2
      %v5953 = vsel %vm1447, %v5950, %v5952
      %v5954 = vrot.slane %v1075, 2
      %v5955 = vsel %vm1447, %v5952, %v5954
      %v5956 = vrot.slane %v1076, 2
      %v5957 = vsel %vm1447, %v5954, %v5956
      %v5958 = vrot.slane %v1077, 2
      %v5959 = vsel %vm1447, %v5956, %v5958
      %v5960 = vrot.slane %v1078, 2
      %v5961 = vsel %vm1447, %v5958, %v5960
      %v5962 = vrot.slane %v1079, 2
      %v5963 = vsel %vm1447, %v5960, %v5962
      %v5964 = vrot.slane %v1080, 2
      %v5965 = vsel %vm1447, %v5962, %v5964
      %v5966 = vrot.slane %v1081, 2
      %v5967 = vsel %vm1447, %v5964, %v5966
      %5968 = vrot.lane.b32.xlu0 %v5933, 64
      %v5969 = vpop.permute.xlu0 %5968
      %5970 = vrot.lane.b32.xlu0 %v5935, 64
      %v5971 = vpop.permute.xlu0 %5970
      %5972 = vrot.lane.b32.xlu0 %v5937, 64
      %v5973 = vpop.permute.xlu0 %5972
      %5974 = vrot.lane.b32.xlu0 %v5939, 64
      %v5975 = vpop.permute.xlu0 %5974
      %5976 = vrot.lane.b32.xlu0 %v5941, 64
      %v5977 = vpop.permute.xlu0 %5976
      %5978 = vrot.lane.b32.xlu0 %v5943, 64
      %v5979 = vpop.permute.xlu0 %5978
      %5980 = vrot.lane.b32.xlu0 %v5945, 64
      %v5981 = vpop.permute.xlu0 %5980
      %5982 = vrot.lane.b32.xlu0 %v5947, 64
      %v5983 = vpop.permute.xlu0 %5982
      %5984 = vrot.lane.b32.xlu0 %v5949, 64
      %v5985 = vpop.permute.xlu0 %5984
      %5986 = vrot.lane.b32.xlu0 %v5951, 64
      %v5987 = vpop.permute.xlu0 %5986
      %5988 = vrot.lane.b32.xlu0 %v5953, 64
      %v5989 = vpop.permute.xlu0 %5988
      %5990 = vrot.lane.b32.xlu0 %v5955, 64
      %v5991 = vpop.permute.xlu0 %5990
      %5992 = vrot.lane.b32.xlu0 %v5957, 64
      %v5993 = vpop.permute.xlu0 %5992
      %5994 = vrot.lane.b32.xlu0 %v5959, 64
      %v5995 = vpop.permute.xlu0 %5994
      %5996 = vrot.lane.b32.xlu0 %v5961, 64
      %v5997 = vpop.permute.xlu0 %5996
      %5998 = vrot.lane.b32.xlu0 %v5963, 64
      %v5999 = vpop.permute.xlu0 %5998
      %6000 = vrot.lane.b32.xlu0 %v5965, 64
      %v6001 = vpop.permute.xlu0 %6000
      %6002 = vrot.lane.b32.xlu0 %v5967, 64
      %v6003 = vpop.permute.xlu0 %6002
      %v6005 = vrot.slane %v1082, 2
      %v6006 = vsel %vm1447, %v5966, %v6005
      %v6007 = vrot.slane %v5590, 2
      %v6008 = vrot.slane %v5586, 3
      %v6009 = vor.u32 %v6007, %v6008
      %v6010 = vrot.slane %v5598, 2
      %v6011 = vrot.slane %v5594, 3
      %v6012 = vor.u32 %v6010, %v6011
      %v6013 = vsel %vm1524, %v6009, %v6012
      %v6014 = vrot.slane %v5606, 2
      %v6015 = vrot.slane %v5602, 3
      %v6016 = vor.u32 %v6014, %v6015
      %v6017 = vsel %vm1524, %v6012, %v6016
      %v6018 = vrot.slane %v5614, 2
      %v6019 = vrot.slane %v5610, 3
      %v6020 = vor.u32 %v6018, %v6019
      %v6021 = vsel %vm1524, %v6016, %v6020
      %v6022 = vrot.slane %v5622, 2
      %v6023 = vrot.slane %v5618, 3
      %v6024 = vor.u32 %v6022, %v6023
      %v6025 = vsel %vm1524, %v6020, %v6024
      %v6026 = vrot.slane %v5630, 2
      %v6027 = vrot.slane %v5626, 3
      %v6028 = vor.u32 %v6026, %v6027
      %v6029 = vsel %vm1524, %v6024, %v6028
      %v6030 = vrot.slane %v5638, 2
      %v6031 = vrot.slane %v5634, 3
      %v6032 = vor.u32 %v6030, %v6031
      %v6033 = vsel %vm1524, %v6028, %v6032
      %v6034 = vrot.slane %v5646, 2
      %v6035 = vrot.slane %v5642, 3
      %v6036 = vor.u32 %v6034, %v6035
      %v6037 = vsel %vm1524, %v6032, %v6036
      %v6038 = vrot.slane %v5654, 2
      %v6039 = vrot.slane %v5650, 3
      %v6040 = vor.u32 %v6038, %v6039
      %v6041 = vsel %vm1524, %v6036, %v6040
      %v6042 = vrot.slane %v5662, 2
      %v6043 = vrot.slane %v5658, 3
      %v6044 = vor.u32 %v6042, %v6043
      %v6045 = vsel %vm1524, %v6040, %v6044
      %v6046 = vrot.slane %v5670, 2
      %v6047 = vrot.slane %v5666, 3
      %v6048 = vor.u32 %v6046, %v6047
      %v6049 = vsel %vm1524, %v6044, %v6048
      %v6050 = vrot.slane %v5678, 2
      %v6051 = vrot.slane %v5674, 3
      %v6052 = vor.u32 %v6050, %v6051
      %v6053 = vsel %vm1524, %v6048, %v6052
      %v6054 = vrot.slane %v5686, 2
      %v6055 = vrot.slane %v5682, 3
      %v6056 = vor.u32 %v6054, %v6055
      %v6057 = vsel %vm1524, %v6052, %v6056
      %v6058 = vrot.slane %v5694, 2
      %v6059 = vrot.slane %v5690, 3
      %v6060 = vor.u32 %v6058, %v6059
      %v6061 = vsel %vm1524, %v6056, %v6060
      %v6062 = vrot.slane %v5702, 2
      %v6063 = vrot.slane %v5698, 3
      %v6064 = vor.u32 %v6062, %v6063
      %v6065 = vsel %vm1524, %v6060, %v6064
      %v6066 = vrot.slane %v5710, 2
      %v6067 = vrot.slane %v5706, 3
      %v6068 = vor.u32 %v6066, %v6067
      %v6069 = vsel %vm1524, %v6064, %v6068
      %v6070 = vrot.slane %v5916, 2
      %v6071 = vrot.slane %v5714, 3
      %v6072 = vor.u32 %v6070, %v6071
      %v6073 = vsel %vm1524, %v6068, %v6072
      %v6074 = vrot.slane %v5923, 2
      %v6075 = vrot.slane %v5926, 3
      %v6076 = vor.u32 %v6074, %v6075
      %v6077 = vsel %vm1524, %v6072, %v6076
      %v6079 = vshrl.u32 %v1082, 16
      %v6081 = vrot.slane %v6079, 2
      %v6082 = vshll.u32 %v1082, 16
      %v6084 = vrot.slane %v6082, 3
      %v6085 = vor.u32 %v6081, %v6084
      %v6086 = vsel %vm1524, %v6076, %v6085
      %6087 = vrot.lane.b32.xlu0 %v6013, 64
      %v6088 = vpop.permute.xlu0 %6087
      %6089 = vrot.lane.b32.xlu0 %v6017, 64
      %v6090 = vpop.permute.xlu0 %6089
      %6091 = vrot.lane.b32.xlu0 %v6021, 64
      %v6092 = vpop.permute.xlu0 %6091
      %6093 = vrot.lane.b32.xlu0 %v6025, 64
      %v6094 = vpop.permute.xlu0 %6093
      %6095 = vrot.lane.b32.xlu0 %v6029, 64
      %v6096 = vpop.permute.xlu0 %6095
      %6097 = vrot.lane.b32.xlu0 %v6033, 64
      %v6098 = vpop.permute.xlu0 %6097
      %6099 = vrot.lane.b32.xlu0 %v6037, 64
      %v6100 = vpop.permute.xlu0 %6099
      %6101 = vrot.lane.b32.xlu0 %v6041, 64
      %v6102 = vpop.permute.xlu0 %6101
      %6103 = vrot.lane.b32.xlu0 %v6045, 64
      %v6104 = vpop.permute.xlu0 %6103
      %6105 = vrot.lane.b32.xlu0 %v6049, 64
      %v6106 = vpop.permute.xlu0 %6105
      %6107 = vrot.lane.b32.xlu0 %v6053, 64
      %v6108 = vpop.permute.xlu0 %6107
      %6109 = vrot.lane.b32.xlu0 %v6057, 64
      %v6110 = vpop.permute.xlu0 %6109
      %6111 = vrot.lane.b32.xlu0 %v6061, 64
      %v6112 = vpop.permute.xlu0 %6111
      %6113 = vrot.lane.b32.xlu0 %v6065, 64
      %v6114 = vpop.permute.xlu0 %6113
      %6115 = vrot.lane.b32.xlu0 %v6069, 64
      %v6116 = vpop.permute.xlu0 %6115
      %6117 = vrot.lane.b32.xlu0 %v6073, 64
      %v6118 = vpop.permute.xlu0 %6117
      %6119 = vrot.lane.b32.xlu0 %v6077, 64
      %v6120 = vpop.permute.xlu0 %6119
      %6121 = vrot.lane.b32.xlu0 %v6086, 64
      %v6122 = vpop.permute.xlu0 %6121
      %v6123 = vrot.slane %v1064, 3
      %v6124 = vrot.slane %v1065, 3
      %v6125 = vsel %vm1641, %v6123, %v6124
      %v6126 = vrot.slane %v1066, 3
      %v6127 = vsel %vm1641, %v6124, %v6126
      %v6128 = vrot.slane %v1067, 3
      %v6129 = vsel %vm1641, %v6126, %v6128
      %v6130 = vrot.slane %v1068, 3
      %v6131 = vsel %vm1641, %v6128, %v6130
      %v6132 = vrot.slane %v1069, 3
      %v6133 = vsel %vm1641, %v6130, %v6132
      %v6134 = vrot.slane %v1070, 3
      %v6135 = vsel %vm1641, %v6132, %v6134
      %v6136 = vrot.slane %v1071, 3
      %v6137 = vsel %vm1641, %v6134, %v6136
      %v6138 = vrot.slane %v1072, 3
      %v6139 = vsel %vm1641, %v6136, %v6138
      %v6140 = vrot.slane %v1073, 3
      %v6141 = vsel %vm1641, %v6138, %v6140
      %v6142 = vrot.slane %v1074, 3
      %v6143 = vsel %vm1641, %v6140, %v6142
      %v6144 = vrot.slane %v1075, 3
      %v6145 = vsel %vm1641, %v6142, %v6144
      %v6146 = vrot.slane %v1076, 3
      %v6147 = vsel %vm1641, %v6144, %v6146
      %v6148 = vrot.slane %v1077, 3
      %v6149 = vsel %vm1641, %v6146, %v6148
      %v6150 = vrot.slane %v1078, 3
      %v6151 = vsel %vm1641, %v6148, %v6150
      %v6152 = vrot.slane %v1079, 3
      %v6153 = vsel %vm1641, %v6150, %v6152
      %v6154 = vrot.slane %v1080, 3
      %v6155 = vsel %vm1641, %v6152, %v6154
      %v6156 = vrot.slane %v1081, 3
      %v6157 = vsel %vm1641, %v6154, %v6156
      %v6158 = vrot.slane %v1082, 3
      %v6159 = vsel %vm1641, %v6156, %v6158
      %v6161 = vsel %vm219, %v1062, %v5719
      %v6164 = vsel %vm219, %v1063, %v5721
      %v6167 = vsel %vm219, %v1064, %v5723
      %v6170 = vsel %vm219, %v1065, %v5725
      %v6173 = vsel %vm219, %v1066, %v5727
      %v6176 = vsel %vm219, %v1067, %v5729
      %v6179 = vsel %vm219, %v1068, %v5731
      %v6182 = vsel %vm219, %v1069, %v5733
      %v6185 = vsel %vm219, %v1070, %v5735
      %v6188 = vsel %vm219, %v1071, %v5737
      %v6191 = vsel %vm219, %v1072, %v5739
      %v6194 = vsel %vm219, %v1073, %v5741
      %v6197 = vsel %vm219, %v1074, %v5743
      %v6200 = vsel %vm219, %v1075, %v5745
      %v6203 = vsel %vm219, %v1076, %v5747
      %v6206 = vsel %vm219, %v1077, %v5749
      %v6209 = vsel %vm219, %v1078, %v5751
      %v6212 = vsel %vm219, %v1079, %v5753
      %v6216 = vsel %vm219, %v5775, %v5814
      %v6220 = vsel %vm219, %v5777, %v5816
      %v6224 = vsel %vm219, %v5779, %v5818
      %v6228 = vsel %vm219, %v5781, %v5820
      %v6232 = vsel %vm219, %v5783, %v5822
      %v6236 = vsel %vm219, %v5785, %v5824
      %v6240 = vsel %vm219, %v5787, %v5826
      %v6244 = vsel %vm219, %v5789, %v5828
      %v6248 = vsel %vm219, %v5791, %v5830
      %v6252 = vsel %vm219, %v5793, %v5832
      %v6256 = vsel %vm219, %v5795, %v5834
      %v6260 = vsel %vm219, %v5797, %v5836
      %v6264 = vsel %vm219, %v5799, %v5838
      %v6268 = vsel %vm219, %v5801, %v5840
      %v6272 = vsel %vm219, %v5803, %v5842
      %v6276 = vsel %vm219, %v5805, %v5844
      %v6280 = vsel %vm219, %v5807, %v5846
      %v6284 = vsel %vm219, %v5809, %v5848
      %v6288 = vsel %vm219, %v5855, %v5969
      %v6292 = vsel %vm219, %v5859, %v5971
      %v6296 = vsel %vm219, %v5863, %v5973
      %v6300 = vsel %vm219, %v5867, %v5975
      %v6304 = vsel %vm219, %v5871, %v5977
      %v6308 = vsel %vm219, %v5875, %v5979
      %v6312 = vsel %vm219, %v5879, %v5981
      %v6316 = vsel %vm219, %v5883, %v5983
      %v6320 = vsel %vm219, %v5887, %v5985
      %v6324 = vsel %vm219, %v5891, %v5987
      %v6328 = vsel %vm219, %v5895, %v5989
      %v6332 = vsel %vm219, %v5899, %v5991
      %v6336 = vsel %vm219, %v5903, %v5993
      %v6340 = vsel %vm219, %v5907, %v5995
      %v6344 = vsel %vm219, %v5911, %v5997
      %v6348 = vsel %vm219, %v5915, %v5999
      %v6352 = vsel %vm219, %v5921, %v6001
      %v6356 = vsel %vm219, %v5930, %v6003
      %v6360 = vsel %vm219, %v5935, %v6088
      %v6364 = vsel %vm219, %v5937, %v6090
      %v6368 = vsel %vm219, %v5939, %v6092
      %v6372 = vsel %vm219, %v5941, %v6094
      %v6376 = vsel %vm219, %v5943, %v6096
      %v6380 = vsel %vm219, %v5945, %v6098
      %v6384 = vsel %vm219, %v5947, %v6100
      %v6388 = vsel %vm219, %v5949, %v6102
      %v6392 = vsel %vm219, %v5951, %v6104
      %v6396 = vsel %vm219, %v5953, %v6106
      %v6400 = vsel %vm219, %v5955, %v6108
      %v6404 = vsel %vm219, %v5957, %v6110
      %v6408 = vsel %vm219, %v5959, %v6112
      %v6412 = vsel %vm219, %v5961, %v6114
      %v6416 = vsel %vm219, %v5963, %v6116
      %v6420 = vsel %vm219, %v5965, %v6118
      %v6424 = vsel %vm219, %v5967, %v6120
      %v6428 = vsel %vm219, %v6006, %v6122
      %s6430 = scalar_lea.vmem %s2, 576
      %v6431 = vld [vmem:[%s6430] sm:$0xf]
      %v6432 = vld [vmem:[%s6430 + $0x4] sm:$0xf]
      %v6433 = vld [vmem:[%s6430 + $0x8] sm:$0xf]
      %v6434 = vld [vmem:[%s6430 + $0xc] sm:$0xf]
      %v6435 = vld [vmem:[%s6430 + $0x10] sm:$0xf]
      %v6436 = vld [vmem:[%s6430 + $0x14] sm:$0xf]
      %v6437 = vld [vmem:[%s6430 + $0x18] sm:$0xf]
      %v6438 = vld [vmem:[%s6430 + $0x1c] sm:$0xf]
      %v6439 = vld [vmem:[%s6430 + $0x20] sm:$0xf]
      %v6440 = vld [vmem:[%s6430 + $0x24] sm:$0xf]
      %v6441 = vld [vmem:[%s6430 + $0x28] sm:$0xf]
      %v6442 = vld [vmem:[%s6430 + $0x2c] sm:$0xf]
      %v6443 = vld [vmem:[%s6430 + $0x30] sm:$0xf]
      %v6444 = vld [vmem:[%s6430 + $0x34] sm:$0xf]
      %v6445 = vld [vmem:[%s6430 + $0x38] sm:$0xf]
      %v6446 = vld [vmem:[%s6430 + $0x3c] sm:$0xf]
      %v6447 = vld [vmem:[%s6430 + $0x40] sm:$0xf]
      %v6448 = vld [vmem:[%s6430 + $0x44] sm:$0xf]
      %v6449 = vld [vmem:[%s6430 + $0x48] sm:$0xf]
      %v6450 = vld [vmem:[%s6430 + $0x4c] sm:$0xf]
      %v6451 = vld [vmem:[%s6430 + $0x50] sm:$0xf]
      %v6452 = vld [vmem:[%s6430 + $0x54] sm:$0xf]
      %v6453 = vld [vmem:[%s6430 + $0x58] sm:$0xf]
      %v6454 = vld [vmem:[%s6430 + $0x5c] sm:$0xf]
      %v6455 = vld [vmem:[%s6430 + $0x60] sm:$0xf]
      %v6456 = vld [vmem:[%s6430 + $0x64] sm:$0xf]
      %v6457 = vld [vmem:[%s6430 + $0x68] sm:$0xf]
      %v6458 = vld [vmem:[%s6430 + $0x6c] sm:$0xf]
      %v6459 = vld [vmem:[%s6430 + $0x70] sm:$0xf]
      %v6460 = vld [vmem:[%s6430 + $0x74] sm:$0xf]
      %v6461 = vld [vmem:[%s6430 + $0x78] sm:$0xf]
      %v6462 = vld [vmem:[%s6430 + $0x7c] sm:$0xf]
      %v6463 = vld [vmem:[%s6430 + $0x80] sm:$0xf]
      %v6464 = vld [vmem:[%s6430 + $0x84] sm:$0xf]
      %v6465 = vld [vmem:[%s6430 + $0x88] sm:$0xf]
      %v6466 = vld [vmem:[%s6430 + $0x8c] sm:$0xf]
      %v6467 = vld [vmem:[%s6430 + $0x90] sm:$0xf]
      %v6468 = vld [vmem:[%s6430 + $0x94] sm:$0xf]
      %v6469 = vld [vmem:[%s6430 + $0x98] sm:$0xf]
      %v6470 = vld [vmem:[%s6430 + $0x9c] sm:$0xf]
      %v6471 = vld [vmem:[%s6430 + $0xa0] sm:$0xf]
      %v6472 = vld [vmem:[%s6430 + $0xa4] sm:$0xf]
      %v6473 = vld [vmem:[%s6430 + $0xa8] sm:$0xf]
      %v6474 = vld [vmem:[%s6430 + $0xac] sm:$0xf]
      %v6475 = vld [vmem:[%s6430 + $0xb0] sm:$0xf]
      %v6476 = vld [vmem:[%s6430 + $0xb4] sm:$0xf]
      %v6477 = vld [vmem:[%s6430 + $0xb8] sm:$0xf]
      %v6478 = vld [vmem:[%s6430 + $0xbc] sm:$0xf]
      %v6479 = vld [vmem:[%s6430 + $0xc0] sm:$0xf]
      %v6480 = vld [vmem:[%s6430 + $0xc4] sm:$0xf]
      %v6481 = vld [vmem:[%s6430 + $0xc8] sm:$0xf]
      %v6482 = vld [vmem:[%s6430 + $0xcc] sm:$0xf]
      %v6483 = vld [vmem:[%s6430 + $0xd0] sm:$0xf]
      %v6484 = vld [vmem:[%s6430 + $0xd4] sm:$0xf]
      %v6485 = vld [vmem:[%s6430 + $0xd8] sm:$0xf]
      %v6486 = vld [vmem:[%s6430 + $0xdc] sm:$0xf]
      %v6487 = vld [vmem:[%s6430 + $0xe0] sm:$0xf]
      %v6488 = vld [vmem:[%s6430 + $0xe4] sm:$0xf]
      %v6489 = vld [vmem:[%s6430 + $0xe8] sm:$0xf]
      %v6490 = vld [vmem:[%s6430 + $0xec] sm:$0xf]
      %v6491 = vld [vmem:[%s6430 + $0xf0] sm:$0xf]
      %v6492 = vld [vmem:[%s6430 + $0xf4] sm:$0xf]
      %v6493 = vld [vmem:[%s6430 + $0xf8] sm:$0xf]
      %v6494 = vld [vmem:[%s6430 + $0xfc] sm:$0xf]
      %v6495 = vld [vmem:[%s6430 + $0x100] sm:$0xf]
      %v6496 = vld [vmem:[%s6430 + $0x104] sm:$0xf]
      %v6497 = vld [vmem:[%s6430 + $0x108] sm:$0xf]
      %v6498 = vld [vmem:[%s6430 + $0x10c] sm:$0xf]
      %v6499 = vld [vmem:[%s6430 + $0x110] sm:$0xf]
      %v6500 = vld [vmem:[%s6430 + $0x114] sm:$0xf]
      %v6501 = vld [vmem:[%s6430 + $0x118] sm:$0xf]
      %v6502 = vld [vmem:[%s6430 + $0x11c] sm:$0xf]
      %s6503 = scalar_lea.vmem %s3, 2
      %v6504 = vld [vmem:[%s6503] sm:$0x1]
      %v6506 = vlaneseq
      %v6507 = vshrl.u32 %v6506, 7
      %v6508 = vsub.s32 0, %v6507
      %v6509 = vrot.slane %v6504, %v6508
      %v6583 = vunpack.c.l.b16 %v6431
      %v6584 = vunpack.c.l.b16 %v6432
      %v6585 = vunpack.c.l.b16 %v6433
      %v6586 = vunpack.c.l.b16 %v6434
      %v6587 = vunpack.c.l.b16 %v6435
      %v6588 = vunpack.c.l.b16 %v6436
      %v6589 = vunpack.c.l.b16 %v6437
      %v6590 = vunpack.c.l.b16 %v6438
      %v6591 = vunpack.c.l.b16 %v6439
      %v6592 = vunpack.c.l.b16 %v6440
      %v6593 = vunpack.c.l.b16 %v6441
      %v6594 = vunpack.c.l.b16 %v6442
      %v6595 = vunpack.c.l.b16 %v6443
      %v6596 = vunpack.c.l.b16 %v6444
      %v6597 = vunpack.c.l.b16 %v6445
      %v6598 = vunpack.c.l.b16 %v6446
      %v6599 = vunpack.c.l.b16 %v6447
      %v6600 = vunpack.c.l.b16 %v6448
      %v6601 = vunpack.c.l.b16 %v6449
      %v6602 = vunpack.c.l.b16 %v6450
      %v6603 = vunpack.c.l.b16 %v6451
      %v6604 = vunpack.c.l.b16 %v6452
      %v6605 = vunpack.c.l.b16 %v6453
      %v6606 = vunpack.c.l.b16 %v6454
      %v6607 = vunpack.c.l.b16 %v6455
      %v6608 = vunpack.c.l.b16 %v6456
      %v6609 = vunpack.c.l.b16 %v6457
      %v6610 = vunpack.c.l.b16 %v6458
      %v6611 = vunpack.c.l.b16 %v6459
      %v6612 = vunpack.c.l.b16 %v6460
      %v6613 = vunpack.c.l.b16 %v6461
      %v6614 = vunpack.c.l.b16 %v6462
      %v6615 = vunpack.c.l.b16 %v6463
      %v6616 = vunpack.c.l.b16 %v6464
      %v6617 = vunpack.c.l.b16 %v6465
      %v6618 = vunpack.c.l.b16 %v6466
      %v6619 = vunpack.c.l.b16 %v6467
      %v6620 = vunpack.c.l.b16 %v6468
      %v6621 = vunpack.c.l.b16 %v6469
      %v6622 = vunpack.c.l.b16 %v6470
      %v6623 = vunpack.c.l.b16 %v6471
      %v6624 = vunpack.c.l.b16 %v6472
      %v6625 = vunpack.c.l.b16 %v6473
      %v6626 = vunpack.c.l.b16 %v6474
      %v6627 = vunpack.c.l.b16 %v6475
      %v6628 = vunpack.c.l.b16 %v6476
      %v6629 = vunpack.c.l.b16 %v6477
      %v6630 = vunpack.c.l.b16 %v6478
      %v6631 = vunpack.c.l.b16 %v6479
      %v6632 = vunpack.c.l.b16 %v6480
      %v6633 = vunpack.c.l.b16 %v6481
      %v6634 = vunpack.c.l.b16 %v6482
      %v6635 = vunpack.c.l.b16 %v6483
      %v6636 = vunpack.c.l.b16 %v6484
      %v6637 = vunpack.c.l.b16 %v6485
      %v6638 = vunpack.c.l.b16 %v6486
      %v6639 = vunpack.c.l.b16 %v6487
      %v6640 = vunpack.c.l.b16 %v6488
      %v6641 = vunpack.c.l.b16 %v6489
      %v6642 = vunpack.c.l.b16 %v6490
      %v6643 = vunpack.c.l.b16 %v6491
      %v6644 = vunpack.c.l.b16 %v6492
      %v6645 = vunpack.c.l.b16 %v6493
      %v6646 = vunpack.c.l.b16 %v6494
      %v6647 = vunpack.c.l.b16 %v6495
      %v6648 = vunpack.c.l.b16 %v6496
      %v6649 = vunpack.c.l.b16 %v6497
      %v6650 = vunpack.c.l.b16 %v6498
      %v6651 = vunpack.c.l.b16 %v6499
      %v6652 = vunpack.c.l.b16 %v6500
      %v6653 = vunpack.c.l.b16 %v6501
      %v6654 = vunpack.c.l.b16 %v6502
      %v6655 = vpack.c.b16 %v6584, %v6583
      %v6656 = vpack.c.b16 %v6586, %v6585
      %v6657 = vpack.c.b16 %v6588, %v6587
      %v6658 = vpack.c.b16 %v6590, %v6589
      %v6659 = vpack.c.b16 %v6592, %v6591
      %v6660 = vpack.c.b16 %v6594, %v6593
      %v6661 = vpack.c.b16 %v6596, %v6595
      %v6662 = vpack.c.b16 %v6598, %v6597
      %v6663 = vpack.c.b16 %v6600, %v6599
      %v6664 = vpack.c.b16 %v6602, %v6601
      %v6665 = vpack.c.b16 %v6604, %v6603
      %v6666 = vpack.c.b16 %v6606, %v6605
      %v6667 = vpack.c.b16 %v6608, %v6607
      %v6668 = vpack.c.b16 %v6610, %v6609
      %v6669 = vpack.c.b16 %v6612, %v6611
      %v6670 = vpack.c.b16 %v6614, %v6613
      %v6671 = vpack.c.b16 %v6616, %v6615
      %v6672 = vpack.c.b16 %v6618, %v6617
      %v6673 = vpack.c.b16 %v6620, %v6619
      %v6674 = vpack.c.b16 %v6622, %v6621
      %v6675 = vpack.c.b16 %v6624, %v6623
      %v6676 = vpack.c.b16 %v6626, %v6625
      %v6677 = vpack.c.b16 %v6628, %v6627
      %v6678 = vpack.c.b16 %v6630, %v6629
      %v6679 = vpack.c.b16 %v6632, %v6631
      %v6680 = vpack.c.b16 %v6634, %v6633
      %v6681 = vpack.c.b16 %v6636, %v6635
      %v6682 = vpack.c.b16 %v6638, %v6637
      %v6683 = vpack.c.b16 %v6640, %v6639
      %v6684 = vpack.c.b16 %v6642, %v6641
      %v6685 = vpack.c.b16 %v6644, %v6643
      %v6686 = vpack.c.b16 %v6646, %v6645
      %v6687 = vpack.c.b16 %v6648, %v6647
      %v6688 = vpack.c.b16 %v6650, %v6649
      %v6689 = vpack.c.b16 %v6652, %v6651
      %v6690 = vpack.c.b16 %v6654, %v6653
      %v6728 = vsel %vm219, %v6125, 0
      %v6731 = vsel %vm219, %v6127, 0
      %v6734 = vsel %vm219, %v6129, 0
      %v6737 = vsel %vm219, %v6131, 0
      %v6740 = vsel %vm219, %v6133, 0
      %v6743 = vsel %vm219, %v6135, 0
      %v6746 = vsel %vm219, %v6137, 0
      %v6749 = vsel %vm219, %v6139, 0
      %v6752 = vsel %vm219, %v6141, 0
      %v6755 = vsel %vm219, %v6143, 0
      %v6758 = vsel %vm219, %v6145, 0
      %v6761 = vsel %vm219, %v6147, 0
      %v6764 = vsel %vm219, %v6149, 0
      %v6767 = vsel %vm219, %v6151, 0
      %v6770 = vsel %vm219, %v6153, 0
      %v6773 = vsel %vm219, %v6155, 0
      %v6776 = vsel %vm219, %v6157, 0
      %v6779 = vsel %vm219, %v6159, 0
      %6781 = vmatprep.subr.bf16.mxu0 0
      %6782 = vmatpush1.bf16.msra.mxu0 %v6655
      %6783 = vmatprep.subr.bf16.mxu0 0
      %6784 = vmatpush1.bf16.msra.mxu0 %v6656
      %6785 = vmatprep.subr.bf16.mxu0 0
      %6786 = vmatpush1.bf16.msra.mxu0 %v6657
      %6787 = vmatprep.subr.bf16.mxu0 0
      %6788 = vmatpush1.bf16.msra.mxu0 %v6658
      %6789 = vmatprep.subr.bf16.mxu0 0
      %6790 = vmatpush1.bf16.msra.mxu0 %v6659
      %6791 = vmatprep.subr.bf16.mxu0 0
      %6792 = vmatpush1.bf16.msra.mxu0 %v6660
      %6793 = vmatprep.subr.bf16.mxu0 0
      %6794 = vmatpush1.bf16.msra.mxu0 %v6661
      %6795 = vmatprep.subr.bf16.mxu0 0
      %6796 = vmatpush1.bf16.msra.mxu0 %v6662
      %6797 = vmatprep.subr.bf16.mxu0 0
      %6798 = vmatpush1.bf16.msra.mxu0 %v6663
      %6799 = vmatprep.subr.bf16.mxu0 0
      %6800 = vmatpush1.bf16.msra.mxu0 %v6664
      %6801 = vmatprep.subr.bf16.mxu0 0
      %6802 = vmatpush1.bf16.msra.mxu0 %v6665
      %6803 = vmatprep.subr.bf16.mxu0 0
      %6804 = vmatpush1.bf16.msra.mxu0 %v6666
      %6805 = vmatprep.subr.bf16.mxu0 0
      %6806 = vmatpush1.bf16.msra.mxu0 %v6667
      %6807 = vmatprep.subr.bf16.mxu0 0
      %6808 = vmatpush1.bf16.msra.mxu0 %v6668
      %6809 = vmatprep.subr.bf16.mxu0 0
      %6810 = vmatpush1.bf16.msra.mxu0 %v6669
      %6811 = vmatprep.subr.bf16.mxu0 0
      %6812 = vmatpush1.bf16.msra.mxu0 %v6670
      %6813 = vmatprep.mubr.bf16.mxu0 %v6216
      %6814 = vmatmul.mubr.bf16.gmra.mrb[0].mxu0 %v6161
      %v6815 = vpop.f32.mrb[0].mxu0
      %v6816 = vadd.f32 %v6509, %v6815
      %v6817 = vpop.f32.mrb[0].mxu0
      %v6818 = vpop.f32.mrb[0].mxu0
      %v6819 = vadd.f32 %v6509, %v6818
      %v6820 = vpop.f32.mrb[0].mxu0
      %6821 = vmatprep.mubr.bf16.mxu0 %v6220
      %6822 = vmatmul.mubr.bf16.gmra.mrb[0].mxu0 %v6164
      %v6823 = vpop.f32.mrb[0].mxu0
      %v6824 = vadd.f32 %v6509, %v6823
      %v6825 = vpop.f32.mrb[0].mxu0
      %v6826 = vpop.f32.mrb[0].mxu0
      %v6827 = vadd.f32 %v6509, %v6826
      %v6828 = vpop.f32.mrb[0].mxu0
      %6829 = vmatprep.mubr.bf16.mxu0 %v6224
      %6830 = vmatmul.mubr.bf16.gmra.mrb[0].mxu0 %v6167
      %v6831 = vpop.f32.mrb[0].mxu0
      %v6832 = vadd.f32 %v6509, %v6831
      %v6833 = vpop.f32.mrb[0].mxu0
      %v6834 = vpop.f32.mrb[0].mxu0
      %v6835 = vadd.f32 %v6509, %v6834
      %v6836 = vpop.f32.mrb[0].mxu0
      %6837 = vmatprep.mubr.bf16.mxu0 %v6228
      %6838 = vmatmul.mubr.bf16.gmra.mrb[0].mxu0 %v6170
      %v6839 = vpop.f32.mrb[0].mxu0
      %v6840 = vadd.f32 %v6509, %v6839
      %v6841 = vpop.f32.mrb[0].mxu0
      %v6842 = vpop.f32.mrb[0].mxu0
      %v6843 = vadd.f32 %v6509, %v6842
      %v6844 = vpop.f32.mrb[0].mxu0
      %6845 = vmatprep.mubr.bf16.mxu0 %v6232
      %6846 = vmatmul.mubr.bf16.gmra.mrb[0].mxu0 %v6173
      %v6847 = vpop.f32.mrb[0].mxu0
      %v6848 = vadd.f32 %v6509, %v6847
      %v6849 = vpop.f32.mrb[0].mxu0
      %v6850 = vpop.f32.mrb[0].mxu0
      %v6851 = vadd.f32 %v6509, %v6850
      %v6852 = vpop.f32.mrb[0].mxu0
      %6853 = vmatprep.mubr.bf16.mxu0 %v6236
      %6854 = vmatmul.mubr.bf16.gmra.mrb[0].mxu0 %v6176
      %v6855 = vpop.f32.mrb[0].mxu0
      %v6856 = vadd.f32 %v6509, %v6855
      %v6857 = vpop.f32.mrb[0].mxu0
      %v6858 = vpop.f32.mrb[0].mxu0
      %v6859 = vadd.f32 %v6509, %v6858
      %v6860 = vpop.f32.mrb[0].mxu0
      %6861 = vmatprep.mubr.bf16.mxu0 %v6240
      %6862 = vmatmul.mubr.bf16.gmra.mrb[0].mxu0 %v6179
      %v6863 = vpop.f32.mrb[0].mxu0
      %v6864 = vadd.f32 %v6509, %v6863
      %v6865 = vpop.f32.mrb[0].mxu0
      %v6866 = vpop.f32.mrb[0].mxu0
      %v6867 = vadd.f32 %v6509, %v6866
      %v6868 = vpop.f32.mrb[0].mxu0
      %6869 = vmatprep.mubr.bf16.mxu0 %v6244
      %6870 = vmatmul.mubr.bf16.gmra.mrb[0].mxu0 %v6182
      %v6871 = vpop.f32.mrb[0].mxu0
      %v6872 = vadd.f32 %v6509, %v6871
      %v6873 = vpop.f32.mrb[0].mxu0
      %v6874 = vpop.f32.mrb[0].mxu0
      %v6875 = vadd.f32 %v6509, %v6874
      %v6876 = vpop.f32.mrb[0].mxu0
      %6877 = vmatprep.mubr.bf16.mxu0 %v6248
      %6878 = vmatmul.mubr.bf16.gmra.mrb[0].mxu0 %v6185
      %v6879 = vpop.f32.mrb[0].mxu0
      %v6880 = vadd.f32 %v6509, %v6879
      %v6881 = vpop.f32.mrb[0].mxu0
      %v6882 = vpop.f32.mrb[0].mxu0
      %v6883 = vadd.f32 %v6509, %v6882
      %v6884 = vpop.f32.mrb[0].mxu0
      %6885 = vmatprep.mubr.bf16.mxu0 %v6252
      %6886 = vmatmul.mubr.bf16.gmra.mrb[0].mxu0 %v6188
      %v6887 = vpop.f32.mrb[0].mxu0
      %v6888 = vadd.f32 %v6509, %v6887
      %v6889 = vpop.f32.mrb[0].mxu0
      %v6890 = vpop.f32.mrb[0].mxu0
      %v6891 = vadd.f32 %v6509, %v6890
      %v6892 = vpop.f32.mrb[0].mxu0
      %6893 = vmatprep.mubr.bf16.mxu0 %v6256
      %6894 = vmatmul.mubr.bf16.gmra.mrb[0].mxu0 %v6191
      %v6895 = vpop.f32.mrb[0].mxu0
      %v6896 = vadd.f32 %v6509, %v6895
      %v6897 = vpop.f32.mrb[0].mxu0
      %v6898 = vpop.f32.mrb[0].mxu0
      %v6899 = vadd.f32 %v6509, %v6898
      %v6900 = vpop.f32.mrb[0].mxu0
      %6901 = vmatprep.mubr.bf16.mxu0 %v6260
      %6902 = vmatmul.mubr.bf16.gmra.mrb[0].mxu0 %v6194
      %v6903 = vpop.f32.mrb[0].mxu0
      %v6904 = vadd.f32 %v6509, %v6903
      %v6905 = vpop.f32.mrb[0].mxu0
      %v6906 = vpop.f32.mrb[0].mxu0
      %v6907 = vadd.f32 %v6509, %v6906
      %v6908 = vpop.f32.mrb[0].mxu0
      %6909 = vmatprep.mubr.bf16.mxu0 %v6264
      %6910 = vmatmul.mubr.bf16.gmra.mrb[0].mxu0 %v6197
      %v6911 = vpop.f32.mrb[0].mxu0
      %v6912 = vadd.f32 %v6509, %v6911
      %v6913 = vpop.f32.mrb[0].mxu0
      %v6914 = vpop.f32.mrb[0].mxu0
      %v6915 = vadd.f32 %v6509, %v6914
      %v6916 = vpop.f32.mrb[0].mxu0
      %6917 = vmatprep.mubr.bf16.mxu0 %v6268
      %6918 = vmatmul.mubr.bf16.gmra.mrb[0].mxu0 %v6200
      %v6919 = vpop.f32.mrb[0].mxu0
      %v6920 = vadd.f32 %v6509, %v6919
      %v6921 = vpop.f32.mrb[0].mxu0
      %v6922 = vpop.f32.mrb[0].mxu0
      %v6923 = vadd.f32 %v6509, %v6922
      %v6924 = vpop.f32.mrb[0].mxu0
      %6925 = vmatprep.mubr.bf16.mxu0 %v6272
      %6926 = vmatmul.mubr.bf16.gmra.mrb[0].mxu0 %v6203
      %v6927 = vpop.f32.mrb[0].mxu0
      %v6928 = vadd.f32 %v6509, %v6927
      %v6929 = vpop.f32.mrb[0].mxu0
      %v6930 = vpop.f32.mrb[0].mxu0
      %v6931 = vadd.f32 %v6509, %v6930
      %v6932 = vpop.f32.mrb[0].mxu0
      %6933 = vmatprep.mubr.bf16.mxu0 %v6276
      %6934 = vmatmul.mubr.bf16.gmra.mrb[0].mxu0 %v6206
      %v6935 = vpop.f32.mrb[0].mxu0
      %v6936 = vadd.f32 %v6509, %v6935
      %v6937 = vpop.f32.mrb[0].mxu0
      %v6938 = vpop.f32.mrb[0].mxu0
      %v6939 = vadd.f32 %v6509, %v6938
      %v6940 = vpop.f32.mrb[0].mxu0
      %6941 = vmatprep.mubr.bf16.mxu0 %v6280
      %6942 = vmatmul.mubr.bf16.gmra.mrb[0].mxu0 %v6209
      %v6943 = vpop.f32.mrb[0].mxu0
      %v6944 = vadd.f32 %v6509, %v6943
      %v6945 = vpop.f32.mrb[0].mxu0
      %v6946 = vpop.f32.mrb[0].mxu0
      %v6947 = vadd.f32 %v6509, %v6946
      %v6948 = vpop.f32.mrb[0].mxu0
      %6949 = vmatprep.mubr.bf16.mxu0 %v6284
      %6950 = vmatmul.mubr.bf16.gmra.mrb[0].mxu0 %v6212
      %v6951 = vpop.f32.mrb[0].mxu0
      %v6952 = vadd.f32 %v6509, %v6951
      %v6953 = vpop.f32.mrb[0].mxu0
      %v6954 = vpop.f32.mrb[0].mxu0
      %v6955 = vadd.f32 %v6509, %v6954
      %v6956 = vpop.f32.mrb[0].mxu0
      %6957 = vdwg.mxu0
      %6958 = vmatprep.subr.bf16.mxu0 0
      %6959 = vmatpush1.bf16.msra.mxu0 %v6671
      %6960 = vmatprep.subr.bf16.mxu0 0
      %6961 = vmatpush1.bf16.msra.mxu0 %v6672
      %6962 = vmatprep.subr.bf16.mxu0 0
      %6963 = vmatpush1.bf16.msra.mxu0 %v6673
      %6964 = vmatprep.subr.bf16.mxu0 0
      %6965 = vmatpush1.bf16.msra.mxu0 %v6674
      %6966 = vmatprep.subr.bf16.mxu0 0
      %6967 = vmatpush1.bf16.msra.mxu0 %v6675
      %6968 = vmatprep.subr.bf16.mxu0 0
      %6969 = vmatpush1.bf16.msra.mxu0 %v6676
      %6970 = vmatprep.subr.bf16.mxu0 0
      %6971 = vmatpush1.bf16.msra.mxu0 %v6677
      %6972 = vmatprep.subr.bf16.mxu0 0
      %6973 = vmatpush1.bf16.msra.mxu0 %v6678
      %6974 = vmatprep.subr.bf16.mxu0 0
      %6975 = vmatpush1.bf16.msra.mxu0 %v6679
      %6976 = vmatprep.subr.bf16.mxu0 0
      %6977 = vmatpush1.bf16.msra.mxu0 %v6680
      %6978 = vmatprep.subr.bf16.mxu0 0
      %6979 = vmatpush1.bf16.msra.mxu0 %v6681
      %6980 = vmatprep.subr.bf16.mxu0 0
      %6981 = vmatpush1.bf16.msra.mxu0 %v6682
      %6982 = vmatprep.subr.bf16.mxu0 0
      %6983 = vmatpush1.bf16.msra.mxu0 %v6683
      %6984 = vmatprep.subr.bf16.mxu0 0
      %6985 = vmatpush1.bf16.msra.mxu0 %v6684
      %6986 = vmatprep.subr.bf16.mxu0 0
      %6987 = vmatpush1.bf16.msra.mxu0 %v6685
      %6988 = vmatprep.subr.bf16.mxu0 0
      %6989 = vmatpush1.bf16.msra.mxu0 %v6686
      %6990 = vmatprep.mubr.bf16.mxu0 %v6360
      %6991 = vmatmul.mubr.bf16.gmra.mrb[0].mxu0 %v6288
      %v6992 = vpop.f32.mrb[0].mxu0
      %v6993 = vadd.f32 %v6816, %v6992
      %v6994 = vpop.f32.mrb[0].mxu0
      %v6995 = vpop.f32.mrb[0].mxu0
      %v6996 = vadd.f32 %v6819, %v6995
      %v6997 = vpop.f32.mrb[0].mxu0
      %6998 = vmatprep.mubr.bf16.mxu0 %v6364
      %6999 = vmatmul.mubr.bf16.gmra.mrb[0].mxu0 %v6292
      %v7000 = vpop.f32.mrb[0].mxu0
      %v7001 = vadd.f32 %v6824, %v7000
      %v7002 = vpop.f32.mrb[0].mxu0
      %v7003 = vpop.f32.mrb[0].mxu0
      %v7004 = vadd.f32 %v6827, %v7003
      %v7005 = vpop.f32.mrb[0].mxu0
      %7006 = vmatprep.mubr.bf16.mxu0 %v6368
      %7007 = vmatmul.mubr.bf16.gmra.mrb[0].mxu0 %v6296
      %v7008 = vpop.f32.mrb[0].mxu0
      %v7009 = vadd.f32 %v6832, %v7008
      %v7010 = vpop.f32.mrb[0].mxu0
      %v7011 = vpop.f32.mrb[0].mxu0
      %v7012 = vadd.f32 %v6835, %v7011
      %v7013 = vpop.f32.mrb[0].mxu0
      %7014 = vmatprep.mubr.bf16.mxu0 %v6372
      %7015 = vmatmul.mubr.bf16.gmra.mrb[0].mxu0 %v6300
      %v7016 = vpop.f32.mrb[0].mxu0
      %v7017 = vadd.f32 %v6840, %v7016
      %v7018 = vpop.f32.mrb[0].mxu0
      %v7019 = vpop.f32.mrb[0].mxu0
      %v7020 = vadd.f32 %v6843, %v7019
      %v7021 = vpop.f32.mrb[0].mxu0
      %7022 = vmatprep.mubr.bf16.mxu0 %v6376
      %7023 = vmatmul.mubr.bf16.gmra.mrb[0].mxu0 %v6304
      %v7024 = vpop.f32.mrb[0].mxu0
      %v7025 = vadd.f32 %v6848, %v7024
      %v7026 = vpop.f32.mrb[0].mxu0
      %v7027 = vpop.f32.mrb[0].mxu0
      %v7028 = vadd.f32 %v6851, %v7027
      %v7029 = vpop.f32.mrb[0].mxu0
      %7030 = vmatprep.mubr.bf16.mxu0 %v6380
      %7031 = vmatmul.mubr.bf16.gmra.mrb[0].mxu0 %v6308
      %v7032 = vpop.f32.mrb[0].mxu0
      %v7033 = vadd.f32 %v6856, %v7032
      %v7034 = vpop.f32.mrb[0].mxu0
      %v7035 = vpop.f32.mrb[0].mxu0
      %v7036 = vadd.f32 %v6859, %v7035
      %v7037 = vpop.f32.mrb[0].mxu0
      %7038 = vmatprep.mubr.bf16.mxu0 %v6384
      %7039 = vmatmul.mubr.bf16.gmra.mrb[0].mxu0 %v6312
      %v7040 = vpop.f32.mrb[0].mxu0
      %v7041 = vadd.f32 %v6864, %v7040
      %v7042 = vpop.f32.mrb[0].mxu0
      %v7043 = vpop.f32.mrb[0].mxu0
      %v7044 = vadd.f32 %v6867, %v7043
      %v7045 = vpop.f32.mrb[0].mxu0
      %7046 = vmatprep.mubr.bf16.mxu0 %v6388
      %7047 = vmatmul.mubr.bf16.gmra.mrb[0].mxu0 %v6316
      %v7048 = vpop.f32.mrb[0].mxu0
      %v7049 = vadd.f32 %v6872, %v7048
      %v7050 = vpop.f32.mrb[0].mxu0
      %v7051 = vpop.f32.mrb[0].mxu0
      %v7052 = vadd.f32 %v6875, %v7051
      %v7053 = vpop.f32.mrb[0].mxu0
      %7054 = vmatprep.mubr.bf16.mxu0 %v6392
      %7055 = vmatmul.mubr.bf16.gmra.mrb[0].mxu0 %v6320
      %v7056 = vpop.f32.mrb[0].mxu0
      %v7057 = vadd.f32 %v6880, %v7056
      %v7058 = vpop.f32.mrb[0].mxu0
      %v7059 = vpop.f32.mrb[0].mxu0
      %v7060 = vadd.f32 %v6883, %v7059
      %v7061 = vpop.f32.mrb[0].mxu0
      %7062 = vmatprep.mubr.bf16.mxu0 %v6396
      %7063 = vmatmul.mubr.bf16.gmra.mrb[0].mxu0 %v6324
      %v7064 = vpop.f32.mrb[0].mxu0
      %v7065 = vadd.f32 %v6888, %v7064
      %v7066 = vpop.f32.mrb[0].mxu0
      %v7067 = vpop.f32.mrb[0].mxu0
      %v7068 = vadd.f32 %v6891, %v7067
      %v7069 = vpop.f32.mrb[0].mxu0
      %7070 = vmatprep.mubr.bf16.mxu0 %v6400
      %7071 = vmatmul.mubr.bf16.gmra.mrb[0].mxu0 %v6328
      %v7072 = vpop.f32.mrb[0].mxu0
      %v7073 = vadd.f32 %v6896, %v7072
      %v7074 = vpop.f32.mrb[0].mxu0
      %v7075 = vpop.f32.mrb[0].mxu0
      %v7076 = vadd.f32 %v6899, %v7075
      %v7077 = vpop.f32.mrb[0].mxu0
      %7078 = vmatprep.mubr.bf16.mxu0 %v6404
      %7079 = vmatmul.mubr.bf16.gmra.mrb[0].mxu0 %v6332
      %v7080 = vpop.f32.mrb[0].mxu0
      %v7081 = vadd.f32 %v6904, %v7080
      %v7082 = vpop.f32.mrb[0].mxu0
      %v7083 = vpop.f32.mrb[0].mxu0
      %v7084 = vadd.f32 %v6907, %v7083
      %v7085 = vpop.f32.mrb[0].mxu0
      %7086 = vmatprep.mubr.bf16.mxu0 %v6408
      %7087 = vmatmul.mubr.bf16.gmra.mrb[0].mxu0 %v6336
      %v7088 = vpop.f32.mrb[0].mxu0
      %v7089 = vadd.f32 %v6912, %v7088
      %v7090 = vpop.f32.mrb[0].mxu0
      %v7091 = vpop.f32.mrb[0].mxu0
      %v7092 = vadd.f32 %v6915, %v7091
      %v7093 = vpop.f32.mrb[0].mxu0
      %7094 = vmatprep.mubr.bf16.mxu0 %v6412
      %7095 = vmatmul.mubr.bf16.gmra.mrb[0].mxu0 %v6340
      %v7096 = vpop.f32.mrb[0].mxu0
      %v7097 = vadd.f32 %v6920, %v7096
      %v7098 = vpop.f32.mrb[0].mxu0
      %v7099 = vpop.f32.mrb[0].mxu0
      %v7100 = vadd.f32 %v6923, %v7099
      %v7101 = vpop.f32.mrb[0].mxu0
      %7102 = vmatprep.mubr.bf16.mxu0 %v6416
      %7103 = vmatmul.mubr.bf16.gmra.mrb[0].mxu0 %v6344
      %v7104 = vpop.f32.mrb[0].mxu0
      %v7105 = vadd.f32 %v6928, %v7104
      %v7106 = vpop.f32.mrb[0].mxu0
      %v7107 = vpop.f32.mrb[0].mxu0
      %v7108 = vadd.f32 %v6931, %v7107
      %v7109 = vpop.f32.mrb[0].mxu0
      %7110 = vmatprep.mubr.bf16.mxu0 %v6420
      %7111 = vmatmul.mubr.bf16.gmra.mrb[0].mxu0 %v6348
      %v7112 = vpop.f32.mrb[0].mxu0
      %v7113 = vadd.f32 %v6936, %v7112
      %v7114 = vpop.f32.mrb[0].mxu0
      %v7115 = vpop.f32.mrb[0].mxu0
      %v7116 = vadd.f32 %v6939, %v7115
      %v7117 = vpop.f32.mrb[0].mxu0
      %7118 = vmatprep.mubr.bf16.mxu0 %v6424
      %7119 = vmatmul.mubr.bf16.gmra.mrb[0].mxu0 %v6352
      %v7120 = vpop.f32.mrb[0].mxu0
      %v7121 = vadd.f32 %v6944, %v7120
      %v7122 = vpop.f32.mrb[0].mxu0
      %v7123 = vpop.f32.mrb[0].mxu0
      %v7124 = vadd.f32 %v6947, %v7123
      %v7125 = vpop.f32.mrb[0].mxu0
      %7126 = vmatprep.mubr.bf16.mxu0 %v6428
      %7127 = vmatmul.mubr.bf16.gmra.mrb[0].mxu0 %v6356
      %v7128 = vpop.f32.mrb[0].mxu0
      %v7129 = vadd.f32 %v6952, %v7128
      %v7130 = vpop.f32.mrb[0].mxu0
      %v7131 = vpop.f32.mrb[0].mxu0
      %v7132 = vadd.f32 %v6955, %v7131
      %v7133 = vpop.f32.mrb[0].mxu0
      %7134 = vdwg.mxu0
      %7135 = vmatprep.subr.bf16.mxu0 0
      %7136 = vmatpush1.bf16.msra.mxu0 %v6687
      %7137 = vmatprep.subr.bf16.mxu0 0
      %7138 = vmatpush1.bf16.msra.mxu0 %v6688
      %7139 = vmatprep.subr.bf16.mxu0 0
      %7140 = vmatpush1.bf16.msra.mxu0 %v6689
      %7141 = vmatprep.subr.bf16.mxu0 0
      %7142 = vmatpush1.bf16.msra.mxu0 %v6690
      %7143 = vmatprep.subr.bf16.mxu0 0
      %7144 = vmatpush1.bf16.msra.mxu0 0
      %7145 = vmatprep.subr.bf16.mxu0 0
      %7146 = vmatpush1.bf16.msra.mxu0 0
      %7147 = vmatprep.subr.bf16.mxu0 0
      %7148 = vmatpush1.bf16.msra.mxu0 0
      %7149 = vmatprep.subr.bf16.mxu0 0
      %7150 = vmatpush1.bf16.msra.mxu0 0
      %7151 = vmatprep.subr.bf16.mxu0 0
      %7152 = vmatpush1.bf16.msra.mxu0 0
      %7153 = vmatprep.subr.bf16.mxu0 0
      %7154 = vmatpush1.bf16.msra.mxu0 0
      %7155 = vmatprep.subr.bf16.mxu0 0
      %7156 = vmatpush1.bf16.msra.mxu0 0
      %7157 = vmatprep.subr.bf16.mxu0 0
      %7158 = vmatpush1.bf16.msra.mxu0 0
      %7159 = vmatprep.subr.bf16.mxu0 0
      %7160 = vmatpush1.bf16.msra.mxu0 0
      %7161 = vmatprep.subr.bf16.mxu0 0
      %7162 = vmatpush1.bf16.msra.mxu0 0
      %7163 = vmatprep.subr.bf16.mxu0 0
      %7164 = vmatpush1.bf16.msra.mxu0 0
      %7165 = vmatprep.subr.bf16.mxu0 0
      %7166 = vmatpush1.bf16.msra.mxu0 0
      %7167 = vmatprep.mubr.bf16.mxu0 0
      %7168 = vmatmul.mubr.bf16.gmra.mrb[0].mxu0 %v6728
      %v7169 = vpop.f32.mrb[0].mxu0
      %v7170 = vadd.f32 %v6993, %v7169
      %v7171 = vpop.f32.mrb[0].mxu0
      %v7172 = vpop.f32.mrb[0].mxu0
      %v7173 = vadd.f32 %v6996, %v7172
      %v7174 = vpop.f32.mrb[0].mxu0
      %7175 = vmatprep.mubr.bf16.mxu0 0
      %7176 = vmatmul.mubr.bf16.gmra.mrb[0].mxu0 %v6731
      %v7177 = vpop.f32.mrb[0].mxu0
      %v7178 = vadd.f32 %v7001, %v7177
      %v7179 = vpop.f32.mrb[0].mxu0
      %v7180 = vpop.f32.mrb[0].mxu0
      %v7181 = vadd.f32 %v7004, %v7180
      %v7182 = vpop.f32.mrb[0].mxu0
      %7183 = vmatprep.mubr.bf16.mxu0 0
      %7184 = vmatmul.mubr.bf16.gmra.mrb[0].mxu0 %v6734
      %v7185 = vpop.f32.mrb[0].mxu0
      %v7186 = vadd.f32 %v7009, %v7185
      %v7187 = vpop.f32.mrb[0].mxu0
      %v7188 = vpop.f32.mrb[0].mxu0
      %v7189 = vadd.f32 %v7012, %v7188
      %v7190 = vpop.f32.mrb[0].mxu0
      %7191 = vmatprep.mubr.bf16.mxu0 0
      %7192 = vmatmul.mubr.bf16.gmra.mrb[0].mxu0 %v6737
      %v7193 = vpop.f32.mrb[0].mxu0
      %v7194 = vadd.f32 %v7017, %v7193
      %v7195 = vpop.f32.mrb[0].mxu0
      %v7196 = vpop.f32.mrb[0].mxu0
      %v7197 = vadd.f32 %v7020, %v7196
      %v7198 = vpop.f32.mrb[0].mxu0
      %7199 = vmatprep.mubr.bf16.mxu0 0
      %7200 = vmatmul.mubr.bf16.gmra.mrb[0].mxu0 %v6740
      %v7201 = vpop.f32.mrb[0].mxu0
      %v7202 = vadd.f32 %v7025, %v7201
      %v7203 = vpop.f32.mrb[0].mxu0
      %v7204 = vpop.f32.mrb[0].mxu0
      %v7205 = vadd.f32 %v7028, %v7204
      %v7206 = vpop.f32.mrb[0].mxu0
      %7207 = vmatprep.mubr.bf16.mxu0 0
      %7208 = vmatmul.mubr.bf16.gmra.mrb[0].mxu0 %v6743
      %v7209 = vpop.f32.mrb[0].mxu0
      %v7210 = vadd.f32 %v7033, %v7209
      %v7211 = vpop.f32.mrb[0].mxu0
      %v7212 = vpop.f32.mrb[0].mxu0
      %v7213 = vadd.f32 %v7036, %v7212
      %v7214 = vpop.f32.mrb[0].mxu0
      %7215 = vmatprep.mubr.bf16.mxu0 0
      %7216 = vmatmul.mubr.bf16.gmra.mrb[0].mxu0 %v6746
      %v7217 = vpop.f32.mrb[0].mxu0
      %v7218 = vadd.f32 %v7041, %v7217
      %v7219 = vpop.f32.mrb[0].mxu0
      %v7220 = vpop.f32.mrb[0].mxu0
      %v7221 = vadd.f32 %v7044, %v7220
      %v7222 = vpop.f32.mrb[0].mxu0
      %7223 = vmatprep.mubr.bf16.mxu0 0
      %7224 = vmatmul.mubr.bf16.gmra.mrb[0].mxu0 %v6749
      %v7225 = vpop.f32.mrb[0].mxu0
      %v7226 = vadd.f32 %v7049, %v7225
      %v7227 = vpop.f32.mrb[0].mxu0
      %v7228 = vpop.f32.mrb[0].mxu0
      %v7229 = vadd.f32 %v7052, %v7228
      %v7230 = vpop.f32.mrb[0].mxu0
      %7231 = vmatprep.mubr.bf16.mxu0 0
      %7232 = vmatmul.mubr.bf16.gmra.mrb[0].mxu0 %v6752
      %v7233 = vpop.f32.mrb[0].mxu0
      %v7234 = vadd.f32 %v7057, %v7233
      %v7235 = vpop.f32.mrb[0].mxu0
      %v7236 = vpop.f32.mrb[0].mxu0
      %v7237 = vadd.f32 %v7060, %v7236
      %v7238 = vpop.f32.mrb[0].mxu0
      %7239 = vmatprep.mubr.bf16.mxu0 0
      %7240 = vmatmul.mubr.bf16.gmra.mrb[0].mxu0 %v6755
      %v7241 = vpop.f32.mrb[0].mxu0
      %v7242 = vadd.f32 %v7065, %v7241
      %v7243 = vpop.f32.mrb[0].mxu0
      %v7244 = vpop.f32.mrb[0].mxu0
      %v7245 = vadd.f32 %v7068, %v7244
      %v7246 = vpop.f32.mrb[0].mxu0
      %7247 = vmatprep.mubr.bf16.mxu0 0
      %7248 = vmatmul.mubr.bf16.gmra.mrb[0].mxu0 %v6758
      %v7249 = vpop.f32.mrb[0].mxu0
      %v7250 = vadd.f32 %v7073, %v7249
      %v7251 = vpop.f32.mrb[0].mxu0
      %v7252 = vpop.f32.mrb[0].mxu0
      %v7253 = vadd.f32 %v7076, %v7252
      %v7254 = vpop.f32.mrb[0].mxu0
      %7255 = vmatprep.mubr.bf16.mxu0 0
      %7256 = vmatmul.mubr.bf16.gmra.mrb[0].mxu0 %v6761
      %v7257 = vpop.f32.mrb[0].mxu0
      %v7258 = vadd.f32 %v7081, %v7257
      %v7259 = vpop.f32.mrb[0].mxu0
      %v7260 = vpop.f32.mrb[0].mxu0
      %v7261 = vadd.f32 %v7084, %v7260
      %v7262 = vpop.f32.mrb[0].mxu0
      %7263 = vmatprep.mubr.bf16.mxu0 0
      %7264 = vmatmul.mubr.bf16.gmra.mrb[0].mxu0 %v6764
      %v7265 = vpop.f32.mrb[0].mxu0
      %v7266 = vadd.f32 %v7089, %v7265
      %v7267 = vpop.f32.mrb[0].mxu0
      %v7268 = vpop.f32.mrb[0].mxu0
      %v7269 = vadd.f32 %v7092, %v7268
      %v7270 = vpop.f32.mrb[0].mxu0
      %7271 = vmatprep.mubr.bf16.mxu0 0
      %7272 = vmatmul.mubr.bf16.gmra.mrb[0].mxu0 %v6767
      %v7273 = vpop.f32.mrb[0].mxu0
      %v7274 = vadd.f32 %v7097, %v7273
      %v7275 = vpop.f32.mrb[0].mxu0
      %v7276 = vpop.f32.mrb[0].mxu0
      %v7277 = vadd.f32 %v7100, %v7276
      %v7278 = vpop.f32.mrb[0].mxu0
      %7279 = vmatprep.mubr.bf16.mxu0 0
      %7280 = vmatmul.mubr.bf16.gmra.mrb[0].mxu0 %v6770
      %v7281 = vpop.f32.mrb[0].mxu0
      %v7282 = vadd.f32 %v7105, %v7281
      %v7283 = vpop.f32.mrb[0].mxu0
      %v7284 = vpop.f32.mrb[0].mxu0
      %v7285 = vadd.f32 %v7108, %v7284
      %v7286 = vpop.f32.mrb[0].mxu0
      %7287 = vmatprep.mubr.bf16.mxu0 0
      %7288 = vmatmul.mubr.bf16.gmra.mrb[0].mxu0 %v6773
      %v7289 = vpop.f32.mrb[0].mxu0
      %v7290 = vadd.f32 %v7113, %v7289
      %v7291 = vpop.f32.mrb[0].mxu0
      %v7292 = vpop.f32.mrb[0].mxu0
      %v7293 = vadd.f32 %v7116, %v7292
      %v7294 = vpop.f32.mrb[0].mxu0
      %7295 = vmatprep.mubr.bf16.mxu0 0
      %7296 = vmatmul.mubr.bf16.gmra.mrb[0].mxu0 %v6776
      %v7297 = vpop.f32.mrb[0].mxu0
      %v7298 = vadd.f32 %v7121, %v7297
      %v7299 = vpop.f32.mrb[0].mxu0
      %v7300 = vpop.f32.mrb[0].mxu0
      %v7301 = vadd.f32 %v7124, %v7300
      %v7302 = vpop.f32.mrb[0].mxu0
      %7303 = vmatprep.mubr.bf16.mxu0 0
      %7304 = vmatmul.mubr.bf16.gmra.mrb[0].mxu0 %v6779
      %v7305 = vpop.f32.mrb[0].mxu0
      %v7306 = vadd.f32 %v7129, %v7305
      %v7307 = vpop.f32.mrb[0].mxu0
      %v7308 = vpop.f32.mrb[0].mxu0
      %v7309 = vadd.f32 %v7132, %v7308
      %v7310 = vpop.f32.mrb[0].mxu0
      %7311 = vdwg.mxu0
      %v7312 = vmax.f32 %v7170, 0.0
      %v7313 = vmax.f32 %v7173, 0.0
      %v7314 = vmax.f32 %v7178, 0.0
      %v7315 = vmax.f32 %v7181, 0.0
      %v7316 = vmax.f32 %v7186, 0.0
      %v7317 = vmax.f32 %v7189, 0.0
      %v7318 = vmax.f32 %v7194, 0.0
      %v7319 = vmax.f32 %v7197, 0.0
      %v7320 = vmax.f32 %v7202, 0.0
      %v7321 = vmax.f32 %v7205, 0.0
      %v7322 = vmax.f32 %v7210, 0.0
      %v7323 = vmax.f32 %v7213, 0.0
      %v7324 = vmax.f32 %v7218, 0.0
      %v7325 = vmax.f32 %v7221, 0.0
      %v7326 = vmax.f32 %v7226, 0.0
      %v7327 = vmax.f32 %v7229, 0.0
      %v7328 = vmax.f32 %v7234, 0.0
      %v7329 = vmax.f32 %v7237, 0.0
      %v7330 = vmax.f32 %v7242, 0.0
      %v7331 = vmax.f32 %v7245, 0.0
      %v7332 = vmax.f32 %v7250, 0.0
      %v7333 = vmax.f32 %v7253, 0.0
      %v7334 = vmax.f32 %v7258, 0.0
      %v7335 = vmax.f32 %v7261, 0.0
      %v7336 = vmax.f32 %v7266, 0.0
      %v7337 = vmax.f32 %v7269, 0.0
      %v7338 = vmax.f32 %v7274, 0.0
      %v7339 = vmax.f32 %v7277, 0.0
      %v7340 = vmax.f32 %v7282, 0.0
      %v7341 = vmax.f32 %v7285, 0.0
      %v7342 = vmax.f32 %v7290, 0.0
      %v7343 = vmax.f32 %v7293, 0.0
      %v7344 = vmax.f32 %v7298, 0.0
      %v7345 = vmax.f32 %v7301, 0.0
      %v7346 = vmax.f32 %v7306, 0.0
      %v7347 = vmax.f32 %v7309, 0.0
      %v7348 = vsel %vm2901, %v7312, 0.0
      %v7349 = vsel %vm2902, %v7313, 0.0
      %v7350 = vsel %vm2903, %v7314, 0.0
      %v7351 = vsel %vm2904, %v7315, 0.0
      %v7352 = vsel %vm2905, %v7316, 0.0
      %v7353 = vsel %vm2906, %v7317, 0.0
      %v7354 = vsel %vm2907, %v7318, 0.0
      %v7355 = vsel %vm2908, %v7319, 0.0
      %v7356 = vsel %vm2909, %v7320, 0.0
      %v7357 = vsel %vm2910, %v7321, 0.0
      %v7358 = vsel %vm2911, %v7322, 0.0
      %v7359 = vsel %vm2912, %v7323, 0.0
      %v7360 = vsel %vm2913, %v7324, 0.0
      %v7361 = vsel %vm2914, %v7325, 0.0
      %v7362 = vsel %vm2915, %v7326, 0.0
      %v7363 = vsel %vm2916, %v7327, 0.0
      %v7364 = vsel %vm2917, %v7328, 0.0
      %v7365 = vsel %vm2918, %v7329, 0.0
      %v7366 = vsel %vm2919, %v7330, 0.0
      %v7367 = vsel %vm2920, %v7331, 0.0
      %v7368 = vsel %vm2921, %v7332, 0.0
      %v7369 = vsel %vm2922, %v7333, 0.0
      %v7370 = vsel %vm2923, %v7334, 0.0
      %v7371 = vsel %vm2924, %v7335, 0.0
      %v7372 = vsel %vm2925, %v7336, 0.0
      %v7373 = vsel %vm2926, %v7337, 0.0
      %v7374 = vsel %vm2927, %v7338, 0.0
      %v7375 = vsel %vm2928, %v7339, 0.0
      %v7376 = vsel %vm2929, %v7340, 0.0
      %v7377 = vsel %vm2930, %v7341, 0.0
      %v7378 = vsel %vm2931, %v7342, 0.0
      %v7379 = vsel %vm2932, %v7343, 0.0
      %v7380 = vsel %vm2933, %v7344, 0.0
      %v7381 = vsel %vm2934, %v7345, 0.0
      %v7382 = vsel %vm2935, %v7346, 0.0
      %v7383 = vsel %vm2936, %v7347, 0.0
      %v7384 = vpack.c.bf16 %v7349, %v7348
      %v7385 = vpack.c.bf16 %v7351, %v7350
      %v7386 = vpack.c.bf16 %v7353, %v7352
      %v7387 = vpack.c.bf16 %v7355, %v7354
      %v7388 = vpack.c.bf16 %v7357, %v7356
      %v7389 = vpack.c.bf16 %v7359, %v7358
      %v7390 = vpack.c.bf16 %v7361, %v7360
      %v7391 = vpack.c.bf16 %v7363, %v7362
      %v7392 = vpack.c.bf16 %v7365, %v7364
      %v7393 = vpack.c.bf16 %v7367, %v7366
      %v7394 = vpack.c.bf16 %v7369, %v7368
      %v7395 = vpack.c.bf16 %v7371, %v7370
      %v7396 = vpack.c.bf16 %v7373, %v7372
      %v7397 = vpack.c.bf16 %v7375, %v7374
      %v7398 = vpack.c.bf16 %v7377, %v7376
      %v7399 = vpack.c.bf16 %v7379, %v7378
      %v7400 = vpack.c.bf16 %v7381, %v7380
      %v7401 = vpack.c.bf16 %v7383, %v7382
      %7402 = vst.msk [vmem:[#allocation2 + $0x10] sm:$0xff] %vm219, %v7384
      %7403 = vst.msk [vmem:[#allocation2 + $0x18] sm:$0xff] %vm219, %v7385
      %7404 = vst.msk [vmem:[#allocation2 + $0x20] sm:$0xff] %vm219, %v7386
      %7405 = vst.msk [vmem:[#allocation2 + $0x28] sm:$0xff] %vm219, %v7387
      %7406 = vst.msk [vmem:[#allocation2 + $0x30] sm:$0xff] %vm219, %v7388
      %7407 = vst.msk [vmem:[#allocation2 + $0x38] sm:$0xff] %vm219, %v7389
      %7408 = vst.msk [vmem:[#allocation2 + $0x40] sm:$0xff] %vm219, %v7390
      %7409 = vst.msk [vmem:[#allocation2 + $0x48] sm:$0xff] %vm219, %v7391
      %7410 = vst.msk [vmem:[#allocation2 + $0x50] sm:$0xff] %vm219, %v7392
      %7411 = vst.msk [vmem:[#allocation2 + $0x58] sm:$0xff] %vm219, %v7393
      %7412 = vst.msk [vmem:[#allocation2 + $0x60] sm:$0xff] %vm219, %v7394
      %7413 = vst.msk [vmem:[#allocation2 + $0x68] sm:$0xff] %vm219, %v7395
      %7414 = vst.msk [vmem:[#allocation2 + $0x70] sm:$0xff] %vm219, %v7396
      %7415 = vst.msk [vmem:[#allocation2 + $0x78] sm:$0xff] %vm219, %v7397
      %7416 = vst.msk [vmem:[#allocation2 + $0x80] sm:$0xff] %vm219, %v7398
      %7417 = vst.msk [vmem:[#allocation2 + $0x88] sm:$0xff] %vm219, %v7399
      %7418 = vst.msk [vmem:[#allocation2 + $0x90] sm:$0xff] %vm219, %v7400
      %7419 = vst.msk [vmem:[#allocation2 + $0x98] sm:$0xff] %vm219, %v7401
      %v7420 = vld [vmem:[#allocation2] sm:$0xff]
      %v7421 = vld [vmem:[#allocation2 + $0x8] sm:$0xff]
      %v7422 = vld [vmem:[#allocation2 + $0x10] sm:$0xff]
      %v7423 = vld [vmem:[#allocation2 + $0x18] sm:$0xff]
      %v7424 = vld [vmem:[#allocation2 + $0x20] sm:$0xff]
      %v7425 = vld [vmem:[#allocation2 + $0x28] sm:$0xff]
      %v7426 = vld [vmem:[#allocation2 + $0x30] sm:$0xff]
      %v7427 = vld [vmem:[#allocation2 + $0x38] sm:$0xff]
      %v7428 = vld [vmem:[#allocation2 + $0x40] sm:$0xff]
      %v7429 = vld [vmem:[#allocation2 + $0x48] sm:$0xff]
      %v7430 = vld [vmem:[#allocation2 + $0x50] sm:$0xff]
      %v7431 = vld [vmem:[#allocation2 + $0x58] sm:$0xff]
      %v7432 = vld [vmem:[#allocation2 + $0x60] sm:$0xff]
      %v7433 = vld [vmem:[#allocation2 + $0x68] sm:$0xff]
      %v7434 = vld [vmem:[#allocation2 + $0x70] sm:$0xff]
      %v7435 = vld [vmem:[#allocation2 + $0x78] sm:$0xff]
      %v7436 = vld [vmem:[#allocation2 + $0x80] sm:$0xff]
      %v7437 = vld [vmem:[#allocation2 + $0x88] sm:$0xff]
      %v7438 = vld [vmem:[#allocation2 + $0x90] sm:$0xff]
      %v7439 = vld [vmem:[#allocation2 + $0x98] sm:$0xff]
      %v7440 = vld [vmem:[#allocation2 + $0xa0] sm:$0xff]
      %v7441 = vld [vmem:[#allocation2 + $0xa8] sm:$0xff]
      %v7443 = vshrl.u32 %v7420, 16
      %v7445 = vshll.u32 %v7420, 16
      %v7447 = vrot.slane %v7445, 1
      %v7448 = vor.u32 %v7443, %v7447
      %v7450 = vshll.u32 %v7421, 16
      %v7452 = vrot.slane %v7450, 1
      %v7453 = vsel %vm1083, %v7448, %v7452
      %v7454 = vshrl.u32 %v7421, 16
      %v7456 = vor.u32 %v7454, %v7452
      %v7458 = vshll.u32 %v7422, 16
      %v7460 = vrot.slane %v7458, 1
      %v7461 = vsel %vm1083, %v7456, %v7460
      %v7462 = vshrl.u32 %v7422, 16
      %v7464 = vor.u32 %v7462, %v7460
      %v7466 = vshll.u32 %v7423, 16
      %v7468 = vrot.slane %v7466, 1
      %v7469 = vsel %vm1083, %v7464, %v7468
      %v7470 = vshrl.u32 %v7423, 16
      %v7472 = vor.u32 %v7470, %v7468
      %v7474 = vshll.u32 %v7424, 16
      %v7476 = vrot.slane %v7474, 1
      %v7477 = vsel %vm1083, %v7472, %v7476
      %v7478 = vshrl.u32 %v7424, 16
      %v7480 = vor.u32 %v7478, %v7476
      %v7482 = vshll.u32 %v7425, 16
      %v7484 = vrot.slane %v7482, 1
      %v7485 = vsel %vm1083, %v7480, %v7484
      %v7486 = vshrl.u32 %v7425, 16
      %v7488 = vor.u32 %v7486, %v7484
      %v7490 = vshll.u32 %v7426, 16
      %v7492 = vrot.slane %v7490, 1
      %v7493 = vsel %vm1083, %v7488, %v7492
      %v7494 = vshrl.u32 %v7426, 16
      %v7496 = vor.u32 %v7494, %v7492
      %v7498 = vshll.u32 %v7427, 16
      %v7500 = vrot.slane %v7498, 1
      %v7501 = vsel %vm1083, %v7496, %v7500
      %v7502 = vshrl.u32 %v7427, 16
      %v7504 = vor.u32 %v7502, %v7500
      %v7506 = vshll.u32 %v7428, 16
      %v7508 = vrot.slane %v7506, 1
      %v7509 = vsel %vm1083, %v7504, %v7508
      %v7510 = vshrl.u32 %v7428, 16
      %v7512 = vor.u32 %v7510, %v7508
      %v7514 = vshll.u32 %v7429, 16
      %v7516 = vrot.slane %v7514, 1
      %v7517 = vsel %vm1083, %v7512, %v7516
      %v7518 = vshrl.u32 %v7429, 16
      %v7520 = vor.u32 %v7518, %v7516
      %v7522 = vshll.u32 %v7430, 16
      %v7524 = vrot.slane %v7522, 1
      %v7525 = vsel %vm1083, %v7520, %v7524
      %v7526 = vshrl.u32 %v7430, 16
      %v7528 = vor.u32 %v7526, %v7524
      %v7530 = vshll.u32 %v7431, 16
      %v7532 = vrot.slane %v7530, 1
      %v7533 = vsel %vm1083, %v7528, %v7532
      %v7534 = vshrl.u32 %v7431, 16
      %v7536 = vor.u32 %v7534, %v7532
      %v7538 = vshll.u32 %v7432, 16
      %v7540 = vrot.slane %v7538, 1
      %v7541 = vsel %vm1083, %v7536, %v7540
      %v7542 = vshrl.u32 %v7432, 16
      %v7544 = vor.u32 %v7542, %v7540
      %v7546 = vshll.u32 %v7433, 16
      %v7548 = vrot.slane %v7546, 1
      %v7549 = vsel %vm1083, %v7544, %v7548
      %v7550 = vshrl.u32 %v7433, 16
      %v7552 = vor.u32 %v7550, %v7548
      %v7554 = vshll.u32 %v7434, 16
      %v7556 = vrot.slane %v7554, 1
      %v7557 = vsel %vm1083, %v7552, %v7556
      %v7558 = vshrl.u32 %v7434, 16
      %v7560 = vor.u32 %v7558, %v7556
      %v7562 = vshll.u32 %v7435, 16
      %v7564 = vrot.slane %v7562, 1
      %v7565 = vsel %vm1083, %v7560, %v7564
      %v7566 = vshrl.u32 %v7435, 16
      %v7568 = vor.u32 %v7566, %v7564
      %v7570 = vshll.u32 %v7436, 16
      %v7572 = vrot.slane %v7570, 1
      %v7573 = vsel %vm1083, %v7568, %v7572
      %v7574 = vshrl.u32 %v7436, 16
      %v7576 = vor.u32 %v7574, %v7572
      %v7578 = vshll.u32 %v7437, 16
      %v7580 = vrot.slane %v7578, 1
      %v7581 = vsel %vm1083, %v7576, %v7580
      %v7582 = vshrl.u32 %v7437, 16
      %v7584 = vor.u32 %v7582, %v7580
      %v7586 = vshll.u32 %v7438, 16
      %v7588 = vrot.slane %v7586, 1
      %v7589 = vsel %vm1083, %v7584, %v7588
      %v7590 = vshrl.u32 %v7438, 16
      %v7592 = vor.u32 %v7590, %v7588
      %7593 = vrot.lane.b32.xlu0 %v7453, 64
      %v7594 = vpop.permute.xlu0 %7593
      %7595 = vrot.lane.b32.xlu0 %v7461, 64
      %v7596 = vpop.permute.xlu0 %7595
      %7597 = vrot.lane.b32.xlu0 %v7469, 64
      %v7598 = vpop.permute.xlu0 %7597
      %7599 = vrot.lane.b32.xlu0 %v7477, 64
      %v7600 = vpop.permute.xlu0 %7599
      %7601 = vrot.lane.b32.xlu0 %v7485, 64
      %v7602 = vpop.permute.xlu0 %7601
      %7603 = vrot.lane.b32.xlu0 %v7493, 64
      %v7604 = vpop.permute.xlu0 %7603
      %7605 = vrot.lane.b32.xlu0 %v7501, 64
      %v7606 = vpop.permute.xlu0 %7605
      %7607 = vrot.lane.b32.xlu0 %v7509, 64
      %v7608 = vpop.permute.xlu0 %7607
      %7609 = vrot.lane.b32.xlu0 %v7517, 64
      %v7610 = vpop.permute.xlu0 %7609
      %7611 = vrot.lane.b32.xlu0 %v7525, 64
      %v7612 = vpop.permute.xlu0 %7611
      %7613 = vrot.lane.b32.xlu0 %v7533, 64
      %v7614 = vpop.permute.xlu0 %7613
      %7615 = vrot.lane.b32.xlu0 %v7541, 64
      %v7616 = vpop.permute.xlu0 %7615
      %7617 = vrot.lane.b32.xlu0 %v7549, 64
      %v7618 = vpop.permute.xlu0 %7617
      %7619 = vrot.lane.b32.xlu0 %v7557, 64
      %v7620 = vpop.permute.xlu0 %7619
      %7621 = vrot.lane.b32.xlu0 %v7565, 64
      %v7622 = vpop.permute.xlu0 %7621
      %7623 = vrot.lane.b32.xlu0 %v7573, 64
      %v7624 = vpop.permute.xlu0 %7623
      %7625 = vrot.lane.b32.xlu0 %v7581, 64
      %v7626 = vpop.permute.xlu0 %7625
      %7627 = vrot.lane.b32.xlu0 %v7589, 64
      %v7628 = vpop.permute.xlu0 %7627
      %7629 = vrot.lane.b32.xlu0 %v7592, 64
      %v7630 = vpop.permute.xlu0 %7629
      %v7650 = vrot.slane %v7420, 1
      %v7651 = vrot.slane %v7421, 1
      %v7652 = vsel %vm1287, %v7650, %v7651
      %v7653 = vrot.slane %v7422, 1
      %v7654 = vsel %vm1287, %v7651, %v7653
      %v7655 = vrot.slane %v7423, 1
      %v7656 = vsel %vm1287, %v7653, %v7655
      %v7657 = vrot.slane %v7424, 1
      %v7658 = vsel %vm1287, %v7655, %v7657
      %v7659 = vrot.slane %v7425, 1
      %v7660 = vsel %vm1287, %v7657, %v7659
      %v7661 = vrot.slane %v7426, 1
      %v7662 = vsel %vm1287, %v7659, %v7661
      %v7663 = vrot.slane %v7427, 1
      %v7664 = vsel %vm1287, %v7661, %v7663
      %v7665 = vrot.slane %v7428, 1
      %v7666 = vsel %vm1287, %v7663, %v7665
      %v7667 = vrot.slane %v7429, 1
      %v7668 = vsel %vm1287, %v7665, %v7667
      %v7669 = vrot.slane %v7430, 1
      %v7670 = vsel %vm1287, %v7667, %v7669
      %v7671 = vrot.slane %v7431, 1
      %v7672 = vsel %vm1287, %v7669, %v7671
      %v7673 = vrot.slane %v7432, 1
      %v7674 = vsel %vm1287, %v7671, %v7673
      %v7675 = vrot.slane %v7433, 1
      %v7676 = vsel %vm1287, %v7673, %v7675
      %v7677 = vrot.slane %v7434, 1
      %v7678 = vsel %vm1287, %v7675, %v7677
      %v7679 = vrot.slane %v7435, 1
      %v7680 = vsel %vm1287, %v7677, %v7679
      %v7681 = vrot.slane %v7436, 1
      %v7682 = vsel %vm1287, %v7679, %v7681
      %v7683 = vrot.slane %v7437, 1
      %v7684 = vsel %vm1287, %v7681, %v7683
      %v7685 = vrot.slane %v7438, 1
      %v7686 = vsel %vm1287, %v7683, %v7685
      %v7688 = vrot.slane %v7439, 1
      %v7689 = vsel %vm1287, %v7685, %v7688
      %7690 = vrot.lane.b32.xlu0 %v7654, 64
      %v7691 = vpop.permute.xlu0 %7690
      %7692 = vrot.lane.b32.xlu0 %v7656, 64
      %v7693 = vpop.permute.xlu0 %7692
      %7694 = vrot.lane.b32.xlu0 %v7658, 64
      %v7695 = vpop.permute.xlu0 %7694
      %7696 = vrot.lane.b32.xlu0 %v7660, 64
      %v7697 = vpop.permute.xlu0 %7696
      %7698 = vrot.lane.b32.xlu0 %v7662, 64
      %v7699 = vpop.permute.xlu0 %7698
      %7700 = vrot.lane.b32.xlu0 %v7664, 64
      %v7701 = vpop.permute.xlu0 %7700
      %7702 = vrot.lane.b32.xlu0 %v7666, 64
      %v7703 = vpop.permute.xlu0 %7702
      %7704 = vrot.lane.b32.xlu0 %v7668, 64
      %v7705 = vpop.permute.xlu0 %7704
      %7706 = vrot.lane.b32.xlu0 %v7670, 64
      %v7707 = vpop.permute.xlu0 %7706
      %7708 = vrot.lane.b32.xlu0 %v7672, 64
      %v7709 = vpop.permute.xlu0 %7708
      %7710 = vrot.lane.b32.xlu0 %v7674, 64
      %v7711 = vpop.permute.xlu0 %7710
      %7712 = vrot.lane.b32.xlu0 %v7676, 64
      %v7713 = vpop.permute.xlu0 %7712
      %7714 = vrot.lane.b32.xlu0 %v7678, 64
      %v7715 = vpop.permute.xlu0 %7714
      %7716 = vrot.lane.b32.xlu0 %v7680, 64
      %v7717 = vpop.permute.xlu0 %7716
      %7718 = vrot.lane.b32.xlu0 %v7682, 64
      %v7719 = vpop.permute.xlu0 %7718
      %7720 = vrot.lane.b32.xlu0 %v7684, 64
      %v7721 = vpop.permute.xlu0 %7720
      %7722 = vrot.lane.b32.xlu0 %v7686, 64
      %v7723 = vpop.permute.xlu0 %7722
      %7724 = vrot.lane.b32.xlu0 %v7689, 64
      %v7725 = vpop.permute.xlu0 %7724
      %7726 = vrot.lane.b32.xlu0 %v7688, 64
      %v7727 = vpop.permute.xlu0 %7726
      %v7728 = vrot.slane %v7462, 1
      %v7729 = vrot.slane %v7458, 2
      %v7730 = vor.u32 %v7728, %v7729
      %v7731 = vrot.slane %v7470, 1
      %v7732 = vrot.slane %v7466, 2
      %v7733 = vor.u32 %v7731, %v7732
      %v7734 = vsel %vm1364, %v7730, %v7733
      %v7735 = vrot.slane %v7478, 1
      %v7736 = vrot.slane %v7474, 2
      %v7737 = vor.u32 %v7735, %v7736
      %v7738 = vsel %vm1364, %v7733, %v7737
      %v7739 = vrot.slane %v7486, 1
      %v7740 = vrot.slane %v7482, 2
      %v7741 = vor.u32 %v7739, %v7740
      %v7742 = vsel %vm1364, %v7737, %v7741
      %v7743 = vrot.slane %v7494, 1
      %v7744 = vrot.slane %v7490, 2
      %v7745 = vor.u32 %v7743, %v7744
      %v7746 = vsel %vm1364, %v7741, %v7745
      %v7747 = vrot.slane %v7502, 1
      %v7748 = vrot.slane %v7498, 2
      %v7749 = vor.u32 %v7747, %v7748
      %v7750 = vsel %vm1364, %v7745, %v7749
      %v7751 = vrot.slane %v7510, 1
      %v7752 = vrot.slane %v7506, 2
      %v7753 = vor.u32 %v7751, %v7752
      %v7754 = vsel %vm1364, %v7749, %v7753
      %v7755 = vrot.slane %v7518, 1
      %v7756 = vrot.slane %v7514, 2
      %v7757 = vor.u32 %v7755, %v7756
      %v7758 = vsel %vm1364, %v7753, %v7757
      %v7759 = vrot.slane %v7526, 1
      %v7760 = vrot.slane %v7522, 2
      %v7761 = vor.u32 %v7759, %v7760
      %v7762 = vsel %vm1364, %v7757, %v7761
      %v7763 = vrot.slane %v7534, 1
      %v7764 = vrot.slane %v7530, 2
      %v7765 = vor.u32 %v7763, %v7764
      %v7766 = vsel %vm1364, %v7761, %v7765
      %v7767 = vrot.slane %v7542, 1
      %v7768 = vrot.slane %v7538, 2
      %v7769 = vor.u32 %v7767, %v7768
      %v7770 = vsel %vm1364, %v7765, %v7769
      %v7771 = vrot.slane %v7550, 1
      %v7772 = vrot.slane %v7546, 2
      %v7773 = vor.u32 %v7771, %v7772
      %v7774 = vsel %vm1364, %v7769, %v7773
      %v7775 = vrot.slane %v7558, 1
      %v7776 = vrot.slane %v7554, 2
      %v7777 = vor.u32 %v7775, %v7776
      %v7778 = vsel %vm1364, %v7773, %v7777
      %v7779 = vrot.slane %v7566, 1
      %v7780 = vrot.slane %v7562, 2
      %v7781 = vor.u32 %v7779, %v7780
      %v7782 = vsel %vm1364, %v7777, %v7781
      %v7783 = vrot.slane %v7574, 1
      %v7784 = vrot.slane %v7570, 2
      %v7785 = vor.u32 %v7783, %v7784
      %v7786 = vsel %vm1364, %v7781, %v7785
      %v7787 = vrot.slane %v7582, 1
      %v7788 = vrot.slane %v7578, 2
      %v7789 = vor.u32 %v7787, %v7788
      %v7790 = vsel %vm1364, %v7785, %v7789
      %v7791 = vrot.slane %v7590, 1
      %v7792 = vrot.slane %v7586, 2
      %v7793 = vor.u32 %v7791, %v7792
      %v7794 = vsel %vm1364, %v7789, %v7793
      %v7796 = vshrl.u32 %v7439, 16
      %v7798 = vrot.slane %v7796, 1
      %v7799 = vshll.u32 %v7439, 16
      %v7801 = vrot.slane %v7799, 2
      %v7802 = vor.u32 %v7798, %v7801
      %v7803 = vsel %vm1364, %v7793, %v7802
      %v7805 = vrot.slane %v7422, 2
      %v7806 = vrot.slane %v7423, 2
      %v7807 = vsel %vm1447, %v7805, %v7806
      %v7808 = vrot.slane %v7424, 2
      %v7809 = vsel %vm1447, %v7806, %v7808
      %v7810 = vrot.slane %v7425, 2
      %v7811 = vsel %vm1447, %v7808, %v7810
      %v7812 = vrot.slane %v7426, 2
      %v7813 = vsel %vm1447, %v7810, %v7812
      %v7814 = vrot.slane %v7427, 2
      %v7815 = vsel %vm1447, %v7812, %v7814
      %v7816 = vrot.slane %v7428, 2
      %v7817 = vsel %vm1447, %v7814, %v7816
      %v7818 = vrot.slane %v7429, 2
      %v7819 = vsel %vm1447, %v7816, %v7818
      %v7820 = vrot.slane %v7430, 2
      %v7821 = vsel %vm1447, %v7818, %v7820
      %v7822 = vrot.slane %v7431, 2
      %v7823 = vsel %vm1447, %v7820, %v7822
      %v7824 = vrot.slane %v7432, 2
      %v7825 = vsel %vm1447, %v7822, %v7824
      %v7826 = vrot.slane %v7433, 2
      %v7827 = vsel %vm1447, %v7824, %v7826
      %v7828 = vrot.slane %v7434, 2
      %v7829 = vsel %vm1447, %v7826, %v7828
      %v7830 = vrot.slane %v7435, 2
      %v7831 = vsel %vm1447, %v7828, %v7830
      %v7832 = vrot.slane %v7436, 2
      %v7833 = vsel %vm1447, %v7830, %v7832
      %v7834 = vrot.slane %v7437, 2
      %v7835 = vsel %vm1447, %v7832, %v7834
      %v7836 = vrot.slane %v7438, 2
      %v7837 = vsel %vm1447, %v7834, %v7836
      %v7838 = vrot.slane %v7439, 2
      %v7839 = vsel %vm1447, %v7836, %v7838
      %v7840 = vrot.slane %v7440, 2
      %v7841 = vsel %vm1447, %v7838, %v7840
      %7842 = vrot.lane.b32.xlu0 %v7805, 64
      %v7843 = vpop.permute.xlu0 %7842
      %7844 = vrot.lane.b32.xlu0 %v7807, 64
      %v7845 = vpop.permute.xlu0 %7844
      %7846 = vrot.lane.b32.xlu0 %v7809, 64
      %v7847 = vpop.permute.xlu0 %7846
      %7848 = vrot.lane.b32.xlu0 %v7811, 64
      %v7849 = vpop.permute.xlu0 %7848
      %7850 = vrot.lane.b32.xlu0 %v7813, 64
      %v7851 = vpop.permute.xlu0 %7850
      %7852 = vrot.lane.b32.xlu0 %v7815, 64
      %v7853 = vpop.permute.xlu0 %7852
      %7854 = vrot.lane.b32.xlu0 %v7817, 64
      %v7855 = vpop.permute.xlu0 %7854
      %7856 = vrot.lane.b32.xlu0 %v7819, 64
      %v7857 = vpop.permute.xlu0 %7856
      %7858 = vrot.lane.b32.xlu0 %v7821, 64
      %v7859 = vpop.permute.xlu0 %7858
      %7860 = vrot.lane.b32.xlu0 %v7823, 64
      %v7861 = vpop.permute.xlu0 %7860
      %7862 = vrot.lane.b32.xlu0 %v7825, 64
      %v7863 = vpop.permute.xlu0 %7862
      %7864 = vrot.lane.b32.xlu0 %v7827, 64
      %v7865 = vpop.permute.xlu0 %7864
      %7866 = vrot.lane.b32.xlu0 %v7829, 64
      %v7867 = vpop.permute.xlu0 %7866
      %7868 = vrot.lane.b32.xlu0 %v7831, 64
      %v7869 = vpop.permute.xlu0 %7868
      %7870 = vrot.lane.b32.xlu0 %v7833, 64
      %v7871 = vpop.permute.xlu0 %7870
      %7872 = vrot.lane.b32.xlu0 %v7835, 64
      %v7873 = vpop.permute.xlu0 %7872
      %7874 = vrot.lane.b32.xlu0 %v7837, 64
      %v7875 = vpop.permute.xlu0 %7874
      %7876 = vrot.lane.b32.xlu0 %v7839, 64
      %v7877 = vpop.permute.xlu0 %7876
      %7878 = vrot.lane.b32.xlu0 %v7841, 64
      %v7879 = vpop.permute.xlu0 %7878
      %v7881 = vrot.slane %v7441, 2
      %v7882 = vsel %vm1447, %v7840, %v7881
      %v7883 = vrot.slane %v7470, 2
      %v7884 = vrot.slane %v7466, 3
      %v7885 = vor.u32 %v7883, %v7884
      %v7886 = vrot.slane %v7478, 2
      %v7887 = vrot.slane %v7474, 3
      %v7888 = vor.u32 %v7886, %v7887
      %v7889 = vsel %vm1524, %v7885, %v7888
      %v7890 = vrot.slane %v7486, 2
      %v7891 = vrot.slane %v7482, 3
      %v7892 = vor.u32 %v7890, %v7891
      %v7893 = vsel %vm1524, %v7888, %v7892
      %v7894 = vrot.slane %v7494, 2
      %v7895 = vrot.slane %v7490, 3
      %v7896 = vor.u32 %v7894, %v7895
      %v7897 = vsel %vm1524, %v7892, %v7896
      %v7898 = vrot.slane %v7502, 2
      %v7899 = vrot.slane %v7498, 3
      %v7900 = vor.u32 %v7898, %v7899
      %v7901 = vsel %vm1524, %v7896, %v7900
      %v7902 = vrot.slane %v7510, 2
      %v7903 = vrot.slane %v7506, 3
      %v7904 = vor.u32 %v7902, %v7903
      %v7905 = vsel %vm1524, %v7900, %v7904
      %v7906 = vrot.slane %v7518, 2
      %v7907 = vrot.slane %v7514, 3
      %v7908 = vor.u32 %v7906, %v7907
      %v7909 = vsel %vm1524, %v7904, %v7908
      %v7910 = vrot.slane %v7526, 2
      %v7911 = vrot.slane %v7522, 3
      %v7912 = vor.u32 %v7910, %v7911
      %v7913 = vsel %vm1524, %v7908, %v7912
      %v7914 = vrot.slane %v7534, 2
      %v7915 = vrot.slane %v7530, 3
      %v7916 = vor.u32 %v7914, %v7915
      %v7917 = vsel %vm1524, %v7912, %v7916
      %v7918 = vrot.slane %v7542, 2
      %v7919 = vrot.slane %v7538, 3
      %v7920 = vor.u32 %v7918, %v7919
      %v7921 = vsel %vm1524, %v7916, %v7920
      %v7922 = vrot.slane %v7550, 2
      %v7923 = vrot.slane %v7546, 3
      %v7924 = vor.u32 %v7922, %v7923
      %v7925 = vsel %vm1524, %v7920, %v7924
      %v7926 = vrot.slane %v7558, 2
      %v7927 = vrot.slane %v7554, 3
      %v7928 = vor.u32 %v7926, %v7927
      %v7929 = vsel %vm1524, %v7924, %v7928
      %v7930 = vrot.slane %v7566, 2
      %v7931 = vrot.slane %v7562, 3
      %v7932 = vor.u32 %v7930, %v7931
      %v7933 = vsel %vm1524, %v7928, %v7932
      %v7934 = vrot.slane %v7574, 2
      %v7935 = vrot.slane %v7570, 3
      %v7936 = vor.u32 %v7934, %v7935
      %v7937 = vsel %vm1524, %v7932, %v7936
      %v7938 = vrot.slane %v7582, 2
      %v7939 = vrot.slane %v7578, 3
      %v7940 = vor.u32 %v7938, %v7939
      %v7941 = vsel %vm1524, %v7936, %v7940
      %v7942 = vrot.slane %v7590, 2
      %v7943 = vrot.slane %v7586, 3
      %v7944 = vor.u32 %v7942, %v7943
      %v7945 = vsel %vm1524, %v7940, %v7944
      %v7946 = vrot.slane %v7796, 2
      %v7947 = vrot.slane %v7799, 3
      %v7948 = vor.u32 %v7946, %v7947
      %v7949 = vsel %vm1524, %v7944, %v7948
      %v7951 = vshrl.u32 %v7440, 16
      %v7953 = vrot.slane %v7951, 2
      %v7954 = vshll.u32 %v7440, 16
      %v7956 = vrot.slane %v7954, 3
      %v7957 = vor.u32 %v7953, %v7956
      %v7958 = vsel %vm1524, %v7948, %v7957
      %v7960 = vshrl.u32 %v7441, 16
      %v7962 = vrot.slane %v7960, 2
      %v7963 = vshll.u32 %v7441, 16
      %v7965 = vrot.slane %v7963, 3
      %v7966 = vor.u32 %v7962, %v7965
      %v7967 = vsel %vm1524, %v7957, %v7966
      %7968 = vrot.lane.b32.xlu0 %v7885, 64
      %v7969 = vpop.permute.xlu0 %7968
      %7970 = vrot.lane.b32.xlu0 %v7889, 64
      %v7971 = vpop.permute.xlu0 %7970
      %7972 = vrot.lane.b32.xlu0 %v7893, 64
      %v7973 = vpop.permute.xlu0 %7972
      %7974 = vrot.lane.b32.xlu0 %v7897, 64
      %v7975 = vpop.permute.xlu0 %7974
      %7976 = vrot.lane.b32.xlu0 %v7901, 64
      %v7977 = vpop.permute.xlu0 %7976
      %7978 = vrot.lane.b32.xlu0 %v7905, 64
      %v7979 = vpop.permute.xlu0 %7978
      %7980 = vrot.lane.b32.xlu0 %v7909, 64
      %v7981 = vpop.permute.xlu0 %7980
      %7982 = vrot.lane.b32.xlu0 %v7913, 64
      %v7983 = vpop.permute.xlu0 %7982
      %7984 = vrot.lane.b32.xlu0 %v7917, 64
      %v7985 = vpop.permute.xlu0 %7984
      %7986 = vrot.lane.b32.xlu0 %v7921, 64
      %v7987 = vpop.permute.xlu0 %7986
      %7988 = vrot.lane.b32.xlu0 %v7925, 64
      %v7989 = vpop.permute.xlu0 %7988
      %7990 = vrot.lane.b32.xlu0 %v7929, 64
      %v7991 = vpop.permute.xlu0 %7990
      %7992 = vrot.lane.b32.xlu0 %v7933, 64
      %v7993 = vpop.permute.xlu0 %7992
      %7994 = vrot.lane.b32.xlu0 %v7937, 64
      %v7995 = vpop.permute.xlu0 %7994
      %7996 = vrot.lane.b32.xlu0 %v7941, 64
      %v7997 = vpop.permute.xlu0 %7996
      %7998 = vrot.lane.b32.xlu0 %v7945, 64
      %v7999 = vpop.permute.xlu0 %7998
      %8000 = vrot.lane.b32.xlu0 %v7949, 64
      %v8001 = vpop.permute.xlu0 %8000
      %8002 = vrot.lane.b32.xlu0 %v7958, 64
      %v8003 = vpop.permute.xlu0 %8002
      %8004 = vrot.lane.b32.xlu0 %v7967, 64
      %v8005 = vpop.permute.xlu0 %8004
      %v8006 = vrot.slane %v7423, 3
      %v8007 = vrot.slane %v7424, 3
      %v8008 = vsel %vm1641, %v8006, %v8007
      %v8009 = vrot.slane %v7425, 3
      %v8010 = vsel %vm1641, %v8007, %v8009
      %v8011 = vrot.slane %v7426, 3
      %v8012 = vsel %vm1641, %v8009, %v8011
      %v8013 = vrot.slane %v7427, 3
      %v8014 = vsel %vm1641, %v8011, %v8013
      %v8015 = vrot.slane %v7428, 3
      %v8016 = vsel %vm1641, %v8013, %v8015
      %v8017 = vrot.slane %v7429, 3
      %v8018 = vsel %vm1641, %v8015, %v8017
      %v8019 = vrot.slane %v7430, 3
      %v8020 = vsel %vm1641, %v8017, %v8019
      %v8021 = vrot.slane %v7431, 3
      %v8022 = vsel %vm1641, %v8019, %v8021
      %v8023 = vrot.slane %v7432, 3
      %v8024 = vsel %vm1641, %v8021, %v8023
      %v8025 = vrot.slane %v7433, 3
      %v8026 = vsel %vm1641, %v8023, %v8025
      %v8027 = vrot.slane %v7434, 3
      %v8028 = vsel %vm1641, %v8025, %v8027
      %v8029 = vrot.slane %v7435, 3
      %v8030 = vsel %vm1641, %v8027, %v8029
      %v8031 = vrot.slane %v7436, 3
      %v8032 = vsel %vm1641, %v8029, %v8031
      %v8033 = vrot.slane %v7437, 3
      %v8034 = vsel %vm1641, %v8031, %v8033
      %v8035 = vrot.slane %v7438, 3
      %v8036 = vsel %vm1641, %v8033, %v8035
      %v8037 = vrot.slane %v7439, 3
      %v8038 = vsel %vm1641, %v8035, %v8037
      %v8039 = vrot.slane %v7440, 3
      %v8040 = vsel %vm1641, %v8037, %v8039
      %v8041 = vrot.slane %v7441, 3
      %v8042 = vsel %vm1641, %v8039, %v8041
      %v8044 = vsel %vm219, %v7420, %v7594
      %v8046 = vsel %vm219, %v7421, %v7596
      %v8048 = vsel %vm219, %v7422, %v7598
      %v8050 = vsel %vm219, %v7423, %v7600
      %v8052 = vsel %vm219, %v7424, %v7602
      %v8054 = vsel %vm219, %v7425, %v7604
      %v8056 = vsel %vm219, %v7426, %v7606
      %v8058 = vsel %vm219, %v7427, %v7608
      %v8060 = vsel %vm219, %v7428, %v7610
      %v8062 = vsel %vm219, %v7429, %v7612
      %v8064 = vsel %vm219, %v7430, %v7614
      %v8066 = vsel %vm219, %v7431, %v7616
      %v8068 = vsel %vm219, %v7432, %v7618
      %v8070 = vsel %vm219, %v7433, %v7620
      %v8072 = vsel %vm219, %v7434, %v7622
      %v8074 = vsel %vm219, %v7435, %v7624
      %v8076 = vsel %vm219, %v7436, %v7626
      %v8078 = vsel %vm219, %v7437, %v7628
      %v8080 = vsel %vm219, %v7438, %v7630
      %v8083 = vsel %vm219, %v7652, %v7691
      %v8086 = vsel %vm219, %v7654, %v7693
      %v8089 = vsel %vm219, %v7656, %v7695
      %v8092 = vsel %vm219, %v7658, %v7697
      %v8095 = vsel %vm219, %v7660, %v7699
      %v8098 = vsel %vm219, %v7662, %v7701
      %v8101 = vsel %vm219, %v7664, %v7703
      %v8104 = vsel %vm219, %v7666, %v7705
      %v8107 = vsel %vm219, %v7668, %v7707
      %v8110 = vsel %vm219, %v7670, %v7709
      %v8113 = vsel %vm219, %v7672, %v7711
      %v8116 = vsel %vm219, %v7674, %v7713
      %v8119 = vsel %vm219, %v7676, %v7715
      %v8122 = vsel %vm219, %v7678, %v7717
      %v8125 = vsel %vm219, %v7680, %v7719
      %v8128 = vsel %vm219, %v7682, %v7721
      %v8131 = vsel %vm219, %v7684, %v7723
      %v8134 = vsel %vm219, %v7686, %v7725
      %v8137 = vsel %vm219, %v7685, %v7727
      %v8140 = vsel %vm219, %v7730, %v7843
      %v8143 = vsel %vm219, %v7734, %v7845
      %v8146 = vsel %vm219, %v7738, %v7847
      %v8149 = vsel %vm219, %v7742, %v7849
      %v8152 = vsel %vm219, %v7746, %v7851
      %v8155 = vsel %vm219, %v7750, %v7853
      %v8158 = vsel %vm219, %v7754, %v7855
      %v8161 = vsel %vm219, %v7758, %v7857
      %v8164 = vsel %vm219, %v7762, %v7859
      %v8167 = vsel %vm219, %v7766, %v7861
      %v8170 = vsel %vm219, %v7770, %v7863
      %v8173 = vsel %vm219, %v7774, %v7865
      %v8176 = vsel %vm219, %v7778, %v7867
      %v8179 = vsel %vm219, %v7782, %v7869
      %v8182 = vsel %vm219, %v7786, %v7871
      %v8185 = vsel %vm219, %v7790, %v7873
      %v8188 = vsel %vm219, %v7794, %v7875
      %v8191 = vsel %vm219, %v7803, %v7877
      %v8194 = vsel %vm219, %v7802, %v7879
      %v8197 = vsel %vm219, %v7806, %v7969
      %v8200 = vsel %vm219, %v7809, %v7971
      %v8203 = vsel %vm219, %v7811, %v7973
      %v8206 = vsel %vm219, %v7813, %v7975
      %v8209 = vsel %vm219, %v7815, %v7977
      %v8212 = vsel %vm219, %v7817, %v7979
      %v8215 = vsel %vm219, %v7819, %v7981
      %v8218 = vsel %vm219, %v7821, %v7983
      %v8221 = vsel %vm219, %v7823, %v7985
      %v8224 = vsel %vm219, %v7825, %v7987
      %v8227 = vsel %vm219, %v7827, %v7989
      %v8230 = vsel %vm219, %v7829, %v7991
      %v8233 = vsel %vm219, %v7831, %v7993
      %v8236 = vsel %vm219, %v7833, %v7995
      %v8239 = vsel %vm219, %v7835, %v7997
      %v8242 = vsel %vm219, %v7837, %v7999
      %v8245 = vsel %vm219, %v7839, %v8001
      %v8248 = vsel %vm219, %v7841, %v8003
      %v8251 = vsel %vm219, %v7882, %v8005
      %s8252 = scalar_lea.vmem %s2, 864
      %v8253 = vld [vmem:[%s8252] sm:$0xf]
      %v8254 = vld [vmem:[%s8252 + $0x4] sm:$0xf]
      %v8255 = vld [vmem:[%s8252 + $0x8] sm:$0xf]
      %v8256 = vld [vmem:[%s8252 + $0xc] sm:$0xf]
      %v8257 = vld [vmem:[%s8252 + $0x10] sm:$0xf]
      %v8258 = vld [vmem:[%s8252 + $0x14] sm:$0xf]
      %v8259 = vld [vmem:[%s8252 + $0x18] sm:$0xf]
      %v8260 = vld [vmem:[%s8252 + $0x1c] sm:$0xf]
      %v8261 = vld [vmem:[%s8252 + $0x20] sm:$0xf]
      %v8262 = vld [vmem:[%s8252 + $0x24] sm:$0xf]
      %v8263 = vld [vmem:[%s8252 + $0x28] sm:$0xf]
      %v8264 = vld [vmem:[%s8252 + $0x2c] sm:$0xf]
      %v8265 = vld [vmem:[%s8252 + $0x30] sm:$0xf]
      %v8266 = vld [vmem:[%s8252 + $0x34] sm:$0xf]
      %v8267 = vld [vmem:[%s8252 + $0x38] sm:$0xf]
      %v8268 = vld [vmem:[%s8252 + $0x3c] sm:$0xf]
      %v8269 = vld [vmem:[%s8252 + $0x40] sm:$0xf]
      %v8270 = vld [vmem:[%s8252 + $0x44] sm:$0xf]
      %v8271 = vld [vmem:[%s8252 + $0x48] sm:$0xf]
      %v8272 = vld [vmem:[%s8252 + $0x4c] sm:$0xf]
      %v8273 = vld [vmem:[%s8252 + $0x50] sm:$0xf]
      %v8274 = vld [vmem:[%s8252 + $0x54] sm:$0xf]
      %v8275 = vld [vmem:[%s8252 + $0x58] sm:$0xf]
      %v8276 = vld [vmem:[%s8252 + $0x5c] sm:$0xf]
      %v8277 = vld [vmem:[%s8252 + $0x60] sm:$0xf]
      %v8278 = vld [vmem:[%s8252 + $0x64] sm:$0xf]
      %v8279 = vld [vmem:[%s8252 + $0x68] sm:$0xf]
      %v8280 = vld [vmem:[%s8252 + $0x6c] sm:$0xf]
      %v8281 = vld [vmem:[%s8252 + $0x70] sm:$0xf]
      %v8282 = vld [vmem:[%s8252 + $0x74] sm:$0xf]
      %v8283 = vld [vmem:[%s8252 + $0x78] sm:$0xf]
      %v8284 = vld [vmem:[%s8252 + $0x7c] sm:$0xf]
      %v8285 = vld [vmem:[%s8252 + $0x80] sm:$0xf]
      %v8286 = vld [vmem:[%s8252 + $0x84] sm:$0xf]
      %v8287 = vld [vmem:[%s8252 + $0x88] sm:$0xf]
      %v8288 = vld [vmem:[%s8252 + $0x8c] sm:$0xf]
      %v8289 = vld [vmem:[%s8252 + $0x90] sm:$0xf]
      %v8290 = vld [vmem:[%s8252 + $0x94] sm:$0xf]
      %v8291 = vld [vmem:[%s8252 + $0x98] sm:$0xf]
      %v8292 = vld [vmem:[%s8252 + $0x9c] sm:$0xf]
      %v8293 = vld [vmem:[%s8252 + $0xa0] sm:$0xf]
      %v8294 = vld [vmem:[%s8252 + $0xa4] sm:$0xf]
      %v8295 = vld [vmem:[%s8252 + $0xa8] sm:$0xf]
      %v8296 = vld [vmem:[%s8252 + $0xac] sm:$0xf]
      %v8297 = vld [vmem:[%s8252 + $0xb0] sm:$0xf]
      %v8298 = vld [vmem:[%s8252 + $0xb4] sm:$0xf]
      %v8299 = vld [vmem:[%s8252 + $0xb8] sm:$0xf]
      %v8300 = vld [vmem:[%s8252 + $0xbc] sm:$0xf]
      %v8301 = vld [vmem:[%s8252 + $0xc0] sm:$0xf]
      %v8302 = vld [vmem:[%s8252 + $0xc4] sm:$0xf]
      %v8303 = vld [vmem:[%s8252 + $0xc8] sm:$0xf]
      %v8304 = vld [vmem:[%s8252 + $0xcc] sm:$0xf]
      %v8305 = vld [vmem:[%s8252 + $0xd0] sm:$0xf]
      %v8306 = vld [vmem:[%s8252 + $0xd4] sm:$0xf]
      %v8307 = vld [vmem:[%s8252 + $0xd8] sm:$0xf]
      %v8308 = vld [vmem:[%s8252 + $0xdc] sm:$0xf]
      %v8309 = vld [vmem:[%s8252 + $0xe0] sm:$0xf]
      %v8310 = vld [vmem:[%s8252 + $0xe4] sm:$0xf]
      %v8311 = vld [vmem:[%s8252 + $0xe8] sm:$0xf]
      %v8312 = vld [vmem:[%s8252 + $0xec] sm:$0xf]
      %v8313 = vld [vmem:[%s8252 + $0xf0] sm:$0xf]
      %v8314 = vld [vmem:[%s8252 + $0xf4] sm:$0xf]
      %v8315 = vld [vmem:[%s8252 + $0xf8] sm:$0xf]
      %v8316 = vld [vmem:[%s8252 + $0xfc] sm:$0xf]
      %v8317 = vld [vmem:[%s8252 + $0x100] sm:$0xf]
      %v8318 = vld [vmem:[%s8252 + $0x104] sm:$0xf]
      %v8319 = vld [vmem:[%s8252 + $0x108] sm:$0xf]
      %v8320 = vld [vmem:[%s8252 + $0x10c] sm:$0xf]
      %v8321 = vld [vmem:[%s8252 + $0x110] sm:$0xf]
      %v8322 = vld [vmem:[%s8252 + $0x114] sm:$0xf]
      %v8323 = vld [vmem:[%s8252 + $0x118] sm:$0xf]
      %v8324 = vld [vmem:[%s8252 + $0x11c] sm:$0xf]
      %s8325 = scalar_lea.vmem %s3, 3
      %v8326 = vld [vmem:[%s8325] sm:$0x1]
      %v8328 = vlaneseq
      %v8329 = vshrl.u32 %v8328, 7
      %v8330 = vsub.s32 0, %v8329
      %v8331 = vrot.slane %v8326, %v8330
      %v8333 = vshrl.u32 %v8044, 16
      %v8335 = vrot.slane %v8333, 6
      %v8336 = vshll.u32 %v8044, 16
      %v8338 = vrot.slane %v8336, 7
      %v8339 = vor.u32 %v8335, %v8338
      %v8340 = vshrl.u32 %v8046, 16
      %v8342 = vrot.slane %v8340, 6
      %v8343 = vshll.u32 %v8046, 16
      %v8345 = vrot.slane %v8343, 7
      %v8346 = vor.u32 %v8342, %v8345
      %v8347 = vsel %vm3922, %v8339, %v8346
      %v8348 = vshrl.u32 %v8083, 16
      %v8350 = vrot.slane %v8348, 6
      %v8351 = vshll.u32 %v8083, 16
      %v8353 = vrot.slane %v8351, 7
      %v8354 = vor.u32 %v8350, %v8353
      %v8355 = vshrl.u32 %v8086, 16
      %v8357 = vrot.slane %v8355, 6
      %v8358 = vshll.u32 %v8086, 16
      %v8360 = vrot.slane %v8358, 7
      %v8361 = vor.u32 %v8357, %v8360
      %v8362 = vsel %vm3922, %v8354, %v8361
      %v8363 = vshrl.u32 %v8140, 16
      %v8365 = vrot.slane %v8363, 6
      %v8366 = vshll.u32 %v8140, 16
      %v8368 = vrot.slane %v8366, 7
      %v8369 = vor.u32 %v8365, %v8368
      %v8370 = vshrl.u32 %v8143, 16
      %v8372 = vrot.slane %v8370, 6
      %v8373 = vshll.u32 %v8143, 16
      %v8375 = vrot.slane %v8373, 7
      %v8376 = vor.u32 %v8372, %v8375
      %v8377 = vsel %vm3922, %v8369, %v8376
      %v8378 = vshrl.u32 %v8197, 16
      %v8380 = vrot.slane %v8378, 6
      %v8381 = vshll.u32 %v8197, 16
      %v8383 = vrot.slane %v8381, 7
      %v8384 = vor.u32 %v8380, %v8383
      %v8385 = vshrl.u32 %v8200, 16
      %v8387 = vrot.slane %v8385, 6
      %v8388 = vshll.u32 %v8200, 16
      %v8390 = vrot.slane %v8388, 7
      %v8391 = vor.u32 %v8387, %v8390
      %v8392 = vsel %vm3922, %v8384, %v8391
      %v8394 = vshrl.u32 %v8006, 16
      %v8396 = vrot.slane %v8394, 6
      %v8397 = vshll.u32 %v8006, 16
      %v8399 = vrot.slane %v8397, 7
      %v8400 = vor.u32 %v8396, %v8399
      %v8402 = vshrl.u32 %v8008, 16
      %v8404 = vrot.slane %v8402, 6
      %v8405 = vshll.u32 %v8008, 16
      %v8407 = vrot.slane %v8405, 7
      %v8408 = vor.u32 %v8404, %v8407
      %v8409 = vsel %vm3922, %v8400, %v8408
      %v8410 = vshrl.u32 %v8048, 16
      %v8412 = vrot.slane %v8410, 6
      %v8413 = vshll.u32 %v8048, 16
      %v8415 = vrot.slane %v8413, 7
      %v8416 = vor.u32 %v8412, %v8415
      %v8417 = vsel %vm3922, %v8346, %v8416
      %v8418 = vshrl.u32 %v8089, 16
      %v8420 = vrot.slane %v8418, 6
      %v8421 = vshll.u32 %v8089, 16
      %v8423 = vrot.slane %v8421, 7
      %v8424 = vor.u32 %v8420, %v8423
      %v8425 = vsel %vm3922, %v8361, %v8424
      %v8426 = vshrl.u32 %v8146, 16
      %v8428 = vrot.slane %v8426, 6
      %v8429 = vshll.u32 %v8146, 16
      %v8431 = vrot.slane %v8429, 7
      %v8432 = vor.u32 %v8428, %v8431
      %v8433 = vsel %vm3922, %v8376, %v8432
      %v8434 = vshrl.u32 %v8203, 16
      %v8436 = vrot.slane %v8434, 6
      %v8437 = vshll.u32 %v8203, 16
      %v8439 = vrot.slane %v8437, 7
      %v8440 = vor.u32 %v8436, %v8439
      %v8441 = vsel %vm3922, %v8391, %v8440
      %v8443 = vshrl.u32 %v8010, 16
      %v8445 = vrot.slane %v8443, 6
      %v8446 = vshll.u32 %v8010, 16
      %v8448 = vrot.slane %v8446, 7
      %v8449 = vor.u32 %v8445, %v8448
      %v8450 = vsel %vm3922, %v8408, %v8449
      %v8451 = vshrl.u32 %v8050, 16
      %v8453 = vrot.slane %v8451, 6
      %v8454 = vshll.u32 %v8050, 16
      %v8456 = vrot.slane %v8454, 7
      %v8457 = vor.u32 %v8453, %v8456
      %v8458 = vsel %vm3922, %v8416, %v8457
      %v8459 = vshrl.u32 %v8092, 16
      %v8461 = vrot.slane %v8459, 6
      %v8462 = vshll.u32 %v8092, 16
      %v8464 = vrot.slane %v8462, 7
      %v8465 = vor.u32 %v8461, %v8464
      %v8466 = vsel %vm3922, %v8424, %v8465
      %v8467 = vshrl.u32 %v8149, 16
      %v8469 = vrot.slane %v8467, 6
      %v8470 = vshll.u32 %v8149, 16
      %v8472 = vrot.slane %v8470, 7
      %v8473 = vor.u32 %v8469, %v8472
      %v8474 = vsel %vm3922, %v8432, %v8473
      %v8475 = vshrl.u32 %v8206, 16
      %v8477 = vrot.slane %v8475, 6
      %v8478 = vshll.u32 %v8206, 16
      %v8480 = vrot.slane %v8478, 7
      %v8481 = vor.u32 %v8477, %v8480
      %v8482 = vsel %vm3922, %v8440, %v8481
      %v8484 = vshrl.u32 %v8012, 16
      %v8486 = vrot.slane %v8484, 6
      %v8487 = vshll.u32 %v8012, 16
      %v8489 = vrot.slane %v8487, 7
      %v8490 = vor.u32 %v8486, %v8489
      %v8491 = vsel %vm3922, %v8449, %v8490
      %v8492 = vshrl.u32 %v8052, 16
      %v8494 = vrot.slane %v8492, 6
      %v8495 = vshll.u32 %v8052, 16
      %v8497 = vrot.slane %v8495, 7
      %v8498 = vor.u32 %v8494, %v8497
      %v8499 = vsel %vm3922, %v8457, %v8498
      %v8500 = vshrl.u32 %v8095, 16
      %v8502 = vrot.slane %v8500, 6
      %v8503 = vshll.u32 %v8095, 16
      %v8505 = vrot.slane %v8503, 7
      %v8506 = vor.u32 %v8502, %v8505
      %v8507 = vsel %vm3922, %v8465, %v8506
      %v8508 = vshrl.u32 %v8152, 16
      %v8510 = vrot.slane %v8508, 6
      %v8511 = vshll.u32 %v8152, 16
      %v8513 = vrot.slane %v8511, 7
      %v8514 = vor.u32 %v8510, %v8513
      %v8515 = vsel %vm3922, %v8473, %v8514
      %v8516 = vshrl.u32 %v8209, 16
      %v8518 = vrot.slane %v8516, 6
      %v8519 = vshll.u32 %v8209, 16
      %v8521 = vrot.slane %v8519, 7
      %v8522 = vor.u32 %v8518, %v8521
      %v8523 = vsel %vm3922, %v8481, %v8522
      %v8525 = vshrl.u32 %v8014, 16
      %v8527 = vrot.slane %v8525, 6
      %v8528 = vshll.u32 %v8014, 16
      %v8530 = vrot.slane %v8528, 7
      %v8531 = vor.u32 %v8527, %v8530
      %v8532 = vsel %vm3922, %v8490, %v8531
      %v8533 = vshrl.u32 %v8054, 16
      %v8535 = vrot.slane %v8533, 6
      %v8536 = vshll.u32 %v8054, 16
      %v8538 = vrot.slane %v8536, 7
      %v8539 = vor.u32 %v8535, %v8538
      %v8540 = vsel %vm3922, %v8498, %v8539
      %v8541 = vshrl.u32 %v8098, 16
      %v8543 = vrot.slane %v8541, 6
      %v8544 = vshll.u32 %v8098, 16
      %v8546 = vrot.slane %v8544, 7
      %v8547 = vor.u32 %v8543, %v8546
      %v8548 = vsel %vm3922, %v8506, %v8547
      %v8549 = vshrl.u32 %v8155, 16
      %v8551 = vrot.slane %v8549, 6
      %v8552 = vshll.u32 %v8155, 16
      %v8554 = vrot.slane %v8552, 7
      %v8555 = vor.u32 %v8551, %v8554
      %v8556 = vsel %vm3922, %v8514, %v8555
      %v8557 = vshrl.u32 %v8212, 16
      %v8559 = vrot.slane %v8557, 6
      %v8560 = vshll.u32 %v8212, 16
      %v8562 = vrot.slane %v8560, 7
      %v8563 = vor.u32 %v8559, %v8562
      %v8564 = vsel %vm3922, %v8522, %v8563
      %v8566 = vshrl.u32 %v8016, 16
      %v8568 = vrot.slane %v8566, 6
      %v8569 = vshll.u32 %v8016, 16
      %v8571 = vrot.slane %v8569, 7
      %v8572 = vor.u32 %v8568, %v8571
      %v8573 = vsel %vm3922, %v8531, %v8572
      %v8574 = vshrl.u32 %v8056, 16
      %v8576 = vrot.slane %v8574, 6
      %v8577 = vshll.u32 %v8056, 16
      %v8579 = vrot.slane %v8577, 7
      %v8580 = vor.u32 %v8576, %v8579
      %v8581 = vsel %vm3922, %v8539, %v8580
      %v8582 = vshrl.u32 %v8101, 16
      %v8584 = vrot.slane %v8582, 6
      %v8585 = vshll.u32 %v8101, 16
      %v8587 = vrot.slane %v8585, 7
      %v8588 = vor.u32 %v8584, %v8587
      %v8589 = vsel %vm3922, %v8547, %v8588
      %v8590 = vshrl.u32 %v8158, 16
      %v8592 = vrot.slane %v8590, 6
      %v8593 = vshll.u32 %v8158, 16
      %v8595 = vrot.slane %v8593, 7
      %v8596 = vor.u32 %v8592, %v8595
      %v8597 = vsel %vm3922, %v8555, %v8596
      %v8598 = vshrl.u32 %v8215, 16
      %v8600 = vrot.slane %v8598, 6
      %v8601 = vshll.u32 %v8215, 16
      %v8603 = vrot.slane %v8601, 7
      %v8604 = vor.u32 %v8600, %v8603
      %v8605 = vsel %vm3922, %v8563, %v8604
      %v8607 = vshrl.u32 %v8018, 16
      %v8609 = vrot.slane %v8607, 6
      %v8610 = vshll.u32 %v8018, 16
      %v8612 = vrot.slane %v8610, 7
      %v8613 = vor.u32 %v8609, %v8612
      %v8614 = vsel %vm3922, %v8572, %v8613
      %v8615 = vshrl.u32 %v8058, 16
      %v8617 = vrot.slane %v8615, 6
      %v8618 = vshll.u32 %v8058, 16
      %v8620 = vrot.slane %v8618, 7
      %v8621 = vor.u32 %v8617, %v8620
      %v8622 = vsel %vm3922, %v8580, %v8621
      %v8623 = vshrl.u32 %v8104, 16
      %v8625 = vrot.slane %v8623, 6
      %v8626 = vshll.u32 %v8104, 16
      %v8628 = vrot.slane %v8626, 7
      %v8629 = vor.u32 %v8625, %v8628
      %v8630 = vsel %vm3922, %v8588, %v8629
      %v8631 = vshrl.u32 %v8161, 16
      %v8633 = vrot.slane %v8631, 6
      %v8634 = vshll.u32 %v8161, 16
      %v8636 = vrot.slane %v8634, 7
      %v8637 = vor.u32 %v8633, %v8636
      %v8638 = vsel %vm3922, %v8596, %v8637
      %v8639 = vshrl.u32 %v8218, 16
      %v8641 = vrot.slane %v8639, 6
      %v8642 = vshll.u32 %v8218, 16
      %v8644 = vrot.slane %v8642, 7
      %v8645 = vor.u32 %v8641, %v8644
      %v8646 = vsel %vm3922, %v8604, %v8645
      %v8648 = vshrl.u32 %v8020, 16
      %v8650 = vrot.slane %v8648, 6
      %v8651 = vshll.u32 %v8020, 16
      %v8653 = vrot.slane %v8651, 7
      %v8654 = vor.u32 %v8650, %v8653
      %v8655 = vsel %vm3922, %v8613, %v8654
      %v8656 = vshrl.u32 %v8060, 16
      %v8658 = vrot.slane %v8656, 6
      %v8659 = vshll.u32 %v8060, 16
      %v8661 = vrot.slane %v8659, 7
      %v8662 = vor.u32 %v8658, %v8661
      %v8663 = vsel %vm3922, %v8621, %v8662
      %v8664 = vshrl.u32 %v8107, 16
      %v8666 = vrot.slane %v8664, 6
      %v8667 = vshll.u32 %v8107, 16
      %v8669 = vrot.slane %v8667, 7
      %v8670 = vor.u32 %v8666, %v8669
      %v8671 = vsel %vm3922, %v8629, %v8670
      %v8672 = vshrl.u32 %v8164, 16
      %v8674 = vrot.slane %v8672, 6
      %v8675 = vshll.u32 %v8164, 16
      %v8677 = vrot.slane %v8675, 7
      %v8678 = vor.u32 %v8674, %v8677
      %v8679 = vsel %vm3922, %v8637, %v8678
      %v8680 = vshrl.u32 %v8221, 16
      %v8682 = vrot.slane %v8680, 6
      %v8683 = vshll.u32 %v8221, 16
      %v8685 = vrot.slane %v8683, 7
      %v8686 = vor.u32 %v8682, %v8685
      %v8687 = vsel %vm3922, %v8645, %v8686
      %v8689 = vshrl.u32 %v8022, 16
      %v8691 = vrot.slane %v8689, 6
      %v8692 = vshll.u32 %v8022, 16
      %v8694 = vrot.slane %v8692, 7
      %v8695 = vor.u32 %v8691, %v8694
      %v8696 = vsel %vm3922, %v8654, %v8695
      %v8697 = vshrl.u32 %v8062, 16
      %v8699 = vrot.slane %v8697, 6
      %v8700 = vshll.u32 %v8062, 16
      %v8702 = vrot.slane %v8700, 7
      %v8703 = vor.u32 %v8699, %v8702
      %v8704 = vsel %vm3922, %v8662, %v8703
      %v8705 = vshrl.u32 %v8110, 16
      %v8707 = vrot.slane %v8705, 6
      %v8708 = vshll.u32 %v8110, 16
      %v8710 = vrot.slane %v8708, 7
      %v8711 = vor.u32 %v8707, %v8710
      %v8712 = vsel %vm3922, %v8670, %v8711
      %v8713 = vshrl.u32 %v8167, 16
      %v8715 = vrot.slane %v8713, 6
      %v8716 = vshll.u32 %v8167, 16
      %v8718 = vrot.slane %v8716, 7
      %v8719 = vor.u32 %v8715, %v8718
      %v8720 = vsel %vm3922, %v8678, %v8719
      %v8721 = vshrl.u32 %v8224, 16
      %v8723 = vrot.slane %v8721, 6
      %v8724 = vshll.u32 %v8224, 16
      %v8726 = vrot.slane %v8724, 7
      %v8727 = vor.u32 %v8723, %v8726
      %v8728 = vsel %vm3922, %v8686, %v8727
      %v8730 = vshrl.u32 %v8024, 16
      %v8732 = vrot.slane %v8730, 6
      %v8733 = vshll.u32 %v8024, 16
      %v8735 = vrot.slane %v8733, 7
      %v8736 = vor.u32 %v8732, %v8735
      %v8737 = vsel %vm3922, %v8695, %v8736
      %v8738 = vshrl.u32 %v8064, 16
      %v8740 = vrot.slane %v8738, 6
      %v8741 = vshll.u32 %v8064, 16
      %v8743 = vrot.slane %v8741, 7
      %v8744 = vor.u32 %v8740, %v8743
      %v8745 = vsel %vm3922, %v8703, %v8744
      %v8746 = vshrl.u32 %v8113, 16
      %v8748 = vrot.slane %v8746, 6
      %v8749 = vshll.u32 %v8113, 16
      %v8751 = vrot.slane %v8749, 7
      %v8752 = vor.u32 %v8748, %v8751
      %v8753 = vsel %vm3922, %v8711, %v8752
      %v8754 = vshrl.u32 %v8170, 16
      %v8756 = vrot.slane %v8754, 6
      %v8757 = vshll.u32 %v8170, 16
      %v8759 = vrot.slane %v8757, 7
      %v8760 = vor.u32 %v8756, %v8759
      %v8761 = vsel %vm3922, %v8719, %v8760
      %v8762 = vshrl.u32 %v8227, 16
      %v8764 = vrot.slane %v8762, 6
      %v8765 = vshll.u32 %v8227, 16
      %v8767 = vrot.slane %v8765, 7
      %v8768 = vor.u32 %v8764, %v8767
      %v8769 = vsel %vm3922, %v8727, %v8768
      %v8771 = vshrl.u32 %v8026, 16
      %v8773 = vrot.slane %v8771, 6
      %v8774 = vshll.u32 %v8026, 16
      %v8776 = vrot.slane %v8774, 7
      %v8777 = vor.u32 %v8773, %v8776
      %v8778 = vsel %vm3922, %v8736, %v8777
      %v8779 = vshrl.u32 %v8066, 16
      %v8781 = vrot.slane %v8779, 6
      %v8782 = vshll.u32 %v8066, 16
      %v8784 = vrot.slane %v8782, 7
      %v8785 = vor.u32 %v8781, %v8784
      %v8786 = vsel %vm3922, %v8744, %v8785
      %v8787 = vshrl.u32 %v8116, 16
      %v8789 = vrot.slane %v8787, 6
      %v8790 = vshll.u32 %v8116, 16
      %v8792 = vrot.slane %v8790, 7
      %v8793 = vor.u32 %v8789, %v8792
      %v8794 = vsel %vm3922, %v8752, %v8793
      %v8795 = vshrl.u32 %v8173, 16
      %v8797 = vrot.slane %v8795, 6
      %v8798 = vshll.u32 %v8173, 16
      %v8800 = vrot.slane %v8798, 7
      %v8801 = vor.u32 %v8797, %v8800
      %v8802 = vsel %vm3922, %v8760, %v8801
      %v8803 = vshrl.u32 %v8230, 16
      %v8805 = vrot.slane %v8803, 6
      %v8806 = vshll.u32 %v8230, 16
      %v8808 = vrot.slane %v8806, 7
      %v8809 = vor.u32 %v8805, %v8808
      %v8810 = vsel %vm3922, %v8768, %v8809
      %v8812 = vshrl.u32 %v8028, 16
      %v8814 = vrot.slane %v8812, 6
      %v8815 = vshll.u32 %v8028, 16
      %v8817 = vrot.slane %v8815, 7
      %v8818 = vor.u32 %v8814, %v8817
      %v8819 = vsel %vm3922, %v8777, %v8818
      %v8820 = vshrl.u32 %v8068, 16
      %v8822 = vrot.slane %v8820, 6
      %v8823 = vshll.u32 %v8068, 16
      %v8825 = vrot.slane %v8823, 7
      %v8826 = vor.u32 %v8822, %v8825
      %v8827 = vsel %vm3922, %v8785, %v8826
      %v8828 = vshrl.u32 %v8119, 16
      %v8830 = vrot.slane %v8828, 6
      %v8831 = vshll.u32 %v8119, 16
      %v8833 = vrot.slane %v8831, 7
      %v8834 = vor.u32 %v8830, %v8833
      %v8835 = vsel %vm3922, %v8793, %v8834
      %v8836 = vshrl.u32 %v8176, 16
      %v8838 = vrot.slane %v8836, 6
      %v8839 = vshll.u32 %v8176, 16
      %v8841 = vrot.slane %v8839, 7
      %v8842 = vor.u32 %v8838, %v8841
      %v8843 = vsel %vm3922, %v8801, %v8842
      %v8844 = vshrl.u32 %v8233, 16
      %v8846 = vrot.slane %v8844, 6
      %v8847 = vshll.u32 %v8233, 16
      %v8849 = vrot.slane %v8847, 7
      %v8850 = vor.u32 %v8846, %v8849
      %v8851 = vsel %vm3922, %v8809, %v8850
      %v8853 = vshrl.u32 %v8030, 16
      %v8855 = vrot.slane %v8853, 6
      %v8856 = vshll.u32 %v8030, 16
      %v8858 = vrot.slane %v8856, 7
      %v8859 = vor.u32 %v8855, %v8858
      %v8860 = vsel %vm3922, %v8818, %v8859
      %v8861 = vshrl.u32 %v8070, 16
      %v8863 = vrot.slane %v8861, 6
      %v8864 = vshll.u32 %v8070, 16
      %v8866 = vrot.slane %v8864, 7
      %v8867 = vor.u32 %v8863, %v8866
      %v8868 = vsel %vm3922, %v8826, %v8867
      %v8869 = vshrl.u32 %v8122, 16
      %v8871 = vrot.slane %v8869, 6
      %v8872 = vshll.u32 %v8122, 16
      %v8874 = vrot.slane %v8872, 7
      %v8875 = vor.u32 %v8871, %v8874
      %v8876 = vsel %vm3922, %v8834, %v8875
      %v8877 = vshrl.u32 %v8179, 16
      %v8879 = vrot.slane %v8877, 6
      %v8880 = vshll.u32 %v8179, 16
      %v8882 = vrot.slane %v8880, 7
      %v8883 = vor.u32 %v8879, %v8882
      %v8884 = vsel %vm3922, %v8842, %v8883
      %v8885 = vshrl.u32 %v8236, 16
      %v8887 = vrot.slane %v8885, 6
      %v8888 = vshll.u32 %v8236, 16
      %v8890 = vrot.slane %v8888, 7
      %v8891 = vor.u32 %v8887, %v8890
      %v8892 = vsel %vm3922, %v8850, %v8891
      %v8894 = vshrl.u32 %v8032, 16
      %v8896 = vrot.slane %v8894, 6
      %v8897 = vshll.u32 %v8032, 16
      %v8899 = vrot.slane %v8897, 7
      %v8900 = vor.u32 %v8896, %v8899
      %v8901 = vsel %vm3922, %v8859, %v8900
      %v8902 = vshrl.u32 %v8072, 16
      %v8904 = vrot.slane %v8902, 6
      %v8905 = vshll.u32 %v8072, 16
      %v8907 = vrot.slane %v8905, 7
      %v8908 = vor.u32 %v8904, %v8907
      %v8909 = vsel %vm3922, %v8867, %v8908
      %v8910 = vshrl.u32 %v8125, 16
      %v8912 = vrot.slane %v8910, 6
      %v8913 = vshll.u32 %v8125, 16
      %v8915 = vrot.slane %v8913, 7
      %v8916 = vor.u32 %v8912, %v8915
      %v8917 = vsel %vm3922, %v8875, %v8916
      %v8918 = vshrl.u32 %v8182, 16
      %v8920 = vrot.slane %v8918, 6
      %v8921 = vshll.u32 %v8182, 16
      %v8923 = vrot.slane %v8921, 7
      %v8924 = vor.u32 %v8920, %v8923
      %v8925 = vsel %vm3922, %v8883, %v8924
      %v8926 = vshrl.u32 %v8239, 16
      %v8928 = vrot.slane %v8926, 6
      %v8929 = vshll.u32 %v8239, 16
      %v8931 = vrot.slane %v8929, 7
      %v8932 = vor.u32 %v8928, %v8931
      %v8933 = vsel %vm3922, %v8891, %v8932
      %v8935 = vshrl.u32 %v8034, 16
      %v8937 = vrot.slane %v8935, 6
      %v8938 = vshll.u32 %v8034, 16
      %v8940 = vrot.slane %v8938, 7
      %v8941 = vor.u32 %v8937, %v8940
      %v8942 = vsel %vm3922, %v8900, %v8941
      %v8943 = vshrl.u32 %v8074, 16
      %v8945 = vrot.slane %v8943, 6
      %v8946 = vshll.u32 %v8074, 16
      %v8948 = vrot.slane %v8946, 7
      %v8949 = vor.u32 %v8945, %v8948
      %v8950 = vsel %vm3922, %v8908, %v8949
      %v8951 = vshrl.u32 %v8128, 16
      %v8953 = vrot.slane %v8951, 6
      %v8954 = vshll.u32 %v8128, 16
      %v8956 = vrot.slane %v8954, 7
      %v8957 = vor.u32 %v8953, %v8956
      %v8958 = vsel %vm3922, %v8916, %v8957
      %v8959 = vshrl.u32 %v8185, 16
      %v8961 = vrot.slane %v8959, 6
      %v8962 = vshll.u32 %v8185, 16
      %v8964 = vrot.slane %v8962, 7
      %v8965 = vor.u32 %v8961, %v8964
      %v8966 = vsel %vm3922, %v8924, %v8965
      %v8967 = vshrl.u32 %v8242, 16
      %v8969 = vrot.slane %v8967, 6
      %v8970 = vshll.u32 %v8242, 16
      %v8972 = vrot.slane %v8970, 7
      %v8973 = vor.u32 %v8969, %v8972
      %v8974 = vsel %vm3922, %v8932, %v8973
      %v8976 = vshrl.u32 %v8036, 16
      %v8978 = vrot.slane %v8976, 6
      %v8979 = vshll.u32 %v8036, 16
      %v8981 = vrot.slane %v8979, 7
      %v8982 = vor.u32 %v8978, %v8981
      %v8983 = vsel %vm3922, %v8941, %v8982
      %v8984 = vshrl.u32 %v8076, 16
      %v8986 = vrot.slane %v8984, 6
      %v8987 = vshll.u32 %v8076, 16
      %v8989 = vrot.slane %v8987, 7
      %v8990 = vor.u32 %v8986, %v8989
      %v8991 = vsel %vm3922, %v8949, %v8990
      %v8992 = vshrl.u32 %v8131, 16
      %v8994 = vrot.slane %v8992, 6
      %v8995 = vshll.u32 %v8131, 16
      %v8997 = vrot.slane %v8995, 7
      %v8998 = vor.u32 %v8994, %v8997
      %v8999 = vsel %vm3922, %v8957, %v8998
      %v9000 = vshrl.u32 %v8188, 16
      %v9002 = vrot.slane %v9000, 6
      %v9003 = vshll.u32 %v8188, 16
      %v9005 = vrot.slane %v9003, 7
      %v9006 = vor.u32 %v9002, %v9005
      %v9007 = vsel %vm3922, %v8965, %v9006
      %v9008 = vshrl.u32 %v8245, 16
      %v9010 = vrot.slane %v9008, 6
      %v9011 = vshll.u32 %v8245, 16
      %v9013 = vrot.slane %v9011, 7
      %v9014 = vor.u32 %v9010, %v9013
      %v9015 = vsel %vm3922, %v8973, %v9014
      %v9017 = vshrl.u32 %v8038, 16
      %v9019 = vrot.slane %v9017, 6
      %v9020 = vshll.u32 %v8038, 16
      %v9022 = vrot.slane %v9020, 7
      %v9023 = vor.u32 %v9019, %v9022
      %v9024 = vsel %vm3922, %v8982, %v9023
      %v9025 = vshrl.u32 %v8078, 16
      %v9027 = vrot.slane %v9025, 6
      %v9028 = vshll.u32 %v8078, 16
      %v9030 = vrot.slane %v9028, 7
      %v9031 = vor.u32 %v9027, %v9030
      %v9032 = vsel %vm3922, %v8990, %v9031
      %v9033 = vshrl.u32 %v8134, 16
      %v9035 = vrot.slane %v9033, 6
      %v9036 = vshll.u32 %v8134, 16
      %v9038 = vrot.slane %v9036, 7
      %v9039 = vor.u32 %v9035, %v9038
      %v9040 = vsel %vm3922, %v8998, %v9039
      %v9041 = vshrl.u32 %v8191, 16
      %v9043 = vrot.slane %v9041, 6
      %v9044 = vshll.u32 %v8191, 16
      %v9046 = vrot.slane %v9044, 7
      %v9047 = vor.u32 %v9043, %v9046
      %v9048 = vsel %vm3922, %v9006, %v9047
      %v9049 = vshrl.u32 %v8248, 16
      %v9051 = vrot.slane %v9049, 6
      %v9052 = vshll.u32 %v8248, 16
      %v9054 = vrot.slane %v9052, 7
      %v9055 = vor.u32 %v9051, %v9054
      %v9056 = vsel %vm3922, %v9014, %v9055
      %v9058 = vshrl.u32 %v8040, 16
      %v9060 = vrot.slane %v9058, 6
      %v9061 = vshll.u32 %v8040, 16
      %v9063 = vrot.slane %v9061, 7
      %v9064 = vor.u32 %v9060, %v9063
      %v9065 = vsel %vm3922, %v9023, %v9064
      %v9066 = vshrl.u32 %v8080, 16
      %v9068 = vrot.slane %v9066, 6
      %v9069 = vshll.u32 %v8080, 16
      %v9071 = vrot.slane %v9069, 7
      %v9072 = vor.u32 %v9068, %v9071
      %v9073 = vsel %vm3922, %v9031, %v9072
      %v9074 = vshrl.u32 %v8137, 16
      %v9076 = vrot.slane %v9074, 6
      %v9077 = vshll.u32 %v8137, 16
      %v9079 = vrot.slane %v9077, 7
      %v9080 = vor.u32 %v9076, %v9079
      %v9081 = vsel %vm3922, %v9039, %v9080
      %v9082 = vshrl.u32 %v8194, 16
      %v9084 = vrot.slane %v9082, 6
      %v9085 = vshll.u32 %v8194, 16
      %v9087 = vrot.slane %v9085, 7
      %v9088 = vor.u32 %v9084, %v9087
      %v9089 = vsel %vm3922, %v9047, %v9088
      %v9090 = vshrl.u32 %v8251, 16
      %v9092 = vrot.slane %v9090, 6
      %v9093 = vshll.u32 %v8251, 16
      %v9095 = vrot.slane %v9093, 7
      %v9096 = vor.u32 %v9092, %v9095
      %v9097 = vsel %vm3922, %v9055, %v9096
      %v9099 = vshrl.u32 %v8042, 16
      %v9101 = vrot.slane %v9099, 6
      %v9102 = vshll.u32 %v8042, 16
      %v9104 = vrot.slane %v9102, 7
      %v9105 = vor.u32 %v9101, %v9104
      %v9106 = vsel %vm3922, %v9064, %v9105
      %v9251 = vunpack.c.l.b16 %v8253
      %v9252 = vunpack.c.l.b16 %v8254
      %v9253 = vunpack.c.l.b16 %v8255
      %v9254 = vunpack.c.l.b16 %v8256
      %v9255 = vunpack.c.l.b16 %v8257
      %v9256 = vunpack.c.l.b16 %v8258
      %v9257 = vunpack.c.l.b16 %v8259
      %v9258 = vunpack.c.l.b16 %v8260
      %v9259 = vunpack.c.l.b16 %v8261
      %v9260 = vunpack.c.l.b16 %v8262
      %v9261 = vunpack.c.l.b16 %v8263
      %v9262 = vunpack.c.l.b16 %v8264
      %v9263 = vunpack.c.l.b16 %v8265
      %v9264 = vunpack.c.l.b16 %v8266
      %v9265 = vunpack.c.l.b16 %v8267
      %v9266 = vunpack.c.l.b16 %v8268
      %v9267 = vunpack.c.l.b16 %v8269
      %v9268 = vunpack.c.l.b16 %v8270
      %v9269 = vunpack.c.l.b16 %v8271
      %v9270 = vunpack.c.l.b16 %v8272
      %v9271 = vunpack.c.l.b16 %v8273
      %v9272 = vunpack.c.l.b16 %v8274
      %v9273 = vunpack.c.l.b16 %v8275
      %v9274 = vunpack.c.l.b16 %v8276
      %v9275 = vunpack.c.l.b16 %v8277
      %v9276 = vunpack.c.l.b16 %v8278
      %v9277 = vunpack.c.l.b16 %v8279
      %v9278 = vunpack.c.l.b16 %v8280
      %v9279 = vunpack.c.l.b16 %v8281
      %v9280 = vunpack.c.l.b16 %v8282
      %v9281 = vunpack.c.l.b16 %v8283
      %v9282 = vunpack.c.l.b16 %v8284
      %v9283 = vunpack.c.l.b16 %v8285
      %v9284 = vunpack.c.l.b16 %v8286
      %v9285 = vunpack.c.l.b16 %v8287
      %v9286 = vunpack.c.l.b16 %v8288
      %v9287 = vunpack.c.l.b16 %v8289
      %v9288 = vunpack.c.l.b16 %v8290
      %v9289 = vunpack.c.l.b16 %v8291
      %v9290 = vunpack.c.l.b16 %v8292
      %v9291 = vunpack.c.l.b16 %v8293
      %v9292 = vunpack.c.l.b16 %v8294
      %v9293 = vunpack.c.l.b16 %v8295
      %v9294 = vunpack.c.l.b16 %v8296
      %v9295 = vunpack.c.l.b16 %v8297
      %v9296 = vunpack.c.l.b16 %v8298
      %v9297 = vunpack.c.l.b16 %v8299
      %v9298 = vunpack.c.l.b16 %v8300
      %v9299 = vunpack.c.l.b16 %v8301
      %v9300 = vunpack.c.l.b16 %v8302
      %v9301 = vunpack.c.l.b16 %v8303
      %v9302 = vunpack.c.l.b16 %v8304
      %v9303 = vunpack.c.l.b16 %v8305
      %v9304 = vunpack.c.l.b16 %v8306
      %v9305 = vunpack.c.l.b16 %v8307
      %v9306 = vunpack.c.l.b16 %v8308
      %v9307 = vunpack.c.l.b16 %v8309
      %v9308 = vunpack.c.l.b16 %v8310
      %v9309 = vunpack.c.l.b16 %v8311
      %v9310 = vunpack.c.l.b16 %v8312
      %v9311 = vunpack.c.l.b16 %v8313
      %v9312 = vunpack.c.l.b16 %v8314
      %v9313 = vunpack.c.l.b16 %v8315
      %v9314 = vunpack.c.l.b16 %v8316
      %v9315 = vunpack.c.l.b16 %v8317
      %v9316 = vunpack.c.l.b16 %v8318
      %v9317 = vunpack.c.l.b16 %v8319
      %v9318 = vunpack.c.l.b16 %v8320
      %v9319 = vunpack.c.l.b16 %v8321
      %v9320 = vunpack.c.l.b16 %v8322
      %v9321 = vunpack.c.l.b16 %v8323
      %v9322 = vunpack.c.l.b16 %v8324
      %v9323 = vpack.c.b16 %v9252, %v9251
      %v9324 = vpack.c.b16 %v9254, %v9253
      %v9325 = vpack.c.b16 %v9256, %v9255
      %v9326 = vpack.c.b16 %v9258, %v9257
      %v9327 = vpack.c.b16 %v9260, %v9259
      %v9328 = vpack.c.b16 %v9262, %v9261
      %v9329 = vpack.c.b16 %v9264, %v9263
      %v9330 = vpack.c.b16 %v9266, %v9265
      %v9331 = vpack.c.b16 %v9268, %v9267
      %v9332 = vpack.c.b16 %v9270, %v9269
      %v9333 = vpack.c.b16 %v9272, %v9271
      %v9334 = vpack.c.b16 %v9274, %v9273
      %v9335 = vpack.c.b16 %v9276, %v9275
      %v9336 = vpack.c.b16 %v9278, %v9277
      %v9337 = vpack.c.b16 %v9280, %v9279
      %v9338 = vpack.c.b16 %v9282, %v9281
      %v9339 = vpack.c.b16 %v9284, %v9283
      %v9340 = vpack.c.b16 %v9286, %v9285
      %v9341 = vpack.c.b16 %v9288, %v9287
      %v9342 = vpack.c.b16 %v9290, %v9289
      %v9343 = vpack.c.b16 %v9292, %v9291
      %v9344 = vpack.c.b16 %v9294, %v9293
      %v9345 = vpack.c.b16 %v9296, %v9295
      %v9346 = vpack.c.b16 %v9298, %v9297
      %v9347 = vpack.c.b16 %v9300, %v9299
      %v9348 = vpack.c.b16 %v9302, %v9301
      %v9349 = vpack.c.b16 %v9304, %v9303
      %v9350 = vpack.c.b16 %v9306, %v9305
      %v9351 = vpack.c.b16 %v9308, %v9307
      %v9352 = vpack.c.b16 %v9310, %v9309
      %v9353 = vpack.c.b16 %v9312, %v9311
      %v9354 = vpack.c.b16 %v9314, %v9313
      %v9355 = vpack.c.b16 %v9316, %v9315
      %v9356 = vpack.c.b16 %v9318, %v9317
      %v9357 = vpack.c.b16 %v9320, %v9319
      %v9358 = vpack.c.b16 %v9322, %v9321
      %v9396 = vsel %vm219, %v8409, 0
      %v9399 = vsel %vm219, %v8450, 0
      %v9402 = vsel %vm219, %v8491, 0
      %v9405 = vsel %vm219, %v8532, 0
      %v9408 = vsel %vm219, %v8573, 0
      %v9411 = vsel %vm219, %v8614, 0
      %v9414 = vsel %vm219, %v8655, 0
      %v9417 = vsel %vm219, %v8696, 0
      %v9420 = vsel %vm219, %v8737, 0
      %v9423 = vsel %vm219, %v8778, 0
      %v9426 = vsel %vm219, %v8819, 0
      %v9429 = vsel %vm219, %v8860, 0
      %v9432 = vsel %vm219, %v8901, 0
      %v9435 = vsel %vm219, %v8942, 0
      %v9438 = vsel %vm219, %v8983, 0
      %v9441 = vsel %vm219, %v9024, 0
      %v9444 = vsel %vm219, %v9065, 0
      %v9447 = vsel %vm219, %v9106, 0
      %9449 = vmatprep.subr.bf16.mxu0 0
      %9450 = vmatpush1.bf16.msra.mxu0 %v9323
      %9451 = vmatprep.subr.bf16.mxu0 0
      %9452 = vmatpush1.bf16.msra.mxu0 %v9324
      %9453 = vmatprep.subr.bf16.mxu0 0
      %9454 = vmatpush1.bf16.msra.mxu0 %v9325
      %9455 = vmatprep.subr.bf16.mxu0 0
      %9456 = vmatpush1.bf16.msra.mxu0 %v9326
      %9457 = vmatprep.subr.bf16.mxu0 0
      %9458 = vmatpush1.bf16.msra.mxu0 %v9327
      %9459 = vmatprep.subr.bf16.mxu0 0
      %9460 = vmatpush1.bf16.msra.mxu0 %v9328
      %9461 = vmatprep.subr.bf16.mxu0 0
      %9462 = vmatpush1.bf16.msra.mxu0 %v9329
      %9463 = vmatprep.subr.bf16.mxu0 0
      %9464 = vmatpush1.bf16.msra.mxu0 %v9330
      %9465 = vmatprep.subr.bf16.mxu0 0
      %9466 = vmatpush1.bf16.msra.mxu0 %v9331
      %9467 = vmatprep.subr.bf16.mxu0 0
      %9468 = vmatpush1.bf16.msra.mxu0 %v9332
      %9469 = vmatprep.subr.bf16.mxu0 0
      %9470 = vmatpush1.bf16.msra.mxu0 %v9333
      %9471 = vmatprep.subr.bf16.mxu0 0
      %9472 = vmatpush1.bf16.msra.mxu0 %v9334
      %9473 = vmatprep.subr.bf16.mxu0 0
      %9474 = vmatpush1.bf16.msra.mxu0 %v9335
      %9475 = vmatprep.subr.bf16.mxu0 0
      %9476 = vmatpush1.bf16.msra.mxu0 %v9336
      %9477 = vmatprep.subr.bf16.mxu0 0
      %9478 = vmatpush1.bf16.msra.mxu0 %v9337
      %9479 = vmatprep.subr.bf16.mxu0 0
      %9480 = vmatpush1.bf16.msra.mxu0 %v9338
      %9481 = vmatprep.mubr.bf16.mxu0 %v8362
      %9482 = vmatmul.mubr.bf16.gmra.mrb[0].mxu0 %v8347
      %v9483 = vpop.f32.mrb[0].mxu0
      %v9484 = vadd.f32 %v8331, %v9483
      %v9485 = vpop.f32.mrb[0].mxu0
      %v9486 = vpop.f32.mrb[0].mxu0
      %v9487 = vadd.f32 %v8331, %v9486
      %v9488 = vpop.f32.mrb[0].mxu0
      %9489 = vmatprep.mubr.bf16.mxu0 %v8425
      %9490 = vmatmul.mubr.bf16.gmra.mrb[0].mxu0 %v8417
      %v9491 = vpop.f32.mrb[0].mxu0
      %v9492 = vadd.f32 %v8331, %v9491
      %v9493 = vpop.f32.mrb[0].mxu0
      %v9494 = vpop.f32.mrb[0].mxu0
      %v9495 = vadd.f32 %v8331, %v9494
      %v9496 = vpop.f32.mrb[0].mxu0
      %9497 = vmatprep.mubr.bf16.mxu0 %v8466
      %9498 = vmatmul.mubr.bf16.gmra.mrb[0].mxu0 %v8458
      %v9499 = vpop.f32.mrb[0].mxu0
      %v9500 = vadd.f32 %v8331, %v9499
      %v9501 = vpop.f32.mrb[0].mxu0
      %v9502 = vpop.f32.mrb[0].mxu0
      %v9503 = vadd.f32 %v8331, %v9502
      %v9504 = vpop.f32.mrb[0].mxu0
      %9505 = vmatprep.mubr.bf16.mxu0 %v8507
      %9506 = vmatmul.mubr.bf16.gmra.mrb[0].mxu0 %v8499
      %v9507 = vpop.f32.mrb[0].mxu0
      %v9508 = vadd.f32 %v8331, %v9507
      %v9509 = vpop.f32.mrb[0].mxu0
      %v9510 = vpop.f32.mrb[0].mxu0
      %v9511 = vadd.f32 %v8331, %v9510
      %v9512 = vpop.f32.mrb[0].mxu0
      %9513 = vmatprep.mubr.bf16.mxu0 %v8548
      %9514 = vmatmul.mubr.bf16.gmra.mrb[0].mxu0 %v8540
      %v9515 = vpop.f32.mrb[0].mxu0
      %v9516 = vadd.f32 %v8331, %v9515
      %v9517 = vpop.f32.mrb[0].mxu0
      %v9518 = vpop.f32.mrb[0].mxu0
      %v9519 = vadd.f32 %v8331, %v9518
      %v9520 = vpop.f32.mrb[0].mxu0
      %9521 = vmatprep.mubr.bf16.mxu0 %v8589
      %9522 = vmatmul.mubr.bf16.gmra.mrb[0].mxu0 %v8581
      %v9523 = vpop.f32.mrb[0].mxu0
      %v9524 = vadd.f32 %v8331, %v9523
      %v9525 = vpop.f32.mrb[0].mxu0
      %v9526 = vpop.f32.mrb[0].mxu0
      %v9527 = vadd.f32 %v8331, %v9526
      %v9528 = vpop.f32.mrb[0].mxu0
      %9529 = vmatprep.mubr.bf16.mxu0 %v8630
      %9530 = vmatmul.mubr.bf16.gmra.mrb[0].mxu0 %v8622
      %v9531 = vpop.f32.mrb[0].mxu0
      %v9532 = vadd.f32 %v8331, %v9531
      %v9533 = vpop.f32.mrb[0].mxu0
      %v9534 = vpop.f32.mrb[0].mxu0
      %v9535 = vadd.f32 %v8331, %v9534
      %v9536 = vpop.f32.mrb[0].mxu0
      %9537 = vmatprep.mubr.bf16.mxu0 %v8671
      %9538 = vmatmul.mubr.bf16.gmra.mrb[0].mxu0 %v8663
      %v9539 = vpop.f32.mrb[0].mxu0
      %v9540 = vadd.f32 %v8331, %v9539
      %v9541 = vpop.f32.mrb[0].mxu0
      %v9542 = vpop.f32.mrb[0].mxu0
      %v9543 = vadd.f32 %v8331, %v9542
      %v9544 = vpop.f32.mrb[0].mxu0
      %9545 = vmatprep.mubr.bf16.mxu0 %v8712
      %9546 = vmatmul.mubr.bf16.gmra.mrb[0].mxu0 %v8704
      %v9547 = vpop.f32.mrb[0].mxu0
      %v9548 = vadd.f32 %v8331, %v9547
      %v9549 = vpop.f32.mrb[0].mxu0
      %v9550 = vpop.f32.mrb[0].mxu0
      %v9551 = vadd.f32 %v8331, %v9550
      %v9552 = vpop.f32.mrb[0].mxu0
      %9553 = vmatprep.mubr.bf16.mxu0 %v8753
      %9554 = vmatmul.mubr.bf16.gmra.mrb[0].mxu0 %v8745
      %v9555 = vpop.f32.mrb[0].mxu0
      %v9556 = vadd.f32 %v8331, %v9555
      %v9557 = vpop.f32.mrb[0].mxu0
      %v9558 = vpop.f32.mrb[0].mxu0
      %v9559 = vadd.f32 %v8331, %v9558
      %v9560 = vpop.f32.mrb[0].mxu0
      %9561 = vmatprep.mubr.bf16.mxu0 %v8794
      %9562 = vmatmul.mubr.bf16.gmra.mrb[0].mxu0 %v8786
      %v9563 = vpop.f32.mrb[0].mxu0
      %v9564 = vadd.f32 %v8331, %v9563
      %v9565 = vpop.f32.mrb[0].mxu0
      %v9566 = vpop.f32.mrb[0].mxu0
      %v9567 = vadd.f32 %v8331, %v9566
      %v9568 = vpop.f32.mrb[0].mxu0
      %9569 = vmatprep.mubr.bf16.mxu0 %v8835
      %9570 = vmatmul.mubr.bf16.gmra.mrb[0].mxu0 %v8827
      %v9571 = vpop.f32.mrb[0].mxu0
      %v9572 = vadd.f32 %v8331, %v9571
      %v9573 = vpop.f32.mrb[0].mxu0
      %v9574 = vpop.f32.mrb[0].mxu0
      %v9575 = vadd.f32 %v8331, %v9574
      %v9576 = vpop.f32.mrb[0].mxu0
      %9577 = vmatprep.mubr.bf16.mxu0 %v8876
      %9578 = vmatmul.mubr.bf16.gmra.mrb[0].mxu0 %v8868
      %v9579 = vpop.f32.mrb[0].mxu0
      %v9580 = vadd.f32 %v8331, %v9579
      %v9581 = vpop.f32.mrb[0].mxu0
      %v9582 = vpop.f32.mrb[0].mxu0
      %v9583 = vadd.f32 %v8331, %v9582
      %v9584 = vpop.f32.mrb[0].mxu0
      %9585 = vmatprep.mubr.bf16.mxu0 %v8917
      %9586 = vmatmul.mubr.bf16.gmra.mrb[0].mxu0 %v8909
      %v9587 = vpop.f32.mrb[0].mxu0
      %v9588 = vadd.f32 %v8331, %v9587
      %v9589 = vpop.f32.mrb[0].mxu0
      %v9590 = vpop.f32.mrb[0].mxu0
      %v9591 = vadd.f32 %v8331, %v9590
      %v9592 = vpop.f32.mrb[0].mxu0
      %9593 = vmatprep.mubr.bf16.mxu0 %v8958
      %9594 = vmatmul.mubr.bf16.gmra.mrb[0].mxu0 %v8950
      %v9595 = vpop.f32.mrb[0].mxu0
      %v9596 = vadd.f32 %v8331, %v9595
      %v9597 = vpop.f32.mrb[0].mxu0
      %v9598 = vpop.f32.mrb[0].mxu0
      %v9599 = vadd.f32 %v8331, %v9598
      %v9600 = vpop.f32.mrb[0].mxu0
      %9601 = vmatprep.mubr.bf16.mxu0 %v8999
      %9602 = vmatmul.mubr.bf16.gmra.mrb[0].mxu0 %v8991
      %v9603 = vpop.f32.mrb[0].mxu0
      %v9604 = vadd.f32 %v8331, %v9603
      %v9605 = vpop.f32.mrb[0].mxu0
      %v9606 = vpop.f32.mrb[0].mxu0
      %v9607 = vadd.f32 %v8331, %v9606
      %v9608 = vpop.f32.mrb[0].mxu0
      %9609 = vmatprep.mubr.bf16.mxu0 %v9040
      %9610 = vmatmul.mubr.bf16.gmra.mrb[0].mxu0 %v9032
      %v9611 = vpop.f32.mrb[0].mxu0
      %v9612 = vadd.f32 %v8331, %v9611
      %v9613 = vpop.f32.mrb[0].mxu0
      %v9614 = vpop.f32.mrb[0].mxu0
      %v9615 = vadd.f32 %v8331, %v9614
      %v9616 = vpop.f32.mrb[0].mxu0
      %9617 = vmatprep.mubr.bf16.mxu0 %v9081
      %9618 = vmatmul.mubr.bf16.gmra.mrb[0].mxu0 %v9073
      %v9619 = vpop.f32.mrb[0].mxu0
      %v9620 = vadd.f32 %v8331, %v9619
      %v9621 = vpop.f32.mrb[0].mxu0
      %v9622 = vpop.f32.mrb[0].mxu0
      %v9623 = vadd.f32 %v8331, %v9622
      %v9624 = vpop.f32.mrb[0].mxu0
      %9625 = vdwg.mxu0
      %9626 = vmatprep.subr.bf16.mxu0 0
      %9627 = vmatpush1.bf16.msra.mxu0 %v9339
      %9628 = vmatprep.subr.bf16.mxu0 0
      %9629 = vmatpush1.bf16.msra.mxu0 %v9340
      %9630 = vmatprep.subr.bf16.mxu0 0
      %9631 = vmatpush1.bf16.msra.mxu0 %v9341
      %9632 = vmatprep.subr.bf16.mxu0 0
      %9633 = vmatpush1.bf16.msra.mxu0 %v9342
      %9634 = vmatprep.subr.bf16.mxu0 0
      %9635 = vmatpush1.bf16.msra.mxu0 %v9343
      %9636 = vmatprep.subr.bf16.mxu0 0
      %9637 = vmatpush1.bf16.msra.mxu0 %v9344
      %9638 = vmatprep.subr.bf16.mxu0 0
      %9639 = vmatpush1.bf16.msra.mxu0 %v9345
      %9640 = vmatprep.subr.bf16.mxu0 0
      %9641 = vmatpush1.bf16.msra.mxu0 %v9346
      %9642 = vmatprep.subr.bf16.mxu0 0
      %9643 = vmatpush1.bf16.msra.mxu0 %v9347
      %9644 = vmatprep.subr.bf16.mxu0 0
      %9645 = vmatpush1.bf16.msra.mxu0 %v9348
      %9646 = vmatprep.subr.bf16.mxu0 0
      %9647 = vmatpush1.bf16.msra.mxu0 %v9349
      %9648 = vmatprep.subr.bf16.mxu0 0
      %9649 = vmatpush1.bf16.msra.mxu0 %v9350
      %9650 = vmatprep.subr.bf16.mxu0 0
      %9651 = vmatpush1.bf16.msra.mxu0 %v9351
      %9652 = vmatprep.subr.bf16.mxu0 0
      %9653 = vmatpush1.bf16.msra.mxu0 %v9352
      %9654 = vmatprep.subr.bf16.mxu0 0
      %9655 = vmatpush1.bf16.msra.mxu0 %v9353
      %9656 = vmatprep.subr.bf16.mxu0 0
      %9657 = vmatpush1.bf16.msra.mxu0 %v9354
      %9658 = vmatprep.mubr.bf16.mxu0 %v8392
      %9659 = vmatmul.mubr.bf16.gmra.mrb[0].mxu0 %v8377
      %v9660 = vpop.f32.mrb[0].mxu0
      %v9661 = vadd.f32 %v9484, %v9660
      %v9662 = vpop.f32.mrb[0].mxu0
      %v9663 = vpop.f32.mrb[0].mxu0
      %v9664 = vadd.f32 %v9487, %v9663
      %v9665 = vpop.f32.mrb[0].mxu0
      %9666 = vmatprep.mubr.bf16.mxu0 %v8441
      %9667 = vmatmul.mubr.bf16.gmra.mrb[0].mxu0 %v8433
      %v9668 = vpop.f32.mrb[0].mxu0
      %v9669 = vadd.f32 %v9492, %v9668
      %v9670 = vpop.f32.mrb[0].mxu0
      %v9671 = vpop.f32.mrb[0].mxu0
      %v9672 = vadd.f32 %v9495, %v9671
      %v9673 = vpop.f32.mrb[0].mxu0
      %9674 = vmatprep.mubr.bf16.mxu0 %v8482
      %9675 = vmatmul.mubr.bf16.gmra.mrb[0].mxu0 %v8474
      %v9676 = vpop.f32.mrb[0].mxu0
      %v9677 = vadd.f32 %v9500, %v9676
      %v9678 = vpop.f32.mrb[0].mxu0
      %v9679 = vpop.f32.mrb[0].mxu0
      %v9680 = vadd.f32 %v9503, %v9679
      %v9681 = vpop.f32.mrb[0].mxu0
      %9682 = vmatprep.mubr.bf16.mxu0 %v8523
      %9683 = vmatmul.mubr.bf16.gmra.mrb[0].mxu0 %v8515
      %v9684 = vpop.f32.mrb[0].mxu0
      %v9685 = vadd.f32 %v9508, %v9684
      %v9686 = vpop.f32.mrb[0].mxu0
      %v9687 = vpop.f32.mrb[0].mxu0
      %v9688 = vadd.f32 %v9511, %v9687
      %v9689 = vpop.f32.mrb[0].mxu0
      %9690 = vmatprep.mubr.bf16.mxu0 %v8564
      %9691 = vmatmul.mubr.bf16.gmra.mrb[0].mxu0 %v8556
      %v9692 = vpop.f32.mrb[0].mxu0
      %v9693 = vadd.f32 %v9516, %v9692
      %v9694 = vpop.f32.mrb[0].mxu0
      %v9695 = vpop.f32.mrb[0].mxu0
      %v9696 = vadd.f32 %v9519, %v9695
      %v9697 = vpop.f32.mrb[0].mxu0
      %9698 = vmatprep.mubr.bf16.mxu0 %v8605
      %9699 = vmatmul.mubr.bf16.gmra.mrb[0].mxu0 %v8597
      %v9700 = vpop.f32.mrb[0].mxu0
      %v9701 = vadd.f32 %v9524, %v9700
      %v9702 = vpop.f32.mrb[0].mxu0
      %v9703 = vpop.f32.mrb[0].mxu0
      %v9704 = vadd.f32 %v9527, %v9703
      %v9705 = vpop.f32.mrb[0].mxu0
      %9706 = vmatprep.mubr.bf16.mxu0 %v8646
      %9707 = vmatmul.mubr.bf16.gmra.mrb[0].mxu0 %v8638
      %v9708 = vpop.f32.mrb[0].mxu0
      %v9709 = vadd.f32 %v9532, %v9708
      %v9710 = vpop.f32.mrb[0].mxu0
      %v9711 = vpop.f32.mrb[0].mxu0
      %v9712 = vadd.f32 %v9535, %v9711
      %v9713 = vpop.f32.mrb[0].mxu0
      %9714 = vmatprep.mubr.bf16.mxu0 %v8687
      %9715 = vmatmul.mubr.bf16.gmra.mrb[0].mxu0 %v8679
      %v9716 = vpop.f32.mrb[0].mxu0
      %v9717 = vadd.f32 %v9540, %v9716
      %v9718 = vpop.f32.mrb[0].mxu0
      %v9719 = vpop.f32.mrb[0].mxu0
      %v9720 = vadd.f32 %v9543, %v9719
      %v9721 = vpop.f32.mrb[0].mxu0
      %9722 = vmatprep.mubr.bf16.mxu0 %v8728
      %9723 = vmatmul.mubr.bf16.gmra.mrb[0].mxu0 %v8720
      %v9724 = vpop.f32.mrb[0].mxu0
      %v9725 = vadd.f32 %v9548, %v9724
      %v9726 = vpop.f32.mrb[0].mxu0
      %v9727 = vpop.f32.mrb[0].mxu0
      %v9728 = vadd.f32 %v9551, %v9727
      %v9729 = vpop.f32.mrb[0].mxu0
      %9730 = vmatprep.mubr.bf16.mxu0 %v8769
      %9731 = vmatmul.mubr.bf16.gmra.mrb[0].mxu0 %v8761
      %v9732 = vpop.f32.mrb[0].mxu0
      %v9733 = vadd.f32 %v9556, %v9732
      %v9734 = vpop.f32.mrb[0].mxu0
      %v9735 = vpop.f32.mrb[0].mxu0
      %v9736 = vadd.f32 %v9559, %v9735
      %v9737 = vpop.f32.mrb[0].mxu0
      %9738 = vmatprep.mubr.bf16.mxu0 %v8810
      %9739 = vmatmul.mubr.bf16.gmra.mrb[0].mxu0 %v8802
      %v9740 = vpop.f32.mrb[0].mxu0
      %v9741 = vadd.f32 %v9564, %v9740
      %v9742 = vpop.f32.mrb[0].mxu0
      %v9743 = vpop.f32.mrb[0].mxu0
      %v9744 = vadd.f32 %v9567, %v9743
      %v9745 = vpop.f32.mrb[0].mxu0
      %9746 = vmatprep.mubr.bf16.mxu0 %v8851
      %9747 = vmatmul.mubr.bf16.gmra.mrb[0].mxu0 %v8843
      %v9748 = vpop.f32.mrb[0].mxu0
      %v9749 = vadd.f32 %v9572, %v9748
      %v9750 = vpop.f32.mrb[0].mxu0
      %v9751 = vpop.f32.mrb[0].mxu0
      %v9752 = vadd.f32 %v9575, %v9751
      %v9753 = vpop.f32.mrb[0].mxu0
      %9754 = vmatprep.mubr.bf16.mxu0 %v8892
      %9755 = vmatmul.mubr.bf16.gmra.mrb[0].mxu0 %v8884
      %v9756 = vpop.f32.mrb[0].mxu0
      %v9757 = vadd.f32 %v9580, %v9756
      %v9758 = vpop.f32.mrb[0].mxu0
      %v9759 = vpop.f32.mrb[0].mxu0
      %v9760 = vadd.f32 %v9583, %v9759
      %v9761 = vpop.f32.mrb[0].mxu0
      %9762 = vmatprep.mubr.bf16.mxu0 %v8933
      %9763 = vmatmul.mubr.bf16.gmra.mrb[0].mxu0 %v8925
      %v9764 = vpop.f32.mrb[0].mxu0
      %v9765 = vadd.f32 %v9588, %v9764
      %v9766 = vpop.f32.mrb[0].mxu0
      %v9767 = vpop.f32.mrb[0].mxu0
      %v9768 = vadd.f32 %v9591, %v9767
      %v9769 = vpop.f32.mrb[0].mxu0
      %9770 = vmatprep.mubr.bf16.mxu0 %v8974
      %9771 = vmatmul.mubr.bf16.gmra.mrb[0].mxu0 %v8966
      %v9772 = vpop.f32.mrb[0].mxu0
      %v9773 = vadd.f32 %v9596, %v9772
      %v9774 = vpop.f32.mrb[0].mxu0
      %v9775 = vpop.f32.mrb[0].mxu0
      %v9776 = vadd.f32 %v9599, %v9775
      %v9777 = vpop.f32.mrb[0].mxu0
      %9778 = vmatprep.mubr.bf16.mxu0 %v9015
      %9779 = vmatmul.mubr.bf16.gmra.mrb[0].mxu0 %v9007
      %v9780 = vpop.f32.mrb[0].mxu0
      %v9781 = vadd.f32 %v9604, %v9780
      %v9782 = vpop.f32.mrb[0].mxu0
      %v9783 = vpop.f32.mrb[0].mxu0
      %v9784 = vadd.f32 %v9607, %v9783
      %v9785 = vpop.f32.mrb[0].mxu0
      %9786 = vmatprep.mubr.bf16.mxu0 %v9056
      %9787 = vmatmul.mubr.bf16.gmra.mrb[0].mxu0 %v9048
      %v9788 = vpop.f32.mrb[0].mxu0
      %v9789 = vadd.f32 %v9612, %v9788
      %v9790 = vpop.f32.mrb[0].mxu0
      %v9791 = vpop.f32.mrb[0].mxu0
      %v9792 = vadd.f32 %v9615, %v9791
      %v9793 = vpop.f32.mrb[0].mxu0
      %9794 = vmatprep.mubr.bf16.mxu0 %v9097
      %9795 = vmatmul.mubr.bf16.gmra.mrb[0].mxu0 %v9089
      %v9796 = vpop.f32.mrb[0].mxu0
      %v9797 = vadd.f32 %v9620, %v9796
      %v9798 = vpop.f32.mrb[0].mxu0
      %v9799 = vpop.f32.mrb[0].mxu0
      %v9800 = vadd.f32 %v9623, %v9799
      %v9801 = vpop.f32.mrb[0].mxu0
      %9802 = vdwg.mxu0
      %9803 = vmatprep.subr.bf16.mxu0 0
      %9804 = vmatpush1.bf16.msra.mxu0 %v9355
      %9805 = vmatprep.subr.bf16.mxu0 0
      %9806 = vmatpush1.bf16.msra.mxu0 %v9356
      %9807 = vmatprep.subr.bf16.mxu0 0
      %9808 = vmatpush1.bf16.msra.mxu0 %v9357
      %9809 = vmatprep.subr.bf16.mxu0 0
      %9810 = vmatpush1.bf16.msra.mxu0 %v9358
      %9811 = vmatprep.subr.bf16.mxu0 0
      %9812 = vmatpush1.bf16.msra.mxu0 0
      %9813 = vmatprep.subr.bf16.mxu0 0
      %9814 = vmatpush1.bf16.msra.mxu0 0
      %9815 = vmatprep.subr.bf16.mxu0 0
      %9816 = vmatpush1.bf16.msra.mxu0 0
      %9817 = vmatprep.subr.bf16.mxu0 0
      %9818 = vmatpush1.bf16.msra.mxu0 0
      %9819 = vmatprep.subr.bf16.mxu0 0
      %9820 = vmatpush1.bf16.msra.mxu0 0
      %9821 = vmatprep.subr.bf16.mxu0 0
      %9822 = vmatpush1.bf16.msra.mxu0 0
      %9823 = vmatprep.subr.bf16.mxu0 0
      %9824 = vmatpush1.bf16.msra.mxu0 0
      %9825 = vmatprep.subr.bf16.mxu0 0
      %9826 = vmatpush1.bf16.msra.mxu0 0
      %9827 = vmatprep.subr.bf16.mxu0 0
      %9828 = vmatpush1.bf16.msra.mxu0 0
      %9829 = vmatprep.subr.bf16.mxu0 0
      %9830 = vmatpush1.bf16.msra.mxu0 0
      %9831 = vmatprep.subr.bf16.mxu0 0
      %9832 = vmatpush1.bf16.msra.mxu0 0
      %9833 = vmatprep.subr.bf16.mxu0 0
      %9834 = vmatpush1.bf16.msra.mxu0 0
      %9835 = vmatprep.mubr.bf16.mxu0 0
      %9836 = vmatmul.mubr.bf16.gmra.mrb[0].mxu0 %v9396
      %v9837 = vpop.f32.mrb[0].mxu0
      %v9838 = vadd.f32 %v9661, %v9837
      %v9839 = vpop.f32.mrb[0].mxu0
      %v9840 = vpop.f32.mrb[0].mxu0
      %v9841 = vadd.f32 %v9664, %v9840
      %v9842 = vpop.f32.mrb[0].mxu0
      %9843 = vmatprep.mubr.bf16.mxu0 0
      %9844 = vmatmul.mubr.bf16.gmra.mrb[0].mxu0 %v9399
      %v9845 = vpop.f32.mrb[0].mxu0
      %v9846 = vadd.f32 %v9669, %v9845
      %v9847 = vpop.f32.mrb[0].mxu0
      %v9848 = vpop.f32.mrb[0].mxu0
      %v9849 = vadd.f32 %v9672, %v9848
      %v9850 = vpop.f32.mrb[0].mxu0
      %9851 = vmatprep.mubr.bf16.mxu0 0
      %9852 = vmatmul.mubr.bf16.gmra.mrb[0].mxu0 %v9402
      %v9853 = vpop.f32.mrb[0].mxu0
      %v9854 = vadd.f32 %v9677, %v9853
      %v9855 = vpop.f32.mrb[0].mxu0
      %v9856 = vpop.f32.mrb[0].mxu0
      %v9857 = vadd.f32 %v9680, %v9856
      %v9858 = vpop.f32.mrb[0].mxu0
      %9859 = vmatprep.mubr.bf16.mxu0 0
      %9860 = vmatmul.mubr.bf16.gmra.mrb[0].mxu0 %v9405
      %v9861 = vpop.f32.mrb[0].mxu0
      %v9862 = vadd.f32 %v9685, %v9861
      %v9863 = vpop.f32.mrb[0].mxu0
      %v9864 = vpop.f32.mrb[0].mxu0
      %v9865 = vadd.f32 %v9688, %v9864
      %v9866 = vpop.f32.mrb[0].mxu0
      %9867 = vmatprep.mubr.bf16.mxu0 0
      %9868 = vmatmul.mubr.bf16.gmra.mrb[0].mxu0 %v9408
      %v9869 = vpop.f32.mrb[0].mxu0
      %v9870 = vadd.f32 %v9693, %v9869
      %v9871 = vpop.f32.mrb[0].mxu0
      %v9872 = vpop.f32.mrb[0].mxu0
      %v9873 = vadd.f32 %v9696, %v9872
      %v9874 = vpop.f32.mrb[0].mxu0
      %9875 = vmatprep.mubr.bf16.mxu0 0
      %9876 = vmatmul.mubr.bf16.gmra.mrb[0].mxu0 %v9411
      %v9877 = vpop.f32.mrb[0].mxu0
      %v9878 = vadd.f32 %v9701, %v9877
      %v9879 = vpop.f32.mrb[0].mxu0
      %v9880 = vpop.f32.mrb[0].mxu0
      %v9881 = vadd.f32 %v9704, %v9880
      %v9882 = vpop.f32.mrb[0].mxu0
      %9883 = vmatprep.mubr.bf16.mxu0 0
      %9884 = vmatmul.mubr.bf16.gmra.mrb[0].mxu0 %v9414
      %v9885 = vpop.f32.mrb[0].mxu0
      %v9886 = vadd.f32 %v9709, %v9885
      %v9887 = vpop.f32.mrb[0].mxu0
      %v9888 = vpop.f32.mrb[0].mxu0
      %v9889 = vadd.f32 %v9712, %v9888
      %v9890 = vpop.f32.mrb[0].mxu0
      %9891 = vmatprep.mubr.bf16.mxu0 0
      %9892 = vmatmul.mubr.bf16.gmra.mrb[0].mxu0 %v9417
      %v9893 = vpop.f32.mrb[0].mxu0
      %v9894 = vadd.f32 %v9717, %v9893
      %v9895 = vpop.f32.mrb[0].mxu0
      %v9896 = vpop.f32.mrb[0].mxu0
      %v9897 = vadd.f32 %v9720, %v9896
      %v9898 = vpop.f32.mrb[0].mxu0
      %9899 = vmatprep.mubr.bf16.mxu0 0
      %9900 = vmatmul.mubr.bf16.gmra.mrb[0].mxu0 %v9420
      %v9901 = vpop.f32.mrb[0].mxu0
      %v9902 = vadd.f32 %v9725, %v9901
      %v9903 = vpop.f32.mrb[0].mxu0
      %v9904 = vpop.f32.mrb[0].mxu0
      %v9905 = vadd.f32 %v9728, %v9904
      %v9906 = vpop.f32.mrb[0].mxu0
      %9907 = vmatprep.mubr.bf16.mxu0 0
      %9908 = vmatmul.mubr.bf16.gmra.mrb[0].mxu0 %v9423
      %v9909 = vpop.f32.mrb[0].mxu0
      %v9910 = vadd.f32 %v9733, %v9909
      %v9911 = vpop.f32.mrb[0].mxu0
      %v9912 = vpop.f32.mrb[0].mxu0
      %v9913 = vadd.f32 %v9736, %v9912
      %v9914 = vpop.f32.mrb[0].mxu0
      %9915 = vmatprep.mubr.bf16.mxu0 0
      %9916 = vmatmul.mubr.bf16.gmra.mrb[0].mxu0 %v9426
      %v9917 = vpop.f32.mrb[0].mxu0
      %v9918 = vadd.f32 %v9741, %v9917
      %v9919 = vpop.f32.mrb[0].mxu0
      %v9920 = vpop.f32.mrb[0].mxu0
      %v9921 = vadd.f32 %v9744, %v9920
      %v9922 = vpop.f32.mrb[0].mxu0
      %9923 = vmatprep.mubr.bf16.mxu0 0
      %9924 = vmatmul.mubr.bf16.gmra.mrb[0].mxu0 %v9429
      %v9925 = vpop.f32.mrb[0].mxu0
      %v9926 = vadd.f32 %v9749, %v9925
      %v9927 = vpop.f32.mrb[0].mxu0
      %v9928 = vpop.f32.mrb[0].mxu0
      %v9929 = vadd.f32 %v9752, %v9928
      %v9930 = vpop.f32.mrb[0].mxu0
      %9931 = vmatprep.mubr.bf16.mxu0 0
      %9932 = vmatmul.mubr.bf16.gmra.mrb[0].mxu0 %v9432
      %v9933 = vpop.f32.mrb[0].mxu0
      %v9934 = vadd.f32 %v9757, %v9933
      %v9935 = vpop.f32.mrb[0].mxu0
      %v9936 = vpop.f32.mrb[0].mxu0
      %v9937 = vadd.f32 %v9760, %v9936
      %v9938 = vpop.f32.mrb[0].mxu0
      %9939 = vmatprep.mubr.bf16.mxu0 0
      %9940 = vmatmul.mubr.bf16.gmra.mrb[0].mxu0 %v9435
      %v9941 = vpop.f32.mrb[0].mxu0
      %v9942 = vadd.f32 %v9765, %v9941
      %v9943 = vpop.f32.mrb[0].mxu0
      %v9944 = vpop.f32.mrb[0].mxu0
      %v9945 = vadd.f32 %v9768, %v9944
      %v9946 = vpop.f32.mrb[0].mxu0
      %9947 = vmatprep.mubr.bf16.mxu0 0
      %9948 = vmatmul.mubr.bf16.gmra.mrb[0].mxu0 %v9438
      %v9949 = vpop.f32.mrb[0].mxu0
      %v9950 = vadd.f32 %v9773, %v9949
      %v9951 = vpop.f32.mrb[0].mxu0
      %v9952 = vpop.f32.mrb[0].mxu0
      %v9953 = vadd.f32 %v9776, %v9952
      %v9954 = vpop.f32.mrb[0].mxu0
      %9955 = vmatprep.mubr.bf16.mxu0 0
      %9956 = vmatmul.mubr.bf16.gmra.mrb[0].mxu0 %v9441
      %v9957 = vpop.f32.mrb[0].mxu0
      %v9958 = vadd.f32 %v9781, %v9957
      %v9959 = vpop.f32.mrb[0].mxu0
      %v9960 = vpop.f32.mrb[0].mxu0
      %v9961 = vadd.f32 %v9784, %v9960
      %v9962 = vpop.f32.mrb[0].mxu0
      %9963 = vmatprep.mubr.bf16.mxu0 0
      %9964 = vmatmul.mubr.bf16.gmra.mrb[0].mxu0 %v9444
      %v9965 = vpop.f32.mrb[0].mxu0
      %v9966 = vadd.f32 %v9789, %v9965
      %v9967 = vpop.f32.mrb[0].mxu0
      %v9968 = vpop.f32.mrb[0].mxu0
      %v9969 = vadd.f32 %v9792, %v9968
      %v9970 = vpop.f32.mrb[0].mxu0
      %9971 = vmatprep.mubr.bf16.mxu0 0
      %9972 = vmatmul.mubr.bf16.gmra.mrb[0].mxu0 %v9447
      %v9973 = vpop.f32.mrb[0].mxu0
      %v9974 = vadd.f32 %v9797, %v9973
      %v9975 = vpop.f32.mrb[0].mxu0
      %v9976 = vpop.f32.mrb[0].mxu0
      %v9977 = vadd.f32 %v9800, %v9976
      %v9978 = vpop.f32.mrb[0].mxu0
      %9979 = vdwg.mxu0
      %v9980 = vmul.f32 %v5428, %v9838
      %v9981 = vmul.f32 %v5431, %v9841
      %v9982 = vmul.f32 %v5436, %v9846
      %v9983 = vmul.f32 %v5439, %v9849
      %v9984 = vmul.f32 %v5444, %v9854
      %v9985 = vmul.f32 %v5447, %v9857
      %v9986 = vmul.f32 %v5452, %v9862
      %v9987 = vmul.f32 %v5455, %v9865
      %v9988 = vmul.f32 %v5460, %v9870
      %v9989 = vmul.f32 %v5463, %v9873
      %v9990 = vmul.f32 %v5468, %v9878
      %v9991 = vmul.f32 %v5471, %v9881
      %v9992 = vmul.f32 %v5476, %v9886
      %v9993 = vmul.f32 %v5479, %v9889
      %v9994 = vmul.f32 %v5484, %v9894
      %v9995 = vmul.f32 %v5487, %v9897
      %v9996 = vmul.f32 %v5492, %v9902
      %v9997 = vmul.f32 %v5495, %v9905
      %v9998 = vmul.f32 %v5500, %v9910
      %v9999 = vmul.f32 %v5503, %v9913
      %v10000 = vmul.f32 %v5508, %v9918
      %v10001 = vmul.f32 %v5511, %v9921
      %v10002 = vmul.f32 %v5516, %v9926
      %v10003 = vmul.f32 %v5519, %v9929
      %v10004 = vmul.f32 %v5524, %v9934
      %v10005 = vmul.f32 %v5527, %v9937
      %v10006 = vmul.f32 %v5532, %v9942
      %v10007 = vmul.f32 %v5535, %v9945
      %v10008 = vmul.f32 %v5540, %v9950
      %v10009 = vmul.f32 %v5543, %v9953
      %v10010 = vmul.f32 %v5548, %v9958
      %v10011 = vmul.f32 %v5551, %v9961
      %v10012 = vmul.f32 %v5556, %v9966
      %v10013 = vmul.f32 %v5559, %v9969
      %v10014 = vmul.f32 %v5564, %v9974
      %v10015 = vmul.f32 %v5567, %v9977
      %vm10053 = vcmask 1044480
      %v10054 = vrot.slane %v917, 3
      %v10055 = vrot.slane %v918, 3
      %v10056 = vsel %vm10053, %v10054, %v10055
      %v10057 = vrot.slane %v919, 3
      %v10058 = vsel %vm10053, %v10055, %v10057
      %v10059 = vrot.slane %v920, 3
      %v10060 = vsel %vm10053, %v10057, %v10059
      %v10061 = vrot.slane %v921, 3
      %v10062 = vsel %vm10053, %v10059, %v10061
      %v10063 = vrot.slane %v922, 3
      %v10064 = vsel %vm10053, %v10061, %v10063
      %v10065 = vrot.slane %v923, 3
      %v10066 = vsel %vm10053, %v10063, %v10065
      %v10067 = vrot.slane %v924, 3
      %v10068 = vsel %vm10053, %v10065, %v10067
      %v10069 = vrot.slane %v925, 3
      %v10070 = vsel %vm10053, %v10067, %v10069
      %v10071 = vrot.slane %v926, 3
      %v10072 = vsel %vm10053, %v10069, %v10071
      %v10073 = vrot.slane %v927, 3
      %v10074 = vsel %vm10053, %v10071, %v10073
      %v10075 = vrot.slane %v928, 3
      %v10076 = vsel %vm10053, %v10073, %v10075
      %v10077 = vrot.slane %v929, 3
      %v10078 = vsel %vm10053, %v10075, %v10077
      %v10079 = vrot.slane %v930, 3
      %v10080 = vsel %vm10053, %v10077, %v10079
      %v10081 = vrot.slane %v931, 3
      %v10082 = vsel %vm10053, %v10079, %v10081
      %v10083 = vrot.slane %v932, 3
      %v10084 = vsel %vm10053, %v10081, %v10083
      %v10085 = vrot.slane %v933, 3
      %v10086 = vsel %vm10053, %v10083, %v10085
      %v10087 = vrot.slane %v934, 3
      %v10088 = vsel %vm10053, %v10085, %v10087
      %v10089 = vrot.slane %v935, 3
      %v10090 = vsel %vm10053, %v10087, %v10089
      %v10091 = vrot.slane %v936, 3
      %v10092 = vsel %vm10053, %v10089, %v10091
      %v10093 = vrot.slane %v937, 3
      %v10094 = vsel %vm10053, %v10091, %v10093
      %v10095 = vrot.slane %v938, 3
      %v10096 = vsel %vm10053, %v10093, %v10095
      %v10097 = vrot.slane %v939, 3
      %v10098 = vsel %vm10053, %v10095, %v10097
      %v10099 = vrot.slane %v940, 3
      %v10100 = vsel %vm10053, %v10097, %v10099
      %v10101 = vrot.slane %v941, 3
      %v10102 = vsel %vm10053, %v10099, %v10101
      %v10103 = vrot.slane %v942, 3
      %v10104 = vsel %vm10053, %v10101, %v10103
      %v10105 = vrot.slane %v943, 3
      %v10106 = vsel %vm10053, %v10103, %v10105
      %v10107 = vrot.slane %v944, 3
      %v10108 = vsel %vm10053, %v10105, %v10107
      %v10109 = vrot.slane %v945, 3
      %v10110 = vsel %vm10053, %v10107, %v10109
      %v10111 = vrot.slane %v946, 3
      %v10112 = vsel %vm10053, %v10109, %v10111
      %v10113 = vrot.slane %v947, 3
      %v10114 = vsel %vm10053, %v10111, %v10113
      %v10115 = vrot.slane %v948, 3
      %v10116 = vsel %vm10053, %v10113, %v10115
      %v10117 = vrot.slane %v949, 3
      %v10118 = vsel %vm10053, %v10115, %v10117
      %v10119 = vrot.slane %v950, 3
      %v10120 = vsel %vm10053, %v10117, %v10119
      %v10121 = vrot.slane %v951, 3
      %v10122 = vsel %vm10053, %v10119, %v10121
      %v10123 = vrot.slane %v952, 3
      %v10124 = vsel %vm10053, %v10121, %v10123
      %v10125 = vrot.slane %v953, 3
      %v10126 = vsel %vm10053, %v10123, %v10125
      %v10163 = vadd.f32 %v9980, %v10056
      %v10164 = vadd.f32 %v9981, %v10058
      %v10165 = vadd.f32 %v9982, %v10060
      %v10166 = vadd.f32 %v9983, %v10062
      %v10167 = vadd.f32 %v9984, %v10064
      %v10168 = vadd.f32 %v9985, %v10066
      %v10169 = vadd.f32 %v9986, %v10068
      %v10170 = vadd.f32 %v9987, %v10070
      %v10171 = vadd.f32 %v9988, %v10072
      %v10172 = vadd.f32 %v9989, %v10074
      %v10173 = vadd.f32 %v9990, %v10076
      %v10174 = vadd.f32 %v9991, %v10078
      %v10175 = vadd.f32 %v9992, %v10080
      %v10176 = vadd.f32 %v9993, %v10082
      %v10177 = vadd.f32 %v9994, %v10084
      %v10178 = vadd.f32 %v9995, %v10086
      %v10179 = vadd.f32 %v9996, %v10088
      %v10180 = vadd.f32 %v9997, %v10090
      %v10181 = vadd.f32 %v9998, %v10092
      %v10182 = vadd.f32 %v9999, %v10094
      %v10183 = vadd.f32 %v10000, %v10096
      %v10184 = vadd.f32 %v10001, %v10098
      %v10185 = vadd.f32 %v10002, %v10100
      %v10186 = vadd.f32 %v10003, %v10102
      %v10187 = vadd.f32 %v10004, %v10104
      %v10188 = vadd.f32 %v10005, %v10106
      %v10189 = vadd.f32 %v10006, %v10108
      %v10190 = vadd.f32 %v10007, %v10110
      %v10191 = vadd.f32 %v10008, %v10112
      %v10192 = vadd.f32 %v10009, %v10114
      %v10193 = vadd.f32 %v10010, %v10116
      %v10194 = vadd.f32 %v10011, %v10118
      %v10195 = vadd.f32 %v10012, %v10120
      %v10196 = vadd.f32 %v10013, %v10122
      %v10197 = vadd.f32 %v10014, %v10124
      %v10198 = vadd.f32 %v10015, %v10126
      %10199 = vst.msk [vmem:[%s217] sm:$0xff] %vm219, %v10163
      %10200 = vst.msk [vmem:[%s217 + $0x8] sm:$0xff] %vm219, %v10164
      %10201 = vst.msk [vmem:[%s217 + $0x10] sm:$0xff] %vm219, %v10165
      %10202 = vst.msk [vmem:[%s217 + $0x18] sm:$0xff] %vm219, %v10166
      %10203 = vst.msk [vmem:[%s217 + $0x20] sm:$0xff] %vm219, %v10167
      %10204 = vst.msk [vmem:[%s217 + $0x28] sm:$0xff] %vm219, %v10168
      %10205 = vst.msk [vmem:[%s217 + $0x30] sm:$0xff] %vm219, %v10169
      %10206 = vst.msk [vmem:[%s217 + $0x38] sm:$0xff] %vm219, %v10170
      %10207 = vst.msk [vmem:[%s217 + $0x40] sm:$0xff] %vm219, %v10171
      %10208 = vst.msk [vmem:[%s217 + $0x48] sm:$0xff] %vm219, %v10172
      %10209 = vst.msk [vmem:[%s217 + $0x50] sm:$0xff] %vm219, %v10173
      %10210 = vst.msk [vmem:[%s217 + $0x58] sm:$0xff] %vm219, %v10174
      %10211 = vst.msk [vmem:[%s217 + $0x60] sm:$0xff] %vm219, %v10175
      %10212 = vst.msk [vmem:[%s217 + $0x68] sm:$0xff] %vm219, %v10176
      %10213 = vst.msk [vmem:[%s217 + $0x70] sm:$0xff] %vm219, %v10177
      %10214 = vst.msk [vmem:[%s217 + $0x78] sm:$0xff] %vm219, %v10178
      %10215 = vst.msk [vmem:[%s217 + $0x80] sm:$0xff] %vm219, %v10179
      %10216 = vst.msk [vmem:[%s217 + $0x88] sm:$0xff] %vm219, %v10180
      %10217 = vst.msk [vmem:[%s217 + $0x90] sm:$0xff] %vm219, %v10181
      %10218 = vst.msk [vmem:[%s217 + $0x98] sm:$0xff] %vm219, %v10182
      %10219 = vst.msk [vmem:[%s217 + $0xa0] sm:$0xff] %vm219, %v10183
      %10220 = vst.msk [vmem:[%s217 + $0xa8] sm:$0xff] %vm219, %v10184
      %10221 = vst.msk [vmem:[%s217 + $0xb0] sm:$0xff] %vm219, %v10185
      %10222 = vst.msk [vmem:[%s217 + $0xb8] sm:$0xff] %vm219, %v10186
      %10223 = vst.msk [vmem:[%s217 + $0xc0] sm:$0xff] %vm219, %v10187
      %10224 = vst.msk [vmem:[%s217 + $0xc8] sm:$0xff] %vm219, %v10188
      %10225 = vst.msk [vmem:[%s217 + $0xd0] sm:$0xff] %vm219, %v10189
      %10226 = vst.msk [vmem:[%s217 + $0xd8] sm:$0xff] %vm219, %v10190
      %10227 = vst.msk [vmem:[%s217 + $0xe0] sm:$0xff] %vm219, %v10191
      %10228 = vst.msk [vmem:[%s217 + $0xe8] sm:$0xff] %vm219, %v10192
      %10229 = vst.msk [vmem:[%s217 + $0xf0] sm:$0xff] %vm219, %v10193
      %10230 = vst.msk [vmem:[%s217 + $0xf8] sm:$0xff] %vm219, %v10194
      %10231 = vst.msk [vmem:[%s217 + $0x100] sm:$0xff] %vm219, %v10195
      %10232 = vst.msk [vmem:[%s217 + $0x108] sm:$0xff] %vm219, %v10196
      %10233 = vst.msk [vmem:[%s217 + $0x110] sm:$0xff] %vm219, %v10197
      %10234 = vst.msk [vmem:[%s217 + $0x118] sm:$0xff] %vm219, %v10198
      %p10235 = scmp.lt.s32.totalorder %s15, 1
      %s10236 = scalar_select %p10235, %s15, 1
      %s10237 = smul.addr %s10236, 36
      %s10238 = smul.addr %s10237, 8
      %s10239 = scalar_lea.vmem %s4, %s10238
      // Predicated region
      $region37: #{tpu_custom_call.1} parent=35 // pred_check
        %p10240 = pneg %p127
      $region38: #{tpu_custom_call.1} parent=35 // pred_check_branch
        %10242 = sbr.rel (%p10240) target = $region40
      $region39: #{tpu_custom_call.1} parent=35 // pred_region
        _
      $region40: #{tpu_custom_call.1} parent=35 // pred_fallthru
        _
    $region36: #{tpu_custom_call.1} parent=5 // pred_fallthru
      _
    %p10243 = scmp.le.s32.totalorder 2, %s10
    // Predicated region
    $region41: #{tpu_custom_call.1} parent=5 // pred_check
      %p10244 = pneg %p10243
    $region42: #{tpu_custom_call.1} parent=5 // pred_check_branch
      %10246 = sbr.rel (%p10244) target = $region44
    $region43: #{tpu_custom_call.1} parent=5 // pred_region
      %s10247 = ssub.s32 %s10, 2
      // Predicated region
      $region45: #{tpu_custom_call.1} parent=43 // pred_check
        %p10248 = pneg %p133
      $region46: #{tpu_custom_call.1} parent=43 // pred_check_branch
        %10250 = sbr.rel (%p10248) target = $region48
      $region47: #{tpu_custom_call.1} parent=43 // pred_region
        %p10251 = scmp.lt.s32.totalorder %s16, 1
        %s10252 = scalar_select %p10251, %s16, 1
        %s10253 = smul.addr %s10252, 36
        %s10254 = smul.addr %s10253, 8
        %s10255 = scalar_lea.vmem %s4, %s10254
      $region48: #{tpu_custom_call.1} parent=43 // pred_fallthru
        _
    $region44: #{tpu_custom_call.1} parent=5 // pred_fallthru
      _
  $region6: #{tpu_custom_call.1} parent=0 // loop_footer
    %s14 = sadd.s32 1, %s10
  $region7: #{tpu_custom_call.1} parent=0 // loop_footer_branch
    %9 = sbr.rel target = $region3
  $region8: #{tpu_custom_call.1} parent=0 // loop_exit
    _

</llo_original>
